<compile_context>
chip_gen: v6e
topology: v6e:2x2x1
jax: 0.10.0
libtpu: 0.0.40
codegen_flags: <defaults>
</compile_context>

<pallas_src>
import functools
import math

import jax
import jax.numpy as jnp
from jax.experimental import pallas as pl
from jax.experimental.pallas import tpu as pltpu


LN_EPS = 1e-6
SIGMA_MIN = 1e-4


# ----------------------------------------------------------------------------
# in-kernel helpers
# ----------------------------------------------------------------------------

def _mxu(a, w):
    """bf16 x bf16 matmul with f32 accumulation on the MXU."""
    return jnp.dot(a.astype(jnp.bfloat16), w.astype(jnp.bfloat16),
                   preferred_element_type=jnp.float32)


def _ln(x, eps=LN_EPS):
    mu = jnp.mean(x, axis=-1, keepdims=True)
    var = jnp.mean((x - mu) * (x - mu), axis=-1, keepdims=True)
    return (x - mu) * jax.lax.rsqrt(var + eps)


# ----------------------------------------------------------------------------
# Kernel 1: fused front-end + CFM sampling prep
# ----------------------------------------------------------------------------

def _prep_kernel(x_ref, f0_ref, spk_ref, y_ref, z_ref, tval_ref, tfeat_ref, mcol_ref,
                 uw_ref, ub_ref, fw_ref, fb_ref, sw_ref, sb_ref,
                 mw_ref, mb_ref, tw1_ref, tb1_ref, tw2_ref, tb2_ref,
                 h0_ref, cact_ref, u_ref):
    x = x_ref[0]                        # (T, Cin)
    y = y_ref[0]                        # (T, M)
    z = z_ref[0]                        # (T, M)
    tv = tval_ref[0]                    # (1, 1)
    mcol = mcol_ref[0]                  # (T, 1)

    # conditional flow-matching interpolation and target vector field
    yt = (1.0 - (1.0 - SIGMA_MIN) * tv) * z + tv * y
    u_ref[0] = y - (1.0 - SIGMA_MIN) * z

    # unit_embed(x) -> ppg features, mel_proj(yt); h0 = concat(mel, ppg) * mask
    mu = _mxu(x, uw_ref[...]) + ub_ref[...]              # (T, Pp)
    mel = _mxu(yt, mw_ref[...]) + mb_ref[...]            # (T, Pm)
    h0_ref[0] = jnp.concatenate([mel, mu], axis=-1) * mcol

    # f0_embed(log(1 + f0/700))   (elementwise broadcast, stays f32)
    lf0 = jnp.log1p(f0_ref[0] / 700.0)                   # (T, 1)
    f0e = lf0 * fw_ref[...] + fb_ref[...]                # (T, H)

    # spk_proj + broadcast over time
    spk = _mxu(spk_ref[0], sw_ref[...]) + sb_ref[...]    # (1, H)
    cond = f0e + spk                                     # (T, H)

    # timestep MLP on the sinusoidal embedding
    te = _mxu(tfeat_ref[0], tw1_ref[...]) + tb1_ref[...]
    te = jax.nn.silu(te)
    te = _mxu(te, tw2_ref[...]) + tb2_ref[...]           # (1, H)

    cact_ref[0] = jax.nn.silu(cond + te)                 # (T, H)


def pallas_prep(params, x, f0, spk, y, z, tval, tfeat, mask_col):
    B, T, Cin = x.shape
    M = y.shape[-1]
    H = tfeat.shape[-1]
    S = spk.shape[-1]
    Pp = params["unit_w"].shape[1]
    Pm = params["mel_proj_w"].shape[1]

    spk3 = spk.reshape(B, 1, S).astype(jnp.float32)
    tval3 = tval.reshape(B, 1, 1).astype(jnp.float32)
    tfeat3 = tfeat.reshape(B, 1, H).astype(jnp.float32)

    row3 = lambda b: (b, 0, 0)
    w2 = lambda b: (0, 0)

    return pl.pallas_call(
        _prep_kernel,
        out_shape=(
            jax.ShapeDtypeStruct((B, T, Pm + Pp), jnp.float32),
            jax.ShapeDtypeStruct((B, T, H), jnp.float32),
            jax.ShapeDtypeStruct((B, T, M), jnp.float32),
        ),
        grid=(B,),
        in_specs=[
            pl.BlockSpec((1, T, Cin), row3),
            pl.BlockSpec((1, T, 1), row3),
            pl.BlockSpec((1, 1, S), row3),
            pl.BlockSpec((1, T, M), row3),
            pl.BlockSpec((1, T, M), row3),
            pl.BlockSpec((1, 1, 1), row3),
            pl.BlockSpec((1, 1, H), row3),
            pl.BlockSpec((1, T, 1), row3),
            # weight/bias blocks have constant index maps -> fetched once
            pl.BlockSpec((Cin, Pp), w2), pl.BlockSpec((1, Pp), w2),
            pl.BlockSpec((1, H), w2), pl.BlockSpec((1, H), w2),
            pl.BlockSpec((S, H), w2), pl.BlockSpec((1, H), w2),
            pl.BlockSpec((M, Pm), w2), pl.BlockSpec((1, Pm), w2),
            pl.BlockSpec((H, H), w2), pl.BlockSpec((1, H), w2),
            pl.BlockSpec((H, H), w2), pl.BlockSpec((1, H), w2),
        ],
        out_specs=(
            pl.BlockSpec((1, T, Pm + Pp), row3),
            pl.BlockSpec((1, T, H), row3),
            pl.BlockSpec((1, T, M), row3),
        ),
        compiler_params=pltpu.CompilerParams(dimension_semantics=("parallel",)),
    )(
        x.astype(jnp.float32), f0.astype(jnp.float32), spk3,
        y.astype(jnp.float32), z.astype(jnp.float32), tval3, tfeat3,
        mask_col.astype(jnp.float32),
        params["unit_w"], params["unit_b"],
        params["f0_w"], params["f0_b"],
        params["spk_w"], params["spk_b"],
        params["mel_proj_w"], params["mel_proj_b"],
        params["t_w1"], params["t_b1"],
        params["t_w2"], params["t_b2"],
    )


# ----------------------------------------------------------------------------
# Kernel 2: fully fused DiT block stack (grid = (batch, layer))
# ----------------------------------------------------------------------------

def _dit_block_kernel(h0_ref, cact_ref, mrow_ref, mcol_ref,
                      ada_w_ref, ada_b_ref, qkv_w_ref, qkv_b_ref,
                      proj_w_ref, proj_b_ref,
                      ffn_w1_ref, ffn_b1_ref, ffn_w2_ref, ffn_b2_ref,
                      h_ref, *, n_heads):
    layer = pl.program_id(1)

    # hidden state h stays resident in the output VMEM block across all layers
    @pl.when(layer == 0)
    def _():
        h_ref[...] = h0_ref[...]

    h = h_ref[0]                         # (T, H) f32
    cact = cact_ref[0]                   # (T, H)
    mrow = mrow_ref[0]                   # (1, T)
    mcol = mcol_ref[0]                   # (T, 1)

    H = h.shape[-1]
    dh = H // n_heads
    scale = 1.0 / math.sqrt(dh)

    # adaLN modulation (6H) from the activated conditioning
    ada = _mxu(cact, ada_w_ref[0]) + ada_b_ref[0]        # (T, 6H)
    sh1, sc1, g1, sh2, sc2, g2 = jnp.split(ada, 6, axis=-1)

    # --- attention ---
    a = _ln(h) * (1.0 + sc1) + sh1
    qkv = _mxu(a, qkv_w_ref[0]) + qkv_b_ref[0]           # (T, 3H): [q | k | v]

    neg = (1.0 - mrow) * (-1e9)                          # key-padding bias (1, T)
    heads = []
    for i in range(n_heads):                             # heads = lane slices
        q = qkv[:, i * dh:(i + 1) * dh]
        k = qkv[:, H + i * dh:H + (i + 1) * dh]
        v = qkv[:, 2 * H + i * dh:2 * H + (i + 1) * dh]
        s = jax.lax.dot_general(
            q.astype(jnp.bfloat16), k.astype(jnp.bfloat16),
            (((1,), (1,)), ((), ())),
            preferred_element_type=jnp.float32) * scale   # (T, T)
        s = s + neg
        s = s - jnp.max(s, axis=-1, keepdims=True)
        p = jnp.exp(s)
        p = p * pl.reciprocal(jnp.sum(p, axis=-1, keepdims=True), approx=True)
        heads.append(_mxu(p, v))                          # (T, dh)
    att = jnp.concatenate(heads, axis=-1)                 # (T, H)
    att = _mxu(att, proj_w_ref[0]) + proj_b_ref[0]
    h = h + g1 * att

    # --- feed-forward ---
    m2 = _ln(h) * (1.0 + sc2) + sh2
    f = _mxu(m2, ffn_w1_ref[0]) + ffn_b1_ref[0]
    f = jax.nn.gelu(f)
    f = _mxu(f, ffn_w2_ref[0]) + ffn_b2_ref[0]
    h_ref[0] = (h + g2 * f) * mcol


def pallas_dit_stack(params, cfg, h0, cact, mask_row, mask_col):
    B, T, H = h0.shape
    L = params["ada_w"].shape[0]
    F = params["ffn_w1"].shape[-1]

    act = lambda b, l: (b, 0, 0)     # per-batch blocks, resident across layers
    lay = lambda b, l: (l, 0, 0)     # per-layer weight slabs

    kern = functools.partial(_dit_block_kernel, n_heads=cfg["n_heads"])
    return pl.pallas_call(
        kern,
        out_shape=jax.ShapeDtypeStruct((B, T, H), jnp.float32),
        grid=(B, L),
        in_specs=[
            pl.BlockSpec((1, T, H), act),        # h0
            pl.BlockSpec((1, T, H), act),        # cact
            pl.BlockSpec((1, 1, T), act),        # mask (row layout)
            pl.BlockSpec((1, T, 1), act),        # mask (col layout)
            pl.BlockSpec((1, H, 6 * H), lay), pl.BlockSpec((1, 1, 6 * H), lay),
            pl.BlockSpec((1, H, 3 * H), lay), pl.BlockSpec((1, 1, 3 * H), lay),
            pl.BlockSpec((1, H, H), lay), pl.BlockSpec((1, 1, H), lay),
            pl.BlockSpec((1, H, F), lay), pl.BlockSpec((1, 1, F), lay),
            pl.BlockSpec((1, F, H), lay), pl.BlockSpec((1, 1, H), lay),
        ],
        out_specs=pl.BlockSpec((1, T, H), act),
        compiler_params=pltpu.CompilerParams(
            dimension_semantics=("parallel", "arbitrary")),
    )(h0, cact, mask_row.astype(jnp.float32), mask_col.astype(jnp.float32),
      params["ada_w"], params["ada_b"], params["qkv_w"], params["qkv_b"],
      params["proj_w"], params["proj_b"],
      params["ffn_w1"], params["ffn_b1"], params["ffn_w2"], params["ffn_b2"])


# ----------------------------------------------------------------------------
# Kernel 3: final adaLN + out projection fused with the squared-error reduction
# ----------------------------------------------------------------------------

def _finalize_kernel(h_ref, cact_ref, mcol_ref, u_ref,
                     adaf_w_ref, adaf_b_ref, out_w_ref, out_b_ref, sq_ref):
    b = pl.program_id(0)

    @pl.when(b == 0)
    def _():
        sq_ref[...] = jnp.zeros_like(sq_ref)

    h = h_ref[0]
    cact = cact_ref[0]
    mcol = mcol_ref[0]

    ada = _mxu(cact, adaf_w_ref[...]) + adaf_b_ref[...]          # (T, 2H)
    shf, scf = jnp.split(ada, 2, axis=-1)
    hf = _ln(h) * (1.0 + scf) + shf
    pred = (_mxu(hf, out_w_ref[...]) + out_b_ref[...]) * mcol    # (T, M)
    # NOTE: pred is masked, u is not (parity with the reference Matcha-style loss).
    d = pred - u_ref[0]
    sq_ref[...] += jnp.sum(d * d)[None, None]


def pallas_finalize_loss(params, h, cact, mask_col, u):
    B, T, H = h.shape
    M = u.shape[-1]

    row3 = lambda b: (b, 0, 0)
    w2 = lambda b: (0, 0)

    return pl.pallas_call(
        _finalize_kernel,
        out_shape=jax.ShapeDtypeStruct((1, 1), jnp.float32),
        grid=(B,),
        in_specs=[
            pl.BlockSpec((1, T, H), row3),
            pl.BlockSpec((1, T, H), row3),
            pl.BlockSpec((1, T, 1), row3),
            pl.BlockSpec((1, T, M), row3),
            pl.BlockSpec((H, 2 * H), w2), pl.BlockSpec((1, 2 * H), w2),
            pl.BlockSpec((H, M), w2), pl.BlockSpec((1, M), w2),
        ],
        out_specs=pl.BlockSpec((1, 1), lambda b: (0, 0)),   # resident accumulator
        compiler_params=pltpu.CompilerParams(dimension_semantics=("arbitrary",)),
    )(h, cact, mask_col.astype(jnp.float32), u,
      params["ada_f_w"], params["ada_f_b"], params["out_w"], params["out_b"])


# ----------------------------------------------------------------------------
# Plain-JAX glue (tiny host-side math) and orchestration
# ----------------------------------------------------------------------------

def timestep_embedding(t, dim, max_period=10000.0):
    half = dim // 2
    freqs = jnp.exp(
        -math.log(max_period) * jnp.arange(half, dtype=jnp.float32) / half)
    args = t.astype(jnp.float32)[:, None] * freqs[None, :]
    return jnp.concatenate([jnp.cos(args), jnp.sin(args)], axis=-1)


def comosvc_dit_forward(params, cfg, key, x, x_lengths, y, y_lengths, f0, spk_embd):
    x_lengths = x_lengths.astype(jnp.int32)   # kept for parity with the module
    y_lengths = y_lengths.astype(jnp.int32)

    B, T, M = y.shape
    H = cfg["hidden"]

    # sequence_mask(y_lengths, y.size(1))
    y_mask = (jnp.arange(T, dtype=jnp.int32)[None, :]
              < y_lengths[:, None]).astype(jnp.float32)          # (B, T)
    mask_col = y_mask[:, :, None]                                # (B, T, 1)
    mask_row = y_mask[:, None, :]                                # (B, 1, T)

    # CFM loss sampling: t ~ U[0,1] per batch row, z ~ N(0,1)
    kt, kz = jax.random.split(key)
    t = jax.random.uniform(kt, (B,), dtype=jnp.float32)
    z = jax.random.normal(kz, (B, T, M), dtype=jnp.float32)
    tfeat = timestep_embedding(t, H)

    h0, cact, u = pallas_prep(params, x, f0.reshape(B, -1, 1), spk_embd,
                              y, z, t, tfeat, mask_col)
    h = pallas_dit_stack(params, cfg, h0, cact, mask_row, mask_col)
    sq = pallas_finalize_loss(params, h, cact, mask_col, u)

    loss = sq[0, 0] / (jnp.sum(y_mask) * M)
    return loss


# ----------------------------------------------------------------------------
# Deterministic parameter init (matmul weights stored bf16, biases f32)
# ----------------------------------------------------------------------------

def init_params(key, cfg):
    H = cfg["hidden"]
    Pm = cfg["mel_proj_channels"]
    Pp = cfg["ppg_proj_channels"]
    M = cfg["mel_channels"]
    F = cfg["filter_channels"]
    Cin = cfg["input_channel"]
    S = cfg["speak_embedding_dim"]
    L = cfg["n_dec_layers"]

    keys = iter(jax.random.split(key, 64))

    def w(shape, scale=0.05, dtype=jnp.bfloat16):
        return (scale * jax.random.normal(next(keys), shape, jnp.float32)).astype(dtype)

    def b(*shape):
        return jnp.zeros(shape, jnp.float32)

    return dict(
        unit_w=w((Cin, Pp)), unit_b=b(1, Pp),
        f0_w=w((1, H), dtype=jnp.float32), f0_b=b(1, H),
        spk_w=w((S, H)), spk_b=b(1, H),
        mel_proj_w=w((M, Pm)), mel_proj_b=b(1, Pm),
        t_w1=w((H, H)), t_b1=b(1, H),
        t_w2=w((H, H)), t_b2=b(1, H),
        ada_f_w=w((H, 2 * H)), ada_f_b=b(1, 2 * H),
        out_w=w((H, M)), out_b=b(1, M),
        # stacked per-layer weights for the single fused DiT-stack kernel
        ada_w=w((L, H, 6 * H)), ada_b=b(L, 1, 6 * H),
        qkv_w=w((L, H, 3 * H)), qkv_b=b(L, 1, 3 * H),
        proj_w=w((L, H, H)), proj_b=b(L, 1, H),
        ffn_w1=w((L, H, F)), ffn_b1=b(L, 1, F),
        ffn_w2=w((L, F, H)), ffn_b2=b(L, 1, H),
    )


# ----------------------------------------------------------------------------
# Demo
# ----------------------------------------------------------------------------

if __name__ == "__main__":
    # small but lane-dense config (all feature dims multiples of 128)
    cfg = dict(
        input_channel=256,
        mel_channels=128,
        mel_proj_channels=128,
        ppg_proj_channels=128,
        filter_channels=1024,
        n_heads=2,
        n_dec_layers=2,
        kernel_size=3,
        p_dropout=0.1,
        speak_embedding_dim=256,
    )
    cfg["hidden"] = cfg["mel_proj_channels"] + cfg["ppg_proj_channels"]

    key = jax.random.PRNGKey(0)
    kp, kx, kf, ks, ky, kloss = jax.random.split(key, 6)
    params = init_params(kp, cfg)

    B, T = 2, 16
    x = jax.random.normal(kx, (B, T, cfg["input_channel"]), jnp.float32)
    f0 = 100.0 + 300.0 * jax.random.uniform(kf, (B, T, 1), jnp.float32)
    spk_embd = jax.random.normal(ks, (B, cfg["speak_embedding_dim"]), jnp.float32)
    y = jax.random.normal(ky, (B, T, cfg["mel_channels"]), jnp.float32)
    x_lengths = jnp.array([T, T - 4], jnp.int32)
    y_lengths = jnp.array([T, T - 4], jnp.int32)

    fwd = jax.jit(lambda p, k, *args: comosvc_dit_forward(p, cfg, k, *args))
    loss = fwd(params, kloss, x, x_lengths, y, y_lengths, f0, spk_embd)
    jax.block_until_ready(loss)
    assert loss.shape == () and bool(jnp.isfinite(loss))
    print("KERNEL_OK")
</pallas_src>

<mosaic_0001>
module attributes {stable_mosaic.version = 11 : i64} {
  func.func @_prep_kernel(%arg0: i32, %arg1: memref<1x16x256xf32, #tpu.memory_space<vmem>>, %arg2: memref<1x16x1xf32, #tpu.memory_space<vmem>>, %arg3: memref<1x1x256xf32, #tpu.memory_space<vmem>>, %arg4: memref<1x16x128xf32, #tpu.memory_space<vmem>>, %arg5: memref<1x16x128xf32, #tpu.memory_space<vmem>>, %arg6: memref<1x1x1xf32, #tpu.memory_space<vmem>>, %arg7: memref<1x1x256xf32, #tpu.memory_space<vmem>>, %arg8: memref<1x16x1xf32, #tpu.memory_space<vmem>>, %arg9: memref<256x128xbf16, #tpu.memory_space<vmem>>, %arg10: memref<1x128xf32, #tpu.memory_space<vmem>>, %arg11: memref<1x256xf32, #tpu.memory_space<vmem>>, %arg12: memref<1x256xf32, #tpu.memory_space<vmem>>, %arg13: memref<256x256xbf16, #tpu.memory_space<vmem>>, %arg14: memref<1x256xf32, #tpu.memory_space<vmem>>, %arg15: memref<128x128xbf16, #tpu.memory_space<vmem>>, %arg16: memref<1x128xf32, #tpu.memory_space<vmem>>, %arg17: memref<256x256xbf16, #tpu.memory_space<vmem>>, %arg18: memref<1x256xf32, #tpu.memory_space<vmem>>, %arg19: memref<256x256xbf16, #tpu.memory_space<vmem>>, %arg20: memref<1x256xf32, #tpu.memory_space<vmem>>, %arg21: memref<1x16x256xf32, #tpu.memory_space<vmem>>, %arg22: memref<1x16x256xf32, #tpu.memory_space<vmem>>, %arg23: memref<1x16x128xf32, #tpu.memory_space<vmem>>) attributes {dimension_semantics = [#tpu.dimension_semantics<parallel>], iteration_bounds = array<i64: 2>, scalar_prefetch = 0 : i64, scratch_operands = 0 : i64, tpu.core_type = #tpu.core_type<tc>, window_params = [{transform_indices = @transform_0, window_bounds = array<i64: 1, 16, 256>}, {transform_indices = @transform_1, window_bounds = array<i64: 1, 16, 1>}, {transform_indices = @transform_2, window_bounds = array<i64: 1, 1, 256>}, {transform_indices = @transform_3, window_bounds = array<i64: 1, 16, 128>}, {transform_indices = @transform_4, window_bounds = array<i64: 1, 16, 128>}, {transform_indices = @transform_5, window_bounds = array<i64: 1, 1, 1>}, {transform_indices = @transform_6, window_bounds = array<i64: 1, 1, 256>}, {transform_indices = @transform_7, window_bounds = array<i64: 1, 16, 1>}, {pipeline_mode = #tpu.pipeline_mode<synchronous>, transform_indices = @transform_8, window_bounds = array<i64: 256, 128>}, {pipeline_mode = #tpu.pipeline_mode<synchronous>, transform_indices = @transform_9, window_bounds = array<i64: 1, 128>}, {pipeline_mode = #tpu.pipeline_mode<synchronous>, transform_indices = @transform_10, window_bounds = array<i64: 1, 256>}, {pipeline_mode = #tpu.pipeline_mode<synchronous>, transform_indices = @transform_11, window_bounds = array<i64: 1, 256>}, {pipeline_mode = #tpu.pipeline_mode<synchronous>, transform_indices = @transform_12, window_bounds = array<i64: 256, 256>}, {pipeline_mode = #tpu.pipeline_mode<synchronous>, transform_indices = @transform_13, window_bounds = array<i64: 1, 256>}, {pipeline_mode = #tpu.pipeline_mode<synchronous>, transform_indices = @transform_14, window_bounds = array<i64: 128, 128>}, {pipeline_mode = #tpu.pipeline_mode<synchronous>, transform_indices = @transform_15, window_bounds = array<i64: 1, 128>}, {pipeline_mode = #tpu.pipeline_mode<synchronous>, transform_indices = @transform_16, window_bounds = array<i64: 256, 256>}, {pipeline_mode = #tpu.pipeline_mode<synchronous>, transform_indices = @transform_17, window_bounds = array<i64: 1, 256>}, {pipeline_mode = #tpu.pipeline_mode<synchronous>, transform_indices = @transform_18, window_bounds = array<i64: 256, 256>}, {pipeline_mode = #tpu.pipeline_mode<synchronous>, transform_indices = @transform_19, window_bounds = array<i64: 1, 256>}, {transform_indices = @transform_20, window_bounds = array<i64: 1, 16, 256>}, {transform_indices = @transform_21, window_bounds = array<i64: 1, 16, 256>}, {transform_indices = @transform_22, window_bounds = array<i64: 1, 16, 128>}]} {
    %c0 = arith.constant 0 : index
    %c0_0 = arith.constant 0 : index
    %c0_1 = arith.constant 0 : index
    %0 = vector.load %arg1[%c0, %c0_0, %c0_1] : memref<1x16x256xf32, #tpu.memory_space<vmem>>, vector<1x16x256xf32>
    %1 = vector.shape_cast %0 : vector<1x16x256xf32> to vector<16x256xf32>
    %c0_2 = arith.constant 0 : index
    %c0_3 = arith.constant 0 : index
    %c0_4 = arith.constant 0 : index
    %2 = vector.load %arg4[%c0_2, %c0_3, %c0_4] : memref<1x16x128xf32, #tpu.memory_space<vmem>>, vector<1x16x128xf32>
    %3 = vector.shape_cast %2 : vector<1x16x128xf32> to vector<16x128xf32>
    %c0_5 = arith.constant 0 : index
    %c0_6 = arith.constant 0 : index
    %c0_7 = arith.constant 0 : index
    %4 = vector.load %arg5[%c0_5, %c0_6, %c0_7] : memref<1x16x128xf32, #tpu.memory_space<vmem>>, vector<1x16x128xf32>
    %5 = vector.shape_cast %4 : vector<1x16x128xf32> to vector<16x128xf32>
    %c0_8 = arith.constant 0 : index
    %c0_9 = arith.constant 0 : index
    %c0_10 = arith.constant 0 : index
    %6 = vector.load %arg6[%c0_8, %c0_9, %c0_10] : memref<1x1x1xf32, #tpu.memory_space<vmem>>, vector<1x1x1xf32>
    %7 = vector.shape_cast %6 : vector<1x1x1xf32> to vector<1x1xf32>
    %c0_11 = arith.constant 0 : index
    %c0_12 = arith.constant 0 : index
    %c0_13 = arith.constant 0 : index
    %8 = vector.load %arg8[%c0_11, %c0_12, %c0_13] : memref<1x16x1xf32, #tpu.memory_space<vmem>>, vector<1x16x1xf32>
    %9 = vector.shape_cast %8 : vector<1x16x1xf32> to vector<16x1xf32>
    %cst = arith.constant 0.999899983 : f32
    %10 = vector.broadcast %cst : f32 to vector<1x1xf32>
    %11 = arith.mulf %10, %7 : vector<1x1xf32>
    %cst_14 = arith.constant 1.000000e+00 : f32
    %12 = vector.broadcast %cst_14 : f32 to vector<1x1xf32>
    %13 = arith.subf %12, %11 : vector<1x1xf32>
    %14 = vector.broadcast %13 : vector<1x1xf32> to vector<16x128xf32>
    %15 = arith.mulf %14, %5 : vector<16x128xf32>
    %16 = vector.broadcast %7 : vector<1x1xf32> to vector<16x128xf32>
    %17 = arith.mulf %16, %3 : vector<16x128xf32>
    %18 = arith.addf %15, %17 : vector<16x128xf32>
    %cst_15 = arith.constant 0.999899983 : f32
    %19 = vector.broadcast %cst_15 : f32 to vector<16x128xf32>
    %20 = arith.mulf %19, %5 : vector<16x128xf32>
    %21 = arith.subf %3, %20 : vector<16x128xf32>
    %c0_16 = arith.constant 0 : index
    %c0_17 = arith.constant 0 : index
    %c0_18 = arith.constant 0 : index
    %22 = vector.load %arg23[%c0_16, %c0_17, %c0_18] : memref<1x16x128xf32, #tpu.memory_space<vmem>>, vector<1x16x128xf32>
    %23 = vector.shape_cast %22 : vector<1x16x128xf32> to vector<16x128xf32>
    %24 = vector.shape_cast %21 : vector<16x128xf32> to vector<1x16x128xf32>
    tpu.vector_store %arg23[%c0_16, %c0_17, %c0_18], %24 {strides = array<i32>} : memref<1x16x128xf32, #tpu.memory_space<vmem>>, vector<1x16x128xf32>,
    %c0_19 = arith.constant 0 : index
    %c0_20 = arith.constant 0 : index
    %25 = vector.load %arg9[%c0_19, %c0_20] : memref<256x128xbf16, #tpu.memory_space<vmem>>, vector<256x128xbf16>
    %26 = arith.truncf %1 : vector<16x256xf32> to vector<16x256xbf16>
    %cst_21 = arith.constant dense<0.000000e+00> : vector<16x128xf32>
    %27 = tpu.matmul %26, %25, %cst_21 {dimension_numbers = #tpu.dot_dimension_numbers<[1], [0], [0], [1], [0, 0, 1, 1], [], []>} : vector<16x256xbf16>, vector<256x128xbf16>, vector<16x128xf32> -> vector<16x128xf32>
    %c0_22 = arith.constant 0 : index
    %c0_23 = arith.constant 0 : index
    %28 = vector.load %arg10[%c0_22, %c0_23] : memref<1x128xf32, #tpu.memory_space<vmem>>, vector<1x128xf32>
    %29 = vector.broadcast %28 : vector<1x128xf32> to vector<16x128xf32>
    %30 = arith.addf %27, %29 : vector<16x128xf32>
    %c0_24 = arith.constant 0 : index
    %c0_25 = arith.constant 0 : index
    %31 = vector.load %arg15[%c0_24, %c0_25] : memref<128x128xbf16, #tpu.memory_space<vmem>>, vector<128x128xbf16>
    %32 = arith.truncf %18 : vector<16x128xf32> to vector<16x128xbf16>
    %cst_26 = arith.constant dense<0.000000e+00> : vector<16x128xf32>
    %33 = tpu.matmul %32, %31, %cst_26 {dimension_numbers = #tpu.dot_dimension_numbers<[1], [0], [0], [1], [0, 0, 1, 1], [], []>} : vector<16x128xbf16>, vector<128x128xbf16>, vector<16x128xf32> -> vector<16x128xf32>
    %c0_27 = arith.constant 0 : index
    %c0_28 = arith.constant 0 : index
    %34 = vector.load %arg16[%c0_27, %c0_28] : memref<1x128xf32, #tpu.memory_space<vmem>>, vector<1x128xf32>
    %35 = vector.broadcast %34 : vector<1x128xf32> to vector<16x128xf32>
    %36 = arith.addf %33, %35 : vector<16x128xf32>
    %37 = tpu.concatenate %36, %30 in 1 : vector<16x128xf32>, vector<16x128xf32> -> vector<16x256xf32>
    %38 = vector.broadcast %9 : vector<16x1xf32> to vector<16x256xf32>
    %39 = arith.mulf %37, %38 : vector<16x256xf32>
    %c0_29 = arith.constant 0 : index
    %c0_30 = arith.constant 0 : index
    %c0_31 = arith.constant 0 : index
    %40 = vector.load %arg21[%c0_29, %c0_30, %c0_31] : memref<1x16x256xf32, #tpu.memory_space<vmem>>, vector<1x16x256xf32>
    %41 = vector.shape_cast %40 : vector<1x16x256xf32> to vector<16x256xf32>
    %42 = vector.shape_cast %39 : vector<16x256xf32> to vector<1x16x256xf32>
    tpu.vector_store %arg21[%c0_29, %c0_30, %c0_31], %42 {strides = array<i32>} : memref<1x16x256xf32, #tpu.memory_space<vmem>>, vector<1x16x256xf32>,
    %c0_32 = arith.constant 0 : index
    %c0_33 = arith.constant 0 : index
    %c0_34 = arith.constant 0 : index
    %43 = vector.load %arg2[%c0_32, %c0_33, %c0_34] : memref<1x16x1xf32, #tpu.memory_space<vmem>>, vector<1x16x1xf32>
    %44 = vector.shape_cast %43 : vector<1x16x1xf32> to vector<16x1xf32>
    %cst_35 = arith.constant 7.000000e+02 : f32
    %45 = vector.broadcast %cst_35 : f32 to vector<16x1xf32>
    %46 = arith.divf %44, %45 : vector<16x1xf32>
    %47 = math.log1p %46 : vector<16x1xf32>
    %c0_36 = arith.constant 0 : index
    %c0_37 = arith.constant 0 : index
    %48 = vector.load %arg11[%c0_36, %c0_37] : memref<1x256xf32, #tpu.memory_space<vmem>>, vector<1x256xf32>
    %49 = vector.broadcast %47 : vector<16x1xf32> to vector<16x256xf32>
    %50 = vector.broadcast %48 : vector<1x256xf32> to vector<16x256xf32>
    %51 = arith.mulf %49, %50 : vector<16x256xf32>
    %c0_38 = arith.constant 0 : index
    %c0_39 = arith.constant 0 : index
    %52 = vector.load %arg12[%c0_38, %c0_39] : memref<1x256xf32, #tpu.memory_space<vmem>>, vector<1x256xf32>
    %53 = vector.broadcast %52 : vector<1x256xf32> to vector<16x256xf32>
    %54 = arith.addf %51, %53 : vector<16x256xf32>
    %c0_40 = arith.constant 0 : index
    %c0_41 = arith.constant 0 : index
    %c0_42 = arith.constant 0 : index
    %55 = vector.load %arg3[%c0_40, %c0_41, %c0_42] : memref<1x1x256xf32, #tpu.memory_space<vmem>>, vector<1x1x256xf32>
    %56 = vector.shape_cast %55 : vector<1x1x256xf32> to vector<1x256xf32>
    %c0_43 = arith.constant 0 : index
    %c0_44 = arith.constant 0 : index
    %57 = vector.load %arg13[%c0_43, %c0_44] : memref<256x256xbf16, #tpu.memory_space<vmem>>, vector<256x256xbf16>
    %58 = arith.truncf %56 : vector<1x256xf32> to vector<1x256xbf16>
    %cst_45 = arith.constant dense<0.000000e+00> : vector<1x256xf32>
    %59 = tpu.matmul %58, %57, %cst_45 {dimension_numbers = #tpu.dot_dimension_numbers<[1], [0], [0], [1], [0, 0, 1, 1], [], []>} : vector<1x256xbf16>, vector<256x256xbf16>, vector<1x256xf32> -> vector<1x256xf32>
    %c0_46 = arith.constant 0 : index
    %c0_47 = arith.constant 0 : index
    %60 = vector.load %arg14[%c0_46, %c0_47] : memref<1x256xf32, #tpu.memory_space<vmem>>, vector<1x256xf32>
    %61 = arith.addf %59, %60 : vector<1x256xf32>
    %62 = vector.broadcast %61 : vector<1x256xf32> to vector<16x256xf32>
    %63 = arith.addf %54, %62 : vector<16x256xf32>
    %c0_48 = arith.constant 0 : index
    %c0_49 = arith.constant 0 : index
    %c0_50 = arith.constant 0 : index
    %64 = vector.load %arg7[%c0_48, %c0_49, %c0_50] : memref<1x1x256xf32, #tpu.memory_space<vmem>>, vector<1x1x256xf32>
    %65 = vector.shape_cast %64 : vector<1x1x256xf32> to vector<1x256xf32>
    %c0_51 = arith.constant 0 : index
    %c0_52 = arith.constant 0 : index
    %66 = vector.load %arg17[%c0_51, %c0_52] : memref<256x256xbf16, #tpu.memory_space<vmem>>, vector<256x256xbf16>
    %67 = arith.truncf %65 : vector<1x256xf32> to vector<1x256xbf16>
    %cst_53 = arith.constant dense<0.000000e+00> : vector<1x256xf32>
    %68 = tpu.matmul %67, %66, %cst_53 {dimension_numbers = #tpu.dot_dimension_numbers<[1], [0], [0], [1], [0, 0, 1, 1], [], []>} : vector<1x256xbf16>, vector<256x256xbf16>, vector<1x256xf32> -> vector<1x256xf32>
    %c0_54 = arith.constant 0 : index
    %c0_55 = arith.constant 0 : index
    %69 = vector.load %arg18[%c0_54, %c0_55] : memref<1x256xf32, #tpu.memory_space<vmem>>, vector<1x256xf32>
    %70 = arith.addf %68, %69 : vector<1x256xf32>
    %71 = arith.negf %70 : vector<1x256xf32>
    %72 = math.exp %71 : vector<1x256xf32>
    %cst_56 = arith.constant 1.000000e+00 : f32
    %73 = vector.broadcast %cst_56 : f32 to vector<1x256xf32>
    %74 = arith.addf %73, %72 : vector<1x256xf32>
    %75 = arith.divf %73, %74 : vector<1x256xf32>
    %76 = arith.mulf %70, %75 : vector<1x256xf32>
    %c0_57 = arith.constant 0 : index
    %c0_58 = arith.constant 0 : index
    %77 = vector.load %arg19[%c0_57, %c0_58] : memref<256x256xbf16, #tpu.memory_space<vmem>>, vector<256x256xbf16>
    %78 = arith.truncf %76 : vector<1x256xf32> to vector<1x256xbf16>
    %cst_59 = arith.constant dense<0.000000e+00> : vector<1x256xf32>
    %79 = tpu.matmul %78, %77, %cst_59 {dimension_numbers = #tpu.dot_dimension_numbers<[1], [0], [0], [1], [0, 0, 1, 1], [], []>} : vector<1x256xbf16>, vector<256x256xbf16>, vector<1x256xf32> -> vector<1x256xf32>
    %c0_60 = arith.constant 0 : index
    %c0_61 = arith.constant 0 : index
    %80 = vector.load %arg20[%c0_60, %c0_61] : memref<1x256xf32, #tpu.memory_space<vmem>>, vector<1x256xf32>
    %81 = arith.addf %79, %80 : vector<1x256xf32>
    %82 = vector.broadcast %81 : vector<1x256xf32> to vector<16x256xf32>
    %83 = arith.addf %63, %82 : vector<16x256xf32>
    %84 = arith.negf %83 : vector<16x256xf32>
    %85 = math.exp %84 : vector<16x256xf32>
    %cst_62 = arith.constant 1.000000e+00 : f32
    %86 = vector.broadcast %cst_62 : f32 to vector<16x256xf32>
    %87 = arith.addf %86, %85 : vector<16x256xf32>
    %88 = arith.divf %86, %87 : vector<16x256xf32>
    %89 = arith.mulf %83, %88 : vector<16x256xf32>
    %c0_63 = arith.constant 0 : index
    %c0_64 = arith.constant 0 : index
    %c0_65 = arith.constant 0 : index
    %90 = vector.load %arg22[%c0_63, %c0_64, %c0_65] : memref<1x16x256xf32, #tpu.memory_space<vmem>>, vector<1x16x256xf32>
    %91 = vector.shape_cast %90 : vector<1x16x256xf32> to vector<16x256xf32>
    %92 = vector.shape_cast %89 : vector<16x256xf32> to vector<1x16x256xf32>
    tpu.vector_store %arg22[%c0_63, %c0_64, %c0_65], %92 {strides = array<i32>} : memref<1x16x256xf32, #tpu.memory_space<vmem>>, vector<1x16x256xf32>,
    return
  }
  func.func @transform_0(%arg0: i32) -> (i32, i32, i32) {
    %c0_i32 = arith.constant 0 : i32
    %c0_i32_0 = arith.constant 0 : i32
    %c0_i32_1 = arith.constant 0 : i32
    return %arg0, %c0_i32, %c0_i32_0 : i32, i32, i32
  }
  func.func @transform_1(%arg0: i32) -> (i32, i32, i32) {
    %c0_i32 = arith.constant 0 : i32
    %c0_i32_0 = arith.constant 0 : i32
    %c0_i32_1 = arith.constant 0 : i32
    return %arg0, %c0_i32, %c0_i32_0 : i32, i32, i32
  }
  func.func @transform_2(%arg0: i32) -> (i32, i32, i32) {
    %c0_i32 = arith.constant 0 : i32
    %c0_i32_0 = arith.constant 0 : i32
    %c0_i32_1 = arith.constant 0 : i32
    return %arg0, %c0_i32, %c0_i32_0 : i32, i32, i32
  }
  func.func @transform_3(%arg0: i32) -> (i32, i32, i32) {
    %c0_i32 = arith.constant 0 : i32
    %c0_i32_0 = arith.constant 0 : i32
    %c0_i32_1 = arith.constant 0 : i32
    return %arg0, %c0_i32, %c0_i32_0 : i32, i32, i32
  }
  func.func @transform_4(%arg0: i32) -> (i32, i32, i32) {
    %c0_i32 = arith.constant 0 : i32
    %c0_i32_0 = arith.constant 0 : i32
    %c0_i32_1 = arith.constant 0 : i32
    return %arg0, %c0_i32, %c0_i32_0 : i32, i32, i32
  }
  func.func @transform_5(%arg0: i32) -> (i32, i32, i32) {
    %c0_i32 = arith.constant 0 : i32
    %c0_i32_0 = arith.constant 0 : i32
    %c0_i32_1 = arith.constant 0 : i32
    return %arg0, %c0_i32, %c0_i32_0 : i32, i32, i32
  }
  func.func @transform_6(%arg0: i32) -> (i32, i32, i32) {
    %c0_i32 = arith.constant 0 : i32
    %c0_i32_0 = arith.constant 0 : i32
    %c0_i32_1 = arith.constant 0 : i32
    return %arg0, %c0_i32, %c0_i32_0 : i32, i32, i32
  }
  func.func @transform_7(%arg0: i32) -> (i32, i32, i32) {
    %c0_i32 = arith.constant 0 : i32
    %c0_i32_0 = arith.constant 0 : i32
    %c0_i32_1 = arith.constant 0 : i32
    return %arg0, %c0_i32, %c0_i32_0 : i32, i32, i32
  }
  func.func @transform_8(%arg0: i32) -> (i32, i32) {
    %c0_i32 = arith.constant 0 : i32
    %c0_i32_0 = arith.constant 0 : i32
    %c0_i32_1 = arith.constant 0 : i32
    return %c0_i32, %c0_i32_0 : i32, i32
  }
  func.func @transform_9(%arg0: i32) -> (i32, i32) {
    %c0_i32 = arith.constant 0 : i32
    %c0_i32_0 = arith.constant 0 : i32
    %c0_i32_1 = arith.constant 0 : i32
    return %c0_i32, %c0_i32_0 : i32, i32
  }
  func.func @transform_10(%arg0: i32) -> (i32, i32) {
    %c0_i32 = arith.constant 0 : i32
    %c0_i32_0 = arith.constant 0 : i32
    %c0_i32_1 = arith.constant 0 : i32
    return %c0_i32, %c0_i32_0 : i32, i32
  }
  func.func @transform_11(%arg0: i32) -> (i32, i32) {
    %c0_i32 = arith.constant 0 : i32
    %c0_i32_0 = arith.constant 0 : i32
    %c0_i32_1 = arith.constant 0 : i32
    return %c0_i32, %c0_i32_0 : i32, i32
  }
  func.func @transform_12(%arg0: i32) -> (i32, i32) {
    %c0_i32 = arith.constant 0 : i32
    %c0_i32_0 = arith.constant 0 : i32
    %c0_i32_1 = arith.constant 0 : i32
    return %c0_i32, %c0_i32_0 : i32, i32
  }
  func.func @transform_13(%arg0: i32) -> (i32, i32) {
    %c0_i32 = arith.constant 0 : i32
    %c0_i32_0 = arith.constant 0 : i32
    %c0_i32_1 = arith.constant 0 : i32
    return %c0_i32, %c0_i32_0 : i32, i32
  }
  func.func @transform_14(%arg0: i32) -> (i32, i32) {
    %c0_i32 = arith.constant 0 : i32
    %c0_i32_0 = arith.constant 0 : i32
    %c0_i32_1 = arith.constant 0 : i32
    return %c0_i32, %c0_i32_0 : i32, i32
  }
  func.func @transform_15(%arg0: i32) -> (i32, i32) {
    %c0_i32 = arith.constant 0 : i32
    %c0_i32_0 = arith.constant 0 : i32
    %c0_i32_1 = arith.constant 0 : i32
    return %c0_i32, %c0_i32_0 : i32, i32
  }
  func.func @transform_16(%arg0: i32) -> (i32, i32) {
    %c0_i32 = arith.constant 0 : i32
    %c0_i32_0 = arith.constant 0 : i32
    %c0_i32_1 = arith.constant 0 : i32
    return %c0_i32, %c0_i32_0 : i32, i32
  }
  func.func @transform_17(%arg0: i32) -> (i32, i32) {
    %c0_i32 = arith.constant 0 : i32
    %c0_i32_0 = arith.constant 0 : i32
    %c0_i32_1 = arith.constant 0 : i32
    return %c0_i32, %c0_i32_0 : i32, i32
  }
  func.func @transform_18(%arg0: i32) -> (i32, i32) {
    %c0_i32 = arith.constant 0 : i32
    %c0_i32_0 = arith.constant 0 : i32
    %c0_i32_1 = arith.constant 0 : i32
    return %c0_i32, %c0_i32_0 : i32, i32
  }
  func.func @transform_19(%arg0: i32) -> (i32, i32) {
    %c0_i32 = arith.constant 0 : i32
    %c0_i32_0 = arith.constant 0 : i32
    %c0_i32_1 = arith.constant 0 : i32
    return %c0_i32, %c0_i32_0 : i32, i32
  }
  func.func @transform_20(%arg0: i32) -> (i32, i32, i32) {
    %c0_i32 = arith.constant 0 : i32
    %c0_i32_0 = arith.constant 0 : i32
    %c0_i32_1 = arith.constant 0 : i32
    return %arg0, %c0_i32, %c0_i32_0 : i32, i32, i32
  }
  func.func @transform_21(%arg0: i32) -> (i32, i32, i32) {
    %c0_i32 = arith.constant 0 : i32
    %c0_i32_0 = arith.constant 0 : i32
    %c0_i32_1 = arith.constant 0 : i32
    return %arg0, %c0_i32, %c0_i32_0 : i32, i32, i32
  }
  func.func @transform_22(%arg0: i32) -> (i32, i32, i32) {
    %c0_i32 = arith.constant 0 : i32
    %c0_i32_0 = arith.constant 0 : i32
    %c0_i32_1 = arith.constant 0 : i32
    return %arg0, %c0_i32, %c0_i32_0 : i32, i32, i32
  }
}

module attributes {stable_mosaic.version = 11 : i64} {
  func.func @_finalize_kernel(%arg0: i32, %arg1: memref<1x16x256xf32, #tpu.memory_space<vmem>>, %arg2: memref<1x16x256xf32, #tpu.memory_space<vmem>>, %arg3: memref<1x16x1xf32, #tpu.memory_space<vmem>>, %arg4: memref<1x16x128xf32, #tpu.memory_space<vmem>>, %arg5: memref<256x512xbf16, #tpu.memory_space<vmem>>, %arg6: memref<1x512xf32, #tpu.memory_space<vmem>>, %arg7: memref<256x128xbf16, #tpu.memory_space<vmem>>, %arg8: memref<1x128xf32, #tpu.memory_space<vmem>>, %arg9: memref<1x1xf32, #tpu.memory_space<vmem>>) attributes {dimension_semantics = [#tpu.dimension_semantics<arbitrary>], iteration_bounds = array<i64: 2>, scalar_prefetch = 0 : i64, scratch_operands = 0 : i64, tpu.core_type = #tpu.core_type<tc>, window_params = [{transform_indices = @transform_0, window_bounds = array<i64: 1, 16, 256>}, {transform_indices = @transform_1, window_bounds = array<i64: 1, 16, 256>}, {transform_indices = @transform_2, window_bounds = array<i64: 1, 16, 1>}, {transform_indices = @transform_3, window_bounds = array<i64: 1, 16, 128>}, {pipeline_mode = #tpu.pipeline_mode<synchronous>, transform_indices = @transform_4, window_bounds = array<i64: 256, 512>}, {pipeline_mode = #tpu.pipeline_mode<synchronous>, transform_indices = @transform_5, window_bounds = array<i64: 1, 512>}, {pipeline_mode = #tpu.pipeline_mode<synchronous>, transform_indices = @transform_6, window_bounds = array<i64: 256, 128>}, {pipeline_mode = #tpu.pipeline_mode<synchronous>, transform_indices = @transform_7, window_bounds = array<i64: 1, 128>}, {pipeline_mode = #tpu.pipeline_mode<synchronous>, transform_indices = @transform_8, window_bounds = array<i64: 1, 1>}]} {
    %c0_i32 = arith.constant 0 : i32
    %0 = arith.cmpi eq, %arg0, %c0_i32 : i32
    %1 = arith.extui %0 : i1 to i32
    %c0_i32_0 = arith.constant 0 : i32
    %2 = arith.cmpi ne, %1, %c0_i32_0 : i32
    scf.if %2 {
      %cst_32 = arith.constant 0.000000e+00 : f32
      %61 = vector.broadcast %cst_32 : f32 to vector<1x1xf32>
      %c0_33 = arith.constant 0 : index
      %c0_34 = arith.constant 0 : index
      %62 = vector.load %arg9[%c0_33, %c0_34] : memref<1x1xf32, #tpu.memory_space<vmem>>, vector<1x1xf32>
      tpu.vector_store %arg9[%c0_33, %c0_34], %61 {strides = array<i32>} : memref<1x1xf32, #tpu.memory_space<vmem>>, vector<1x1xf32>,
    } else {
    }
    %c0 = arith.constant 0 : index
    %c0_1 = arith.constant 0 : index
    %c0_2 = arith.constant 0 : index
    %3 = vector.load %arg1[%c0, %c0_1, %c0_2] : memref<1x16x256xf32, #tpu.memory_space<vmem>>, vector<1x16x256xf32>
    %4 = vector.shape_cast %3 : vector<1x16x256xf32> to vector<16x256xf32>
    %c0_3 = arith.constant 0 : index
    %c0_4 = arith.constant 0 : index
    %c0_5 = arith.constant 0 : index
    %5 = vector.load %arg2[%c0_3, %c0_4, %c0_5] : memref<1x16x256xf32, #tpu.memory_space<vmem>>, vector<1x16x256xf32>
    %6 = vector.shape_cast %5 : vector<1x16x256xf32> to vector<16x256xf32>
    %c0_6 = arith.constant 0 : index
    %c0_7 = arith.constant 0 : index
    %c0_8 = arith.constant 0 : index
    %7 = vector.load %arg3[%c0_6, %c0_7, %c0_8] : memref<1x16x1xf32, #tpu.memory_space<vmem>>, vector<1x16x1xf32>
    %8 = vector.shape_cast %7 : vector<1x16x1xf32> to vector<16x1xf32>
    %c0_9 = arith.constant 0 : index
    %c0_10 = arith.constant 0 : index
    %9 = vector.load %arg5[%c0_9, %c0_10] : memref<256x512xbf16, #tpu.memory_space<vmem>>, vector<256x512xbf16>
    %10 = arith.truncf %6 : vector<16x256xf32> to vector<16x256xbf16>
    %cst = arith.constant dense<0.000000e+00> : vector<16x512xf32>
    %11 = tpu.matmul %10, %9, %cst {dimension_numbers = #tpu.dot_dimension_numbers<[1], [0], [0], [1], [0, 0, 1, 1], [], []>} : vector<16x256xbf16>, vector<256x512xbf16>, vector<16x512xf32> -> vector<16x512xf32>
    %c0_11 = arith.constant 0 : index
    %c0_12 = arith.constant 0 : index
    %12 = vector.load %arg6[%c0_11, %c0_12] : memref<1x512xf32, #tpu.memory_space<vmem>>, vector<1x512xf32>
    %13 = vector.broadcast %12 : vector<1x512xf32> to vector<16x512xf32>
    %14 = arith.addf %11, %13 : vector<16x512xf32>
    %15 = vector.extract_strided_slice %14 {offsets = [0, 0], sizes = [16, 256], strides = [1, 1]} : vector<16x512xf32> to vector<16x256xf32>
    %16 = vector.extract_strided_slice %14 {offsets = [0, 256], sizes = [16, 256], strides = [1, 1]} : vector<16x512xf32> to vector<16x256xf32>
    %cst_13 = arith.constant dense<0.000000e+00> : vector<16xf32>
    %17 = vector.multi_reduction <add>, %4, %cst_13 [1] : vector<16x256xf32> to vector<16xf32>
    %18 = vector.shape_cast %17 : vector<16xf32> to vector<16x1xf32>
    %cst_14 = arith.constant 2.560000e+02 : f32
    %19 = vector.broadcast %cst_14 : f32 to vector<16x1xf32>
    %20 = arith.divf %18, %19 : vector<16x1xf32>
    %21 = vector.broadcast %20 : vector<16x1xf32> to vector<16x256xf32>
    %22 = arith.subf %4, %21 : vector<16x256xf32>
    %23 = vector.broadcast %20 : vector<16x1xf32> to vector<16x256xf32>
    %24 = arith.subf %4, %23 : vector<16x256xf32>
    %25 = arith.mulf %22, %24 : vector<16x256xf32>
    %cst_15 = arith.constant dense<0.000000e+00> : vector<16xf32>
    %26 = vector.multi_reduction <add>, %25, %cst_15 [1] : vector<16x256xf32> to vector<16xf32>
    %27 = vector.shape_cast %26 : vector<16xf32> to vector<16x1xf32>
    %cst_16 = arith.constant 2.560000e+02 : f32
    %28 = vector.broadcast %cst_16 : f32 to vector<16x1xf32>
    %29 = arith.divf %27, %28 : vector<16x1xf32>
    %30 = vector.broadcast %20 : vector<16x1xf32> to vector<16x256xf32>
    %31 = arith.subf %4, %30 : vector<16x256xf32>
    %cst_17 = arith.constant 9.99999997E-7 : f32
    %32 = vector.broadcast %cst_17 : f32 to vector<16x1xf32>
    %33 = arith.addf %29, %32 : vector<16x1xf32>
    %34 = math.rsqrt %33 : vector<16x1xf32>
    %35 = vector.broadcast %34 : vector<16x1xf32> to vector<16x256xf32>
    %36 = arith.mulf %31, %35 : vector<16x256xf32>
    %cst_18 = arith.constant 1.000000e+00 : f32
    %37 = vector.broadcast %cst_18 : f32 to vector<16x256xf32>
    %38 = arith.addf %37, %16 : vector<16x256xf32>
    %39 = arith.mulf %36, %38 : vector<16x256xf32>
    %40 = arith.addf %39, %15 : vector<16x256xf32>
    %c0_19 = arith.constant 0 : index
    %c0_20 = arith.constant 0 : index
    %41 = vector.load %arg7[%c0_19, %c0_20] : memref<256x128xbf16, #tpu.memory_space<vmem>>, vector<256x128xbf16>
    %42 = arith.truncf %40 : vector<16x256xf32> to vector<16x256xbf16>
    %cst_21 = arith.constant dense<0.000000e+00> : vector<16x128xf32>
    %43 = tpu.matmul %42, %41, %cst_21 {dimension_numbers = #tpu.dot_dimension_numbers<[1], [0], [0], [1], [0, 0, 1, 1], [], []>} : vector<16x256xbf16>, vector<256x128xbf16>, vector<16x128xf32> -> vector<16x128xf32>
    %c0_22 = arith.constant 0 : index
    %c0_23 = arith.constant 0 : index
    %44 = vector.load %arg8[%c0_22, %c0_23] : memref<1x128xf32, #tpu.memory_space<vmem>>, vector<1x128xf32>
    %45 = vector.broadcast %44 : vector<1x128xf32> to vector<16x128xf32>
    %46 = arith.addf %43, %45 : vector<16x128xf32>
    %47 = vector.broadcast %8 : vector<16x1xf32> to vector<16x128xf32>
    %48 = arith.mulf %46, %47 : vector<16x128xf32>
    %c0_24 = arith.constant 0 : index
    %c0_25 = arith.constant 0 : index
    %c0_26 = arith.constant 0 : index
    %49 = vector.load %arg4[%c0_24, %c0_25, %c0_26] : memref<1x16x128xf32, #tpu.memory_space<vmem>>, vector<1x16x128xf32>
    %50 = vector.shape_cast %49 : vector<1x16x128xf32> to vector<16x128xf32>
    %51 = arith.subf %48, %50 : vector<16x128xf32>
    %c0_27 = arith.constant 0 : index
    %c0_28 = arith.constant 0 : index
    %52 = vector.load %arg9[%c0_27, %c0_28] : memref<1x1xf32, #tpu.memory_space<vmem>>, vector<1x1xf32>
    %53 = arith.mulf %51, %51 : vector<16x128xf32>
    %54 = vector.shape_cast %53 : vector<16x128xf32> to vector<1x16x128xf32>
    %cst_29 = arith.constant dense<0.000000e+00> : vector<1xf32>
    %55 = vector.multi_reduction <add>, %54, %cst_29 [1, 2] : vector<1x16x128xf32> to vector<1xf32>
    %56 = vector.shape_cast %55 : vector<1xf32> to vector<1x1x1xf32>
    %57 = vector.extract %56[0, 0, 0] : f32 from vector<1x1x1xf32>
    %58 = vector.broadcast %57 : f32 to vector<1x1xf32>
    %59 = arith.addf %52, %58 : vector<1x1xf32>
    %c0_30 = arith.constant 0 : index
    %c0_31 = arith.constant 0 : index
    %60 = vector.load %arg9[%c0_30, %c0_31] : memref<1x1xf32, #tpu.memory_space<vmem>>, vector<1x1xf32>
    tpu.vector_store %arg9[%c0_30, %c0_31], %59 {strides = array<i32>} : memref<1x1xf32, #tpu.memory_space<vmem>>, vector<1x1xf32>,
    return
  }
  func.func @transform_0(%arg0: i32) -> (i32, i32, i32) {
    %c0_i32 = arith.constant 0 : i32
    %c0_i32_0 = arith.constant 0 : i32
    %c0_i32_1 = arith.constant 0 : i32
    return %arg0, %c0_i32, %c0_i32_0 : i32, i32, i32
  }
  func.func @transform_1(%arg0: i32) -> (i32, i32, i32) {
    %c0_i32 = arith.constant 0 : i32
    %c0_i32_0 = arith.constant 0 : i32
    %c0_i32_1 = arith.constant 0 : i32
    return %arg0, %c0_i32, %c0_i32_0 : i32, i32, i32
  }
  func.func @transform_2(%arg0: i32) -> (i32, i32, i32) {
    %c0_i32 = arith.constant 0 : i32
    %c0_i32_0 = arith.constant 0 : i32
    %c0_i32_1 = arith.constant 0 : i32
    return %arg0, %c0_i32, %c0_i32_0 : i32, i32, i32
  }
  func.func @transform_3(%arg0: i32) -> (i32, i32, i32) {
    %c0_i32 = arith.constant 0 : i32
    %c0_i32_0 = arith.constant 0 : i32
    %c0_i32_1 = arith.constant 0 : i32
    return %arg0, %c0_i32, %c0_i32_0 : i32, i32, i32
  }
  func.func @transform_4(%arg0: i32) -> (i32, i32) {
    %c0_i32 = arith.constant 0 : i32
    %c0_i32_0 = arith.constant 0 : i32
    %c0_i32_1 = arith.constant 0 : i32
    return %c0_i32, %c0_i32_0 : i32, i32
  }
  func.func @transform_5(%arg0: i32) -> (i32, i32) {
    %c0_i32 = arith.constant 0 : i32
    %c0_i32_0 = arith.constant 0 : i32
    %c0_i32_1 = arith.constant 0 : i32
    return %c0_i32, %c0_i32_0 : i32, i32
  }
  func.func @transform_6(%arg0: i32) -> (i32, i32) {
    %c0_i32 = arith.constant 0 : i32
    %c0_i32_0 = arith.constant 0 : i32
    %c0_i32_1 = arith.constant 0 : i32
    return %c0_i32, %c0_i32_0 : i32, i32
  }
  func.func @transform_7(%arg0: i32) -> (i32, i32) {
    %c0_i32 = arith.constant 0 : i32
    %c0_i32_0 = arith.constant 0 : i32
    %c0_i32_1 = arith.constant 0 : i32
    return %c0_i32, %c0_i32_0 : i32, i32
  }
  func.func @transform_8(%arg0: i32) -> (i32, i32) {
    %c0_i32 = arith.constant 0 : i32
    %c0_i32_0 = arith.constant 0 : i32
    %c0_i32_1 = arith.constant 0 : i32
    return %c0_i32, %c0_i32_0 : i32, i32
  }
}

module attributes {stable_mosaic.version = 11 : i64} {
  func.func @_dit_block_kernel(%arg0: i32, %arg1: i32, %arg2: memref<1x16x256xf32, #tpu.memory_space<vmem>>, %arg3: memref<1x16x256xf32, #tpu.memory_space<vmem>>, %arg4: memref<1x1x16xf32, #tpu.memory_space<vmem>>, %arg5: memref<1x16x1xf32, #tpu.memory_space<vmem>>, %arg6: memref<1x256x1536xbf16, #tpu.memory_space<vmem>>, %arg7: memref<1x1x1536xf32, #tpu.memory_space<vmem>>, %arg8: memref<1x256x768xbf16, #tpu.memory_space<vmem>>, %arg9: memref<1x1x768xf32, #tpu.memory_space<vmem>>, %arg10: memref<1x256x256xbf16, #tpu.memory_space<vmem>>, %arg11: memref<1x1x256xf32, #tpu.memory_space<vmem>>, %arg12: memref<1x256x1024xbf16, #tpu.memory_space<vmem>>, %arg13: memref<1x1x1024xf32, #tpu.memory_space<vmem>>, %arg14: memref<1x1024x256xbf16, #tpu.memory_space<vmem>>, %arg15: memref<1x1x256xf32, #tpu.memory_space<vmem>>, %arg16: memref<1x16x256xf32, #tpu.memory_space<vmem>>) attributes {dimension_semantics = [#tpu.dimension_semantics<parallel>, #tpu.dimension_semantics<arbitrary>], iteration_bounds = array<i64: 2, 2>, scalar_prefetch = 0 : i64, scratch_operands = 0 : i64, tpu.core_type = #tpu.core_type<tc>, window_params = [{transform_indices = @transform_0, window_bounds = array<i64: 1, 16, 256>}, {transform_indices = @transform_1, window_bounds = array<i64: 1, 16, 256>}, {transform_indices = @transform_2, window_bounds = array<i64: 1, 1, 16>}, {transform_indices = @transform_3, window_bounds = array<i64: 1, 16, 1>}, {transform_indices = @transform_4, window_bounds = array<i64: 1, 256, 1536>}, {transform_indices = @transform_5, window_bounds = array<i64: 1, 1, 1536>}, {transform_indices = @transform_6, window_bounds = array<i64: 1, 256, 768>}, {transform_indices = @transform_7, window_bounds = array<i64: 1, 1, 768>}, {transform_indices = @transform_8, window_bounds = array<i64: 1, 256, 256>}, {transform_indices = @transform_9, window_bounds = array<i64: 1, 1, 256>}, {transform_indices = @transform_10, window_bounds = array<i64: 1, 256, 1024>}, {transform_indices = @transform_11, window_bounds = array<i64: 1, 1, 1024>}, {transform_indices = @transform_12, window_bounds = array<i64: 1, 1024, 256>}, {transform_indices = @transform_13, window_bounds = array<i64: 1, 1, 256>}, {transform_indices = @transform_14, window_bounds = array<i64: 1, 16, 256>}]} {
    %c0_i32 = arith.constant 0 : i32
    %0 = arith.cmpi eq, %arg1, %c0_i32 : i32
    %1 = arith.extui %0 : i1 to i32
    %c0_i32_0 = arith.constant 0 : i32
    %2 = arith.cmpi ne, %1, %c0_i32_0 : i32
    scf.if %2 {
      %c0_77 = arith.constant 0 : index
      %c0_78 = arith.constant 0 : index
      %c0_79 = arith.constant 0 : index
      %178 = vector.load %arg2[%c0_77, %c0_78, %c0_79] : memref<1x16x256xf32, #tpu.memory_space<vmem>>, vector<1x16x256xf32>
      %c0_80 = arith.constant 0 : index
      %c0_81 = arith.constant 0 : index
      %c0_82 = arith.constant 0 : index
      %179 = vector.load %arg16[%c0_80, %c0_81, %c0_82] : memref<1x16x256xf32, #tpu.memory_space<vmem>>, vector<1x16x256xf32>
      tpu.vector_store %arg16[%c0_80, %c0_81, %c0_82], %178 {strides = array<i32>} : memref<1x16x256xf32, #tpu.memory_space<vmem>>, vector<1x16x256xf32>,
    } else {
    }
    %c0 = arith.constant 0 : index
    %c0_1 = arith.constant 0 : index
    %c0_2 = arith.constant 0 : index
    %3 = vector.load %arg16[%c0, %c0_1, %c0_2] : memref<1x16x256xf32, #tpu.memory_space<vmem>>, vector<1x16x256xf32>
    %4 = vector.shape_cast %3 : vector<1x16x256xf32> to vector<16x256xf32>
    %c0_3 = arith.constant 0 : index
    %c0_4 = arith.constant 0 : index
    %c0_5 = arith.constant 0 : index
    %5 = vector.load %arg3[%c0_3, %c0_4, %c0_5] : memref<1x16x256xf32, #tpu.memory_space<vmem>>, vector<1x16x256xf32>
    %6 = vector.shape_cast %5 : vector<1x16x256xf32> to vector<16x256xf32>
    %c0_6 = arith.constant 0 : index
    %c0_7 = arith.constant 0 : index
    %c0_8 = arith.constant 0 : index
    %7 = vector.load %arg4[%c0_6, %c0_7, %c0_8] : memref<1x1x16xf32, #tpu.memory_space<vmem>>, vector<1x1x16xf32>
    %8 = vector.shape_cast %7 : vector<1x1x16xf32> to vector<1x16xf32>
    %c0_9 = arith.constant 0 : index
    %c0_10 = arith.constant 0 : index
    %c0_11 = arith.constant 0 : index
    %9 = vector.load %arg5[%c0_9, %c0_10, %c0_11] : memref<1x16x1xf32, #tpu.memory_space<vmem>>, vector<1x16x1xf32>
    %10 = vector.shape_cast %9 : vector<1x16x1xf32> to vector<16x1xf32>
    %c0_12 = arith.constant 0 : index
    %c0_13 = arith.constant 0 : index
    %c0_14 = arith.constant 0 : index
    %11 = vector.load %arg6[%c0_12, %c0_13, %c0_14] : memref<1x256x1536xbf16, #tpu.memory_space<vmem>>, vector<1x256x1536xbf16>
    %12 = vector.shape_cast %11 : vector<1x256x1536xbf16> to vector<256x1536xbf16>
    %13 = arith.truncf %6 : vector<16x256xf32> to vector<16x256xbf16>
    %cst = arith.constant dense<0.000000e+00> : vector<16x1536xf32>
    %14 = tpu.matmul %13, %12, %cst {dimension_numbers = #tpu.dot_dimension_numbers<[1], [0], [0], [1], [0, 0, 1, 1], [], []>} : vector<16x256xbf16>, vector<256x1536xbf16>, vector<16x1536xf32> -> vector<16x1536xf32>
    %c0_15 = arith.constant 0 : index
    %c0_16 = arith.constant 0 : index
    %c0_17 = arith.constant 0 : index
    %15 = vector.load %arg7[%c0_15, %c0_16, %c0_17] : memref<1x1x1536xf32, #tpu.memory_space<vmem>>, vector<1x1x1536xf32>
    %16 = vector.shape_cast %15 : vector<1x1x1536xf32> to vector<1x1536xf32>
    %17 = vector.broadcast %16 : vector<1x1536xf32> to vector<16x1536xf32>
    %18 = arith.addf %14, %17 : vector<16x1536xf32>
    %19 = vector.extract_strided_slice %18 {offsets = [0, 0], sizes = [16, 256], strides = [1, 1]} : vector<16x1536xf32> to vector<16x256xf32>
    %20 = vector.extract_strided_slice %18 {offsets = [0, 256], sizes = [16, 256], strides = [1, 1]} : vector<16x1536xf32> to vector<16x256xf32>
    %21 = vector.extract_strided_slice %18 {offsets = [0, 512], sizes = [16, 256], strides = [1, 1]} : vector<16x1536xf32> to vector<16x256xf32>
    %22 = vector.extract_strided_slice %18 {offsets = [0, 768], sizes = [16, 256], strides = [1, 1]} : vector<16x1536xf32> to vector<16x256xf32>
    %23 = vector.extract_strided_slice %18 {offsets = [0, 1024], sizes = [16, 256], strides = [1, 1]} : vector<16x1536xf32> to vector<16x256xf32>
    %24 = vector.extract_strided_slice %18 {offsets = [0, 1280], sizes = [16, 256], strides = [1, 1]} : vector<16x1536xf32> to vector<16x256xf32>
    %cst_18 = arith.constant dense<0.000000e+00> : vector<16xf32>
    %25 = vector.multi_reduction <add>, %4, %cst_18 [1] : vector<16x256xf32> to vector<16xf32>
    %26 = vector.shape_cast %25 : vector<16xf32> to vector<16x1xf32>
    %cst_19 = arith.constant 2.560000e+02 : f32
    %27 = vector.broadcast %cst_19 : f32 to vector<16x1xf32>
    %28 = arith.divf %26, %27 : vector<16x1xf32>
    %29 = vector.broadcast %28 : vector<16x1xf32> to vector<16x256xf32>
    %30 = arith.subf %4, %29 : vector<16x256xf32>
    %31 = vector.broadcast %28 : vector<16x1xf32> to vector<16x256xf32>
    %32 = arith.subf %4, %31 : vector<16x256xf32>
    %33 = arith.mulf %30, %32 : vector<16x256xf32>
    %cst_20 = arith.constant dense<0.000000e+00> : vector<16xf32>
    %34 = vector.multi_reduction <add>, %33, %cst_20 [1] : vector<16x256xf32> to vector<16xf32>
    %35 = vector.shape_cast %34 : vector<16xf32> to vector<16x1xf32>
    %cst_21 = arith.constant 2.560000e+02 : f32
    %36 = vector.broadcast %cst_21 : f32 to vector<16x1xf32>
    %37 = arith.divf %35, %36 : vector<16x1xf32>
    %38 = vector.broadcast %28 : vector<16x1xf32> to vector<16x256xf32>
    %39 = arith.subf %4, %38 : vector<16x256xf32>
    %cst_22 = arith.constant 9.99999997E-7 : f32
    %40 = vector.broadcast %cst_22 : f32 to vector<16x1xf32>
    %41 = arith.addf %37, %40 : vector<16x1xf32>
    %42 = math.rsqrt %41 : vector<16x1xf32>
    %43 = vector.broadcast %42 : vector<16x1xf32> to vector<16x256xf32>
    %44 = arith.mulf %39, %43 : vector<16x256xf32>
    %cst_23 = arith.constant 1.000000e+00 : f32
    %45 = vector.broadcast %cst_23 : f32 to vector<16x256xf32>
    %46 = arith.addf %45, %20 : vector<16x256xf32>
    %47 = arith.mulf %44, %46 : vector<16x256xf32>
    %48 = arith.addf %47, %19 : vector<16x256xf32>
    %c0_24 = arith.constant 0 : index
    %c0_25 = arith.constant 0 : index
    %c0_26 = arith.constant 0 : index
    %49 = vector.load %arg8[%c0_24, %c0_25, %c0_26] : memref<1x256x768xbf16, #tpu.memory_space<vmem>>, vector<1x256x768xbf16>
    %50 = vector.shape_cast %49 : vector<1x256x768xbf16> to vector<256x768xbf16>
    %51 = arith.truncf %48 : vector<16x256xf32> to vector<16x256xbf16>
    %cst_27 = arith.constant dense<0.000000e+00> : vector<16x768xf32>
    %52 = tpu.matmul %51, %50, %cst_27 {dimension_numbers = #tpu.dot_dimension_numbers<[1], [0], [0], [1], [0, 0, 1, 1], [], []>} : vector<16x256xbf16>, vector<256x768xbf16>, vector<16x768xf32> -> vector<16x768xf32>
    %c0_28 = arith.constant 0 : index
    %c0_29 = arith.constant 0 : index
    %c0_30 = arith.constant 0 : index
    %53 = vector.load %arg9[%c0_28, %c0_29, %c0_30] : memref<1x1x768xf32, #tpu.memory_space<vmem>>, vector<1x1x768xf32>
    %54 = vector.shape_cast %53 : vector<1x1x768xf32> to vector<1x768xf32>
    %55 = vector.broadcast %54 : vector<1x768xf32> to vector<16x768xf32>
    %56 = arith.addf %52, %55 : vector<16x768xf32>
    %cst_31 = arith.constant 1.000000e+00 : f32
    %57 = vector.broadcast %cst_31 : f32 to vector<1x16xf32>
    %58 = arith.subf %57, %8 : vector<1x16xf32>
    %cst_32 = arith.constant -1.000000e+09 : f32
    %59 = vector.broadcast %cst_32 : f32 to vector<1x16xf32>
    %60 = arith.mulf %58, %59 : vector<1x16xf32>
    %61 = vector.extract_strided_slice %56 {offsets = [0, 0], sizes = [16, 128], strides = [1, 1]} : vector<16x768xf32> to vector<16x128xf32>
    %62 = vector.extract_strided_slice %56 {offsets = [0, 256], sizes = [16, 128], strides = [1, 1]} : vector<16x768xf32> to vector<16x128xf32>
    %63 = vector.extract_strided_slice %56 {offsets = [0, 512], sizes = [16, 128], strides = [1, 1]} : vector<16x768xf32> to vector<16x128xf32>
    %64 = arith.truncf %61 : vector<16x128xf32> to vector<16x128xbf16>
    %65 = arith.truncf %62 : vector<16x128xf32> to vector<16x128xbf16>
    %cst_33 = arith.constant dense<0.000000e+00> : vector<16x16xf32>
    %66 = tpu.matmul %64, %65, %cst_33 {dimension_numbers = #tpu.dot_dimension_numbers<[1], [1], [0], [0], [0, 0, 1, 0], [], []>} : vector<16x128xbf16>, vector<16x128xbf16>, vector<16x16xf32> -> vector<16x16xf32>
    %cst_34 = arith.constant 0.0883883461 : f32
    %67 = vector.broadcast %cst_34 : f32 to vector<16x16xf32>
    %68 = arith.mulf %66, %67 : vector<16x16xf32>
    %69 = vector.broadcast %60 : vector<1x16xf32> to vector<16x16xf32>
    %70 = arith.addf %68, %69 : vector<16x16xf32>
    %cst_35 = arith.constant dense<0xFF800000> : vector<16xf32>
    %71 = vector.multi_reduction <maximumf>, %70, %cst_35 [1] : vector<16x16xf32> to vector<16xf32>
    %72 = vector.shape_cast %71 : vector<16xf32> to vector<16x1xf32>
    %73 = vector.broadcast %72 : vector<16x1xf32> to vector<16x16xf32>
    %74 = arith.subf %70, %73 : vector<16x16xf32>
    %75 = math.exp %74 : vector<16x16xf32>
    %cst_36 = arith.constant dense<0.000000e+00> : vector<16xf32>
    %76 = vector.multi_reduction <add>, %75, %cst_36 [1] : vector<16x16xf32> to vector<16xf32>
    %77 = vector.shape_cast %76 : vector<16xf32> to vector<16x1xf32>
    %78 = tpu.reciprocal %77 {approx = true} : vector<16x1xf32> -> vector<16x1xf32>
    %79 = vector.broadcast %78 : vector<16x1xf32> to vector<16x16xf32>
    %80 = arith.mulf %75, %79 : vector<16x16xf32>
    %81 = arith.truncf %80 : vector<16x16xf32> to vector<16x16xbf16>
    %82 = arith.truncf %63 : vector<16x128xf32> to vector<16x128xbf16>
    %cst_37 = arith.constant dense<0.000000e+00> : vector<16x128xf32>
    %83 = tpu.matmul %81, %82, %cst_37 {dimension_numbers = #tpu.dot_dimension_numbers<[1], [0], [0], [1], [0, 0, 1, 1], [], []>} : vector<16x16xbf16>, vector<16x128xbf16>, vector<16x128xf32> -> vector<16x128xf32>
    %84 = vector.extract_strided_slice %56 {offsets = [0, 128], sizes = [16, 128], strides = [1, 1]} : vector<16x768xf32> to vector<16x128xf32>
    %85 = vector.extract_strided_slice %56 {offsets = [0, 384], sizes = [16, 128], strides = [1, 1]} : vector<16x768xf32> to vector<16x128xf32>
    %86 = vector.extract_strided_slice %56 {offsets = [0, 640], sizes = [16, 128], strides = [1, 1]} : vector<16x768xf32> to vector<16x128xf32>
    %87 = arith.truncf %84 : vector<16x128xf32> to vector<16x128xbf16>
    %88 = arith.truncf %85 : vector<16x128xf32> to vector<16x128xbf16>
    %cst_38 = arith.constant dense<0.000000e+00> : vector<16x16xf32>
    %89 = tpu.matmul %87, %88, %cst_38 {dimension_numbers = #tpu.dot_dimension_numbers<[1], [1], [0], [0], [0, 0, 1, 0], [], []>} : vector<16x128xbf16>, vector<16x128xbf16>, vector<16x16xf32> -> vector<16x16xf32>
    %cst_39 = arith.constant 0.0883883461 : f32
    %90 = vector.broadcast %cst_39 : f32 to vector<16x16xf32>
    %91 = arith.mulf %89, %90 : vector<16x16xf32>
    %92 = vector.broadcast %60 : vector<1x16xf32> to vector<16x16xf32>
    %93 = arith.addf %91, %92 : vector<16x16xf32>
    %cst_40 = arith.constant dense<0xFF800000> : vector<16xf32>
    %94 = vector.multi_reduction <maximumf>, %93, %cst_40 [1] : vector<16x16xf32> to vector<16xf32>
    %95 = vector.shape_cast %94 : vector<16xf32> to vector<16x1xf32>
    %96 = vector.broadcast %95 : vector<16x1xf32> to vector<16x16xf32>
    %97 = arith.subf %93, %96 : vector<16x16xf32>
    %98 = math.exp %97 : vector<16x16xf32>
    %cst_41 = arith.constant dense<0.000000e+00> : vector<16xf32>
    %99 = vector.multi_reduction <add>, %98, %cst_41 [1] : vector<16x16xf32> to vector<16xf32>
    %100 = vector.shape_cast %99 : vector<16xf32> to vector<16x1xf32>
    %101 = tpu.reciprocal %100 {approx = true} : vector<16x1xf32> -> vector<16x1xf32>
    %102 = vector.broadcast %101 : vector<16x1xf32> to vector<16x16xf32>
    %103 = arith.mulf %98, %102 : vector<16x16xf32>
    %104 = arith.truncf %103 : vector<16x16xf32> to vector<16x16xbf16>
    %105 = arith.truncf %86 : vector<16x128xf32> to vector<16x128xbf16>
    %cst_42 = arith.constant dense<0.000000e+00> : vector<16x128xf32>
    %106 = tpu.matmul %104, %105, %cst_42 {dimension_numbers = #tpu.dot_dimension_numbers<[1], [0], [0], [1], [0, 0, 1, 1], [], []>} : vector<16x16xbf16>, vector<16x128xbf16>, vector<16x128xf32> -> vector<16x128xf32>
    %107 = tpu.concatenate %83, %106 in 1 : vector<16x128xf32>, vector<16x128xf32> -> vector<16x256xf32>
    %c0_43 = arith.constant 0 : index
    %c0_44 = arith.constant 0 : index
    %c0_45 = arith.constant 0 : index
    %108 = vector.load %arg10[%c0_43, %c0_44, %c0_45] : memref<1x256x256xbf16, #tpu.memory_space<vmem>>, vector<1x256x256xbf16>
    %109 = vector.shape_cast %108 : vector<1x256x256xbf16> to vector<256x256xbf16>
    %110 = arith.truncf %107 : vector<16x256xf32> to vector<16x256xbf16>
    %cst_46 = arith.constant dense<0.000000e+00> : vector<16x256xf32>
    %111 = tpu.matmul %110, %109, %cst_46 {dimension_numbers = #tpu.dot_dimension_numbers<[1], [0], [0], [1], [0, 0, 1, 1], [], []>} : vector<16x256xbf16>, vector<256x256xbf16>, vector<16x256xf32> -> vector<16x256xf32>
    %c0_47 = arith.constant 0 : index
    %c0_48 = arith.constant 0 : index
    %c0_49 = arith.constant 0 : index
    %112 = vector.load %arg11[%c0_47, %c0_48, %c0_49] : memref<1x1x256xf32, #tpu.memory_space<vmem>>, vector<1x1x256xf32>
    %113 = vector.shape_cast %112 : vector<1x1x256xf32> to vector<1x256xf32>
    %114 = vector.broadcast %113 : vector<1x256xf32> to vector<16x256xf32>
    %115 = arith.addf %111, %114 : vector<16x256xf32>
    %116 = arith.mulf %21, %115 : vector<16x256xf32>
    %117 = arith.addf %4, %116 : vector<16x256xf32>
    %cst_50 = arith.constant dense<0.000000e+00> : vector<16xf32>
    %118 = vector.multi_reduction <add>, %117, %cst_50 [1] : vector<16x256xf32> to vector<16xf32>
    %119 = vector.shape_cast %118 : vector<16xf32> to vector<16x1xf32>
    %cst_51 = arith.constant 2.560000e+02 : f32
    %120 = vector.broadcast %cst_51 : f32 to vector<16x1xf32>
    %121 = arith.divf %119, %120 : vector<16x1xf32>
    %122 = vector.broadcast %121 : vector<16x1xf32> to vector<16x256xf32>
    %123 = arith.subf %117, %122 : vector<16x256xf32>
    %124 = vector.broadcast %121 : vector<16x1xf32> to vector<16x256xf32>
    %125 = arith.subf %117, %124 : vector<16x256xf32>
    %126 = arith.mulf %123, %125 : vector<16x256xf32>
    %cst_52 = arith.constant dense<0.000000e+00> : vector<16xf32>
    %127 = vector.multi_reduction <add>, %126, %cst_52 [1] : vector<16x256xf32> to vector<16xf32>
    %128 = vector.shape_cast %127 : vector<16xf32> to vector<16x1xf32>
    %cst_53 = arith.constant 2.560000e+02 : f32
    %129 = vector.broadcast %cst_53 : f32 to vector<16x1xf32>
    %130 = arith.divf %128, %129 : vector<16x1xf32>
    %131 = vector.broadcast %121 : vector<16x1xf32> to vector<16x256xf32>
    %132 = arith.subf %117, %131 : vector<16x256xf32>
    %cst_54 = arith.constant 9.99999997E-7 : f32
    %133 = vector.broadcast %cst_54 : f32 to vector<16x1xf32>
    %134 = arith.addf %130, %133 : vector<16x1xf32>
    %135 = math.rsqrt %134 : vector<16x1xf32>
    %136 = vector.broadcast %135 : vector<16x1xf32> to vector<16x256xf32>
    %137 = arith.mulf %132, %136 : vector<16x256xf32>
    %cst_55 = arith.constant 1.000000e+00 : f32
    %138 = vector.broadcast %cst_55 : f32 to vector<16x256xf32>
    %139 = arith.addf %138, %23 : vector<16x256xf32>
    %140 = arith.mulf %137, %139 : vector<16x256xf32>
    %141 = arith.addf %140, %22 : vector<16x256xf32>
    %c0_56 = arith.constant 0 : index
    %c0_57 = arith.constant 0 : index
    %c0_58 = arith.constant 0 : index
    %142 = vector.load %arg12[%c0_56, %c0_57, %c0_58] : memref<1x256x1024xbf16, #tpu.memory_space<vmem>>, vector<1x256x1024xbf16>
    %143 = vector.shape_cast %142 : vector<1x256x1024xbf16> to vector<256x1024xbf16>
    %144 = arith.truncf %141 : vector<16x256xf32> to vector<16x256xbf16>
    %cst_59 = arith.constant dense<0.000000e+00> : vector<16x1024xf32>
    %145 = tpu.matmul %144, %143, %cst_59 {dimension_numbers = #tpu.dot_dimension_numbers<[1], [0], [0], [1], [0, 0, 1, 1], [], []>} : vector<16x256xbf16>, vector<256x1024xbf16>, vector<16x1024xf32> -> vector<16x1024xf32>
    %c0_60 = arith.constant 0 : index
    %c0_61 = arith.constant 0 : index
    %c0_62 = arith.constant 0 : index
    %146 = vector.load %arg13[%c0_60, %c0_61, %c0_62] : memref<1x1x1024xf32, #tpu.memory_space<vmem>>, vector<1x1x1024xf32>
    %147 = vector.shape_cast %146 : vector<1x1x1024xf32> to vector<1x1024xf32>
    %148 = vector.broadcast %147 : vector<1x1024xf32> to vector<16x1024xf32>
    %149 = arith.addf %145, %148 : vector<16x1024xf32>
    %150 = arith.mulf %149, %149 : vector<16x1024xf32>
    %151 = arith.mulf %149, %150 : vector<16x1024xf32>
    %cst_63 = arith.constant 4.471500e-02 : f32
    %152 = vector.broadcast %cst_63 : f32 to vector<16x1024xf32>
    %153 = arith.mulf %152, %151 : vector<16x1024xf32>
    %154 = arith.addf %149, %153 : vector<16x1024xf32>
    %cst_64 = arith.constant 0.797884583 : f32
    %155 = vector.broadcast %cst_64 : f32 to vector<16x1024xf32>
    %156 = arith.mulf %155, %154 : vector<16x1024xf32>
    %157 = math.tanh %156 : vector<16x1024xf32>
    %cst_65 = arith.constant 1.000000e+00 : f32
    %158 = vector.broadcast %cst_65 : f32 to vector<16x1024xf32>
    %159 = arith.addf %158, %157 : vector<16x1024xf32>
    %cst_66 = arith.constant 5.000000e-01 : f32
    %160 = vector.broadcast %cst_66 : f32 to vector<16x1024xf32>
    %161 = arith.mulf %160, %159 : vector<16x1024xf32>
    %162 = arith.mulf %149, %161 : vector<16x1024xf32>
    %c0_67 = arith.constant 0 : index
    %c0_68 = arith.constant 0 : index
    %c0_69 = arith.constant 0 : index
    %163 = vector.load %arg14[%c0_67, %c0_68, %c0_69] : memref<1x1024x256xbf16, #tpu.memory_space<vmem>>, vector<1x1024x256xbf16>
    %164 = vector.shape_cast %163 : vector<1x1024x256xbf16> to vector<1024x256xbf16>
    %165 = arith.truncf %162 : vector<16x1024xf32> to vector<16x1024xbf16>
    %cst_70 = arith.constant dense<0.000000e+00> : vector<16x256xf32>
    %166 = tpu.matmul %165, %164, %cst_70 {dimension_numbers = #tpu.dot_dimension_numbers<[1], [0], [0], [1], [0, 0, 1, 1], [], []>} : vector<16x1024xbf16>, vector<1024x256xbf16>, vector<16x256xf32> -> vector<16x256xf32>
    %c0_71 = arith.constant 0 : index
    %c0_72 = arith.constant 0 : index
    %c0_73 = arith.constant 0 : index
    %167 = vector.load %arg15[%c0_71, %c0_72, %c0_73] : memref<1x1x256xf32, #tpu.memory_space<vmem>>, vector<1x1x256xf32>
    %168 = vector.shape_cast %167 : vector<1x1x256xf32> to vector<1x256xf32>
    %169 = vector.broadcast %168 : vector<1x256xf32> to vector<16x256xf32>
    %170 = arith.addf %166, %169 : vector<16x256xf32>
    %171 = arith.mulf %24, %170 : vector<16x256xf32>
    %172 = arith.addf %117, %171 : vector<16x256xf32>
    %173 = vector.broadcast %10 : vector<16x1xf32> to vector<16x256xf32>
    %174 = arith.mulf %172, %173 : vector<16x256xf32>
    %c0_74 = arith.constant 0 : index
    %c0_75 = arith.constant 0 : index
    %c0_76 = arith.constant 0 : index
    %175 = vector.load %arg16[%c0_74, %c0_75, %c0_76] : memref<1x16x256xf32, #tpu.memory_space<vmem>>, vector<1x16x256xf32>
    %176 = vector.shape_cast %175 : vector<1x16x256xf32> to vector<16x256xf32>
    %177 = vector.shape_cast %174 : vector<16x256xf32> to vector<1x16x256xf32>
    tpu.vector_store %arg16[%c0_74, %c0_75, %c0_76], %177 {strides = array<i32>} : memref<1x16x256xf32, #tpu.memory_space<vmem>>, vector<1x16x256xf32>,
    return
  }
  func.func @transform_0(%arg0: i32, %arg1: i32) -> (i32, i32, i32) {
    %c0_i32 = arith.constant 0 : i32
    %c0_i32_0 = arith.constant 0 : i32
    %c0_i32_1 = arith.constant 0 : i32
    return %arg0, %c0_i32, %c0_i32_0 : i32, i32, i32
  }
  func.func @transform_1(%arg0: i32, %arg1: i32) -> (i32, i32, i32) {
    %c0_i32 = arith.constant 0 : i32
    %c0_i32_0 = arith.constant 0 : i32
    %c0_i32_1 = arith.constant 0 : i32
    return %arg0, %c0_i32, %c0_i32_0 : i32, i32, i32
  }
  func.func @transform_2(%arg0: i32, %arg1: i32) -> (i32, i32, i32) {
    %c0_i32 = arith.constant 0 : i32
    %c0_i32_0 = arith.constant 0 : i32
    %c0_i32_1 = arith.constant 0 : i32
    return %arg0, %c0_i32, %c0_i32_0 : i32, i32, i32
  }
  func.func @transform_3(%arg0: i32, %arg1: i32) -> (i32, i32, i32) {
    %c0_i32 = arith.constant 0 : i32
    %c0_i32_0 = arith.constant 0 : i32
    %c0_i32_1 = arith.constant 0 : i32
    return %arg0, %c0_i32, %c0_i32_0 : i32, i32, i32
  }
  func.func @transform_4(%arg0: i32, %arg1: i32) -> (i32, i32, i32) {
    %c0_i32 = arith.constant 0 : i32
    %c0_i32_0 = arith.constant 0 : i32
    %c0_i32_1 = arith.constant 0 : i32
    return %arg1, %c0_i32, %c0_i32_0 : i32, i32, i32
  }
  func.func @transform_5(%arg0: i32, %arg1: i32) -> (i32, i32, i32) {
    %c0_i32 = arith.constant 0 : i32
    %c0_i32_0 = arith.constant 0 : i32
    %c0_i32_1 = arith.constant 0 : i32
    return %arg1, %c0_i32, %c0_i32_0 : i32, i32, i32
  }
  func.func @transform_6(%arg0: i32, %arg1: i32) -> (i32, i32, i32) {
    %c0_i32 = arith.constant 0 : i32
    %c0_i32_0 = arith.constant 0 : i32
    %c0_i32_1 = arith.constant 0 : i32
    return %arg1, %c0_i32, %c0_i32_0 : i32, i32, i32
  }
  func.func @transform_7(%arg0: i32, %arg1: i32) -> (i32, i32, i32) {
    %c0_i32 = arith.constant 0 : i32
    %c0_i32_0 = arith.constant 0 : i32
    %c0_i32_1 = arith.constant 0 : i32
    return %arg1, %c0_i32, %c0_i32_0 : i32, i32, i32
  }
  func.func @transform_8(%arg0: i32, %arg1: i32) -> (i32, i32, i32) {
    %c0_i32 = arith.constant 0 : i32
    %c0_i32_0 = arith.constant 0 : i32
    %c0_i32_1 = arith.constant 0 : i32
    return %arg1, %c0_i32, %c0_i32_0 : i32, i32, i32
  }
  func.func @transform_9(%arg0: i32, %arg1: i32) -> (i32, i32, i32) {
    %c0_i32 = arith.constant 0 : i32
    %c0_i32_0 = arith.constant 0 : i32
    %c0_i32_1 = arith.constant 0 : i32
    return %arg1, %c0_i32, %c0_i32_0 : i32, i32, i32
  }
  func.func @transform_10(%arg0: i32, %arg1: i32) -> (i32, i32, i32) {
    %c0_i32 = arith.constant 0 : i32
    %c0_i32_0 = arith.constant 0 : i32
    %c0_i32_1 = arith.constant 0 : i32
    return %arg1, %c0_i32, %c0_i32_0 : i32, i32, i32
  }
  func.func @transform_11(%arg0: i32, %arg1: i32) -> (i32, i32, i32) {
    %c0_i32 = arith.constant 0 : i32
    %c0_i32_0 = arith.constant 0 : i32
    %c0_i32_1 = arith.constant 0 : i32
    return %arg1, %c0_i32, %c0_i32_0 : i32, i32, i32
  }
  func.func @transform_12(%arg0: i32, %arg1: i32) -> (i32, i32, i32) {
    %c0_i32 = arith.constant 0 : i32
    %c0_i32_0 = arith.constant 0 : i32
    %c0_i32_1 = arith.constant 0 : i32
    return %arg1, %c0_i32, %c0_i32_0 : i32, i32, i32
  }
  func.func @transform_13(%arg0: i32, %arg1: i32) -> (i32, i32, i32) {
    %c0_i32 = arith.constant 0 : i32
    %c0_i32_0 = arith.constant 0 : i32
    %c0_i32_1 = arith.constant 0 : i32
    return %arg1, %c0_i32, %c0_i32_0 : i32, i32, i32
  }
  func.func @transform_14(%arg0: i32, %arg1: i32) -> (i32, i32, i32) {
    %c0_i32 = arith.constant 0 : i32
    %c0_i32_0 = arith.constant 0 : i32
    %c0_i32_1 = arith.constant 0 : i32
    return %arg0, %c0_i32, %c0_i32_0 : i32, i32, i32
  }
}

</mosaic_0001>

<llo_original>
// kernel: _lambda_.5
$region0: #{_lambda_.5}
  #allocation0 [shape = 'u32[]', space=smem, size = 0x4, offset = 0x4, fixed_abs, tag = 'smem constant byte address 0x4 - core index']
  #allocation1 [shape = 'u32[144,128]{1,0:T(1,128)}', space=vmem, size = 0x12000, scoped, tag = 'internal scratch']
  %s0 = inlined_call_operand.vmem [shape: f32[2,16,256], index: 0, kind: input, shape index: {}]
  %s1 = inlined_call_operand.vmem [shape: f32[2,16,256], index: 1, kind: input, shape index: {}]
  %s2 = inlined_call_operand.vmem [shape: f32[2,16,1], index: 2, kind: input, shape index: {}]
  %s3 = inlined_call_operand.vmem [shape: f32[2,16,128], index: 3, kind: input, shape index: {}]
  %s4 = inlined_call_operand.vmem [shape: bf16[256,512], index: 4, kind: input, shape index: {}]
  %s5 = inlined_call_operand.vmem [shape: f32[1,512], index: 5, kind: input, shape index: {}]
  %s6 = inlined_call_operand.vmem [shape: bf16[256,128], index: 6, kind: input, shape index: {}]
  %s7 = inlined_call_operand.vmem [shape: f32[1,128], index: 7, kind: input, shape index: {}]
  %s8 = inlined_call_operand.hbm [shape: f32[1,1], index: 8, kind: output, shape index: {}]
  %s9 = sld [smem:[#allocation0]]
  $region69: #{_lambda_.5} parent=0
    _
  %s11 = ssub.s32 1, %s9
  %s12 = scalar_select 0, %s11, %s9
  $region1: #{_lambda_.5} parent=0
    #allocation2 [shape = 'u8[512]{0}', space=vmem, size = 0x400, scoped, tag = 'output window, operand 0, single buffered']
    #allocation3 [shape = 's32[2]{0}', space=sflag, size = 0x8, scoped, tag = 'scoped memory for _lambda_.5']
    %13 = vsyncpa [#allocation3], 0
    loop: start=0, step=1, limit=4
    $region2: #{_lambda_.5} parent=1 // loop_pre_header
      _
    $region3: #{_lambda_.5} parent=1 // loop_header
      %s15 = sphi 0, %s19
      %p16 = scmp.ge.s32.totalorder %s15, 4
      %s25 = sphi 0, %s27
      %s28 = sphi 0, %s25
      %s29 = sphi 0, %s28
      %s45 = sphi 0, %s29
      %s51 = sphi 0, %s53
      %s54 = sphi 0, %s51
      %s55 = sphi 0, %s54
      %s71 = sphi 0, %s55
      %s77 = sphi 0, %s79
      %s80 = sphi 0, %s77
      %s81 = sphi 0, %s80
      %s97 = sphi 0, %s81
      %s103 = sphi 0, %s105
      %s106 = sphi 0, %s103
      %s107 = sphi 0, %s106
      %s123 = sphi 0, %s107
      %s127 = sphi 0, %s127
      %s129 = sphi 0, %s127
      %s130 = sphi 0, %s129
      %s144 = sphi 0, %s130
      %s148 = sphi 0, %s148
      %s150 = sphi 0, %s148
      %s151 = sphi 0, %s150
      %s165 = sphi 0, %s151
      %s169 = sphi 0, %s169
      %s171 = sphi 0, %s169
      %s172 = sphi 0, %s171
      %s186 = sphi 0, %s172
      %s190 = sphi 0, %s190
      %s192 = sphi 0, %s190
      %s193 = sphi 0, %s192
      %s207 = sphi 0, %s193
      %s211 = sphi 0, %s211
      %s213 = sphi 0, %s211
      %s214 = sphi 0, %s213
      %s228 = sphi 0, %s214
    $region4: #{_lambda_.5} parent=1 // loop_header_branch
      %18 = sbr.rel (%p16) target = $region8
    $region5: #{_lambda_.5} parent=1 // loop_body
      %s20 = ssub.s32 %s15, 1
      %s21 = ssub.s32 %s15, 2
      %s22 = sadd.s32 %s15, 1
      %s23 = ssub.s32 %s15, %s22
      %p24 = scmp.eq.s32.totalorder %s23, 0
      %s26 = sadd.s32 %s25, 1
      %s27 = scalar_select %p24, %s25, %s26
      %p30 = pneg %p24
      %p31 = scmp.eq.s32.totalorder %s15, 1
      %p32 = por %p30, %p31
      %p33 = scmp.ne.s32.totalorder %s25, %s28
      %p34 = scmp.eq.s32.totalorder %s15, 0
      %p35 = por %p33, %p34
      %p36 = scmp.ne.s32.totalorder %s25, %s28
      %p37 = scmp.eq.s32.totalorder %s20, 1
      %p38 = por %p36, %p37
      %p39 = scmp.ne.s32.totalorder %s28, %s29
      %p40 = scmp.eq.s32.totalorder %s20, 0
      %p41 = por %p39, %p40
      %p42 = scmp.ne.s32.totalorder %s28, %s29
      %p43 = scmp.eq.s32.totalorder %s21, 1
      %p44 = por %p42, %p43
      %p46 = scmp.ne.s32.totalorder %s29, %s45
      %p47 = scmp.eq.s32.totalorder %s21, 0
      %p48 = por %p46, %p47
      %s49 = ssub.s32 %s15, %s22
      %p50 = scmp.eq.s32.totalorder %s49, 0
      %s52 = sadd.s32 %s51, 1
      %s53 = scalar_select %p50, %s51, %s52
      %p56 = pneg %p50
      %p57 = scmp.eq.s32.totalorder %s15, 1
      %p58 = por %p56, %p57
      %p59 = scmp.ne.s32.totalorder %s51, %s54
      %p60 = scmp.eq.s32.totalorder %s15, 0
      %p61 = por %p59, %p60
      %p62 = scmp.ne.s32.totalorder %s51, %s54
      %p63 = scmp.eq.s32.totalorder %s20, 1
      %p64 = por %p62, %p63
      %p65 = scmp.ne.s32.totalorder %s54, %s55
      %p66 = scmp.eq.s32.totalorder %s20, 0
      %p67 = por %p65, %p66
      %p68 = scmp.ne.s32.totalorder %s54, %s55
      %p69 = scmp.eq.s32.totalorder %s21, 1
      %p70 = por %p68, %p69
      %p72 = scmp.ne.s32.totalorder %s55, %s71
      %p73 = scmp.eq.s32.totalorder %s21, 0
      %p74 = por %p72, %p73
      %s75 = ssub.s32 %s15, %s22
      %p76 = scmp.eq.s32.totalorder %s75, 0
      %s78 = sadd.s32 %s77, 1
      %s79 = scalar_select %p76, %s77, %s78
      %p82 = pneg %p76
      %p83 = scmp.eq.s32.totalorder %s15, 1
      %p84 = por %p82, %p83
      %p85 = scmp.ne.s32.totalorder %s77, %s80
      %p86 = scmp.eq.s32.totalorder %s15, 0
      %p87 = por %p85, %p86
      %p88 = scmp.ne.s32.totalorder %s77, %s80
      %p89 = scmp.eq.s32.totalorder %s20, 1
      %p90 = por %p88, %p89
      %p91 = scmp.ne.s32.totalorder %s80, %s81
      %p92 = scmp.eq.s32.totalorder %s20, 0
      %p93 = por %p91, %p92
      %p94 = scmp.ne.s32.totalorder %s80, %s81
      %p95 = scmp.eq.s32.totalorder %s21, 1
      %p96 = por %p94, %p95
      %p98 = scmp.ne.s32.totalorder %s81, %s97
      %p99 = scmp.eq.s32.totalorder %s21, 0
      %p100 = por %p98, %p99
      %s101 = ssub.s32 %s15, %s22
      %p102 = scmp.eq.s32.totalorder %s101, 0
      %s104 = sadd.s32 %s103, 1
      %s105 = scalar_select %p102, %s103, %s104
      %p108 = pneg %p102
      %p109 = scmp.eq.s32.totalorder %s15, 1
      %p110 = por %p108, %p109
      %p111 = scmp.ne.s32.totalorder %s103, %s106
      %p112 = scmp.eq.s32.totalorder %s15, 0
      %p113 = por %p111, %p112
      %p114 = scmp.ne.s32.totalorder %s103, %s106
      %p115 = scmp.eq.s32.totalorder %s20, 1
      %p116 = por %p114, %p115
      %p117 = scmp.ne.s32.totalorder %s106, %s107
      %p118 = scmp.eq.s32.totalorder %s20, 0
      %p119 = por %p117, %p118
      %p120 = scmp.ne.s32.totalorder %s106, %s107
      %p121 = scmp.eq.s32.totalorder %s21, 1
      %p122 = por %p120, %p121
      %p124 = scmp.ne.s32.totalorder %s107, %s123
      %p125 = scmp.eq.s32.totalorder %s21, 0
      %p126 = por %p124, %p125
      %s128 = sadd.s32 %s127, 1
      %p131 = scmp.eq.s32.totalorder %s15, 1
      %p132 = scmp.ne.s32.totalorder %s127, %s129
      %p133 = scmp.eq.s32.totalorder %s15, 0
      %p134 = por %p132, %p133
      %p135 = scmp.ne.s32.totalorder %s127, %s129
      %p136 = scmp.eq.s32.totalorder %s20, 1
      %p137 = por %p135, %p136
      %p138 = scmp.ne.s32.totalorder %s129, %s130
      %p139 = scmp.eq.s32.totalorder %s20, 0
      %p140 = por %p138, %p139
      %p141 = scmp.ne.s32.totalorder %s129, %s130
      %p142 = scmp.eq.s32.totalorder %s21, 1
      %p143 = por %p141, %p142
      %p145 = scmp.ne.s32.totalorder %s130, %s144
      %p146 = scmp.eq.s32.totalorder %s21, 0
      %p147 = por %p145, %p146
      %s149 = sadd.s32 %s148, 1
      %p152 = scmp.eq.s32.totalorder %s15, 1
      %p153 = scmp.ne.s32.totalorder %s148, %s150
      %p154 = scmp.eq.s32.totalorder %s15, 0
      %p155 = por %p153, %p154
      %p156 = scmp.ne.s32.totalorder %s148, %s150
      %p157 = scmp.eq.s32.totalorder %s20, 1
      %p158 = por %p156, %p157
      %p159 = scmp.ne.s32.totalorder %s150, %s151
      %p160 = scmp.eq.s32.totalorder %s20, 0
      %p161 = por %p159, %p160
      %p162 = scmp.ne.s32.totalorder %s150, %s151
      %p163 = scmp.eq.s32.totalorder %s21, 1
      %p164 = por %p162, %p163
      %p166 = scmp.ne.s32.totalorder %s151, %s165
      %p167 = scmp.eq.s32.totalorder %s21, 0
      %p168 = por %p166, %p167
      %s170 = sadd.s32 %s169, 1
      %p173 = scmp.eq.s32.totalorder %s15, 1
      %p174 = scmp.ne.s32.totalorder %s169, %s171
      %p175 = scmp.eq.s32.totalorder %s15, 0
      %p176 = por %p174, %p175
      %p177 = scmp.ne.s32.totalorder %s169, %s171
      %p178 = scmp.eq.s32.totalorder %s20, 1
      %p179 = por %p177, %p178
      %p180 = scmp.ne.s32.totalorder %s171, %s172
      %p181 = scmp.eq.s32.totalorder %s20, 0
      %p182 = por %p180, %p181
      %p183 = scmp.ne.s32.totalorder %s171, %s172
      %p184 = scmp.eq.s32.totalorder %s21, 1
      %p185 = por %p183, %p184
      %p187 = scmp.ne.s32.totalorder %s172, %s186
      %p188 = scmp.eq.s32.totalorder %s21, 0
      %p189 = por %p187, %p188
      %s191 = sadd.s32 %s190, 1
      %p194 = scmp.eq.s32.totalorder %s15, 1
      %p195 = scmp.ne.s32.totalorder %s190, %s192
      %p196 = scmp.eq.s32.totalorder %s15, 0
      %p197 = por %p195, %p196
      %p198 = scmp.ne.s32.totalorder %s190, %s192
      %p199 = scmp.eq.s32.totalorder %s20, 1
      %p200 = por %p198, %p199
      %p201 = scmp.ne.s32.totalorder %s192, %s193
      %p202 = scmp.eq.s32.totalorder %s20, 0
      %p203 = por %p201, %p202
      %p204 = scmp.ne.s32.totalorder %s192, %s193
      %p205 = scmp.eq.s32.totalorder %s21, 1
      %p206 = por %p204, %p205
      %p208 = scmp.ne.s32.totalorder %s193, %s207
      %p209 = scmp.eq.s32.totalorder %s21, 0
      %p210 = por %p208, %p209
      %s212 = sadd.s32 %s211, 1
      %p215 = scmp.eq.s32.totalorder %s15, 1
      %p216 = scmp.ne.s32.totalorder %s211, %s213
      %p217 = scmp.eq.s32.totalorder %s15, 0
      %p218 = por %p216, %p217
      %p219 = scmp.ne.s32.totalorder %s211, %s213
      %p220 = scmp.eq.s32.totalorder %s20, 1
      %p221 = por %p219, %p220
      %p222 = scmp.ne.s32.totalorder %s213, %s214
      %p223 = scmp.eq.s32.totalorder %s20, 0
      %p224 = por %p222, %p223
      %p225 = scmp.ne.s32.totalorder %s213, %s214
      %p226 = scmp.eq.s32.totalorder %s21, 1
      %p227 = por %p225, %p226
      %p229 = scmp.ne.s32.totalorder %s214, %s228
      %p230 = scmp.eq.s32.totalorder %s21, 0
      %p231 = por %p229, %p230
      %p232 = scmp.le.s32.totalorder 1, %s15
      %p233 = scmp.lt.s32.totalorder %s15, 3
      %p234 = pnand %p232, %p233
      %p235 = pneg %p234
      // Predicated region
      $region9: #{_lambda_.5} parent=5 // pred_check
        _
      $region10: #{_lambda_.5} parent=5 // pred_check_branch
        %237 = sbr.rel (%p234) target = $region12
      $region11: #{_lambda_.5} parent=5 // pred_region
        %s238 = ssub.s32 %s15, 1
        // Predicated region
        $region13: #{_lambda_.5} parent=11 // pred_check
          %p239 = pneg %p140
        $region14: #{_lambda_.5} parent=11 // pred_check_branch
          %241 = sbr.rel (%p239) target = $region16
        $region15: #{_lambda_.5} parent=11 // pred_region
          _
        $region16: #{_lambda_.5} parent=11 // pred_fallthru
          _
        // Predicated region
        $region17: #{_lambda_.5} parent=11 // pred_check
          %p242 = pneg %p161
        $region18: #{_lambda_.5} parent=11 // pred_check_branch
          %244 = sbr.rel (%p242) target = $region20
        $region19: #{_lambda_.5} parent=11 // pred_region
          _
        $region20: #{_lambda_.5} parent=11 // pred_fallthru
          _
        // Predicated region
        $region21: #{_lambda_.5} parent=11 // pred_check
          %p245 = pneg %p182
        $region22: #{_lambda_.5} parent=11 // pred_check_branch
          %247 = sbr.rel (%p245) target = $region24
        $region23: #{_lambda_.5} parent=11 // pred_region
          _
        $region24: #{_lambda_.5} parent=11 // pred_fallthru
          _
        // Predicated region
        $region25: #{_lambda_.5} parent=11 // pred_check
          %p248 = pneg %p203
        $region26: #{_lambda_.5} parent=11 // pred_check_branch
          %250 = sbr.rel (%p248) target = $region28
        $region27: #{_lambda_.5} parent=11 // pred_region
          _
        $region28: #{_lambda_.5} parent=11 // pred_fallthru
          _
      $region12: #{_lambda_.5} parent=5 // pred_fallthru
        _
      %p251 = scmp.lt.s32.totalorder %s15, 2
      // Predicated region
      $region29: #{_lambda_.5} parent=5 // pred_check
        %p252 = pneg %p251
      $region30: #{_lambda_.5} parent=5 // pred_check_branch
        %254 = sbr.rel (%p252) target = $region32
      $region31: #{_lambda_.5} parent=5 // pred_region
        // Predicated region
        $region33: #{_lambda_.5} parent=31 // pred_check
          %p255 = pneg %p35
        $region34: #{_lambda_.5} parent=31 // pred_check_branch
          %257 = sbr.rel (%p255) target = $region36
        $region35: #{_lambda_.5} parent=31 // pred_region
          %p258 = scmp.lt.s32.totalorder %s15, 1
          %s259 = scalar_select %p258, %s15, 1
          %s260 = smul.addr %s259, 4
          %s261 = smul.addr %s260, 8
          %s262 = scalar_lea.vmem %s0, %s261
        $region36: #{_lambda_.5} parent=31 // pred_fallthru
          _
        // Predicated region
        $region37: #{_lambda_.5} parent=31 // pred_check
          %p263 = pneg %p61
        $region38: #{_lambda_.5} parent=31 // pred_check_branch
          %265 = sbr.rel (%p263) target = $region40
        $region39: #{_lambda_.5} parent=31 // pred_region
          %p266 = scmp.lt.s32.totalorder %s15, 1
          %s267 = scalar_select %p266, %s15, 1
          %s268 = smul.addr %s267, 4
          %s269 = smul.addr %s268, 8
          %s270 = scalar_lea.vmem %s1, %s269
        $region40: #{_lambda_.5} parent=31 // pred_fallthru
          _
        // Predicated region
        $region41: #{_lambda_.5} parent=31 // pred_check
          %p271 = pneg %p87
        $region42: #{_lambda_.5} parent=31 // pred_check_branch
          %273 = sbr.rel (%p271) target = $region44
        $region43: #{_lambda_.5} parent=31 // pred_region
          %p274 = scmp.lt.s32.totalorder %s15, 1
          %s275 = scalar_select %p274, %s15, 1
          %s276 = smul.addr %s275, 2
          %s277 = smul.addr %s276, 8
          %s278 = scalar_lea.vmem %s2, %s277
        $region44: #{_lambda_.5} parent=31 // pred_fallthru
          _
        // Predicated region
        $region45: #{_lambda_.5} parent=31 // pred_check
          %p279 = pneg %p113
        $region46: #{_lambda_.5} parent=31 // pred_check_branch
          %281 = sbr.rel (%p279) target = $region48
        $region47: #{_lambda_.5} parent=31 // pred_region
          %p282 = scmp.lt.s32.totalorder %s15, 1
          %s283 = scalar_select %p282, %s15, 1
          %s284 = smul.addr %s283, 2
          %s285 = smul.addr %s284, 8
          %s286 = scalar_lea.vmem %s3, %s285
        $region48: #{_lambda_.5} parent=31 // pred_fallthru
          _
      $region32: #{_lambda_.5} parent=5 // pred_fallthru
        _
      %p287 = scmp.le.s32.totalorder 1, %s15
      %p288 = scmp.lt.s32.totalorder %s15, 3
      %p289 = pnand %p287, %p288
      %p290 = pneg %p289
      // Predicated region
      $region49: #{_lambda_.5} parent=5 // pred_check
        _
      $region50: #{_lambda_.5} parent=5 // pred_check_branch
        %292 = sbr.rel (%p289) target = $region52
      $region51: #{_lambda_.5} parent=5 // pred_region
        %s293 = ssub.s32 %s15, 1
        %p294 = scmp.lt.s32.totalorder %s20, 1
        %s295 = scalar_select %p294, %s20, 1
        %s296 = smul.addr %s295, 4
        %s297 = smul.addr %s296, 8
        %s298 = scalar_lea.vmem %s0, %s297
        %p299 = pneg %p41
        %p300 = pneg %p38
        %p301 = scmp.lt.s32.totalorder %s20, 1
        %s302 = scalar_select %p301, %s20, 1
        %s303 = smul.addr %s302, 4
        %s304 = smul.addr %s303, 8
        %s305 = scalar_lea.vmem %s1, %s304
        %p306 = pneg %p67
        %p307 = pneg %p64
        %p308 = scmp.lt.s32.totalorder %s20, 1
        %s309 = scalar_select %p308, %s20, 1
        %s310 = smul.addr %s309, 2
        %s311 = smul.addr %s310, 8
        %s312 = scalar_lea.vmem %s2, %s311
        %p313 = pneg %p93
        %p314 = pneg %p90
        %p315 = scmp.lt.s32.totalorder %s20, 1
        %s316 = scalar_select %p315, %s20, 1
        %s317 = smul.addr %s316, 2
        %s318 = smul.addr %s317, 8
        %s319 = scalar_lea.vmem %s3, %s318
        %p320 = pneg %p119
        %p321 = pneg %p116
        %p322 = pneg %p140
        %p323 = pneg %p137
        %p324 = pneg %p161
        %p325 = pneg %p158
        %p326 = pneg %p182
        %p327 = pneg %p179
        %p328 = pneg %p203
        %p329 = pneg %p200
        %p330 = pneg %p224
        %p331 = pneg %p221
        %p332 = scmp.lt.s32.totalorder %s20, 1
        %s333 = scalar_select %p332, %s20, 1
        %s334 = smul.addr %s333, 4
        %s335 = smul.addr %s334, 8
        %s336 = scalar_lea.vmem %s0, %s335
        %p337 = scmp.lt.s32.totalorder %s20, 1
        %s338 = scalar_select %p337, %s20, 1
        %s339 = smul.addr %s338, 4
        %s340 = smul.addr %s339, 8
        %s341 = scalar_lea.vmem %s1, %s340
        %p342 = scmp.lt.s32.totalorder %s20, 1
        %s343 = scalar_select %p342, %s20, 1
        %s344 = smul.addr %s343, 2
        %s345 = smul.addr %s344, 8
        %s346 = scalar_lea.vmem %s2, %s345
        %p347 = scmp.lt.s32.totalorder %s20, 1
        %s348 = scalar_select %p347, %s20, 1
        %s349 = smul.addr %s348, 2
        %s350 = smul.addr %s349, 8
        %s351 = scalar_lea.vmem %s3, %s350
        %p353 = scmp.eq.s32.totalorder %s20, 0
        // Predicated region
        $region53: #{_lambda_.5} parent=51 // pred_check
          %p354 = pneg %p353
        $region54: #{_lambda_.5} parent=51 // pred_check_branch
          %356 = sbr.rel (%p354) target = $region56
        $region55: #{_lambda_.5} parent=51 // pred_region
          %vm357 = vcmask 0
          %358 = vst.msk [vmem:[#allocation2] sm:$0x1] %vm357, 0.0
        $region56: #{_lambda_.5} parent=51 // pred_fallthru
          _
        %v359 = vld [vmem:[%s336] sm:$0xff]
        %v360 = vld [vmem:[%s336 + $0x8] sm:$0xff]
        %v361 = vld [vmem:[%s336 + $0x10] sm:$0xff]
        %v362 = vld [vmem:[%s336 + $0x18] sm:$0xff]
        %v363 = vld [vmem:[%s341] sm:$0xff]
        %v364 = vld [vmem:[%s341 + $0x8] sm:$0xff]
        %v365 = vld [vmem:[%s341 + $0x10] sm:$0xff]
        %v366 = vld [vmem:[%s341 + $0x18] sm:$0xff]
        %v367 = vld [vmem:[%s346] sm:$0xff]
        %v368 = vld [vmem:[%s346 + $0x8] sm:$0xff]
        %v369 = vld [vmem:[%s4] sm:$0xff]
        %v370 = vld [vmem:[%s4 + $0x8] sm:$0xff]
        %v371 = vld [vmem:[%s4 + $0x10] sm:$0xff]
        %v372 = vld [vmem:[%s4 + $0x18] sm:$0xff]
        %v373 = vld [vmem:[%s4 + $0x20] sm:$0xff]
        %v374 = vld [vmem:[%s4 + $0x28] sm:$0xff]
        %v375 = vld [vmem:[%s4 + $0x30] sm:$0xff]
        %v376 = vld [vmem:[%s4 + $0x38] sm:$0xff]
        %v377 = vld [vmem:[%s4 + $0x40] sm:$0xff]
        %v378 = vld [vmem:[%s4 + $0x48] sm:$0xff]
        %v379 = vld [vmem:[%s4 + $0x50] sm:$0xff]
        %v380 = vld [vmem:[%s4 + $0x58] sm:$0xff]
        %v381 = vld [vmem:[%s4 + $0x60] sm:$0xff]
        %v382 = vld [vmem:[%s4 + $0x68] sm:$0xff]
        %v383 = vld [vmem:[%s4 + $0x70] sm:$0xff]
        %v384 = vld [vmem:[%s4 + $0x78] sm:$0xff]
        %v385 = vld [vmem:[%s4 + $0x80] sm:$0xff]
        %v386 = vld [vmem:[%s4 + $0x88] sm:$0xff]
        %v387 = vld [vmem:[%s4 + $0x90] sm:$0xff]
        %v388 = vld [vmem:[%s4 + $0x98] sm:$0xff]
        %v389 = vld [vmem:[%s4 + $0xa0] sm:$0xff]
        %v390 = vld [vmem:[%s4 + $0xa8] sm:$0xff]
        %v391 = vld [vmem:[%s4 + $0xb0] sm:$0xff]
        %v392 = vld [vmem:[%s4 + $0xb8] sm:$0xff]
        %v393 = vld [vmem:[%s4 + $0xc0] sm:$0xff]
        %v394 = vld [vmem:[%s4 + $0xc8] sm:$0xff]
        %v395 = vld [vmem:[%s4 + $0xd0] sm:$0xff]
        %v396 = vld [vmem:[%s4 + $0xd8] sm:$0xff]
        %v397 = vld [vmem:[%s4 + $0xe0] sm:$0xff]
        %v398 = vld [vmem:[%s4 + $0xe8] sm:$0xff]
        %v399 = vld [vmem:[%s4 + $0xf0] sm:$0xff]
        %v400 = vld [vmem:[%s4 + $0xf8] sm:$0xff]
        %v401 = vld [vmem:[%s4 + $0x100] sm:$0xff]
        %v402 = vld [vmem:[%s4 + $0x108] sm:$0xff]
        %v403 = vld [vmem:[%s4 + $0x110] sm:$0xff]
        %v404 = vld [vmem:[%s4 + $0x118] sm:$0xff]
        %v405 = vld [vmem:[%s4 + $0x120] sm:$0xff]
        %v406 = vld [vmem:[%s4 + $0x128] sm:$0xff]
        %v407 = vld [vmem:[%s4 + $0x130] sm:$0xff]
        %v408 = vld [vmem:[%s4 + $0x138] sm:$0xff]
        %v409 = vld [vmem:[%s4 + $0x140] sm:$0xff]
        %v410 = vld [vmem:[%s4 + $0x148] sm:$0xff]
        %v411 = vld [vmem:[%s4 + $0x150] sm:$0xff]
        %v412 = vld [vmem:[%s4 + $0x158] sm:$0xff]
        %v413 = vld [vmem:[%s4 + $0x160] sm:$0xff]
        %v414 = vld [vmem:[%s4 + $0x168] sm:$0xff]
        %v415 = vld [vmem:[%s4 + $0x170] sm:$0xff]
        %v416 = vld [vmem:[%s4 + $0x178] sm:$0xff]
        %v417 = vld [vmem:[%s4 + $0x180] sm:$0xff]
        %v418 = vld [vmem:[%s4 + $0x188] sm:$0xff]
        %v419 = vld [vmem:[%s4 + $0x190] sm:$0xff]
        %v420 = vld [vmem:[%s4 + $0x198] sm:$0xff]
        %v421 = vld [vmem:[%s4 + $0x1a0] sm:$0xff]
        %v422 = vld [vmem:[%s4 + $0x1a8] sm:$0xff]
        %v423 = vld [vmem:[%s4 + $0x1b0] sm:$0xff]
        %v424 = vld [vmem:[%s4 + $0x1b8] sm:$0xff]
        %v425 = vld [vmem:[%s4 + $0x1c0] sm:$0xff]
        %v426 = vld [vmem:[%s4 + $0x1c8] sm:$0xff]
        %v427 = vld [vmem:[%s4 + $0x1d0] sm:$0xff]
        %v428 = vld [vmem:[%s4 + $0x1d8] sm:$0xff]
        %v429 = vld [vmem:[%s4 + $0x1e0] sm:$0xff]
        %v430 = vld [vmem:[%s4 + $0x1e8] sm:$0xff]
        %v431 = vld [vmem:[%s4 + $0x1f0] sm:$0xff]
        %v432 = vld [vmem:[%s4 + $0x1f8] sm:$0xff]
        %v433 = vpack.c.bf16 %v365, %v363
        %v434 = vpack.c.bf16 %v366, %v364
        %v435 = vld [vmem:[%s5] sm:$0xf]
        %v437 = vlaneseq
        %v438 = vshrl.u32 %v437, 7
        %v439 = vsub.s32 0, %v438
        %v440 = vrot.slane %v435, %v439
        %v441 = vlaneseq
        %v442 = vshrl.u32 %v441, 7
        %v443 = vsub.s32 1, %v442
        %v444 = vrot.slane %v435, %v443
        %v445 = vlaneseq
        %v446 = vshrl.u32 %v445, 7
        %v447 = vsub.s32 2, %v446
        %v448 = vrot.slane %v435, %v447
        %v449 = vlaneseq
        %v450 = vshrl.u32 %v449, 7
        %v451 = vsub.s32 3, %v450
        %v452 = vrot.slane %v435, %v451
        %v521 = vunpack.c.l.b16 %v369
        %v522 = vunpack.c.h.b16 %v369
        %v523 = vunpack.c.l.b16 %v370
        %v524 = vunpack.c.h.b16 %v370
        %v525 = vunpack.c.l.b16 %v371
        %v526 = vunpack.c.h.b16 %v371
        %v527 = vunpack.c.l.b16 %v372
        %v528 = vunpack.c.h.b16 %v372
        %v529 = vunpack.c.l.b16 %v373
        %v530 = vunpack.c.h.b16 %v373
        %v531 = vunpack.c.l.b16 %v374
        %v532 = vunpack.c.h.b16 %v374
        %v533 = vunpack.c.l.b16 %v375
        %v534 = vunpack.c.h.b16 %v375
        %v535 = vunpack.c.l.b16 %v376
        %v536 = vunpack.c.h.b16 %v376
        %v537 = vunpack.c.l.b16 %v377
        %v538 = vunpack.c.h.b16 %v377
        %v539 = vunpack.c.l.b16 %v378
        %v540 = vunpack.c.h.b16 %v378
        %v541 = vunpack.c.l.b16 %v379
        %v542 = vunpack.c.h.b16 %v379
        %v543 = vunpack.c.l.b16 %v380
        %v544 = vunpack.c.h.b16 %v380
        %v545 = vunpack.c.l.b16 %v381
        %v546 = vunpack.c.h.b16 %v381
        %v547 = vunpack.c.l.b16 %v382
        %v548 = vunpack.c.h.b16 %v382
        %v549 = vunpack.c.l.b16 %v383
        %v550 = vunpack.c.h.b16 %v383
        %v551 = vunpack.c.l.b16 %v384
        %v552 = vunpack.c.h.b16 %v384
        %v553 = vunpack.c.l.b16 %v385
        %v554 = vunpack.c.h.b16 %v385
        %v555 = vunpack.c.l.b16 %v386
        %v556 = vunpack.c.h.b16 %v386
        %v557 = vunpack.c.l.b16 %v387
        %v558 = vunpack.c.h.b16 %v387
        %v559 = vunpack.c.l.b16 %v388
        %v560 = vunpack.c.h.b16 %v388
        %v561 = vunpack.c.l.b16 %v389
        %v562 = vunpack.c.h.b16 %v389
        %v563 = vunpack.c.l.b16 %v390
        %v564 = vunpack.c.h.b16 %v390
        %v565 = vunpack.c.l.b16 %v391
        %v566 = vunpack.c.h.b16 %v391
        %v567 = vunpack.c.l.b16 %v392
        %v568 = vunpack.c.h.b16 %v392
        %v569 = vunpack.c.l.b16 %v393
        %v570 = vunpack.c.h.b16 %v393
        %v571 = vunpack.c.l.b16 %v394
        %v572 = vunpack.c.h.b16 %v394
        %v573 = vunpack.c.l.b16 %v395
        %v574 = vunpack.c.h.b16 %v395
        %v575 = vunpack.c.l.b16 %v396
        %v576 = vunpack.c.h.b16 %v396
        %v577 = vunpack.c.l.b16 %v397
        %v578 = vunpack.c.h.b16 %v397
        %v579 = vunpack.c.l.b16 %v398
        %v580 = vunpack.c.h.b16 %v398
        %v581 = vunpack.c.l.b16 %v399
        %v582 = vunpack.c.h.b16 %v399
        %v583 = vunpack.c.l.b16 %v400
        %v584 = vunpack.c.h.b16 %v400
        %v585 = vunpack.c.l.b16 %v401
        %v586 = vunpack.c.h.b16 %v401
        %v587 = vunpack.c.l.b16 %v402
        %v588 = vunpack.c.h.b16 %v402
        %v589 = vunpack.c.l.b16 %v403
        %v590 = vunpack.c.h.b16 %v403
        %v591 = vunpack.c.l.b16 %v404
        %v592 = vunpack.c.h.b16 %v404
        %v593 = vunpack.c.l.b16 %v405
        %v594 = vunpack.c.h.b16 %v405
        %v595 = vunpack.c.l.b16 %v406
        %v596 = vunpack.c.h.b16 %v406
        %v597 = vunpack.c.l.b16 %v407
        %v598 = vunpack.c.h.b16 %v407
        %v599 = vunpack.c.l.b16 %v408
        %v600 = vunpack.c.h.b16 %v408
        %v601 = vunpack.c.l.b16 %v409
        %v602 = vunpack.c.h.b16 %v409
        %v603 = vunpack.c.l.b16 %v410
        %v604 = vunpack.c.h.b16 %v410
        %v605 = vunpack.c.l.b16 %v411
        %v606 = vunpack.c.h.b16 %v411
        %v607 = vunpack.c.l.b16 %v412
        %v608 = vunpack.c.h.b16 %v412
        %v609 = vunpack.c.l.b16 %v413
        %v610 = vunpack.c.h.b16 %v413
        %v611 = vunpack.c.l.b16 %v414
        %v612 = vunpack.c.h.b16 %v414
        %v613 = vunpack.c.l.b16 %v415
        %v614 = vunpack.c.h.b16 %v415
        %v615 = vunpack.c.l.b16 %v416
        %v616 = vunpack.c.h.b16 %v416
        %v617 = vunpack.c.l.b16 %v417
        %v618 = vunpack.c.h.b16 %v417
        %v619 = vunpack.c.l.b16 %v418
        %v620 = vunpack.c.h.b16 %v418
        %v621 = vunpack.c.l.b16 %v419
        %v622 = vunpack.c.h.b16 %v419
        %v623 = vunpack.c.l.b16 %v420
        %v624 = vunpack.c.h.b16 %v420
        %v625 = vunpack.c.l.b16 %v421
        %v626 = vunpack.c.h.b16 %v421
        %v627 = vunpack.c.l.b16 %v422
        %v628 = vunpack.c.h.b16 %v422
        %v629 = vunpack.c.l.b16 %v423
        %v630 = vunpack.c.h.b16 %v423
        %v631 = vunpack.c.l.b16 %v424
        %v632 = vunpack.c.h.b16 %v424
        %v633 = vunpack.c.l.b16 %v425
        %v634 = vunpack.c.h.b16 %v425
        %v635 = vunpack.c.l.b16 %v426
        %v636 = vunpack.c.h.b16 %v426
        %v637 = vunpack.c.l.b16 %v427
        %v638 = vunpack.c.h.b16 %v427
        %v639 = vunpack.c.l.b16 %v428
        %v640 = vunpack.c.h.b16 %v428
        %v641 = vunpack.c.l.b16 %v429
        %v642 = vunpack.c.h.b16 %v429
        %v643 = vunpack.c.l.b16 %v430
        %v644 = vunpack.c.h.b16 %v430
        %v645 = vunpack.c.l.b16 %v431
        %v646 = vunpack.c.h.b16 %v431
        %v647 = vunpack.c.l.b16 %v432
        %v648 = vunpack.c.h.b16 %v432
        %v649 = vpack.c.b16 %v525, %v521
        %v650 = vpack.c.b16 %v526, %v522
        %v651 = vpack.c.b16 %v527, %v523
        %v652 = vpack.c.b16 %v528, %v524
        %v653 = vpack.c.b16 %v533, %v529
        %v654 = vpack.c.b16 %v534, %v530
        %v655 = vpack.c.b16 %v535, %v531
        %v656 = vpack.c.b16 %v536, %v532
        %v657 = vpack.c.b16 %v541, %v537
        %v658 = vpack.c.b16 %v542, %v538
        %v659 = vpack.c.b16 %v543, %v539
        %v660 = vpack.c.b16 %v544, %v540
        %v661 = vpack.c.b16 %v549, %v545
        %v662 = vpack.c.b16 %v550, %v546
        %v663 = vpack.c.b16 %v551, %v547
        %v664 = vpack.c.b16 %v552, %v548
        %v665 = vpack.c.b16 %v557, %v553
        %v666 = vpack.c.b16 %v558, %v554
        %v667 = vpack.c.b16 %v559, %v555
        %v668 = vpack.c.b16 %v560, %v556
        %v669 = vpack.c.b16 %v565, %v561
        %v670 = vpack.c.b16 %v566, %v562
        %v671 = vpack.c.b16 %v567, %v563
        %v672 = vpack.c.b16 %v568, %v564
        %v673 = vpack.c.b16 %v573, %v569
        %v674 = vpack.c.b16 %v574, %v570
        %v675 = vpack.c.b16 %v575, %v571
        %v676 = vpack.c.b16 %v576, %v572
        %v677 = vpack.c.b16 %v581, %v577
        %v678 = vpack.c.b16 %v582, %v578
        %v679 = vpack.c.b16 %v583, %v579
        %v680 = vpack.c.b16 %v584, %v580
        %v681 = vpack.c.b16 %v589, %v585
        %v682 = vpack.c.b16 %v590, %v586
        %v683 = vpack.c.b16 %v591, %v587
        %v684 = vpack.c.b16 %v592, %v588
        %v685 = vpack.c.b16 %v597, %v593
        %v686 = vpack.c.b16 %v598, %v594
        %v687 = vpack.c.b16 %v599, %v595
        %v688 = vpack.c.b16 %v600, %v596
        %v689 = vpack.c.b16 %v605, %v601
        %v690 = vpack.c.b16 %v606, %v602
        %v691 = vpack.c.b16 %v607, %v603
        %v692 = vpack.c.b16 %v608, %v604
        %v693 = vpack.c.b16 %v613, %v609
        %v694 = vpack.c.b16 %v614, %v610
        %v695 = vpack.c.b16 %v615, %v611
        %v696 = vpack.c.b16 %v616, %v612
        %v697 = vpack.c.b16 %v621, %v617
        %v698 = vpack.c.b16 %v622, %v618
        %v699 = vpack.c.b16 %v623, %v619
        %v700 = vpack.c.b16 %v624, %v620
        %v701 = vpack.c.b16 %v629, %v625
        %v702 = vpack.c.b16 %v630, %v626
        %v703 = vpack.c.b16 %v631, %v627
        %v704 = vpack.c.b16 %v632, %v628
        %v705 = vpack.c.b16 %v637, %v633
        %v706 = vpack.c.b16 %v638, %v634
        %v707 = vpack.c.b16 %v639, %v635
        %v708 = vpack.c.b16 %v640, %v636
        %v709 = vpack.c.b16 %v645, %v641
        %v710 = vpack.c.b16 %v646, %v642
        %v711 = vpack.c.b16 %v647, %v643
        %v712 = vpack.c.b16 %v648, %v644
        %777 = vmatprep.subr.bf16.mxu0 %v678
        %778 = vmatpush1.bf16.msra.mxu0 %v677
        %779 = vmatprep.subr.bf16.mxu0 %v674
        %780 = vmatpush1.bf16.msra.mxu0 %v673
        %781 = vmatprep.subr.bf16.mxu0 %v670
        %782 = vmatpush1.bf16.msra.mxu0 %v669
        %783 = vmatprep.subr.bf16.mxu0 %v666
        %784 = vmatpush1.bf16.msra.mxu0 %v665
        %785 = vmatprep.subr.bf16.mxu0 %v662
        %786 = vmatpush1.bf16.msra.mxu0 %v661
        %787 = vmatprep.subr.bf16.mxu0 %v658
        %788 = vmatpush1.bf16.msra.mxu0 %v657
        %789 = vmatprep.subr.bf16.mxu0 %v654
        %790 = vmatpush1.bf16.msra.mxu0 %v653
        %791 = vmatprep.subr.bf16.mxu0 %v650
        %792 = vmatpush1.bf16.msra.mxu0 %v649
        %793 = vmatprep.subr.bf16.mxu0 %v710
        %794 = vmatpush2.bf16.msra.mxu0 %v709
        %795 = vmatprep.subr.bf16.mxu0 %v706
        %796 = vmatpush2.bf16.msra.mxu0 %v705
        %797 = vmatprep.subr.bf16.mxu0 %v702
        %798 = vmatpush2.bf16.msra.mxu0 %v701
        %799 = vmatprep.subr.bf16.mxu0 %v698
        %800 = vmatpush2.bf16.msra.mxu0 %v697
        %801 = vmatprep.subr.bf16.mxu0 %v694
        %802 = vmatpush2.bf16.msra.mxu0 %v693
        %803 = vmatprep.subr.bf16.mxu0 %v690
        %804 = vmatpush2.bf16.msra.mxu0 %v689
        %805 = vmatprep.subr.bf16.mxu0 %v686
        %806 = vmatpush2.bf16.msra.mxu0 %v685
        %807 = vmatprep.subr.bf16.mxu0 %v682
        %808 = vmatpush2.bf16.msra.mxu0 %v681
        %809 = vmatprep.mubr.bf16.mxu0 %v434
        %810 = vmatmul.mubr.bf16.gmra.mxu0 %v433
        %v811 = vpop.f32.mrf.mxu0
        %v812 = vadd.f32 %v440, %v811
        %v813 = vpop.f32.mrf.mxu0
        %v814 = vadd.f32 %v444, %v813
        %v815 = vpop.f32.mrf.mxu0
        %v816 = vadd.f32 %v440, %v815
        %v817 = vpop.f32.mrf.mxu0
        %v818 = vadd.f32 %v444, %v817
        %819 = vdwg.mxu0
        %820 = vmatprep.subr.bf16.mxu0 %v680
        %821 = vmatpush1.bf16.msra.mxu0 %v679
        %822 = vmatprep.subr.bf16.mxu0 %v676
        %823 = vmatpush1.bf16.msra.mxu0 %v675
        %824 = vmatprep.subr.bf16.mxu0 %v672
        %825 = vmatpush1.bf16.msra.mxu0 %v671
        %826 = vmatprep.subr.bf16.mxu0 %v668
        %827 = vmatpush1.bf16.msra.mxu0 %v667
        %828 = vmatprep.subr.bf16.mxu0 %v664
        %829 = vmatpush1.bf16.msra.mxu0 %v663
        %830 = vmatprep.subr.bf16.mxu0 %v660
        %831 = vmatpush1.bf16.msra.mxu0 %v659
        %832 = vmatprep.subr.bf16.mxu0 %v656
        %833 = vmatpush1.bf16.msra.mxu0 %v655
        %834 = vmatprep.subr.bf16.mxu0 %v652
        %835 = vmatpush1.bf16.msra.mxu0 %v651
        %836 = vmatprep.subr.bf16.mxu0 %v712
        %837 = vmatpush2.bf16.msra.mxu0 %v711
        %838 = vmatprep.subr.bf16.mxu0 %v708
        %839 = vmatpush2.bf16.msra.mxu0 %v707
        %840 = vmatprep.subr.bf16.mxu0 %v704
        %841 = vmatpush2.bf16.msra.mxu0 %v703
        %842 = vmatprep.subr.bf16.mxu0 %v700
        %843 = vmatpush2.bf16.msra.mxu0 %v699
        %844 = vmatprep.subr.bf16.mxu0 %v696
        %845 = vmatpush2.bf16.msra.mxu0 %v695
        %846 = vmatprep.subr.bf16.mxu0 %v692
        %847 = vmatpush2.bf16.msra.mxu0 %v691
        %848 = vmatprep.subr.bf16.mxu0 %v688
        %849 = vmatpush2.bf16.msra.mxu0 %v687
        %850 = vmatprep.subr.bf16.mxu0 %v684
        %851 = vmatpush2.bf16.msra.mxu0 %v683
        %852 = vmatprep.mubr.bf16.mxu0 %v434
        %853 = vmatmul.mubr.bf16.gmra.mxu0 %v433
        %v854 = vpop.f32.mrf.mxu0
        %v855 = vadd.f32 %v448, %v854
        %v856 = vpop.f32.mrf.mxu0
        %v857 = vadd.f32 %v452, %v856
        %v858 = vpop.f32.mrf.mxu0
        %v859 = vadd.f32 %v448, %v858
        %v860 = vpop.f32.mrf.mxu0
        %v861 = vadd.f32 %v452, %v860
        %862 = vdwg.mxu0
        %v863 = vadd.f32 %v359, %v360
        %864 = vadd.xlane.f32.xlu0 %v863
        %v865 = vpop.xlane.xlu0 %864
        %v866 = vadd.f32 %v361, %v362
        %867 = vadd.xlane.f32.xlu0 %v866
        %v868 = vpop.xlane.xlu0 %867
        %v869 = vrcp.pop 256.0
        %v870 = vmul.f32 %v865, %v869
        %v871 = vmul.f32 %v868, %v869
        %v872 = vsub.f32 %v359, %v870
        %v873 = vsub.f32 %v360, %v870
        %v874 = vsub.f32 %v361, %v871
        %v875 = vsub.f32 %v362, %v871
        %v876 = vmul.f32 %v872, %v872
        %v877 = vmul.f32 %v873, %v873
        %v878 = vmul.f32 %v874, %v874
        %v879 = vmul.f32 %v875, %v875
        %v880 = vadd.f32 %v876, %v877
        %881 = vadd.xlane.f32.xlu0 %v880
        %v882 = vpop.xlane.xlu0 %881
        %v883 = vadd.f32 %v878, %v879
        %884 = vadd.xlane.f32.xlu0 %v883
        %v885 = vpop.xlane.xlu0 %884
        %v886 = vmul.f32 %v882, %v869
        %v887 = vmul.f32 %v885, %v869
        %v888 = vadd.f32 %v886, 1e-06
        %v889 = vadd.f32 %v887, 1e-06
        %v890 = vrsqrt.pop %v888
        %v891 = vrsqrt.pop %v889
        %v892 = vmul.f32 %v872, %v890
        %v893 = vmul.f32 %v873, %v890
        %v894 = vmul.f32 %v874, %v891
        %v895 = vmul.f32 %v875, %v891
        %v896 = vadd.f32 %v855, 1.0
        %v897 = vadd.f32 %v857, 1.0
        %v898 = vadd.f32 %v859, 1.0
        %v899 = vadd.f32 %v861, 1.0
        %v900 = vmul.f32 %v892, %v896
        %v901 = vmul.f32 %v893, %v897
        %v902 = vmul.f32 %v894, %v898
        %v903 = vmul.f32 %v895, %v899
        %v904 = vadd.f32 %v900, %v812
        %v905 = vadd.f32 %v901, %v814
        %v906 = vadd.f32 %v902, %v816
        %v907 = vadd.f32 %v903, %v818
        %v908 = vld [vmem:[%s6] sm:$0xf]
        %v909 = vld [vmem:[%s6 + $0x4] sm:$0xf]
        %v910 = vld [vmem:[%s6 + $0x8] sm:$0xf]
        %v911 = vld [vmem:[%s6 + $0xc] sm:$0xf]
        %v912 = vld [vmem:[%s6 + $0x10] sm:$0xf]
        %v913 = vld [vmem:[%s6 + $0x14] sm:$0xf]
        %v914 = vld [vmem:[%s6 + $0x18] sm:$0xf]
        %v915 = vld [vmem:[%s6 + $0x1c] sm:$0xf]
        %v916 = vld [vmem:[%s6 + $0x20] sm:$0xf]
        %v917 = vld [vmem:[%s6 + $0x24] sm:$0xf]
        %v918 = vld [vmem:[%s6 + $0x28] sm:$0xf]
        %v919 = vld [vmem:[%s6 + $0x2c] sm:$0xf]
        %v920 = vld [vmem:[%s6 + $0x30] sm:$0xf]
        %v921 = vld [vmem:[%s6 + $0x34] sm:$0xf]
        %v922 = vld [vmem:[%s6 + $0x38] sm:$0xf]
        %v923 = vld [vmem:[%s6 + $0x3c] sm:$0xf]
        %v924 = vld [vmem:[%s6 + $0x40] sm:$0xf]
        %v925 = vld [vmem:[%s6 + $0x44] sm:$0xf]
        %v926 = vld [vmem:[%s6 + $0x48] sm:$0xf]
        %v927 = vld [vmem:[%s6 + $0x4c] sm:$0xf]
        %v928 = vld [vmem:[%s6 + $0x50] sm:$0xf]
        %v929 = vld [vmem:[%s6 + $0x54] sm:$0xf]
        %v930 = vld [vmem:[%s6 + $0x58] sm:$0xf]
        %v931 = vld [vmem:[%s6 + $0x5c] sm:$0xf]
        %v932 = vld [vmem:[%s6 + $0x60] sm:$0xf]
        %v933 = vld [vmem:[%s6 + $0x64] sm:$0xf]
        %v934 = vld [vmem:[%s6 + $0x68] sm:$0xf]
        %v935 = vld [vmem:[%s6 + $0x6c] sm:$0xf]
        %v936 = vld [vmem:[%s6 + $0x70] sm:$0xf]
        %v937 = vld [vmem:[%s6 + $0x74] sm:$0xf]
        %v938 = vld [vmem:[%s6 + $0x78] sm:$0xf]
        %v939 = vld [vmem:[%s6 + $0x7c] sm:$0xf]
        %v940 = vpack.c.bf16 %v906, %v904
        %v941 = vpack.c.bf16 %v907, %v905
        %v942 = vld [vmem:[%s7] sm:$0x1]
        %v944 = vlaneseq
        %v945 = vshrl.u32 %v944, 7
        %v946 = vsub.s32 0, %v945
        %v947 = vrot.slane %v942, %v946
        %v981 = vunpack.c.l.b16 %v908
        %v982 = vunpack.c.l.b16 %v909
        %v983 = vunpack.c.l.b16 %v910
        %v984 = vunpack.c.l.b16 %v911
        %v985 = vunpack.c.l.b16 %v912
        %v986 = vunpack.c.l.b16 %v913
        %v987 = vunpack.c.l.b16 %v914
        %v988 = vunpack.c.l.b16 %v915
        %v989 = vunpack.c.l.b16 %v916
        %v990 = vunpack.c.l.b16 %v917
        %v991 = vunpack.c.l.b16 %v918
        %v992 = vunpack.c.l.b16 %v919
        %v993 = vunpack.c.l.b16 %v920
        %v994 = vunpack.c.l.b16 %v921
        %v995 = vunpack.c.l.b16 %v922
        %v996 = vunpack.c.l.b16 %v923
        %v997 = vunpack.c.l.b16 %v924
        %v998 = vunpack.c.l.b16 %v925
        %v999 = vunpack.c.l.b16 %v926
        %v1000 = vunpack.c.l.b16 %v927
        %v1001 = vunpack.c.l.b16 %v928
        %v1002 = vunpack.c.l.b16 %v929
        %v1003 = vunpack.c.l.b16 %v930
        %v1004 = vunpack.c.l.b16 %v931
        %v1005 = vunpack.c.l.b16 %v932
        %v1006 = vunpack.c.l.b16 %v933
        %v1007 = vunpack.c.l.b16 %v934
        %v1008 = vunpack.c.l.b16 %v935
        %v1009 = vunpack.c.l.b16 %v936
        %v1010 = vunpack.c.l.b16 %v937
        %v1011 = vunpack.c.l.b16 %v938
        %v1012 = vunpack.c.l.b16 %v939
        %v1013 = vpack.c.b16 %v982, %v981
        %v1014 = vpack.c.b16 %v984, %v983
        %v1015 = vpack.c.b16 %v986, %v985
        %v1016 = vpack.c.b16 %v988, %v987
        %v1017 = vpack.c.b16 %v990, %v989
        %v1018 = vpack.c.b16 %v992, %v991
        %v1019 = vpack.c.b16 %v994, %v993
        %v1020 = vpack.c.b16 %v996, %v995
        %v1021 = vpack.c.b16 %v998, %v997
        %v1022 = vpack.c.b16 %v1000, %v999
        %v1023 = vpack.c.b16 %v1002, %v1001
        %v1024 = vpack.c.b16 %v1004, %v1003
        %v1025 = vpack.c.b16 %v1006, %v1005
        %v1026 = vpack.c.b16 %v1008, %v1007
        %v1027 = vpack.c.b16 %v1010, %v1009
        %v1028 = vpack.c.b16 %v1012, %v1011
        %1045 = vmatprep.subr.bf16.mxu0 0
        %1046 = vmatpush1.bf16.msra.mxu0 %v1020
        %1047 = vmatprep.subr.bf16.mxu0 0
        %1048 = vmatpush1.bf16.msra.mxu0 %v1019
        %1049 = vmatprep.subr.bf16.mxu0 0
        %1050 = vmatpush1.bf16.msra.mxu0 %v1018
        %1051 = vmatprep.subr.bf16.mxu0 0
        %1052 = vmatpush1.bf16.msra.mxu0 %v1017
        %1053 = vmatprep.subr.bf16.mxu0 0
        %1054 = vmatpush1.bf16.msra.mxu0 %v1016
        %1055 = vmatprep.subr.bf16.mxu0 0
        %1056 = vmatpush1.bf16.msra.mxu0 %v1015
        %1057 = vmatprep.subr.bf16.mxu0 0
        %1058 = vmatpush1.bf16.msra.mxu0 %v1014
        %1059 = vmatprep.subr.bf16.mxu0 0
        %1060 = vmatpush1.bf16.msra.mxu0 %v1013
        %1061 = vmatprep.subr.bf16.mxu0 0
        %1062 = vmatpush2.bf16.msra.mxu0 %v1028
        %1063 = vmatprep.subr.bf16.mxu0 0
        %1064 = vmatpush2.bf16.msra.mxu0 %v1027
        %1065 = vmatprep.subr.bf16.mxu0 0
        %1066 = vmatpush2.bf16.msra.mxu0 %v1026
        %1067 = vmatprep.subr.bf16.mxu0 0
        %1068 = vmatpush2.bf16.msra.mxu0 %v1025
        %1069 = vmatprep.subr.bf16.mxu0 0
        %1070 = vmatpush2.bf16.msra.mxu0 %v1024
        %1071 = vmatprep.subr.bf16.mxu0 0
        %1072 = vmatpush2.bf16.msra.mxu0 %v1023
        %1073 = vmatprep.subr.bf16.mxu0 0
        %1074 = vmatpush2.bf16.msra.mxu0 %v1022
        %1075 = vmatprep.subr.bf16.mxu0 0
        %1076 = vmatpush2.bf16.msra.mxu0 %v1021
        %1077 = vmatprep.mubr.bf16.mxu0 %v941
        %1078 = vmatmul.mubr.bf16.gmra.mxu0 %v940
        %v1079 = vpop.f32.mrf.mxu0
        %v1080 = vadd.f32 %v947, %v1079
        %v1081 = vpop.f32.mrf.mxu0
        %v1082 = vpop.f32.mrf.mxu0
        %v1083 = vadd.f32 %v947, %v1082
        %v1084 = vpop.f32.mrf.mxu0
        %1085 = vdwg.mxu0
        %1087 = vset.pattern.permute.xlu0 0
        %1088 = vperm.xlu0 %1087, %v367
        %v1089 = vpop.permute.xlu0 %1088
        %1092 = vset.pattern.permute.xlu0 0
        %1093 = vperm.xlu0 %1092, %v368
        %v1094 = vpop.permute.xlu0 %1093
        %v1096 = vmul.f32 %v1080, %v1089
        %v1097 = vmul.f32 %v1083, %v1094
        %v1098 = vld [vmem:[%s351] sm:$0xff]
        %v1099 = vld [vmem:[%s351 + $0x8] sm:$0xff]
        %v1100 = vsub.f32 %v1096, %v1098
        %v1101 = vsub.f32 %v1097, %v1099
        %v1102 = vld [vmem:[#allocation2] sm:$0x1]
        %v1103 = vmul.f32 %v1100, %v1100
        %v1104 = vmul.f32 %v1101, %v1101
        %v1105 = vadd.f32 %v1103, %v1104
        %1106 = vadd.xlane.f32.xlu0 %v1105
        %v1107 = vpop.xlane.xlu0 %1106
        %v1108 = vrot.slane %v1107, 4
        %v1109 = vadd.f32 %v1107, %v1108
        %v1110 = vrot.slane %v1109, 2
        %v1111 = vadd.f32 %v1109, %v1110
        %v1112 = vrot.slane %v1111, 1
        %v1113 = vadd.f32 %v1111, %v1112
        %s1114 = vtos %v1113
        %v1115 = vstv %s1114
        %v1116 = vadd.f32 %v1102, %v1115
        %vm1117 = vcmask 0
        %1118 = vst.msk [vmem:[#allocation2] sm:$0x1] %vm1117, %v1116
        // Predicated region
        $region57: #{_lambda_.5} parent=51 // pred_check
          %p1119 = pneg %p221
        $region58: #{_lambda_.5} parent=51 // pred_check_branch
          %1121 = sbr.rel (%p1119) target = $region60
        $region59: #{_lambda_.5} parent=51 // pred_region
          %s1123 = ssub.s32 16, 16
          %1124 = vsyncadd [#allocation3], %s1123
          %s1126 = sshll.u32 [#allocation2], 4
          %s1127 = int_to_ptr.vmem [resolvable:$true] %s1126
          %1129 = dma.vmem_to_hbm [thread:$0]  %s1127, 16, %s8, [#allocation3]
        $region60: #{_lambda_.5} parent=51 // pred_fallthru
          _
        // Predicated region
        $region61: #{_lambda_.5} parent=51 // pred_check
          %p1130 = pneg %p221
        $region62: #{_lambda_.5} parent=51 // pred_check_branch
          %1132 = sbr.rel (%p1130) target = $region64
        $region63: #{_lambda_.5} parent=51 // pred_region
          %1133 = dma.done [#allocation3], 16
        $region64: #{_lambda_.5} parent=51 // pred_fallthru
          _
      $region52: #{_lambda_.5} parent=5 // pred_fallthru
        _
      %p1134 = scmp.le.s32.totalorder 2, %s15
      // Predicated region
      $region65: #{_lambda_.5} parent=5 // pred_check
        %p1135 = pneg %p1134
      $region66: #{_lambda_.5} parent=5 // pred_check_branch
        %1137 = sbr.rel (%p1135) target = $region68
      $region67: #{_lambda_.5} parent=5 // pred_region
        %s1138 = ssub.s32 %s15, 2
      $region68: #{_lambda_.5} parent=5 // pred_fallthru
        _
    $region6: #{_lambda_.5} parent=1 // loop_footer
      %s19 = sadd.s32 1, %s15
    $region7: #{_lambda_.5} parent=1 // loop_footer_branch
      %14 = sbr.rel target = $region3
    $region8: #{_lambda_.5} parent=1 // loop_exit
      _
    %1139 = vsyncpa [#allocation3], 1
    %s1140 = scalar_lea.sflag [#allocation3], 1
    %1141 = vsyncpa %s1140, 1

// kernel: _lambda_.3
$region0: #{_lambda_.3}
  #allocation0 [shape = 'u32[]', space=smem, size = 0x4, offset = 0x4, fixed_abs, tag = 'smem constant byte address 0x4 - core index']
  #allocation1 [shape = 'u32[144,128]{1,0:T(1,128)}', space=vmem, size = 0x12000, scoped, tag = 'internal scratch']
  %s0 = inlined_call_operand.hbm [shape: f32[2,16,256], index: 0, kind: input, shape index: {}]
  %s1 = inlined_call_operand.vmem [shape: f32[2,16,1], index: 1, kind: input, shape index: {}]
  %s2 = inlined_call_operand.vmem [shape: f32[2,1,256], index: 2, kind: input, shape index: {}]
  %s3 = inlined_call_operand.hbm [shape: f32[2,16,128], index: 3, kind: input, shape index: {}]
  %s4 = inlined_call_operand.vmem [shape: f32[2,16,128], index: 4, kind: input, shape index: {}]
  %s5 = inlined_call_operand.vmem [shape: f32[2,1,1], index: 5, kind: input, shape index: {}]
  %s6 = inlined_call_operand.vmem [shape: f32[2,1,256], index: 6, kind: input, shape index: {}]
  %s7 = inlined_call_operand.vmem [shape: f32[2,16,1], index: 7, kind: input, shape index: {}]
  %s8 = inlined_call_operand.hbm [shape: bf16[256,128], index: 8, kind: input, shape index: {}]
  %s9 = inlined_call_operand.hbm [shape: f32[1,128], index: 9, kind: input, shape index: {}]
  %s10 = inlined_call_operand.hbm [shape: f32[1,256], index: 10, kind: input, shape index: {}]
  %s11 = inlined_call_operand.hbm [shape: f32[1,256], index: 11, kind: input, shape index: {}]
  %s12 = inlined_call_operand.hbm [shape: bf16[256,256], index: 12, kind: input, shape index: {}]
  %s13 = inlined_call_operand.hbm [shape: f32[1,256], index: 13, kind: input, shape index: {}]
  %s14 = inlined_call_operand.hbm [shape: bf16[128,128], index: 14, kind: input, shape index: {}]
  %s15 = inlined_call_operand.hbm [shape: f32[1,128], index: 15, kind: input, shape index: {}]
  %s16 = inlined_call_operand.hbm [shape: bf16[256,256], index: 16, kind: input, shape index: {}]
  %s17 = inlined_call_operand.hbm [shape: f32[1,256], index: 17, kind: input, shape index: {}]
  %s18 = inlined_call_operand.hbm [shape: bf16[256,256], index: 18, kind: input, shape index: {}]
  %s19 = inlined_call_operand.hbm [shape: f32[1,256], index: 19, kind: input, shape index: {}]
  %s20 = inlined_call_operand.vmem [shape: f32[2,16,256], index: 20, kind: output, shape index: {0}]
  %s21 = inlined_call_operand.vmem [shape: f32[2,16,256], index: 21, kind: output, shape index: {1}]
  %s22 = inlined_call_operand.vmem [shape: f32[2,16,128], index: 22, kind: output, shape index: {2}]
  %23 = xla_tuple %s20, %s21, %s22
  %s24 = sld [smem:[#allocation0]]
  $region185: #{_lambda_.3} parent=0
    _
  %s26 = ssub.s32 1, %s24
  %s27 = scalar_select 0, %s26, %s24
  $region1: #{_lambda_.3} parent=0
    #allocation2 [shape = 'u8[32768]{0}', space=vmem, size = 0x8000, scoped, tag = 'input window, operand 0']
    #allocation3 [shape = 's32[2]{0}', space=sflag, size = 0x8, scoped, tag = 'scoped memory for _lambda_.3']
    #allocation4 [shape = 'u8[16384]{0}', space=vmem, size = 0x4000, scoped, tag = 'input window, operand 3']
    #allocation5 [shape = 's32[2]{0}', space=sflag, size = 0x8, scoped, tag = 'scoped memory for _lambda_.3']
    #allocation6 [shape = 'u8[65536]{0}', space=vmem, size = 0x10000, scoped, tag = 'input window, operand 8, single buffered']
    #allocation7 [shape = 'u8[512]{0}', space=vmem, size = 0x400, scoped, tag = 'input window, operand 9, single buffered']
    #allocation8 [shape = 's32[1]{0}', space=sflag, size = 0x4, scoped, tag = 'scoped memory for _lambda_.3']
    #allocation9 [shape = 'u8[1024]{0}', space=vmem, size = 0x400, scoped, tag = 'input window, operand 10, single buffered']
    #allocation10 [shape = 'u8[1024]{0}', space=vmem, size = 0x400, scoped, tag = 'input window, operand 11, single buffered']
    #allocation11 [shape = 's32[1]{0}', space=sflag, size = 0x4, scoped, tag = 'scoped memory for _lambda_.3']
    #allocation12 [shape = 'u8[131072]{0}', space=vmem, size = 0x20000, scoped, tag = 'input window, operand 12, single buffered']
    #allocation13 [shape = 'u8[1024]{0}', space=vmem, size = 0x400, scoped, tag = 'input window, operand 13, single buffered']
    #allocation14 [shape = 's32[1]{0}', space=sflag, size = 0x4, scoped, tag = 'scoped memory for _lambda_.3']
    #allocation15 [shape = 'u8[32768]{0}', space=vmem, size = 0x8000, scoped, tag = 'input window, operand 14, single buffered']
    #allocation16 [shape = 'u8[512]{0}', space=vmem, size = 0x400, scoped, tag = 'input window, operand 15, single buffered']
    #allocation17 [shape = 's32[1]{0}', space=sflag, size = 0x4, scoped, tag = 'scoped memory for _lambda_.3']
    #allocation18 [shape = 'u8[131072]{0}', space=vmem, size = 0x20000, scoped, tag = 'input window, operand 16, single buffered']
    #allocation19 [shape = 'u8[1024]{0}', space=vmem, size = 0x400, scoped, tag = 'input window, operand 17, single buffered']
    #allocation20 [shape = 's32[1]{0}', space=sflag, size = 0x4, scoped, tag = 'scoped memory for _lambda_.3']
    #allocation21 [shape = 'u8[131072]{0}', space=vmem, size = 0x20000, scoped, tag = 'input window, operand 18, single buffered']
    #allocation22 [shape = 'u8[1024]{0}', space=vmem, size = 0x400, scoped, tag = 'input window, operand 19, single buffered']
    #allocation23 [shape = 's32[1]{0}', space=sflag, size = 0x4, scoped, tag = 'scoped memory for _lambda_.3']
    %28 = vsyncpa [#allocation3], 0
    %s29 = scalar_lea.sflag [#allocation3], 1
    %30 = vsyncpa %s29, 0
    %31 = vsyncpa [#allocation5], 0
    %s32 = scalar_lea.sflag [#allocation5], 1
    %33 = vsyncpa %s32, 0
    %34 = vsyncpa [#allocation8], 0
    %35 = vsyncpa [#allocation11], 0
    %36 = vsyncpa [#allocation14], 0
    %37 = vsyncpa [#allocation17], 0
    %38 = vsyncpa [#allocation20], 0
    %39 = vsyncpa [#allocation23], 0
    loop: start=0, step=1, limit=4
    $region2: #{_lambda_.3} parent=1 // loop_pre_header
      _
    $region3: #{_lambda_.3} parent=1 // loop_header
      %s41 = sphi 0, %s45
      %p42 = scmp.ge.s32.totalorder %s41, 4
      %s51 = sphi 0, %s53
      %s54 = sphi 0, %s51
      %s55 = sphi 0, %s54
      %s71 = sphi 0, %s55
      %s77 = sphi 0, %s79
      %s80 = sphi 0, %s77
      %s81 = sphi 0, %s80
      %s97 = sphi 0, %s81
      %s103 = sphi 0, %s105
      %s106 = sphi 0, %s103
      %s107 = sphi 0, %s106
      %s123 = sphi 0, %s107
      %s129 = sphi 0, %s131
      %s132 = sphi 0, %s129
      %s133 = sphi 0, %s132
      %s149 = sphi 0, %s133
      %s155 = sphi 0, %s157
      %s158 = sphi 0, %s155
      %s159 = sphi 0, %s158
      %s175 = sphi 0, %s159
      %s181 = sphi 0, %s183
      %s184 = sphi 0, %s181
      %s185 = sphi 0, %s184
      %s201 = sphi 0, %s185
      %s207 = sphi 0, %s209
      %s210 = sphi 0, %s207
      %s211 = sphi 0, %s210
      %s227 = sphi 0, %s211
      %s233 = sphi 0, %s235
      %s236 = sphi 0, %s233
      %s237 = sphi 0, %s236
      %s253 = sphi 0, %s237
      %s257 = sphi 0, %s257
      %s259 = sphi 0, %s257
      %s260 = sphi 0, %s259
      %s274 = sphi 0, %s260
      %s278 = sphi 0, %s278
      %s280 = sphi 0, %s278
      %s281 = sphi 0, %s280
      %s295 = sphi 0, %s281
      %s299 = sphi 0, %s299
      %s301 = sphi 0, %s299
      %s302 = sphi 0, %s301
      %s316 = sphi 0, %s302
      %s320 = sphi 0, %s320
      %s322 = sphi 0, %s320
      %s323 = sphi 0, %s322
      %s337 = sphi 0, %s323
      %s341 = sphi 0, %s341
      %s343 = sphi 0, %s341
      %s344 = sphi 0, %s343
      %s358 = sphi 0, %s344
      %s362 = sphi 0, %s362
      %s364 = sphi 0, %s362
      %s365 = sphi 0, %s364
      %s379 = sphi 0, %s365
      %s383 = sphi 0, %s383
      %s385 = sphi 0, %s383
      %s386 = sphi 0, %s385
      %s400 = sphi 0, %s386
      %s404 = sphi 0, %s404
      %s406 = sphi 0, %s404
      %s407 = sphi 0, %s406
      %s421 = sphi 0, %s407
      %s425 = sphi 0, %s425
      %s427 = sphi 0, %s425
      %s428 = sphi 0, %s427
      %s442 = sphi 0, %s428
      %s446 = sphi 0, %s446
      %s448 = sphi 0, %s446
      %s449 = sphi 0, %s448
      %s463 = sphi 0, %s449
      %s467 = sphi 0, %s467
      %s469 = sphi 0, %s467
      %s470 = sphi 0, %s469
      %s484 = sphi 0, %s470
      %s488 = sphi 0, %s488
      %s490 = sphi 0, %s488
      %s491 = sphi 0, %s490
      %s505 = sphi 0, %s491
      %s511 = sphi 0, %s513
      %s514 = sphi 0, %s511
      %s515 = sphi 0, %s514
      %s531 = sphi 0, %s515
      %s537 = sphi 0, %s539
      %s540 = sphi 0, %s537
      %s541 = sphi 0, %s540
      %s557 = sphi 0, %s541
      %s563 = sphi 0, %s565
      %s566 = sphi 0, %s563
      %s567 = sphi 0, %s566
      %s583 = sphi 0, %s567
    $region4: #{_lambda_.3} parent=1 // loop_header_branch
      %44 = sbr.rel (%p42) target = $region8
    $region5: #{_lambda_.3} parent=1 // loop_body
      %s46 = ssub.s32 %s41, 1
      %s47 = ssub.s32 %s41, 2
      %s48 = sadd.s32 %s41, 1
      %s49 = ssub.s32 %s41, %s48
      %p50 = scmp.eq.s32.totalorder %s49, 0
      %s52 = sadd.s32 %s51, 1
      %s53 = scalar_select %p50, %s51, %s52
      %p56 = pneg %p50
      %p57 = scmp.eq.s32.totalorder %s41, 1
      %p58 = por %p56, %p57
      %p59 = scmp.ne.s32.totalorder %s51, %s54
      %p60 = scmp.eq.s32.totalorder %s41, 0
      %p61 = por %p59, %p60
      %p62 = scmp.ne.s32.totalorder %s51, %s54
      %p63 = scmp.eq.s32.totalorder %s46, 1
      %p64 = por %p62, %p63
      %p65 = scmp.ne.s32.totalorder %s54, %s55
      %p66 = scmp.eq.s32.totalorder %s46, 0
      %p67 = por %p65, %p66
      %p68 = scmp.ne.s32.totalorder %s54, %s55
      %p69 = scmp.eq.s32.totalorder %s47, 1
      %p70 = por %p68, %p69
      %p72 = scmp.ne.s32.totalorder %s55, %s71
      %p73 = scmp.eq.s32.totalorder %s47, 0
      %p74 = por %p72, %p73
      %s75 = ssub.s32 %s41, %s48
      %p76 = scmp.eq.s32.totalorder %s75, 0
      %s78 = sadd.s32 %s77, 1
      %s79 = scalar_select %p76, %s77, %s78
      %p82 = pneg %p76
      %p83 = scmp.eq.s32.totalorder %s41, 1
      %p84 = por %p82, %p83
      %p85 = scmp.ne.s32.totalorder %s77, %s80
      %p86 = scmp.eq.s32.totalorder %s41, 0
      %p87 = por %p85, %p86
      %p88 = scmp.ne.s32.totalorder %s77, %s80
      %p89 = scmp.eq.s32.totalorder %s46, 1
      %p90 = por %p88, %p89
      %p91 = scmp.ne.s32.totalorder %s80, %s81
      %p92 = scmp.eq.s32.totalorder %s46, 0
      %p93 = por %p91, %p92
      %p94 = scmp.ne.s32.totalorder %s80, %s81
      %p95 = scmp.eq.s32.totalorder %s47, 1
      %p96 = por %p94, %p95
      %p98 = scmp.ne.s32.totalorder %s81, %s97
      %p99 = scmp.eq.s32.totalorder %s47, 0
      %p100 = por %p98, %p99
      %s101 = ssub.s32 %s41, %s48
      %p102 = scmp.eq.s32.totalorder %s101, 0
      %s104 = sadd.s32 %s103, 1
      %s105 = scalar_select %p102, %s103, %s104
      %p108 = pneg %p102
      %p109 = scmp.eq.s32.totalorder %s41, 1
      %p110 = por %p108, %p109
      %p111 = scmp.ne.s32.totalorder %s103, %s106
      %p112 = scmp.eq.s32.totalorder %s41, 0
      %p113 = por %p111, %p112
      %p114 = scmp.ne.s32.totalorder %s103, %s106
      %p115 = scmp.eq.s32.totalorder %s46, 1
      %p116 = por %p114, %p115
      %p117 = scmp.ne.s32.totalorder %s106, %s107
      %p118 = scmp.eq.s32.totalorder %s46, 0
      %p119 = por %p117, %p118
      %p120 = scmp.ne.s32.totalorder %s106, %s107
      %p121 = scmp.eq.s32.totalorder %s47, 1
      %p122 = por %p120, %p121
      %p124 = scmp.ne.s32.totalorder %s107, %s123
      %p125 = scmp.eq.s32.totalorder %s47, 0
      %p126 = por %p124, %p125
      %s127 = ssub.s32 %s41, %s48
      %p128 = scmp.eq.s32.totalorder %s127, 0
      %s130 = sadd.s32 %s129, 1
      %s131 = scalar_select %p128, %s129, %s130
      %p134 = pneg %p128
      %p135 = scmp.eq.s32.totalorder %s41, 1
      %p136 = por %p134, %p135
      %p137 = scmp.ne.s32.totalorder %s129, %s132
      %p138 = scmp.eq.s32.totalorder %s41, 0
      %p139 = por %p137, %p138
      %p140 = scmp.ne.s32.totalorder %s129, %s132
      %p141 = scmp.eq.s32.totalorder %s46, 1
      %p142 = por %p140, %p141
      %p143 = scmp.ne.s32.totalorder %s132, %s133
      %p144 = scmp.eq.s32.totalorder %s46, 0
      %p145 = por %p143, %p144
      %p146 = scmp.ne.s32.totalorder %s132, %s133
      %p147 = scmp.eq.s32.totalorder %s47, 1
      %p148 = por %p146, %p147
      %p150 = scmp.ne.s32.totalorder %s133, %s149
      %p151 = scmp.eq.s32.totalorder %s47, 0
      %p152 = por %p150, %p151
      %s153 = ssub.s32 %s41, %s48
      %p154 = scmp.eq.s32.totalorder %s153, 0
      %s156 = sadd.s32 %s155, 1
      %s157 = scalar_select %p154, %s155, %s156
      %p160 = pneg %p154
      %p161 = scmp.eq.s32.totalorder %s41, 1
      %p162 = por %p160, %p161
      %p163 = scmp.ne.s32.totalorder %s155, %s158
      %p164 = scmp.eq.s32.totalorder %s41, 0
      %p165 = por %p163, %p164
      %p166 = scmp.ne.s32.totalorder %s155, %s158
      %p167 = scmp.eq.s32.totalorder %s46, 1
      %p168 = por %p166, %p167
      %p169 = scmp.ne.s32.totalorder %s158, %s159
      %p170 = scmp.eq.s32.totalorder %s46, 0
      %p171 = por %p169, %p170
      %p172 = scmp.ne.s32.totalorder %s158, %s159
      %p173 = scmp.eq.s32.totalorder %s47, 1
      %p174 = por %p172, %p173
      %p176 = scmp.ne.s32.totalorder %s159, %s175
      %p177 = scmp.eq.s32.totalorder %s47, 0
      %p178 = por %p176, %p177
      %s179 = ssub.s32 %s41, %s48
      %p180 = scmp.eq.s32.totalorder %s179, 0
      %s182 = sadd.s32 %s181, 1
      %s183 = scalar_select %p180, %s181, %s182
      %p186 = pneg %p180
      %p187 = scmp.eq.s32.totalorder %s41, 1
      %p188 = por %p186, %p187
      %p189 = scmp.ne.s32.totalorder %s181, %s184
      %p190 = scmp.eq.s32.totalorder %s41, 0
      %p191 = por %p189, %p190
      %p192 = scmp.ne.s32.totalorder %s181, %s184
      %p193 = scmp.eq.s32.totalorder %s46, 1
      %p194 = por %p192, %p193
      %p195 = scmp.ne.s32.totalorder %s184, %s185
      %p196 = scmp.eq.s32.totalorder %s46, 0
      %p197 = por %p195, %p196
      %p198 = scmp.ne.s32.totalorder %s184, %s185
      %p199 = scmp.eq.s32.totalorder %s47, 1
      %p200 = por %p198, %p199
      %p202 = scmp.ne.s32.totalorder %s185, %s201
      %p203 = scmp.eq.s32.totalorder %s47, 0
      %p204 = por %p202, %p203
      %s205 = ssub.s32 %s41, %s48
      %p206 = scmp.eq.s32.totalorder %s205, 0
      %s208 = sadd.s32 %s207, 1
      %s209 = scalar_select %p206, %s207, %s208
      %p212 = pneg %p206
      %p213 = scmp.eq.s32.totalorder %s41, 1
      %p214 = por %p212, %p213
      %p215 = scmp.ne.s32.totalorder %s207, %s210
      %p216 = scmp.eq.s32.totalorder %s41, 0
      %p217 = por %p215, %p216
      %p218 = scmp.ne.s32.totalorder %s207, %s210
      %p219 = scmp.eq.s32.totalorder %s46, 1
      %p220 = por %p218, %p219
      %p221 = scmp.ne.s32.totalorder %s210, %s211
      %p222 = scmp.eq.s32.totalorder %s46, 0
      %p223 = por %p221, %p222
      %p224 = scmp.ne.s32.totalorder %s210, %s211
      %p225 = scmp.eq.s32.totalorder %s47, 1
      %p226 = por %p224, %p225
      %p228 = scmp.ne.s32.totalorder %s211, %s227
      %p229 = scmp.eq.s32.totalorder %s47, 0
      %p230 = por %p228, %p229
      %s231 = ssub.s32 %s41, %s48
      %p232 = scmp.eq.s32.totalorder %s231, 0
      %s234 = sadd.s32 %s233, 1
      %s235 = scalar_select %p232, %s233, %s234
      %p238 = pneg %p232
      %p239 = scmp.eq.s32.totalorder %s41, 1
      %p240 = por %p238, %p239
      %p241 = scmp.ne.s32.totalorder %s233, %s236
      %p242 = scmp.eq.s32.totalorder %s41, 0
      %p243 = por %p241, %p242
      %p244 = scmp.ne.s32.totalorder %s233, %s236
      %p245 = scmp.eq.s32.totalorder %s46, 1
      %p246 = por %p244, %p245
      %p247 = scmp.ne.s32.totalorder %s236, %s237
      %p248 = scmp.eq.s32.totalorder %s46, 0
      %p249 = por %p247, %p248
      %p250 = scmp.ne.s32.totalorder %s236, %s237
      %p251 = scmp.eq.s32.totalorder %s47, 1
      %p252 = por %p250, %p251
      %p254 = scmp.ne.s32.totalorder %s237, %s253
      %p255 = scmp.eq.s32.totalorder %s47, 0
      %p256 = por %p254, %p255
      %s258 = sadd.s32 %s257, 1
      %p261 = scmp.eq.s32.totalorder %s41, 1
      %p262 = scmp.ne.s32.totalorder %s257, %s259
      %p263 = scmp.eq.s32.totalorder %s41, 0
      %p264 = por %p262, %p263
      %p265 = scmp.ne.s32.totalorder %s257, %s259
      %p266 = scmp.eq.s32.totalorder %s46, 1
      %p267 = por %p265, %p266
      %p268 = scmp.ne.s32.totalorder %s259, %s260
      %p269 = scmp.eq.s32.totalorder %s46, 0
      %p270 = por %p268, %p269
      %p271 = scmp.ne.s32.totalorder %s259, %s260
      %p272 = scmp.eq.s32.totalorder %s47, 1
      %p273 = por %p271, %p272
      %p275 = scmp.ne.s32.totalorder %s260, %s274
      %p276 = scmp.eq.s32.totalorder %s47, 0
      %p277 = por %p275, %p276
      %s279 = sadd.s32 %s278, 1
      %p282 = scmp.eq.s32.totalorder %s41, 1
      %p283 = scmp.ne.s32.totalorder %s278, %s280
      %p284 = scmp.eq.s32.totalorder %s41, 0
      %p285 = por %p283, %p284
      %p286 = scmp.ne.s32.totalorder %s278, %s280
      %p287 = scmp.eq.s32.totalorder %s46, 1
      %p288 = por %p286, %p287
      %p289 = scmp.ne.s32.totalorder %s280, %s281
      %p290 = scmp.eq.s32.totalorder %s46, 0
      %p291 = por %p289, %p290
      %p292 = scmp.ne.s32.totalorder %s280, %s281
      %p293 = scmp.eq.s32.totalorder %s47, 1
      %p294 = por %p292, %p293
      %p296 = scmp.ne.s32.totalorder %s281, %s295
      %p297 = scmp.eq.s32.totalorder %s47, 0
      %p298 = por %p296, %p297
      %s300 = sadd.s32 %s299, 1
      %p303 = scmp.eq.s32.totalorder %s41, 1
      %p304 = scmp.ne.s32.totalorder %s299, %s301
      %p305 = scmp.eq.s32.totalorder %s41, 0
      %p306 = por %p304, %p305
      %p307 = scmp.ne.s32.totalorder %s299, %s301
      %p308 = scmp.eq.s32.totalorder %s46, 1
      %p309 = por %p307, %p308
      %p310 = scmp.ne.s32.totalorder %s301, %s302
      %p311 = scmp.eq.s32.totalorder %s46, 0
      %p312 = por %p310, %p311
      %p313 = scmp.ne.s32.totalorder %s301, %s302
      %p314 = scmp.eq.s32.totalorder %s47, 1
      %p315 = por %p313, %p314
      %p317 = scmp.ne.s32.totalorder %s302, %s316
      %p318 = scmp.eq.s32.totalorder %s47, 0
      %p319 = por %p317, %p318
      %s321 = sadd.s32 %s320, 1
      %p324 = scmp.eq.s32.totalorder %s41, 1
      %p325 = scmp.ne.s32.totalorder %s320, %s322
      %p326 = scmp.eq.s32.totalorder %s41, 0
      %p327 = por %p325, %p326
      %p328 = scmp.ne.s32.totalorder %s320, %s322
      %p329 = scmp.eq.s32.totalorder %s46, 1
      %p330 = por %p328, %p329
      %p331 = scmp.ne.s32.totalorder %s322, %s323
      %p332 = scmp.eq.s32.totalorder %s46, 0
      %p333 = por %p331, %p332
      %p334 = scmp.ne.s32.totalorder %s322, %s323
      %p335 = scmp.eq.s32.totalorder %s47, 1
      %p336 = por %p334, %p335
      %p338 = scmp.ne.s32.totalorder %s323, %s337
      %p339 = scmp.eq.s32.totalorder %s47, 0
      %p340 = por %p338, %p339
      %s342 = sadd.s32 %s341, 1
      %p345 = scmp.eq.s32.totalorder %s41, 1
      %p346 = scmp.ne.s32.totalorder %s341, %s343
      %p347 = scmp.eq.s32.totalorder %s41, 0
      %p348 = por %p346, %p347
      %p349 = scmp.ne.s32.totalorder %s341, %s343
      %p350 = scmp.eq.s32.totalorder %s46, 1
      %p351 = por %p349, %p350
      %p352 = scmp.ne.s32.totalorder %s343, %s344
      %p353 = scmp.eq.s32.totalorder %s46, 0
      %p354 = por %p352, %p353
      %p355 = scmp.ne.s32.totalorder %s343, %s344
      %p356 = scmp.eq.s32.totalorder %s47, 1
      %p357 = por %p355, %p356
      %p359 = scmp.ne.s32.totalorder %s344, %s358
      %p360 = scmp.eq.s32.totalorder %s47, 0
      %p361 = por %p359, %p360
      %s363 = sadd.s32 %s362, 1
      %p366 = scmp.eq.s32.totalorder %s41, 1
      %p367 = scmp.ne.s32.totalorder %s362, %s364
      %p368 = scmp.eq.s32.totalorder %s41, 0
      %p369 = por %p367, %p368
      %p370 = scmp.ne.s32.totalorder %s362, %s364
      %p371 = scmp.eq.s32.totalorder %s46, 1
      %p372 = por %p370, %p371
      %p373 = scmp.ne.s32.totalorder %s364, %s365
      %p374 = scmp.eq.s32.totalorder %s46, 0
      %p375 = por %p373, %p374
      %p376 = scmp.ne.s32.totalorder %s364, %s365
      %p377 = scmp.eq.s32.totalorder %s47, 1
      %p378 = por %p376, %p377
      %p380 = scmp.ne.s32.totalorder %s365, %s379
      %p381 = scmp.eq.s32.totalorder %s47, 0
      %p382 = por %p380, %p381
      %s384 = sadd.s32 %s383, 1
      %p387 = scmp.eq.s32.totalorder %s41, 1
      %p388 = scmp.ne.s32.totalorder %s383, %s385
      %p389 = scmp.eq.s32.totalorder %s41, 0
      %p390 = por %p388, %p389
      %p391 = scmp.ne.s32.totalorder %s383, %s385
      %p392 = scmp.eq.s32.totalorder %s46, 1
      %p393 = por %p391, %p392
      %p394 = scmp.ne.s32.totalorder %s385, %s386
      %p395 = scmp.eq.s32.totalorder %s46, 0
      %p396 = por %p394, %p395
      %p397 = scmp.ne.s32.totalorder %s385, %s386
      %p398 = scmp.eq.s32.totalorder %s47, 1
      %p399 = por %p397, %p398
      %p401 = scmp.ne.s32.totalorder %s386, %s400
      %p402 = scmp.eq.s32.totalorder %s47, 0
      %p403 = por %p401, %p402
      %s405 = sadd.s32 %s404, 1
      %p408 = scmp.eq.s32.totalorder %s41, 1
      %p409 = scmp.ne.s32.totalorder %s404, %s406
      %p410 = scmp.eq.s32.totalorder %s41, 0
      %p411 = por %p409, %p410
      %p412 = scmp.ne.s32.totalorder %s404, %s406
      %p413 = scmp.eq.s32.totalorder %s46, 1
      %p414 = por %p412, %p413
      %p415 = scmp.ne.s32.totalorder %s406, %s407
      %p416 = scmp.eq.s32.totalorder %s46, 0
      %p417 = por %p415, %p416
      %p418 = scmp.ne.s32.totalorder %s406, %s407
      %p419 = scmp.eq.s32.totalorder %s47, 1
      %p420 = por %p418, %p419
      %p422 = scmp.ne.s32.totalorder %s407, %s421
      %p423 = scmp.eq.s32.totalorder %s47, 0
      %p424 = por %p422, %p423
      %s426 = sadd.s32 %s425, 1
      %p429 = scmp.eq.s32.totalorder %s41, 1
      %p430 = scmp.ne.s32.totalorder %s425, %s427
      %p431 = scmp.eq.s32.totalorder %s41, 0
      %p432 = por %p430, %p431
      %p433 = scmp.ne.s32.totalorder %s425, %s427
      %p434 = scmp.eq.s32.totalorder %s46, 1
      %p435 = por %p433, %p434
      %p436 = scmp.ne.s32.totalorder %s427, %s428
      %p437 = scmp.eq.s32.totalorder %s46, 0
      %p438 = por %p436, %p437
      %p439 = scmp.ne.s32.totalorder %s427, %s428
      %p440 = scmp.eq.s32.totalorder %s47, 1
      %p441 = por %p439, %p440
      %p443 = scmp.ne.s32.totalorder %s428, %s442
      %p444 = scmp.eq.s32.totalorder %s47, 0
      %p445 = por %p443, %p444
      %s447 = sadd.s32 %s446, 1
      %p450 = scmp.eq.s32.totalorder %s41, 1
      %p451 = scmp.ne.s32.totalorder %s446, %s448
      %p452 = scmp.eq.s32.totalorder %s41, 0
      %p453 = por %p451, %p452
      %p454 = scmp.ne.s32.totalorder %s446, %s448
      %p455 = scmp.eq.s32.totalorder %s46, 1
      %p456 = por %p454, %p455
      %p457 = scmp.ne.s32.totalorder %s448, %s449
      %p458 = scmp.eq.s32.totalorder %s46, 0
      %p459 = por %p457, %p458
      %p460 = scmp.ne.s32.totalorder %s448, %s449
      %p461 = scmp.eq.s32.totalorder %s47, 1
      %p462 = por %p460, %p461
      %p464 = scmp.ne.s32.totalorder %s449, %s463
      %p465 = scmp.eq.s32.totalorder %s47, 0
      %p466 = por %p464, %p465
      %s468 = sadd.s32 %s467, 1
      %p471 = scmp.eq.s32.totalorder %s41, 1
      %p472 = scmp.ne.s32.totalorder %s467, %s469
      %p473 = scmp.eq.s32.totalorder %s41, 0
      %p474 = por %p472, %p473
      %p475 = scmp.ne.s32.totalorder %s467, %s469
      %p476 = scmp.eq.s32.totalorder %s46, 1
      %p477 = por %p475, %p476
      %p478 = scmp.ne.s32.totalorder %s469, %s470
      %p479 = scmp.eq.s32.totalorder %s46, 0
      %p480 = por %p478, %p479
      %p481 = scmp.ne.s32.totalorder %s469, %s470
      %p482 = scmp.eq.s32.totalorder %s47, 1
      %p483 = por %p481, %p482
      %p485 = scmp.ne.s32.totalorder %s470, %s484
      %p486 = scmp.eq.s32.totalorder %s47, 0
      %p487 = por %p485, %p486
      %s489 = sadd.s32 %s488, 1
      %p492 = scmp.eq.s32.totalorder %s41, 1
      %p493 = scmp.ne.s32.totalorder %s488, %s490
      %p494 = scmp.eq.s32.totalorder %s41, 0
      %p495 = por %p493, %p494
      %p496 = scmp.ne.s32.totalorder %s488, %s490
      %p497 = scmp.eq.s32.totalorder %s46, 1
      %p498 = por %p496, %p497
      %p499 = scmp.ne.s32.totalorder %s490, %s491
      %p500 = scmp.eq.s32.totalorder %s46, 0
      %p501 = por %p499, %p500
      %p502 = scmp.ne.s32.totalorder %s490, %s491
      %p503 = scmp.eq.s32.totalorder %s47, 1
      %p504 = por %p502, %p503
      %p506 = scmp.ne.s32.totalorder %s491, %s505
      %p507 = scmp.eq.s32.totalorder %s47, 0
      %p508 = por %p506, %p507
      %s509 = ssub.s32 %s41, %s48
      %p510 = scmp.eq.s32.totalorder %s509, 0
      %s512 = sadd.s32 %s511, 1
      %s513 = scalar_select %p510, %s511, %s512
      %p516 = pneg %p510
      %p517 = scmp.eq.s32.totalorder %s41, 1
      %p518 = por %p516, %p517
      %p519 = scmp.ne.s32.totalorder %s511, %s514
      %p520 = scmp.eq.s32.totalorder %s41, 0
      %p521 = por %p519, %p520
      %p522 = scmp.ne.s32.totalorder %s511, %s514
      %p523 = scmp.eq.s32.totalorder %s46, 1
      %p524 = por %p522, %p523
      %p525 = scmp.ne.s32.totalorder %s514, %s515
      %p526 = scmp.eq.s32.totalorder %s46, 0
      %p527 = por %p525, %p526
      %p528 = scmp.ne.s32.totalorder %s514, %s515
      %p529 = scmp.eq.s32.totalorder %s47, 1
      %p530 = por %p528, %p529
      %p532 = scmp.ne.s32.totalorder %s515, %s531
      %p533 = scmp.eq.s32.totalorder %s47, 0
      %p534 = por %p532, %p533
      %s535 = ssub.s32 %s41, %s48
      %p536 = scmp.eq.s32.totalorder %s535, 0
      %s538 = sadd.s32 %s537, 1
      %s539 = scalar_select %p536, %s537, %s538
      %p542 = pneg %p536
      %p543 = scmp.eq.s32.totalorder %s41, 1
      %p544 = por %p542, %p543
      %p545 = scmp.ne.s32.totalorder %s537, %s540
      %p546 = scmp.eq.s32.totalorder %s41, 0
      %p547 = por %p545, %p546
      %p548 = scmp.ne.s32.totalorder %s537, %s540
      %p549 = scmp.eq.s32.totalorder %s46, 1
      %p550 = por %p548, %p549
      %p551 = scmp.ne.s32.totalorder %s540, %s541
      %p552 = scmp.eq.s32.totalorder %s46, 0
      %p553 = por %p551, %p552
      %p554 = scmp.ne.s32.totalorder %s540, %s541
      %p555 = scmp.eq.s32.totalorder %s47, 1
      %p556 = por %p554, %p555
      %p558 = scmp.ne.s32.totalorder %s541, %s557
      %p559 = scmp.eq.s32.totalorder %s47, 0
      %p560 = por %p558, %p559
      %s561 = ssub.s32 %s41, %s48
      %p562 = scmp.eq.s32.totalorder %s561, 0
      %s564 = sadd.s32 %s563, 1
      %s565 = scalar_select %p562, %s563, %s564
      %p568 = pneg %p562
      %p569 = scmp.eq.s32.totalorder %s41, 1
      %p570 = por %p568, %p569
      %p571 = scmp.ne.s32.totalorder %s563, %s566
      %p572 = scmp.eq.s32.totalorder %s41, 0
      %p573 = por %p571, %p572
      %p574 = scmp.ne.s32.totalorder %s563, %s566
      %p575 = scmp.eq.s32.totalorder %s46, 1
      %p576 = por %p574, %p575
      %p577 = scmp.ne.s32.totalorder %s566, %s567
      %p578 = scmp.eq.s32.totalorder %s46, 0
      %p579 = por %p577, %p578
      %p580 = scmp.ne.s32.totalorder %s566, %s567
      %p581 = scmp.eq.s32.totalorder %s47, 1
      %p582 = por %p580, %p581
      %p584 = scmp.ne.s32.totalorder %s567, %s583
      %p585 = scmp.eq.s32.totalorder %s47, 0
      %p586 = por %p584, %p585
      %p587 = scmp.le.s32.totalorder 1, %s41
      %p588 = scmp.lt.s32.totalorder %s41, 3
      %p589 = pnand %p587, %p588
      %p590 = pneg %p589
      // Predicated region
      $region9: #{_lambda_.3} parent=5 // pred_check
        _
      $region10: #{_lambda_.3} parent=5 // pred_check_branch
        %592 = sbr.rel (%p589) target = $region12
      $region11: #{_lambda_.3} parent=5 // pred_region
        %s593 = ssub.s32 %s41, 1
        // Predicated region
        $region13: #{_lambda_.3} parent=11 // pred_check
          %p594 = pneg %p270
        $region14: #{_lambda_.3} parent=11 // pred_check_branch
          %596 = sbr.rel (%p594) target = $region16
        $region15: #{_lambda_.3} parent=11 // pred_region
          %s598 = ssub.s32 2048, 2048
          %599 = vsyncadd [#allocation5], %s598
          %s600 = sshll.u32 [#allocation6], 4
          %s601 = int_to_ptr.vmem [resolvable:$true] %s600
          %606 = dma.hbm_to_vmem [thread:$0]  %s8, 2048, %s601, [#allocation5], 64, 64, 4
        $region16: #{_lambda_.3} parent=11 // pred_fallthru
          _
        // Predicated region
        $region17: #{_lambda_.3} parent=11 // pred_check
          %p607 = pneg %p291
        $region18: #{_lambda_.3} parent=11 // pred_check_branch
          %609 = sbr.rel (%p607) target = $region20
        $region19: #{_lambda_.3} parent=11 // pred_region
          %s611 = ssub.s32 16, 16
          %612 = vsyncadd [#allocation8], %s611
          %s614 = sshll.u32 [#allocation7], 4
          %s615 = int_to_ptr.vmem [resolvable:$true] %s614
          %617 = dma.hbm_to_vmem [thread:$0]  %s9, 16, %s615, [#allocation8]
        $region20: #{_lambda_.3} parent=11 // pred_fallthru
          _
        // Predicated region
        $region21: #{_lambda_.3} parent=11 // pred_check
          %p618 = pneg %p312
        $region22: #{_lambda_.3} parent=11 // pred_check_branch
          %620 = sbr.rel (%p618) target = $region24
        $region23: #{_lambda_.3} parent=11 // pred_region
          %s622 = ssub.s32 32, 32
          %623 = vsyncadd [#allocation8], %s622
          %s625 = sshll.u32 [#allocation9], 4
          %s626 = int_to_ptr.vmem [resolvable:$true] %s625
          %628 = dma.hbm_to_vmem [thread:$0]  %s10, 32, %s626, [#allocation8]
        $region24: #{_lambda_.3} parent=11 // pred_fallthru
          _
        // Predicated region
        $region25: #{_lambda_.3} parent=11 // pred_check
          %p629 = pneg %p333
        $region26: #{_lambda_.3} parent=11 // pred_check_branch
          %631 = sbr.rel (%p629) target = $region28
        $region27: #{_lambda_.3} parent=11 // pred_region
          %s633 = ssub.s32 32, 32
          %634 = vsyncadd [#allocation11], %s633
          %s636 = sshll.u32 [#allocation10], 4
          %s637 = int_to_ptr.vmem [resolvable:$true] %s636
          %639 = dma.hbm_to_vmem [thread:$0]  %s11, 32, %s637, [#allocation11]
        $region28: #{_lambda_.3} parent=11 // pred_fallthru
          _
        // Predicated region
        $region29: #{_lambda_.3} parent=11 // pred_check
          %p640 = pneg %p354
        $region30: #{_lambda_.3} parent=11 // pred_check_branch
          %642 = sbr.rel (%p640) target = $region32
        $region31: #{_lambda_.3} parent=11 // pred_region
          %s644 = ssub.s32 4096, 4096
          %645 = vsyncadd [#allocation11], %s644
          %s646 = sshll.u32 [#allocation12], 4
          %s647 = int_to_ptr.vmem [resolvable:$true] %s646
          %652 = dma.hbm_to_vmem [thread:$0]  %s12, 4096, %s647, [#allocation11], 128, 128, 8
        $region32: #{_lambda_.3} parent=11 // pred_fallthru
          _
        // Predicated region
        $region33: #{_lambda_.3} parent=11 // pred_check
          %p653 = pneg %p375
        $region34: #{_lambda_.3} parent=11 // pred_check_branch
          %655 = sbr.rel (%p653) target = $region36
        $region35: #{_lambda_.3} parent=11 // pred_region
          %s657 = ssub.s32 32, 32
          %658 = vsyncadd [#allocation14], %s657
          %s660 = sshll.u32 [#allocation13], 4
          %s661 = int_to_ptr.vmem [resolvable:$true] %s660
          %663 = dma.hbm_to_vmem [thread:$0]  %s13, 32, %s661, [#allocation14]
        $region36: #{_lambda_.3} parent=11 // pred_fallthru
          _
        // Predicated region
        $region37: #{_lambda_.3} parent=11 // pred_check
          %p664 = pneg %p396
        $region38: #{_lambda_.3} parent=11 // pred_check_branch
          %666 = sbr.rel (%p664) target = $region40
        $region39: #{_lambda_.3} parent=11 // pred_region
          %s668 = ssub.s32 1024, 1024
          %669 = vsyncadd [#allocation14], %s668
          %s670 = sshll.u32 [#allocation15], 4
          %s671 = int_to_ptr.vmem [resolvable:$true] %s670
          %676 = dma.hbm_to_vmem [thread:$0]  %s14, 1024, %s671, [#allocation14], 64, 64, 4
        $region40: #{_lambda_.3} parent=11 // pred_fallthru
          _
        // Predicated region
        $region41: #{_lambda_.3} parent=11 // pred_check
          %p677 = pneg %p417
        $region42: #{_lambda_.3} parent=11 // pred_check_branch
          %679 = sbr.rel (%p677) target = $region44
        $region43: #{_lambda_.3} parent=11 // pred_region
          %s681 = ssub.s32 16, 16
          %682 = vsyncadd [#allocation17], %s681
          %s684 = sshll.u32 [#allocation16], 4
          %s685 = int_to_ptr.vmem [resolvable:$true] %s684
          %687 = dma.hbm_to_vmem [thread:$0]  %s15, 16, %s685, [#allocation17]
        $region44: #{_lambda_.3} parent=11 // pred_fallthru
          _
        // Predicated region
        $region45: #{_lambda_.3} parent=11 // pred_check
          %p688 = pneg %p438
        $region46: #{_lambda_.3} parent=11 // pred_check_branch
          %690 = sbr.rel (%p688) target = $region48
        $region47: #{_lambda_.3} parent=11 // pred_region
          %s692 = ssub.s32 4096, 4096
          %693 = vsyncadd [#allocation17], %s692
          %s694 = sshll.u32 [#allocation18], 4
          %s695 = int_to_ptr.vmem [resolvable:$true] %s694
          %700 = dma.hbm_to_vmem [thread:$0]  %s16, 4096, %s695, [#allocation17], 128, 128, 8
        $region48: #{_lambda_.3} parent=11 // pred_fallthru
          _
        // Predicated region
        $region49: #{_lambda_.3} parent=11 // pred_check
          %p701 = pneg %p459
        $region50: #{_lambda_.3} parent=11 // pred_check_branch
          %703 = sbr.rel (%p701) target = $region52
        $region51: #{_lambda_.3} parent=11 // pred_region
          %s705 = ssub.s32 32, 32
          %706 = vsyncadd [#allocation20], %s705
          %s708 = sshll.u32 [#allocation19], 4
          %s709 = int_to_ptr.vmem [resolvable:$true] %s708
          %711 = dma.hbm_to_vmem [thread:$0]  %s17, 32, %s709, [#allocation20]
        $region52: #{_lambda_.3} parent=11 // pred_fallthru
          _
        // Predicated region
        $region53: #{_lambda_.3} parent=11 // pred_check
          %p712 = pneg %p480
        $region54: #{_lambda_.3} parent=11 // pred_check_branch
          %714 = sbr.rel (%p712) target = $region56
        $region55: #{_lambda_.3} parent=11 // pred_region
          %s716 = ssub.s32 4096, 4096
          %717 = vsyncadd [#allocation20], %s716
          %s718 = sshll.u32 [#allocation21], 4
          %s719 = int_to_ptr.vmem [resolvable:$true] %s718
          %724 = dma.hbm_to_vmem [thread:$0]  %s18, 4096, %s719, [#allocation20], 128, 128, 8
        $region56: #{_lambda_.3} parent=11 // pred_fallthru
          _
        // Predicated region
        $region57: #{_lambda_.3} parent=11 // pred_check
          %p725 = pneg %p501
        $region58: #{_lambda_.3} parent=11 // pred_check_branch
          %727 = sbr.rel (%p725) target = $region60
        $region59: #{_lambda_.3} parent=11 // pred_region
          %s729 = ssub.s32 32, 32
          %730 = vsyncadd [#allocation23], %s729
          %s732 = sshll.u32 [#allocation22], 4
          %s733 = int_to_ptr.vmem [resolvable:$true] %s732
          %735 = dma.hbm_to_vmem [thread:$0]  %s19, 32, %s733, [#allocation23]
        $region60: #{_lambda_.3} parent=11 // pred_fallthru
          _
      $region12: #{_lambda_.3} parent=5 // pred_fallthru
        _
      %p736 = scmp.lt.s32.totalorder %s41, 2
      // Predicated region
      $region61: #{_lambda_.3} parent=5 // pred_check
        %p737 = pneg %p736
      $region62: #{_lambda_.3} parent=5 // pred_check_branch
        %739 = sbr.rel (%p737) target = $region64
      $region63: #{_lambda_.3} parent=5 // pred_region
        // Predicated region
        $region65: #{_lambda_.3} parent=63 // pred_check
          %p740 = pneg %p61
        $region66: #{_lambda_.3} parent=63 // pred_check_branch
          %742 = sbr.rel (%p740) target = $region68
        $region67: #{_lambda_.3} parent=63 // pred_region
          %s743 = sand.u32 %s51, 1
          %s744 = scalar_lea.sflag [#allocation3], %s743
          %s745 = sand.u32 %s51, 1
          %s746 = smul.addr %s745, 32
          %s747 = scalar_lea.vmem [#allocation2], %s746
          %s749 = ssub.s32 512, 512
          %750 = vsyncadd %s744, %s749
          %s751 = smul.addr %s41, 4
          %s752 = smul.addr %s751, 128
          %s753 = scalar_lea.hbm %s0, %s752
          %s754 = sshll.u32 %s747, 4
          %s755 = int_to_ptr.vmem [resolvable:$true] %s754
          %760 = dma.hbm_to_vmem [thread:$0]  %s753, 512, %s755, %s744, 256, 256, 16
        $region68: #{_lambda_.3} parent=63 // pred_fallthru
          _
        // Predicated region
        $region69: #{_lambda_.3} parent=63 // pred_check
          %p761 = pneg %p87
        $region70: #{_lambda_.3} parent=63 // pred_check_branch
          %763 = sbr.rel (%p761) target = $region72
        $region71: #{_lambda_.3} parent=63 // pred_region
          %p764 = scmp.lt.s32.totalorder %s41, 1
          %s765 = scalar_select %p764, %s41, 1
          %s766 = smul.addr %s765, 2
          %s767 = smul.addr %s766, 8
          %s768 = scalar_lea.vmem %s1, %s767
        $region72: #{_lambda_.3} parent=63 // pred_fallthru
          _
        // Predicated region
        $region73: #{_lambda_.3} parent=63 // pred_check
          %p769 = pneg %p113
        $region74: #{_lambda_.3} parent=63 // pred_check_branch
          %771 = sbr.rel (%p769) target = $region76
        $region75: #{_lambda_.3} parent=63 // pred_region
          %p772 = scmp.lt.s32.totalorder %s41, 1
          %s773 = scalar_select %p772, %s41, 1
          %s774 = smul.addr %s773, 2
          %s775 = scalar_lea.vmem %s2, %s774
        $region76: #{_lambda_.3} parent=63 // pred_fallthru
          _
        // Predicated region
        $region77: #{_lambda_.3} parent=63 // pred_check
          %p776 = pneg %p139
        $region78: #{_lambda_.3} parent=63 // pred_check_branch
          %778 = sbr.rel (%p776) target = $region80
        $region79: #{_lambda_.3} parent=63 // pred_region
          %s779 = sand.u32 %s41, 1
          %s780 = scalar_lea.sflag [#allocation5], %s779
          %s781 = sand.u32 %s129, 1
          %s782 = smul.addr %s781, 16
          %s783 = scalar_lea.vmem [#allocation4], %s782
          %s785 = ssub.s32 256, 256
          %786 = vsyncadd %s780, %s785
          %s787 = smul.addr %s41, 2
          %s788 = smul.addr %s787, 128
          %s789 = scalar_lea.hbm %s3, %s788
          %s790 = sshll.u32 %s783, 4
          %s791 = int_to_ptr.vmem [resolvable:$true] %s790
          %796 = dma.hbm_to_vmem [thread:$0]  %s789, 256, %s791, %s780, 128, 128, 8
        $region80: #{_lambda_.3} parent=63 // pred_fallthru
          _
        // Predicated region
        $region81: #{_lambda_.3} parent=63 // pred_check
          %p797 = pneg %p165
        $region82: #{_lambda_.3} parent=63 // pred_check_branch
          %799 = sbr.rel (%p797) target = $region84
        $region83: #{_lambda_.3} parent=63 // pred_region
          %p800 = scmp.lt.s32.totalorder %s41, 1
          %s801 = scalar_select %p800, %s41, 1
          %s802 = smul.addr %s801, 2
          %s803 = smul.addr %s802, 8
          %s804 = scalar_lea.vmem %s4, %s803
        $region84: #{_lambda_.3} parent=63 // pred_fallthru
          _
        // Predicated region
        $region85: #{_lambda_.3} parent=63 // pred_check
          %p805 = pneg %p191
        $region86: #{_lambda_.3} parent=63 // pred_check_branch
          %807 = sbr.rel (%p805) target = $region88
        $region87: #{_lambda_.3} parent=63 // pred_region
          %p808 = scmp.lt.s32.totalorder %s41, 1
          %s809 = scalar_select %p808, %s41, 1
          %s810 = scalar_lea.vmem %s5, %s809
        $region88: #{_lambda_.3} parent=63 // pred_fallthru
          _
        // Predicated region
        $region89: #{_lambda_.3} parent=63 // pred_check
          %p811 = pneg %p217
        $region90: #{_lambda_.3} parent=63 // pred_check_branch
          %813 = sbr.rel (%p811) target = $region92
        $region91: #{_lambda_.3} parent=63 // pred_region
          %p814 = scmp.lt.s32.totalorder %s41, 1
          %s815 = scalar_select %p814, %s41, 1
          %s816 = smul.addr %s815, 2
          %s817 = scalar_lea.vmem %s6, %s816
        $region92: #{_lambda_.3} parent=63 // pred_fallthru
          _
        // Predicated region
        $region93: #{_lambda_.3} parent=63 // pred_check
          %p818 = pneg %p243
        $region94: #{_lambda_.3} parent=63 // pred_check_branch
          %820 = sbr.rel (%p818) target = $region96
        $region95: #{_lambda_.3} parent=63 // pred_region
          %p821 = scmp.lt.s32.totalorder %s41, 1
          %s822 = scalar_select %p821, %s41, 1
          %s823 = smul.addr %s822, 2
          %s824 = smul.addr %s823, 8
          %s825 = scalar_lea.vmem %s7, %s824
        $region96: #{_lambda_.3} parent=63 // pred_fallthru
          _
      $region64: #{_lambda_.3} parent=5 // pred_fallthru
        _
      %p826 = scmp.le.s32.totalorder 1, %s41
      %p827 = scmp.lt.s32.totalorder %s41, 3
      %p828 = pnand %p826, %p827
      %p829 = pneg %p828
      // Predicated region
      $region97: #{_lambda_.3} parent=5 // pred_check
        _
      $region98: #{_lambda_.3} parent=5 // pred_check_branch
        %831 = sbr.rel (%p828) target = $region100
      $region99: #{_lambda_.3} parent=5 // pred_region
        %s832 = ssub.s32 %s41, 1
        %s833 = sand.u32 %s54, 1
        %s834 = scalar_lea.sflag [#allocation3], %s833
        %s835 = sand.u32 %s54, 1
        %s836 = smul.addr %s835, 32
        %s837 = scalar_lea.vmem [#allocation2], %s836
        // Predicated region
        $region101: #{_lambda_.3} parent=99 // pred_check
          %p838 = pneg %p67
        $region102: #{_lambda_.3} parent=99 // pred_check_branch
          %840 = sbr.rel (%p838) target = $region104
        $region103: #{_lambda_.3} parent=99 // pred_region
          %841 = dma.done %s834, 512
        $region104: #{_lambda_.3} parent=99 // pred_fallthru
          _
        %s842 = sand.u32 %s46, 1
        %s843 = scalar_lea.sflag [#allocation5], %s842
        %s844 = sand.u32 %s132, 1
        %s845 = smul.addr %s844, 16
        %s846 = scalar_lea.vmem [#allocation4], %s845
        // Predicated region
        $region105: #{_lambda_.3} parent=99 // pred_check
          %p847 = pneg %p145
        $region106: #{_lambda_.3} parent=99 // pred_check_branch
          %849 = sbr.rel (%p847) target = $region108
        $region107: #{_lambda_.3} parent=99 // pred_region
          %850 = dma.done %s843, 256
        $region108: #{_lambda_.3} parent=99 // pred_fallthru
          _
        // Predicated region
        $region109: #{_lambda_.3} parent=99 // pred_check
          %p851 = pneg %p270
        $region110: #{_lambda_.3} parent=99 // pred_check_branch
          %853 = sbr.rel (%p851) target = $region112
        $region111: #{_lambda_.3} parent=99 // pred_region
          %854 = dma.done [#allocation5], 2048
        $region112: #{_lambda_.3} parent=99 // pred_fallthru
          _
        // Predicated region
        $region113: #{_lambda_.3} parent=99 // pred_check
          %p855 = pneg %p291
        $region114: #{_lambda_.3} parent=99 // pred_check_branch
          %857 = sbr.rel (%p855) target = $region116
        $region115: #{_lambda_.3} parent=99 // pred_region
          %858 = dma.done [#allocation8], 16
        $region116: #{_lambda_.3} parent=99 // pred_fallthru
          _
        // Predicated region
        $region117: #{_lambda_.3} parent=99 // pred_check
          %p859 = pneg %p312
        $region118: #{_lambda_.3} parent=99 // pred_check_branch
          %861 = sbr.rel (%p859) target = $region120
        $region119: #{_lambda_.3} parent=99 // pred_region
          %862 = dma.done [#allocation8], 32
        $region120: #{_lambda_.3} parent=99 // pred_fallthru
          _
        // Predicated region
        $region121: #{_lambda_.3} parent=99 // pred_check
          %p863 = pneg %p333
        $region122: #{_lambda_.3} parent=99 // pred_check_branch
          %865 = sbr.rel (%p863) target = $region124
        $region123: #{_lambda_.3} parent=99 // pred_region
          %866 = dma.done [#allocation11], 32
        $region124: #{_lambda_.3} parent=99 // pred_fallthru
          _
        // Predicated region
        $region125: #{_lambda_.3} parent=99 // pred_check
          %p867 = pneg %p354
        $region126: #{_lambda_.3} parent=99 // pred_check_branch
          %869 = sbr.rel (%p867) target = $region128
        $region127: #{_lambda_.3} parent=99 // pred_region
          %870 = dma.done [#allocation11], 4096
        $region128: #{_lambda_.3} parent=99 // pred_fallthru
          _
        // Predicated region
        $region129: #{_lambda_.3} parent=99 // pred_check
          %p871 = pneg %p375
        $region130: #{_lambda_.3} parent=99 // pred_check_branch
          %873 = sbr.rel (%p871) target = $region132
        $region131: #{_lambda_.3} parent=99 // pred_region
          %874 = dma.done [#allocation14], 32
        $region132: #{_lambda_.3} parent=99 // pred_fallthru
          _
        // Predicated region
        $region133: #{_lambda_.3} parent=99 // pred_check
          %p875 = pneg %p396
        $region134: #{_lambda_.3} parent=99 // pred_check_branch
          %877 = sbr.rel (%p875) target = $region136
        $region135: #{_lambda_.3} parent=99 // pred_region
          %878 = dma.done [#allocation14], 1024
        $region136: #{_lambda_.3} parent=99 // pred_fallthru
          _
        // Predicated region
        $region137: #{_lambda_.3} parent=99 // pred_check
          %p879 = pneg %p417
        $region138: #{_lambda_.3} parent=99 // pred_check_branch
          %881 = sbr.rel (%p879) target = $region140
        $region139: #{_lambda_.3} parent=99 // pred_region
          %882 = dma.done [#allocation17], 16
        $region140: #{_lambda_.3} parent=99 // pred_fallthru
          _
        // Predicated region
        $region141: #{_lambda_.3} parent=99 // pred_check
          %p883 = pneg %p438
        $region142: #{_lambda_.3} parent=99 // pred_check_branch
          %885 = sbr.rel (%p883) target = $region144
        $region143: #{_lambda_.3} parent=99 // pred_region
          %886 = dma.done [#allocation17], 4096
        $region144: #{_lambda_.3} parent=99 // pred_fallthru
          _
        // Predicated region
        $region145: #{_lambda_.3} parent=99 // pred_check
          %p887 = pneg %p459
        $region146: #{_lambda_.3} parent=99 // pred_check_branch
          %889 = sbr.rel (%p887) target = $region148
        $region147: #{_lambda_.3} parent=99 // pred_region
          %890 = dma.done [#allocation20], 32
        $region148: #{_lambda_.3} parent=99 // pred_fallthru
          _
        // Predicated region
        $region149: #{_lambda_.3} parent=99 // pred_check
          %p891 = pneg %p480
        $region150: #{_lambda_.3} parent=99 // pred_check_branch
          %893 = sbr.rel (%p891) target = $region152
        $region151: #{_lambda_.3} parent=99 // pred_region
          %894 = dma.done [#allocation20], 4096
        $region152: #{_lambda_.3} parent=99 // pred_fallthru
          _
        // Predicated region
        $region153: #{_lambda_.3} parent=99 // pred_check
          %p895 = pneg %p501
        $region154: #{_lambda_.3} parent=99 // pred_check_branch
          %897 = sbr.rel (%p895) target = $region156
        $region155: #{_lambda_.3} parent=99 // pred_region
          %898 = dma.done [#allocation23], 32
        $region156: #{_lambda_.3} parent=99 // pred_fallthru
          _
        %s899 = sand.u32 %s54, 1
        %s900 = scalar_lea.sflag [#allocation3], %s899
        %s901 = sand.u32 %s54, 1
        %s902 = smul.addr %s901, 32
        %s903 = scalar_lea.vmem [#allocation2], %s902
        %p904 = pneg %p67
        %p905 = pneg %p64
        %p906 = scmp.lt.s32.totalorder %s46, 1
        %s907 = scalar_select %p906, %s46, 1
        %s908 = smul.addr %s907, 2
        %s909 = smul.addr %s908, 8
        %s910 = scalar_lea.vmem %s1, %s909
        %p911 = pneg %p93
        %p912 = pneg %p90
        %p913 = scmp.lt.s32.totalorder %s46, 1
        %s914 = scalar_select %p913, %s46, 1
        %s915 = smul.addr %s914, 2
        %s916 = scalar_lea.vmem %s2, %s915
        %p917 = pneg %p119
        %p918 = pneg %p116
        %s919 = sand.u32 %s46, 1
        %s920 = scalar_lea.sflag [#allocation5], %s919
        %s921 = sand.u32 %s132, 1
        %s922 = smul.addr %s921, 16
        %s923 = scalar_lea.vmem [#allocation4], %s922
        %p924 = pneg %p145
        %p925 = pneg %p142
        %p926 = scmp.lt.s32.totalorder %s46, 1
        %s927 = scalar_select %p926, %s46, 1
        %s928 = smul.addr %s927, 2
        %s929 = smul.addr %s928, 8
        %s930 = scalar_lea.vmem %s4, %s929
        %p931 = pneg %p171
        %p932 = pneg %p168
        %p933 = scmp.lt.s32.totalorder %s46, 1
        %s934 = scalar_select %p933, %s46, 1
        %s935 = scalar_lea.vmem %s5, %s934
        %p936 = pneg %p197
        %p937 = pneg %p194
        %p938 = scmp.lt.s32.totalorder %s46, 1
        %s939 = scalar_select %p938, %s46, 1
        %s940 = smul.addr %s939, 2
        %s941 = scalar_lea.vmem %s6, %s940
        %p942 = pneg %p223
        %p943 = pneg %p220
        %p944 = scmp.lt.s32.totalorder %s46, 1
        %s945 = scalar_select %p944, %s46, 1
        %s946 = smul.addr %s945, 2
        %s947 = smul.addr %s946, 8
        %s948 = scalar_lea.vmem %s7, %s947
        %p949 = pneg %p249
        %p950 = pneg %p246
        %p951 = pneg %p270
        %p952 = pneg %p267
        %p953 = pneg %p291
        %p954 = pneg %p288
        %p955 = pneg %p312
        %p956 = pneg %p309
        %p957 = pneg %p333
        %p958 = pneg %p330
        %p959 = pneg %p354
        %p960 = pneg %p351
        %p961 = pneg %p375
        %p962 = pneg %p372
        %p963 = pneg %p396
        %p964 = pneg %p393
        %p965 = pneg %p417
        %p966 = pneg %p414
        %p967 = pneg %p438
        %p968 = pneg %p435
        %p969 = pneg %p459
        %p970 = pneg %p456
        %p971 = pneg %p480
        %p972 = pneg %p477
        %p973 = pneg %p501
        %p974 = pneg %p498
        %p975 = pneg %p527
        %p976 = pneg %p524
        %p977 = scmp.lt.s32.totalorder %s46, 1
        %s978 = scalar_select %p977, %s46, 1
        %s979 = smul.addr %s978, 4
        %s980 = smul.addr %s979, 8
        %s981 = scalar_lea.vmem %s20, %s980
        %p982 = pneg %p553
        %p983 = pneg %p550
        %p984 = scmp.lt.s32.totalorder %s46, 1
        %s985 = scalar_select %p984, %s46, 1
        %s986 = smul.addr %s985, 4
        %s987 = smul.addr %s986, 8
        %s988 = scalar_lea.vmem %s21, %s987
        %p989 = pneg %p579
        %p990 = pneg %p576
        %p991 = scmp.lt.s32.totalorder %s46, 1
        %s992 = scalar_select %p991, %s46, 1
        %s993 = smul.addr %s992, 2
        %s994 = smul.addr %s993, 8
        %s995 = scalar_lea.vmem %s22, %s994
        %p996 = scmp.lt.s32.totalorder %s46, 1
        %s997 = scalar_select %p996, %s46, 1
        %s998 = smul.addr %s997, 2
        %s999 = smul.addr %s998, 8
        %s1000 = scalar_lea.vmem %s1, %s999
        %p1001 = scmp.lt.s32.totalorder %s46, 1
        %s1002 = scalar_select %p1001, %s46, 1
        %s1003 = smul.addr %s1002, 2
        %s1004 = scalar_lea.vmem %s2, %s1003
        %p1005 = scmp.lt.s32.totalorder %s46, 1
        %s1006 = scalar_select %p1005, %s46, 1
        %s1007 = smul.addr %s1006, 2
        %s1008 = smul.addr %s1007, 8
        %s1009 = scalar_lea.vmem %s4, %s1008
        %p1010 = scmp.lt.s32.totalorder %s46, 1
        %s1011 = scalar_select %p1010, %s46, 1
        %s1012 = scalar_lea.vmem %s5, %s1011
        %p1013 = scmp.lt.s32.totalorder %s46, 1
        %s1014 = scalar_select %p1013, %s46, 1
        %s1015 = smul.addr %s1014, 2
        %s1016 = scalar_lea.vmem %s6, %s1015
        %p1017 = scmp.lt.s32.totalorder %s46, 1
        %s1018 = scalar_select %p1017, %s46, 1
        %s1019 = smul.addr %s1018, 2
        %s1020 = smul.addr %s1019, 8
        %s1021 = scalar_lea.vmem %s7, %s1020
        %p1022 = scmp.lt.s32.totalorder %s46, 1
        %s1023 = scalar_select %p1022, %s46, 1
        %s1024 = smul.addr %s1023, 4
        %s1025 = smul.addr %s1024, 8
        %s1026 = scalar_lea.vmem %s20, %s1025
        %p1027 = scmp.lt.s32.totalorder %s46, 1
        %s1028 = scalar_select %p1027, %s46, 1
        %s1029 = smul.addr %s1028, 4
        %s1030 = smul.addr %s1029, 8
        %s1031 = scalar_lea.vmem %s21, %s1030
        %p1032 = scmp.lt.s32.totalorder %s46, 1
        %s1033 = scalar_select %p1032, %s46, 1
        %s1034 = smul.addr %s1033, 2
        %s1035 = smul.addr %s1034, 8
        %s1036 = scalar_lea.vmem %s22, %s1035
        %v1038 = vld [vmem:[%s837] sm:$0xff]
        %v1039 = vld [vmem:[%s837 + $0x8] sm:$0xff]
        %v1040 = vld [vmem:[%s837 + $0x10] sm:$0xff]
        %v1041 = vld [vmem:[%s837 + $0x18] sm:$0xff]
        %v1042 = vld [vmem:[%s846] sm:$0xff]
        %v1043 = vld [vmem:[%s846 + $0x8] sm:$0xff]
        %v1044 = vld [vmem:[%s1009] sm:$0xff]
        %v1045 = vld [vmem:[%s1009 + $0x8] sm:$0xff]
        %v1046 = vld [vmem:[%s1012] sm:$0x1]
        %v1047 = vld [vmem:[%s1021] sm:$0xff]
        %v1048 = vld [vmem:[%s1021 + $0x8] sm:$0xff]
        %v1049 = vmul.f32 %v1046, 0.9999
        %v1050 = vsub.f32 1.0, %v1049
        %v1052 = vlaneseq
        %v1053 = vshrl.u32 %v1052, 7
        %v1054 = vsub.s32 0, %v1053
        %v1055 = vrot.slane %v1050, %v1054
        %1056 = vset.pattern.permute.xlu0 0
        %1057 = vperm.xlu0 %1056, %v1055
        %v1058 = vpop.permute.xlu0 %1057
        %v1060 = vmul.f32 %v1058, %v1044
        %v1061 = vmul.f32 %v1058, %v1045
        %v1063 = vlaneseq
        %v1064 = vshrl.u32 %v1063, 7
        %v1065 = vsub.s32 0, %v1064
        %v1066 = vrot.slane %v1046, %v1065
        %1067 = vset.pattern.permute.xlu0 0
        %1068 = vperm.xlu0 %1067, %v1066
        %v1069 = vpop.permute.xlu0 %1068
        %v1071 = vmul.f32 %v1069, %v1042
        %v1072 = vmul.f32 %v1069, %v1043
        %v1073 = vadd.f32 %v1060, %v1071
        %v1074 = vadd.f32 %v1061, %v1072
        %v1075 = vmul.f32 %v1044, 0.9999
        %v1076 = vmul.f32 %v1045, 0.9999
        %v1077 = vsub.f32 %v1042, %v1075
        %v1078 = vsub.f32 %v1043, %v1076
        %1079 = vst [vmem:[%s1036] sm:$0xff] %v1077
        %1080 = vst [vmem:[%s1036 + $0x8] sm:$0xff] %v1078
        %v1081 = vld [vmem:[#allocation6] sm:$0xf]
        %v1082 = vld [vmem:[#allocation6 + $0x4] sm:$0xf]
        %v1083 = vld [vmem:[#allocation6 + $0x8] sm:$0xf]
        %v1084 = vld [vmem:[#allocation6 + $0xc] sm:$0xf]
        %v1085 = vld [vmem:[#allocation6 + $0x10] sm:$0xf]
        %v1086 = vld [vmem:[#allocation6 + $0x14] sm:$0xf]
        %v1087 = vld [vmem:[#allocation6 + $0x18] sm:$0xf]
        %v1088 = vld [vmem:[#allocation6 + $0x1c] sm:$0xf]
        %v1089 = vld [vmem:[#allocation6 + $0x20] sm:$0xf]
        %v1090 = vld [vmem:[#allocation6 + $0x24] sm:$0xf]
        %v1091 = vld [vmem:[#allocation6 + $0x28] sm:$0xf]
        %v1092 = vld [vmem:[#allocation6 + $0x2c] sm:$0xf]
        %v1093 = vld [vmem:[#allocation6 + $0x30] sm:$0xf]
        %v1094 = vld [vmem:[#allocation6 + $0x34] sm:$0xf]
        %v1095 = vld [vmem:[#allocation6 + $0x38] sm:$0xf]
        %v1096 = vld [vmem:[#allocation6 + $0x3c] sm:$0xf]
        %v1097 = vld [vmem:[#allocation6 + $0x40] sm:$0xf]
        %v1098 = vld [vmem:[#allocation6 + $0x44] sm:$0xf]
        %v1099 = vld [vmem:[#allocation6 + $0x48] sm:$0xf]
        %v1100 = vld [vmem:[#allocation6 + $0x4c] sm:$0xf]
        %v1101 = vld [vmem:[#allocation6 + $0x50] sm:$0xf]
        %v1102 = vld [vmem:[#allocation6 + $0x54] sm:$0xf]
        %v1103 = vld [vmem:[#allocation6 + $0x58] sm:$0xf]
        %v1104 = vld [vmem:[#allocation6 + $0x5c] sm:$0xf]
        %v1105 = vld [vmem:[#allocation6 + $0x60] sm:$0xf]
        %v1106 = vld [vmem:[#allocation6 + $0x64] sm:$0xf]
        %v1107 = vld [vmem:[#allocation6 + $0x68] sm:$0xf]
        %v1108 = vld [vmem:[#allocation6 + $0x6c] sm:$0xf]
        %v1109 = vld [vmem:[#allocation6 + $0x70] sm:$0xf]
        %v1110 = vld [vmem:[#allocation6 + $0x74] sm:$0xf]
        %v1111 = vld [vmem:[#allocation6 + $0x78] sm:$0xf]
        %v1112 = vld [vmem:[#allocation6 + $0x7c] sm:$0xf]
        %v1113 = vpack.c.bf16 %v1040, %v1038
        %v1114 = vpack.c.bf16 %v1041, %v1039
        %v1115 = vld [vmem:[#allocation7] sm:$0x1]
        %v1117 = vlaneseq
        %v1118 = vshrl.u32 %v1117, 7
        %v1119 = vsub.s32 0, %v1118
        %v1120 = vrot.slane %v1115, %v1119
        %v1154 = vunpack.c.l.b16 %v1081
        %v1155 = vunpack.c.l.b16 %v1082
        %v1156 = vunpack.c.l.b16 %v1083
        %v1157 = vunpack.c.l.b16 %v1084
        %v1158 = vunpack.c.l.b16 %v1085
        %v1159 = vunpack.c.l.b16 %v1086
        %v1160 = vunpack.c.l.b16 %v1087
        %v1161 = vunpack.c.l.b16 %v1088
        %v1162 = vunpack.c.l.b16 %v1089
        %v1163 = vunpack.c.l.b16 %v1090
        %v1164 = vunpack.c.l.b16 %v1091
        %v1165 = vunpack.c.l.b16 %v1092
        %v1166 = vunpack.c.l.b16 %v1093
        %v1167 = vunpack.c.l.b16 %v1094
        %v1168 = vunpack.c.l.b16 %v1095
        %v1169 = vunpack.c.l.b16 %v1096
        %v1170 = vunpack.c.l.b16 %v1097
        %v1171 = vunpack.c.l.b16 %v1098
        %v1172 = vunpack.c.l.b16 %v1099
        %v1173 = vunpack.c.l.b16 %v1100
        %v1174 = vunpack.c.l.b16 %v1101
        %v1175 = vunpack.c.l.b16 %v1102
        %v1176 = vunpack.c.l.b16 %v1103
        %v1177 = vunpack.c.l.b16 %v1104
        %v1178 = vunpack.c.l.b16 %v1105
        %v1179 = vunpack.c.l.b16 %v1106
        %v1180 = vunpack.c.l.b16 %v1107
        %v1181 = vunpack.c.l.b16 %v1108
        %v1182 = vunpack.c.l.b16 %v1109
        %v1183 = vunpack.c.l.b16 %v1110
        %v1184 = vunpack.c.l.b16 %v1111
        %v1185 = vunpack.c.l.b16 %v1112
        %v1186 = vpack.c.b16 %v1155, %v1154
        %v1187 = vpack.c.b16 %v1157, %v1156
        %v1188 = vpack.c.b16 %v1159, %v1158
        %v1189 = vpack.c.b16 %v1161, %v1160
        %v1190 = vpack.c.b16 %v1163, %v1162
        %v1191 = vpack.c.b16 %v1165, %v1164
        %v1192 = vpack.c.b16 %v1167, %v1166
        %v1193 = vpack.c.b16 %v1169, %v1168
        %v1194 = vpack.c.b16 %v1171, %v1170
        %v1195 = vpack.c.b16 %v1173, %v1172
        %v1196 = vpack.c.b16 %v1175, %v1174
        %v1197 = vpack.c.b16 %v1177, %v1176
        %v1198 = vpack.c.b16 %v1179, %v1178
        %v1199 = vpack.c.b16 %v1181, %v1180
        %v1200 = vpack.c.b16 %v1183, %v1182
        %v1201 = vpack.c.b16 %v1185, %v1184
        %1218 = vmatprep.subr.bf16.mxu0 0
        %1219 = vmatpush1.bf16.msra.mxu0 %v1193
        %1220 = vmatprep.subr.bf16.mxu0 0
        %1221 = vmatpush1.bf16.msra.mxu0 %v1192
        %1222 = vmatprep.subr.bf16.mxu0 0
        %1223 = vmatpush1.bf16.msra.mxu0 %v1191
        %1224 = vmatprep.subr.bf16.mxu0 0
        %1225 = vmatpush1.bf16.msra.mxu0 %v1190
        %1226 = vmatprep.subr.bf16.mxu0 0
        %1227 = vmatpush1.bf16.msra.mxu0 %v1189
        %1228 = vmatprep.subr.bf16.mxu0 0
        %1229 = vmatpush1.bf16.msra.mxu0 %v1188
        %1230 = vmatprep.subr.bf16.mxu0 0
        %1231 = vmatpush1.bf16.msra.mxu0 %v1187
        %1232 = vmatprep.subr.bf16.mxu0 0
        %1233 = vmatpush1.bf16.msra.mxu0 %v1186
        %1234 = vmatprep.subr.bf16.mxu0 0
        %1235 = vmatpush2.bf16.msra.mxu0 %v1201
        %1236 = vmatprep.subr.bf16.mxu0 0
        %1237 = vmatpush2.bf16.msra.mxu0 %v1200
        %1238 = vmatprep.subr.bf16.mxu0 0
        %1239 = vmatpush2.bf16.msra.mxu0 %v1199
        %1240 = vmatprep.subr.bf16.mxu0 0
        %1241 = vmatpush2.bf16.msra.mxu0 %v1198
        %1242 = vmatprep.subr.bf16.mxu0 0
        %1243 = vmatpush2.bf16.msra.mxu0 %v1197
        %1244 = vmatprep.subr.bf16.mxu0 0
        %1245 = vmatpush2.bf16.msra.mxu0 %v1196
        %1246 = vmatprep.subr.bf16.mxu0 0
        %1247 = vmatpush2.bf16.msra.mxu0 %v1195
        %1248 = vmatprep.subr.bf16.mxu0 0
        %1249 = vmatpush2.bf16.msra.mxu0 %v1194
        %1250 = vmatprep.mubr.bf16.mxu0 %v1114
        %1251 = vmatmul.mubr.bf16.gmra.mxu0 %v1113
        %v1252 = vpop.f32.mrf.mxu0
        %v1253 = vadd.f32 %v1120, %v1252
        %v1254 = vpop.f32.mrf.mxu0
        %v1255 = vpop.f32.mrf.mxu0
        %v1256 = vadd.f32 %v1120, %v1255
        %v1257 = vpop.f32.mrf.mxu0
        %1258 = vdwg.mxu0
        %v1259 = vld [vmem:[#allocation15] sm:$0xf]
        %v1260 = vld [vmem:[#allocation15 + $0x4] sm:$0xf]
        %v1261 = vld [vmem:[#allocation15 + $0x8] sm:$0xf]
        %v1262 = vld [vmem:[#allocation15 + $0xc] sm:$0xf]
        %v1263 = vld [vmem:[#allocation15 + $0x10] sm:$0xf]
        %v1264 = vld [vmem:[#allocation15 + $0x14] sm:$0xf]
        %v1265 = vld [vmem:[#allocation15 + $0x18] sm:$0xf]
        %v1266 = vld [vmem:[#allocation15 + $0x1c] sm:$0xf]
        %v1267 = vld [vmem:[#allocation15 + $0x20] sm:$0xf]
        %v1268 = vld [vmem:[#allocation15 + $0x24] sm:$0xf]
        %v1269 = vld [vmem:[#allocation15 + $0x28] sm:$0xf]
        %v1270 = vld [vmem:[#allocation15 + $0x2c] sm:$0xf]
        %v1271 = vld [vmem:[#allocation15 + $0x30] sm:$0xf]
        %v1272 = vld [vmem:[#allocation15 + $0x34] sm:$0xf]
        %v1273 = vld [vmem:[#allocation15 + $0x38] sm:$0xf]
        %v1274 = vld [vmem:[#allocation15 + $0x3c] sm:$0xf]
        %v1275 = vpack.c.bf16 %v1074, %v1073
        %v1276 = vld [vmem:[#allocation16] sm:$0x1]
        %v1278 = vlaneseq
        %v1279 = vshrl.u32 %v1278, 7
        %v1280 = vsub.s32 0, %v1279
        %v1281 = vrot.slane %v1276, %v1280
        %v1299 = vunpack.c.l.b16 %v1259
        %v1300 = vunpack.c.l.b16 %v1260
        %v1301 = vunpack.c.l.b16 %v1261
        %v1302 = vunpack.c.l.b16 %v1262
        %v1303 = vunpack.c.l.b16 %v1263
        %v1304 = vunpack.c.l.b16 %v1264
        %v1305 = vunpack.c.l.b16 %v1265
        %v1306 = vunpack.c.l.b16 %v1266
        %v1307 = vunpack.c.l.b16 %v1267
        %v1308 = vunpack.c.l.b16 %v1268
        %v1309 = vunpack.c.l.b16 %v1269
        %v1310 = vunpack.c.l.b16 %v1270
        %v1311 = vunpack.c.l.b16 %v1271
        %v1312 = vunpack.c.l.b16 %v1272
        %v1313 = vunpack.c.l.b16 %v1273
        %v1314 = vunpack.c.l.b16 %v1274
        %v1315 = vpack.c.b16 %v1300, %v1299
        %v1316 = vpack.c.b16 %v1302, %v1301
        %v1317 = vpack.c.b16 %v1304, %v1303
        %v1318 = vpack.c.b16 %v1306, %v1305
        %v1319 = vpack.c.b16 %v1308, %v1307
        %v1320 = vpack.c.b16 %v1310, %v1309
        %v1321 = vpack.c.b16 %v1312, %v1311
        %v1322 = vpack.c.b16 %v1314, %v1313
        %1331 = vmatprep.subr.bf16.mxu0 0
        %1332 = vmatpush1.bf16.msra.mxu0 %v1322
        %1333 = vmatprep.subr.bf16.mxu0 0
        %1334 = vmatpush1.bf16.msra.mxu0 %v1321
        %1335 = vmatprep.subr.bf16.mxu0 0
        %1336 = vmatpush1.bf16.msra.mxu0 %v1320
        %1337 = vmatprep.subr.bf16.mxu0 0
        %1338 = vmatpush1.bf16.msra.mxu0 %v1319
        %1339 = vmatprep.subr.bf16.mxu0 0
        %1340 = vmatpush1.bf16.msra.mxu0 %v1318
        %1341 = vmatprep.subr.bf16.mxu0 0
        %1342 = vmatpush1.bf16.msra.mxu0 %v1317
        %1343 = vmatprep.subr.bf16.mxu0 0
        %1344 = vmatpush1.bf16.msra.mxu0 %v1316
        %1345 = vmatprep.subr.bf16.mxu0 0
        %1346 = vmatpush1.bf16.msra.mxu0 %v1315
        %1347 = vmatprep.subr.bf16.mxu0 0
        %1348 = vmatpush2.bf16.msra.mxu0 0
        %1349 = vmatprep.subr.bf16.mxu0 0
        %1350 = vmatpush2.bf16.msra.mxu0 0
        %1351 = vmatprep.subr.bf16.mxu0 0
        %1352 = vmatpush2.bf16.msra.mxu0 0
        %1353 = vmatprep.subr.bf16.mxu0 0
        %1354 = vmatpush2.bf16.msra.mxu0 0
        %1355 = vmatprep.subr.bf16.mxu0 0
        %1356 = vmatpush2.bf16.msra.mxu0 0
        %1357 = vmatprep.subr.bf16.mxu0 0
        %1358 = vmatpush2.bf16.msra.mxu0 0
        %1359 = vmatprep.subr.bf16.mxu0 0
        %1360 = vmatpush2.bf16.msra.mxu0 0
        %1361 = vmatprep.subr.bf16.mxu0 0
        %1362 = vmatpush2.bf16.msra.mxu0 0
        %1363 = vmatprep.mubr.bf16.mxu0 0
        %1364 = vmatmul.mubr.bf16.gmra.mxu0 %v1275
        %v1365 = vpop.f32.mrf.mxu0
        %v1366 = vadd.f32 %v1281, %v1365
        %v1367 = vpop.f32.mrf.mxu0
        %v1368 = vpop.f32.mrf.mxu0
        %v1369 = vadd.f32 %v1281, %v1368
        %v1370 = vpop.f32.mrf.mxu0
        %1371 = vdwg.mxu0
        %1373 = vset.pattern.permute.xlu0 0
        %1374 = vperm.xlu0 %1373, %v1047
        %v1375 = vpop.permute.xlu0 %1374
        %1378 = vset.pattern.permute.xlu0 0
        %1379 = vperm.xlu0 %1378, %v1048
        %v1380 = vpop.permute.xlu0 %1379
        %v1382 = vmul.f32 %v1366, %v1375
        %v1383 = vmul.f32 %v1253, %v1375
        %v1384 = vmul.f32 %v1369, %v1380
        %v1385 = vmul.f32 %v1256, %v1380
        %1386 = vst [vmem:[%s1026] sm:$0xff] %v1382
        %1387 = vst [vmem:[%s1026 + $0x8] sm:$0xff] %v1383
        %1388 = vst [vmem:[%s1026 + $0x10] sm:$0xff] %v1384
        %1389 = vst [vmem:[%s1026 + $0x18] sm:$0xff] %v1385
        %v1390 = vld [vmem:[%s1000] sm:$0xff]
        %v1391 = vld [vmem:[%s1000 + $0x8] sm:$0xff]
        %v1392 = vrcp.pop 700.0
        %v1393 = vmul.f32 %v1390, %v1392
        %v1394 = vmul.f32 %v1391, %v1392
        %v1395 = vadd.f32 %v1393, 1.0
        %v1396 = vlog2.pop %v1395
        %v1397 = vmul.f32 %v1396, 0.6931472
        %v1398 = vmul.f32 -0.5, %v1393
        %v1399 = vadd.f32 %v1398, 1.0
        %v1400 = vmul.f32 %v1399, %v1393
        %v1401 = vand.u32 2147483647, %v1393
        %vm1402 = vcmp.lt.f32.partialorder %v1401, 0.0004427343
        %v1403 = vsel %vm1402, %v1400, %v1397
        %v1404 = vadd.f32 %v1394, 1.0
        %v1405 = vlog2.pop %v1404
        %v1406 = vmul.f32 %v1405, 0.6931472
        %v1407 = vmul.f32 -0.5, %v1394
        %v1408 = vadd.f32 %v1407, 1.0
        %v1409 = vmul.f32 %v1408, %v1394
        %v1410 = vand.u32 2147483647, %v1394
        %vm1411 = vcmp.lt.f32.partialorder %v1410, 0.0004427343
        %v1412 = vsel %vm1411, %v1409, %v1406
        %v1413 = vld [vmem:[#allocation9] sm:$0x3]
        %1415 = vset.pattern.permute.xlu0 0
        %1416 = vperm.xlu0 %1415, %v1403
        %v1417 = vpop.permute.xlu0 %1416
        %1420 = vset.pattern.permute.xlu0 0
        %1421 = vperm.xlu0 %1420, %v1412
        %v1422 = vpop.permute.xlu0 %1421
        %v1425 = vlaneseq
        %v1426 = vshrl.u32 %v1425, 7
        %v1427 = vsub.s32 0, %v1426
        %v1428 = vrot.slane %v1413, %v1427
        %v1429 = vlaneseq
        %v1430 = vshrl.u32 %v1429, 7
        %v1431 = vsub.s32 1, %v1430
        %v1432 = vrot.slane %v1413, %v1431
        %v1435 = vmul.f32 %v1417, %v1428
        %v1436 = vmul.f32 %v1417, %v1432
        %v1437 = vmul.f32 %v1422, %v1428
        %v1438 = vmul.f32 %v1422, %v1432
        %v1439 = vld [vmem:[#allocation10] sm:$0x3]
        %v1441 = vlaneseq
        %v1442 = vshrl.u32 %v1441, 7
        %v1443 = vsub.s32 0, %v1442
        %v1444 = vrot.slane %v1439, %v1443
        %v1445 = vlaneseq
        %v1446 = vshrl.u32 %v1445, 7
        %v1447 = vsub.s32 1, %v1446
        %v1448 = vrot.slane %v1439, %v1447
        %v1451 = vadd.f32 %v1435, %v1444
        %v1452 = vadd.f32 %v1436, %v1448
        %v1453 = vadd.f32 %v1437, %v1444
        %v1454 = vadd.f32 %v1438, %v1448
        %v1455 = vld [vmem:[%s1004] sm:$0x3]
        %v1456 = vld [vmem:[#allocation12] sm:$0xff]
        %v1457 = vld [vmem:[#allocation12 + $0x8] sm:$0xff]
        %v1458 = vld [vmem:[#allocation12 + $0x10] sm:$0xff]
        %v1459 = vld [vmem:[#allocation12 + $0x18] sm:$0xff]
        %v1460 = vld [vmem:[#allocation12 + $0x20] sm:$0xff]
        %v1461 = vld [vmem:[#allocation12 + $0x28] sm:$0xff]
        %v1462 = vld [vmem:[#allocation12 + $0x30] sm:$0xff]
        %v1463 = vld [vmem:[#allocation12 + $0x38] sm:$0xff]
        %v1464 = vld [vmem:[#allocation12 + $0x40] sm:$0xff]
        %v1465 = vld [vmem:[#allocation12 + $0x48] sm:$0xff]
        %v1466 = vld [vmem:[#allocation12 + $0x50] sm:$0xff]
        %v1467 = vld [vmem:[#allocation12 + $0x58] sm:$0xff]
        %v1468 = vld [vmem:[#allocation12 + $0x60] sm:$0xff]
        %v1469 = vld [vmem:[#allocation12 + $0x68] sm:$0xff]
        %v1470 = vld [vmem:[#allocation12 + $0x70] sm:$0xff]
        %v1471 = vld [vmem:[#allocation12 + $0x78] sm:$0xff]
        %v1472 = vld [vmem:[#allocation12 + $0x80] sm:$0xff]
        %v1473 = vld [vmem:[#allocation12 + $0x88] sm:$0xff]
        %v1474 = vld [vmem:[#allocation12 + $0x90] sm:$0xff]
        %v1475 = vld [vmem:[#allocation12 + $0x98] sm:$0xff]
        %v1476 = vld [vmem:[#allocation12 + $0xa0] sm:$0xff]
        %v1477 = vld [vmem:[#allocation12 + $0xa8] sm:$0xff]
        %v1478 = vld [vmem:[#allocation12 + $0xb0] sm:$0xff]
        %v1479 = vld [vmem:[#allocation12 + $0xb8] sm:$0xff]
        %v1480 = vld [vmem:[#allocation12 + $0xc0] sm:$0xff]
        %v1481 = vld [vmem:[#allocation12 + $0xc8] sm:$0xff]
        %v1482 = vld [vmem:[#allocation12 + $0xd0] sm:$0xff]
        %v1483 = vld [vmem:[#allocation12 + $0xd8] sm:$0xff]
        %v1484 = vld [vmem:[#allocation12 + $0xe0] sm:$0xff]
        %v1485 = vld [vmem:[#allocation12 + $0xe8] sm:$0xff]
        %v1486 = vld [vmem:[#allocation12 + $0xf0] sm:$0xff]
        %v1487 = vld [vmem:[#allocation12 + $0xf8] sm:$0xff]
        %v1489 = vlaneseq
        %v1490 = vshrl.u32 %v1489, 7
        %v1491 = vsub.s32 0, %v1490
        %v1492 = vrot.slane %v1455, %v1491
        %v1493 = vlaneseq
        %v1494 = vshrl.u32 %v1493, 7
        %v1495 = vsub.s32 1, %v1494
        %v1496 = vrot.slane %v1455, %v1495
        %v1499 = vpack.c.bf16 %v1492, %v1492
        %v1500 = vpack.c.bf16 %v1496, %v1496
        %v1501 = vld [vmem:[#allocation13] sm:$0x3]
        %v1534 = vunpack.c.l.b16 %v1456
        %v1535 = vunpack.c.h.b16 %v1456
        %v1536 = vunpack.c.l.b16 %v1457
        %v1537 = vunpack.c.h.b16 %v1457
        %v1538 = vunpack.c.l.b16 %v1458
        %v1539 = vunpack.c.h.b16 %v1458
        %v1540 = vunpack.c.l.b16 %v1459
        %v1541 = vunpack.c.h.b16 %v1459
        %v1542 = vunpack.c.l.b16 %v1460
        %v1543 = vunpack.c.h.b16 %v1460
        %v1544 = vunpack.c.l.b16 %v1461
        %v1545 = vunpack.c.h.b16 %v1461
        %v1546 = vunpack.c.l.b16 %v1462
        %v1547 = vunpack.c.h.b16 %v1462
        %v1548 = vunpack.c.l.b16 %v1463
        %v1549 = vunpack.c.h.b16 %v1463
        %v1550 = vunpack.c.l.b16 %v1464
        %v1551 = vunpack.c.h.b16 %v1464
        %v1552 = vunpack.c.l.b16 %v1465
        %v1553 = vunpack.c.h.b16 %v1465
        %v1554 = vunpack.c.l.b16 %v1466
        %v1555 = vunpack.c.h.b16 %v1466
        %v1556 = vunpack.c.l.b16 %v1467
        %v1557 = vunpack.c.h.b16 %v1467
        %v1558 = vunpack.c.l.b16 %v1468
        %v1559 = vunpack.c.h.b16 %v1468
        %v1560 = vunpack.c.l.b16 %v1469
        %v1561 = vunpack.c.h.b16 %v1469
        %v1562 = vunpack.c.l.b16 %v1470
        %v1563 = vunpack.c.h.b16 %v1470
        %v1564 = vunpack.c.l.b16 %v1471
        %v1565 = vunpack.c.h.b16 %v1471
        %v1566 = vunpack.c.l.b16 %v1472
        %v1567 = vunpack.c.h.b16 %v1472
        %v1568 = vunpack.c.l.b16 %v1473
        %v1569 = vunpack.c.h.b16 %v1473
        %v1570 = vunpack.c.l.b16 %v1474
        %v1571 = vunpack.c.h.b16 %v1474
        %v1572 = vunpack.c.l.b16 %v1475
        %v1573 = vunpack.c.h.b16 %v1475
        %v1574 = vunpack.c.l.b16 %v1476
        %v1575 = vunpack.c.h.b16 %v1476
        %v1576 = vunpack.c.l.b16 %v1477
        %v1577 = vunpack.c.h.b16 %v1477
        %v1578 = vunpack.c.l.b16 %v1478
        %v1579 = vunpack.c.h.b16 %v1478
        %v1580 = vunpack.c.l.b16 %v1479
        %v1581 = vunpack.c.h.b16 %v1479
        %v1582 = vunpack.c.l.b16 %v1480
        %v1583 = vunpack.c.h.b16 %v1480
        %v1584 = vunpack.c.l.b16 %v1481
        %v1585 = vunpack.c.h.b16 %v1481
        %v1586 = vunpack.c.l.b16 %v1482
        %v1587 = vunpack.c.h.b16 %v1482
        %v1588 = vunpack.c.l.b16 %v1483
        %v1589 = vunpack.c.h.b16 %v1483
        %v1590 = vunpack.c.l.b16 %v1484
        %v1591 = vunpack.c.h.b16 %v1484
        %v1592 = vunpack.c.l.b16 %v1485
        %v1593 = vunpack.c.h.b16 %v1485
        %v1594 = vunpack.c.l.b16 %v1486
        %v1595 = vunpack.c.h.b16 %v1486
        %v1596 = vunpack.c.l.b16 %v1487
        %v1597 = vunpack.c.h.b16 %v1487
        %v1598 = vpack.c.b16 %v1536, %v1534
        %v1599 = vpack.c.b16 %v1537, %v1535
        %v1600 = vpack.c.b16 %v1540, %v1538
        %v1601 = vpack.c.b16 %v1541, %v1539
        %v1602 = vpack.c.b16 %v1544, %v1542
        %v1603 = vpack.c.b16 %v1545, %v1543
        %v1604 = vpack.c.b16 %v1548, %v1546
        %v1605 = vpack.c.b16 %v1549, %v1547
        %v1606 = vpack.c.b16 %v1552, %v1550
        %v1607 = vpack.c.b16 %v1553, %v1551
        %v1608 = vpack.c.b16 %v1556, %v1554
        %v1609 = vpack.c.b16 %v1557, %v1555
        %v1610 = vpack.c.b16 %v1560, %v1558
        %v1611 = vpack.c.b16 %v1561, %v1559
        %v1612 = vpack.c.b16 %v1564, %v1562
        %v1613 = vpack.c.b16 %v1565, %v1563
        %v1614 = vpack.c.b16 %v1568, %v1566
        %v1615 = vpack.c.b16 %v1569, %v1567
        %v1616 = vpack.c.b16 %v1572, %v1570
        %v1617 = vpack.c.b16 %v1573, %v1571
        %v1618 = vpack.c.b16 %v1576, %v1574
        %v1619 = vpack.c.b16 %v1577, %v1575
        %v1620 = vpack.c.b16 %v1580, %v1578
        %v1621 = vpack.c.b16 %v1581, %v1579
        %v1622 = vpack.c.b16 %v1584, %v1582
        %v1623 = vpack.c.b16 %v1585, %v1583
        %v1624 = vpack.c.b16 %v1588, %v1586
        %v1625 = vpack.c.b16 %v1589, %v1587
        %v1626 = vpack.c.b16 %v1592, %v1590
        %v1627 = vpack.c.b16 %v1593, %v1591
        %v1628 = vpack.c.b16 %v1596, %v1594
        %v1629 = vpack.c.b16 %v1597, %v1595
        %v1663 = vlaneseq
        %v1664 = vshrl.u32 %v1663, 7
        %v1665 = vsub.s32 0, %v1664
        %v1666 = vrot.slane %v1501, %v1665
        %v1667 = vlaneseq
        %v1668 = vshrl.u32 %v1667, 7
        %v1669 = vsub.s32 1, %v1668
        %v1670 = vrot.slane %v1501, %v1669
        %1673 = vmatprep.subr.bf16.mxu0 %v1613
        %1674 = vmatpush1.bf16.msra.mxu0 %v1612
        %1675 = vmatprep.subr.bf16.mxu0 %v1611
        %1676 = vmatpush1.bf16.msra.mxu0 %v1610
        %1677 = vmatprep.subr.bf16.mxu0 %v1609
        %1678 = vmatpush1.bf16.msra.mxu0 %v1608
        %1679 = vmatprep.subr.bf16.mxu0 %v1607
        %1680 = vmatpush1.bf16.msra.mxu0 %v1606
        %1681 = vmatprep.subr.bf16.mxu0 %v1605
        %1682 = vmatpush1.bf16.msra.mxu0 %v1604
        %1683 = vmatprep.subr.bf16.mxu0 %v1603
        %1684 = vmatpush1.bf16.msra.mxu0 %v1602
        %1685 = vmatprep.subr.bf16.mxu0 %v1601
        %1686 = vmatpush1.bf16.msra.mxu0 %v1600
        %1687 = vmatprep.subr.bf16.mxu0 %v1599
        %1688 = vmatpush1.bf16.msra.mxu0 %v1598
        %1689 = vmatprep.subr.bf16.mxu0 %v1629
        %1690 = vmatpush2.bf16.msra.mxu0 %v1628
        %1691 = vmatprep.subr.bf16.mxu0 %v1627
        %1692 = vmatpush2.bf16.msra.mxu0 %v1626
        %1693 = vmatprep.subr.bf16.mxu0 %v1625
        %1694 = vmatpush2.bf16.msra.mxu0 %v1624
        %1695 = vmatprep.subr.bf16.mxu0 %v1623
        %1696 = vmatpush2.bf16.msra.mxu0 %v1622
        %1697 = vmatprep.subr.bf16.mxu0 %v1621
        %1698 = vmatpush2.bf16.msra.mxu0 %v1620
        %1699 = vmatprep.subr.bf16.mxu0 %v1619
        %1700 = vmatpush2.bf16.msra.mxu0 %v1618
        %1701 = vmatprep.subr.bf16.mxu0 %v1617
        %1702 = vmatpush2.bf16.msra.mxu0 %v1616
        %1703 = vmatprep.subr.bf16.mxu0 %v1615
        %1704 = vmatpush2.bf16.msra.mxu0 %v1614
        %1705 = vmatprep.mubr.bf16.mxu0 %v1500
        %1706 = vmatmul.mubr.bf16.gmra.mxu0 %v1499
        %v1707 = vpop.f32.mrf.mxu0
        %v1708 = vadd.f32 %v1666, %v1707
        %v1709 = vpop.f32.mrf.mxu0
        %v1710 = vadd.f32 %v1670, %v1709
        %v1711 = vpop.f32.mrf.mxu0
        %v1712 = vpop.f32.mrf.mxu0
        %1713 = vdwg.mxu0
        %v1714 = vlaneseq
        %v1715 = vshrl.u32 %v1714, 7
        %v1716 = vsub.s32 0, %v1715
        %v1717 = vrot.slane %v1708, %v1716
        %v1718 = vlaneseq
        %v1719 = vshrl.u32 %v1718, 7
        %v1720 = vsub.s32 0, %v1719
        %v1721 = vrot.slane %v1710, %v1720
        %v1722 = vadd.f32 %v1451, %v1717
        %v1723 = vadd.f32 %v1452, %v1721
        %v1724 = vadd.f32 %v1453, %v1717
        %v1725 = vadd.f32 %v1454, %v1721
        %v1726 = vld [vmem:[%s1016] sm:$0x3]
        %v1727 = vld [vmem:[#allocation18] sm:$0xff]
        %v1728 = vld [vmem:[#allocation18 + $0x8] sm:$0xff]
        %v1729 = vld [vmem:[#allocation18 + $0x10] sm:$0xff]
        %v1730 = vld [vmem:[#allocation18 + $0x18] sm:$0xff]
        %v1731 = vld [vmem:[#allocation18 + $0x20] sm:$0xff]
        %v1732 = vld [vmem:[#allocation18 + $0x28] sm:$0xff]
        %v1733 = vld [vmem:[#allocation18 + $0x30] sm:$0xff]
        %v1734 = vld [vmem:[#allocation18 + $0x38] sm:$0xff]
        %v1735 = vld [vmem:[#allocation18 + $0x40] sm:$0xff]
        %v1736 = vld [vmem:[#allocation18 + $0x48] sm:$0xff]
        %v1737 = vld [vmem:[#allocation18 + $0x50] sm:$0xff]
        %v1738 = vld [vmem:[#allocation18 + $0x58] sm:$0xff]
        %v1739 = vld [vmem:[#allocation18 + $0x60] sm:$0xff]
        %v1740 = vld [vmem:[#allocation18 + $0x68] sm:$0xff]
        %v1741 = vld [vmem:[#allocation18 + $0x70] sm:$0xff]
        %v1742 = vld [vmem:[#allocation18 + $0x78] sm:$0xff]
        %v1743 = vld [vmem:[#allocation18 + $0x80] sm:$0xff]
        %v1744 = vld [vmem:[#allocation18 + $0x88] sm:$0xff]
        %v1745 = vld [vmem:[#allocation18 + $0x90] sm:$0xff]
        %v1746 = vld [vmem:[#allocation18 + $0x98] sm:$0xff]
        %v1747 = vld [vmem:[#allocation18 + $0xa0] sm:$0xff]
        %v1748 = vld [vmem:[#allocation18 + $0xa8] sm:$0xff]
        %v1749 = vld [vmem:[#allocation18 + $0xb0] sm:$0xff]
        %v1750 = vld [vmem:[#allocation18 + $0xb8] sm:$0xff]
        %v1751 = vld [vmem:[#allocation18 + $0xc0] sm:$0xff]
        %v1752 = vld [vmem:[#allocation18 + $0xc8] sm:$0xff]
        %v1753 = vld [vmem:[#allocation18 + $0xd0] sm:$0xff]
        %v1754 = vld [vmem:[#allocation18 + $0xd8] sm:$0xff]
        %v1755 = vld [vmem:[#allocation18 + $0xe0] sm:$0xff]
        %v1756 = vld [vmem:[#allocation18 + $0xe8] sm:$0xff]
        %v1757 = vld [vmem:[#allocation18 + $0xf0] sm:$0xff]
        %v1758 = vld [vmem:[#allocation18 + $0xf8] sm:$0xff]
        %v1760 = vlaneseq
        %v1761 = vshrl.u32 %v1760, 7
        %v1762 = vsub.s32 0, %v1761
        %v1763 = vrot.slane %v1726, %v1762
        %v1764 = vlaneseq
        %v1765 = vshrl.u32 %v1764, 7
        %v1766 = vsub.s32 1, %v1765
        %v1767 = vrot.slane %v1726, %v1766
        %v1770 = vpack.c.bf16 %v1763, %v1763
        %v1771 = vpack.c.bf16 %v1767, %v1767
        %v1772 = vld [vmem:[#allocation19] sm:$0x3]
        %v1805 = vunpack.c.l.b16 %v1727
        %v1806 = vunpack.c.h.b16 %v1727
        %v1807 = vunpack.c.l.b16 %v1728
        %v1808 = vunpack.c.h.b16 %v1728
        %v1809 = vunpack.c.l.b16 %v1729
        %v1810 = vunpack.c.h.b16 %v1729
        %v1811 = vunpack.c.l.b16 %v1730
        %v1812 = vunpack.c.h.b16 %v1730
        %v1813 = vunpack.c.l.b16 %v1731
        %v1814 = vunpack.c.h.b16 %v1731
        %v1815 = vunpack.c.l.b16 %v1732
        %v1816 = vunpack.c.h.b16 %v1732
        %v1817 = vunpack.c.l.b16 %v1733
        %v1818 = vunpack.c.h.b16 %v1733
        %v1819 = vunpack.c.l.b16 %v1734
        %v1820 = vunpack.c.h.b16 %v1734
        %v1821 = vunpack.c.l.b16 %v1735
        %v1822 = vunpack.c.h.b16 %v1735
        %v1823 = vunpack.c.l.b16 %v1736
        %v1824 = vunpack.c.h.b16 %v1736
        %v1825 = vunpack.c.l.b16 %v1737
        %v1826 = vunpack.c.h.b16 %v1737
        %v1827 = vunpack.c.l.b16 %v1738
        %v1828 = vunpack.c.h.b16 %v1738
        %v1829 = vunpack.c.l.b16 %v1739
        %v1830 = vunpack.c.h.b16 %v1739
        %v1831 = vunpack.c.l.b16 %v1740
        %v1832 = vunpack.c.h.b16 %v1740
        %v1833 = vunpack.c.l.b16 %v1741
        %v1834 = vunpack.c.h.b16 %v1741
        %v1835 = vunpack.c.l.b16 %v1742
        %v1836 = vunpack.c.h.b16 %v1742
        %v1837 = vunpack.c.l.b16 %v1743
        %v1838 = vunpack.c.h.b16 %v1743
        %v1839 = vunpack.c.l.b16 %v1744
        %v1840 = vunpack.c.h.b16 %v1744
        %v1841 = vunpack.c.l.b16 %v1745
        %v1842 = vunpack.c.h.b16 %v1745
        %v1843 = vunpack.c.l.b16 %v1746
        %v1844 = vunpack.c.h.b16 %v1746
        %v1845 = vunpack.c.l.b16 %v1747
        %v1846 = vunpack.c.h.b16 %v1747
        %v1847 = vunpack.c.l.b16 %v1748
        %v1848 = vunpack.c.h.b16 %v1748
        %v1849 = vunpack.c.l.b16 %v1749
        %v1850 = vunpack.c.h.b16 %v1749
        %v1851 = vunpack.c.l.b16 %v1750
        %v1852 = vunpack.c.h.b16 %v1750
        %v1853 = vunpack.c.l.b16 %v1751
        %v1854 = vunpack.c.h.b16 %v1751
        %v1855 = vunpack.c.l.b16 %v1752
        %v1856 = vunpack.c.h.b16 %v1752
        %v1857 = vunpack.c.l.b16 %v1753
        %v1858 = vunpack.c.h.b16 %v1753
        %v1859 = vunpack.c.l.b16 %v1754
        %v1860 = vunpack.c.h.b16 %v1754
        %v1861 = vunpack.c.l.b16 %v1755
        %v1862 = vunpack.c.h.b16 %v1755
        %v1863 = vunpack.c.l.b16 %v1756
        %v1864 = vunpack.c.h.b16 %v1756
        %v1865 = vunpack.c.l.b16 %v1757
        %v1866 = vunpack.c.h.b16 %v1757
        %v1867 = vunpack.c.l.b16 %v1758
        %v1868 = vunpack.c.h.b16 %v1758
        %v1869 = vpack.c.b16 %v1807, %v1805
        %v1870 = vpack.c.b16 %v1808, %v1806
        %v1871 = vpack.c.b16 %v1811, %v1809
        %v1872 = vpack.c.b16 %v1812, %v1810
        %v1873 = vpack.c.b16 %v1815, %v1813
        %v1874 = vpack.c.b16 %v1816, %v1814
        %v1875 = vpack.c.b16 %v1819, %v1817
        %v1876 = vpack.c.b16 %v1820, %v1818
        %v1877 = vpack.c.b16 %v1823, %v1821
        %v1878 = vpack.c.b16 %v1824, %v1822
        %v1879 = vpack.c.b16 %v1827, %v1825
        %v1880 = vpack.c.b16 %v1828, %v1826
        %v1881 = vpack.c.b16 %v1831, %v1829
        %v1882 = vpack.c.b16 %v1832, %v1830
        %v1883 = vpack.c.b16 %v1835, %v1833
        %v1884 = vpack.c.b16 %v1836, %v1834
        %v1885 = vpack.c.b16 %v1839, %v1837
        %v1886 = vpack.c.b16 %v1840, %v1838
        %v1887 = vpack.c.b16 %v1843, %v1841
        %v1888 = vpack.c.b16 %v1844, %v1842
        %v1889 = vpack.c.b16 %v1847, %v1845
        %v1890 = vpack.c.b16 %v1848, %v1846
        %v1891 = vpack.c.b16 %v1851, %v1849
        %v1892 = vpack.c.b16 %v1852, %v1850
        %v1893 = vpack.c.b16 %v1855, %v1853
        %v1894 = vpack.c.b16 %v1856, %v1854
        %v1895 = vpack.c.b16 %v1859, %v1857
        %v1896 = vpack.c.b16 %v1860, %v1858
        %v1897 = vpack.c.b16 %v1863, %v1861
        %v1898 = vpack.c.b16 %v1864, %v1862
        %v1899 = vpack.c.b16 %v1867, %v1865
        %v1900 = vpack.c.b16 %v1868, %v1866
        %v1934 = vlaneseq
        %v1935 = vshrl.u32 %v1934, 7
        %v1936 = vsub.s32 0, %v1935
        %v1937 = vrot.slane %v1772, %v1936
        %v1938 = vlaneseq
        %v1939 = vshrl.u32 %v1938, 7
        %v1940 = vsub.s32 1, %v1939
        %v1941 = vrot.slane %v1772, %v1940
        %1944 = vmatprep.subr.bf16.mxu0 %v1884
        %1945 = vmatpush1.bf16.msra.mxu0 %v1883
        %1946 = vmatprep.subr.bf16.mxu0 %v1882
        %1947 = vmatpush1.bf16.msra.mxu0 %v1881
        %1948 = vmatprep.subr.bf16.mxu0 %v1880
        %1949 = vmatpush1.bf16.msra.mxu0 %v1879
        %1950 = vmatprep.subr.bf16.mxu0 %v1878
        %1951 = vmatpush1.bf16.msra.mxu0 %v1877
        %1952 = vmatprep.subr.bf16.mxu0 %v1876
        %1953 = vmatpush1.bf16.msra.mxu0 %v1875
        %1954 = vmatprep.subr.bf16.mxu0 %v1874
        %1955 = vmatpush1.bf16.msra.mxu0 %v1873
        %1956 = vmatprep.subr.bf16.mxu0 %v1872
        %1957 = vmatpush1.bf16.msra.mxu0 %v1871
        %1958 = vmatprep.subr.bf16.mxu0 %v1870
        %1959 = vmatpush1.bf16.msra.mxu0 %v1869
        %1960 = vmatprep.subr.bf16.mxu0 %v1900
        %1961 = vmatpush2.bf16.msra.mxu0 %v1899
        %1962 = vmatprep.subr.bf16.mxu0 %v1898
        %1963 = vmatpush2.bf16.msra.mxu0 %v1897
        %1964 = vmatprep.subr.bf16.mxu0 %v1896
        %1965 = vmatpush2.bf16.msra.mxu0 %v1895
        %1966 = vmatprep.subr.bf16.mxu0 %v1894
        %1967 = vmatpush2.bf16.msra.mxu0 %v1893
        %1968 = vmatprep.subr.bf16.mxu0 %v1892
        %1969 = vmatpush2.bf16.msra.mxu0 %v1891
        %1970 = vmatprep.subr.bf16.mxu0 %v1890
        %1971 = vmatpush2.bf16.msra.mxu0 %v1889
        %1972 = vmatprep.subr.bf16.mxu0 %v1888
        %1973 = vmatpush2.bf16.msra.mxu0 %v1887
        %1974 = vmatprep.subr.bf16.mxu0 %v1886
        %1975 = vmatpush2.bf16.msra.mxu0 %v1885
        %1976 = vmatprep.mubr.bf16.mxu0 %v1771
        %1977 = vmatmul.mubr.bf16.gmra.mxu0 %v1770
        %v1978 = vpop.f32.mrf.mxu0
        %v1979 = vadd.f32 %v1937, %v1978
        %v1980 = vpop.f32.mrf.mxu0
        %v1981 = vadd.f32 %v1941, %v1980
        %v1982 = vpop.f32.mrf.mxu0
        %v1983 = vpop.f32.mrf.mxu0
        %1984 = vdwg.mxu0
        %v1985 = vxor.u32 %v1979, 2147483648
        %v1986 = vxor.u32 %v1981, 2147483648
        %v1987 = vmul.f32 %v1985, 1.442695
        %v1988 = vpow.pop %v1987
        %v1989 = vmul.f32 %v1986, 1.442695
        %v1990 = vpow.pop %v1989
        %v1991 = vadd.f32 %v1988, 1.0
        %v1992 = vadd.f32 %v1990, 1.0
        %v1993 = vrcp.pop %v1991
        %v1994 = vmul.f32 1.0, %v1993
        %v1995 = vrcp.pop %v1992
        %v1996 = vmul.f32 1.0, %v1995
        %v1997 = vmul.f32 %v1979, %v1994
        %v1998 = vmul.f32 %v1981, %v1996
        %v1999 = vld [vmem:[#allocation21] sm:$0xff]
        %v2000 = vld [vmem:[#allocation21 + $0x8] sm:$0xff]
        %v2001 = vld [vmem:[#allocation21 + $0x10] sm:$0xff]
        %v2002 = vld [vmem:[#allocation21 + $0x18] sm:$0xff]
        %v2003 = vld [vmem:[#allocation21 + $0x20] sm:$0xff]
        %v2004 = vld [vmem:[#allocation21 + $0x28] sm:$0xff]
        %v2005 = vld [vmem:[#allocation21 + $0x30] sm:$0xff]
        %v2006 = vld [vmem:[#allocation21 + $0x38] sm:$0xff]
        %v2007 = vld [vmem:[#allocation21 + $0x40] sm:$0xff]
        %v2008 = vld [vmem:[#allocation21 + $0x48] sm:$0xff]
        %v2009 = vld [vmem:[#allocation21 + $0x50] sm:$0xff]
        %v2010 = vld [vmem:[#allocation21 + $0x58] sm:$0xff]
        %v2011 = vld [vmem:[#allocation21 + $0x60] sm:$0xff]
        %v2012 = vld [vmem:[#allocation21 + $0x68] sm:$0xff]
        %v2013 = vld [vmem:[#allocation21 + $0x70] sm:$0xff]
        %v2014 = vld [vmem:[#allocation21 + $0x78] sm:$0xff]
        %v2015 = vld [vmem:[#allocation21 + $0x80] sm:$0xff]
        %v2016 = vld [vmem:[#allocation21 + $0x88] sm:$0xff]
        %v2017 = vld [vmem:[#allocation21 + $0x90] sm:$0xff]
        %v2018 = vld [vmem:[#allocation21 + $0x98] sm:$0xff]
        %v2019 = vld [vmem:[#allocation21 + $0xa0] sm:$0xff]
        %v2020 = vld [vmem:[#allocation21 + $0xa8] sm:$0xff]
        %v2021 = vld [vmem:[#allocation21 + $0xb0] sm:$0xff]
        %v2022 = vld [vmem:[#allocation21 + $0xb8] sm:$0xff]
        %v2023 = vld [vmem:[#allocation21 + $0xc0] sm:$0xff]
        %v2024 = vld [vmem:[#allocation21 + $0xc8] sm:$0xff]
        %v2025 = vld [vmem:[#allocation21 + $0xd0] sm:$0xff]
        %v2026 = vld [vmem:[#allocation21 + $0xd8] sm:$0xff]
        %v2027 = vld [vmem:[#allocation21 + $0xe0] sm:$0xff]
        %v2028 = vld [vmem:[#allocation21 + $0xe8] sm:$0xff]
        %v2029 = vld [vmem:[#allocation21 + $0xf0] sm:$0xff]
        %v2030 = vld [vmem:[#allocation21 + $0xf8] sm:$0xff]
        %v2031 = vpack.c.bf16 %v1997, %v1997
        %v2032 = vpack.c.bf16 %v1998, %v1998
        %v2033 = vld [vmem:[#allocation22] sm:$0x3]
        %v2066 = vunpack.c.l.b16 %v1999
        %v2067 = vunpack.c.h.b16 %v1999
        %v2068 = vunpack.c.l.b16 %v2000
        %v2069 = vunpack.c.h.b16 %v2000
        %v2070 = vunpack.c.l.b16 %v2001
        %v2071 = vunpack.c.h.b16 %v2001
        %v2072 = vunpack.c.l.b16 %v2002
        %v2073 = vunpack.c.h.b16 %v2002
        %v2074 = vunpack.c.l.b16 %v2003
        %v2075 = vunpack.c.h.b16 %v2003
        %v2076 = vunpack.c.l.b16 %v2004
        %v2077 = vunpack.c.h.b16 %v2004
        %v2078 = vunpack.c.l.b16 %v2005
        %v2079 = vunpack.c.h.b16 %v2005
        %v2080 = vunpack.c.l.b16 %v2006
        %v2081 = vunpack.c.h.b16 %v2006
        %v2082 = vunpack.c.l.b16 %v2007
        %v2083 = vunpack.c.h.b16 %v2007
        %v2084 = vunpack.c.l.b16 %v2008
        %v2085 = vunpack.c.h.b16 %v2008
        %v2086 = vunpack.c.l.b16 %v2009
        %v2087 = vunpack.c.h.b16 %v2009
        %v2088 = vunpack.c.l.b16 %v2010
        %v2089 = vunpack.c.h.b16 %v2010
        %v2090 = vunpack.c.l.b16 %v2011
        %v2091 = vunpack.c.h.b16 %v2011
        %v2092 = vunpack.c.l.b16 %v2012
        %v2093 = vunpack.c.h.b16 %v2012
        %v2094 = vunpack.c.l.b16 %v2013
        %v2095 = vunpack.c.h.b16 %v2013
        %v2096 = vunpack.c.l.b16 %v2014
        %v2097 = vunpack.c.h.b16 %v2014
        %v2098 = vunpack.c.l.b16 %v2015
        %v2099 = vunpack.c.h.b16 %v2015
        %v2100 = vunpack.c.l.b16 %v2016
        %v2101 = vunpack.c.h.b16 %v2016
        %v2102 = vunpack.c.l.b16 %v2017
        %v2103 = vunpack.c.h.b16 %v2017
        %v2104 = vunpack.c.l.b16 %v2018
        %v2105 = vunpack.c.h.b16 %v2018
        %v2106 = vunpack.c.l.b16 %v2019
        %v2107 = vunpack.c.h.b16 %v2019
        %v2108 = vunpack.c.l.b16 %v2020
        %v2109 = vunpack.c.h.b16 %v2020
        %v2110 = vunpack.c.l.b16 %v2021
        %v2111 = vunpack.c.h.b16 %v2021
        %v2112 = vunpack.c.l.b16 %v2022
        %v2113 = vunpack.c.h.b16 %v2022
        %v2114 = vunpack.c.l.b16 %v2023
        %v2115 = vunpack.c.h.b16 %v2023
        %v2116 = vunpack.c.l.b16 %v2024
        %v2117 = vunpack.c.h.b16 %v2024
        %v2118 = vunpack.c.l.b16 %v2025
        %v2119 = vunpack.c.h.b16 %v2025
        %v2120 = vunpack.c.l.b16 %v2026
        %v2121 = vunpack.c.h.b16 %v2026
        %v2122 = vunpack.c.l.b16 %v2027
        %v2123 = vunpack.c.h.b16 %v2027
        %v2124 = vunpack.c.l.b16 %v2028
        %v2125 = vunpack.c.h.b16 %v2028
        %v2126 = vunpack.c.l.b16 %v2029
        %v2127 = vunpack.c.h.b16 %v2029
        %v2128 = vunpack.c.l.b16 %v2030
        %v2129 = vunpack.c.h.b16 %v2030
        %v2130 = vpack.c.b16 %v2068, %v2066
        %v2131 = vpack.c.b16 %v2069, %v2067
        %v2132 = vpack.c.b16 %v2072, %v2070
        %v2133 = vpack.c.b16 %v2073, %v2071
        %v2134 = vpack.c.b16 %v2076, %v2074
        %v2135 = vpack.c.b16 %v2077, %v2075
        %v2136 = vpack.c.b16 %v2080, %v2078
        %v2137 = vpack.c.b16 %v2081, %v2079
        %v2138 = vpack.c.b16 %v2084, %v2082
        %v2139 = vpack.c.b16 %v2085, %v2083
        %v2140 = vpack.c.b16 %v2088, %v2086
        %v2141 = vpack.c.b16 %v2089, %v2087
        %v2142 = vpack.c.b16 %v2092, %v2090
        %v2143 = vpack.c.b16 %v2093, %v2091
        %v2144 = vpack.c.b16 %v2096, %v2094
        %v2145 = vpack.c.b16 %v2097, %v2095
        %v2146 = vpack.c.b16 %v2100, %v2098
        %v2147 = vpack.c.b16 %v2101, %v2099
        %v2148 = vpack.c.b16 %v2104, %v2102
        %v2149 = vpack.c.b16 %v2105, %v2103
        %v2150 = vpack.c.b16 %v2108, %v2106
        %v2151 = vpack.c.b16 %v2109, %v2107
        %v2152 = vpack.c.b16 %v2112, %v2110
        %v2153 = vpack.c.b16 %v2113, %v2111
        %v2154 = vpack.c.b16 %v2116, %v2114
        %v2155 = vpack.c.b16 %v2117, %v2115
        %v2156 = vpack.c.b16 %v2120, %v2118
        %v2157 = vpack.c.b16 %v2121, %v2119
        %v2158 = vpack.c.b16 %v2124, %v2122
        %v2159 = vpack.c.b16 %v2125, %v2123
        %v2160 = vpack.c.b16 %v2128, %v2126
        %v2161 = vpack.c.b16 %v2129, %v2127
        %v2195 = vlaneseq
        %v2196 = vshrl.u32 %v2195, 7
        %v2197 = vsub.s32 0, %v2196
        %v2198 = vrot.slane %v2033, %v2197
        %v2199 = vlaneseq
        %v2200 = vshrl.u32 %v2199, 7
        %v2201 = vsub.s32 1, %v2200
        %v2202 = vrot.slane %v2033, %v2201
        %2205 = vmatprep.subr.bf16.mxu0 %v2145
        %2206 = vmatpush1.bf16.msra.mxu0 %v2144
        %2207 = vmatprep.subr.bf16.mxu0 %v2143
        %2208 = vmatpush1.bf16.msra.mxu0 %v2142
        %2209 = vmatprep.subr.bf16.mxu0 %v2141
        %2210 = vmatpush1.bf16.msra.mxu0 %v2140
        %2211 = vmatprep.subr.bf16.mxu0 %v2139
        %2212 = vmatpush1.bf16.msra.mxu0 %v2138
        %2213 = vmatprep.subr.bf16.mxu0 %v2137
        %2214 = vmatpush1.bf16.msra.mxu0 %v2136
        %2215 = vmatprep.subr.bf16.mxu0 %v2135
        %2216 = vmatpush1.bf16.msra.mxu0 %v2134
        %2217 = vmatprep.subr.bf16.mxu0 %v2133
        %2218 = vmatpush1.bf16.msra.mxu0 %v2132
        %2219 = vmatprep.subr.bf16.mxu0 %v2131
        %2220 = vmatpush1.bf16.msra.mxu0 %v2130
        %2221 = vmatprep.subr.bf16.mxu0 %v2161
        %2222 = vmatpush2.bf16.msra.mxu0 %v2160
        %2223 = vmatprep.subr.bf16.mxu0 %v2159
        %2224 = vmatpush2.bf16.msra.mxu0 %v2158
        %2225 = vmatprep.subr.bf16.mxu0 %v2157
        %2226 = vmatpush2.bf16.msra.mxu0 %v2156
        %2227 = vmatprep.subr.bf16.mxu0 %v2155
        %2228 = vmatpush2.bf16.msra.mxu0 %v2154
        %2229 = vmatprep.subr.bf16.mxu0 %v2153
        %2230 = vmatpush2.bf16.msra.mxu0 %v2152
        %2231 = vmatprep.subr.bf16.mxu0 %v2151
        %2232 = vmatpush2.bf16.msra.mxu0 %v2150
        %2233 = vmatprep.subr.bf16.mxu0 %v2149
        %2234 = vmatpush2.bf16.msra.mxu0 %v2148
        %2235 = vmatprep.subr.bf16.mxu0 %v2147
        %2236 = vmatpush2.bf16.msra.mxu0 %v2146
        %2237 = vmatprep.mubr.bf16.mxu0 %v2032
        %2238 = vmatmul.mubr.bf16.gmra.mxu0 %v2031
        %v2239 = vpop.f32.mrf.mxu0
        %v2240 = vadd.f32 %v2198, %v2239
        %v2241 = vpop.f32.mrf.mxu0
        %v2242 = vadd.f32 %v2202, %v2241
        %v2243 = vpop.f32.mrf.mxu0
        %v2244 = vpop.f32.mrf.mxu0
        %2245 = vdwg.mxu0
        %v2246 = vlaneseq
        %v2247 = vshrl.u32 %v2246, 7
        %v2248 = vsub.s32 0, %v2247
        %v2249 = vrot.slane %v2240, %v2248
        %v2250 = vlaneseq
        %v2251 = vshrl.u32 %v2250, 7
        %v2252 = vsub.s32 0, %v2251
        %v2253 = vrot.slane %v2242, %v2252
        %v2254 = vadd.f32 %v1722, %v2249
        %v2255 = vadd.f32 %v1723, %v2253
        %v2256 = vadd.f32 %v1724, %v2249
        %v2257 = vadd.f32 %v1725, %v2253
        %v2258 = vxor.u32 %v2254, 2147483648
        %v2259 = vxor.u32 %v2255, 2147483648
        %v2260 = vxor.u32 %v2256, 2147483648
        %v2261 = vxor.u32 %v2257, 2147483648
        %v2262 = vmul.f32 %v2258, 1.442695
        %v2263 = vpow.pop %v2262
        %v2264 = vmul.f32 %v2259, 1.442695
        %v2265 = vpow.pop %v2264
        %v2266 = vmul.f32 %v2260, 1.442695
        %v2267 = vpow.pop %v2266
        %v2268 = vmul.f32 %v2261, 1.442695
        %v2269 = vpow.pop %v2268
        %v2270 = vadd.f32 %v2263, 1.0
        %v2271 = vadd.f32 %v2265, 1.0
        %v2272 = vadd.f32 %v2267, 1.0
        %v2273 = vadd.f32 %v2269, 1.0
        %v2274 = vrcp.pop %v2270
        %v2275 = vmul.f32 1.0, %v2274
        %v2276 = vrcp.pop %v2271
        %v2277 = vmul.f32 1.0, %v2276
        %v2278 = vrcp.pop %v2272
        %v2279 = vmul.f32 1.0, %v2278
        %v2280 = vrcp.pop %v2273
        %v2281 = vmul.f32 1.0, %v2280
        %v2282 = vmul.f32 %v2254, %v2275
        %v2283 = vmul.f32 %v2255, %v2277
        %v2284 = vmul.f32 %v2256, %v2279
        %v2285 = vmul.f32 %v2257, %v2281
        %2286 = vst [vmem:[%s1031] sm:$0xff] %v2282
        %2287 = vst [vmem:[%s1031 + $0x8] sm:$0xff] %v2283
        %2288 = vst [vmem:[%s1031 + $0x10] sm:$0xff] %v2284
        %2289 = vst [vmem:[%s1031 + $0x18] sm:$0xff] %v2285
        %p2290 = scmp.lt.s32.totalorder %s46, 1
        %s2291 = scalar_select %p2290, %s46, 1
        %s2292 = smul.addr %s2291, 4
        %s2293 = smul.addr %s2292, 8
        %s2294 = scalar_lea.vmem %s20, %s2293
        %p2295 = scmp.lt.s32.totalorder %s46, 1
        %s2296 = scalar_select %p2295, %s46, 1
        %s2297 = smul.addr %s2296, 4
        %s2298 = smul.addr %s2297, 8
        %s2299 = scalar_lea.vmem %s21, %s2298
        %p2300 = scmp.lt.s32.totalorder %s46, 1
        %s2301 = scalar_select %p2300, %s46, 1
        %s2302 = smul.addr %s2301, 2
        %s2303 = smul.addr %s2302, 8
        %s2304 = scalar_lea.vmem %s22, %s2303
        // Predicated region
        $region157: #{_lambda_.3} parent=99 // pred_check
          %p2305 = pneg %p524
        $region158: #{_lambda_.3} parent=99 // pred_check_branch
          %2307 = sbr.rel (%p2305) target = $region160
        $region159: #{_lambda_.3} parent=99 // pred_region
          _
        $region160: #{_lambda_.3} parent=99 // pred_fallthru
          _
        // Predicated region
        $region161: #{_lambda_.3} parent=99 // pred_check
          %p2308 = pneg %p550
        $region162: #{_lambda_.3} parent=99 // pred_check_branch
          %2310 = sbr.rel (%p2308) target = $region164
        $region163: #{_lambda_.3} parent=99 // pred_region
          _
        $region164: #{_lambda_.3} parent=99 // pred_fallthru
          _
        // Predicated region
        $region165: #{_lambda_.3} parent=99 // pred_check
          %p2311 = pneg %p576
        $region166: #{_lambda_.3} parent=99 // pred_check_branch
          %2313 = sbr.rel (%p2311) target = $region168
        $region167: #{_lambda_.3} parent=99 // pred_region
          _
        $region168: #{_lambda_.3} parent=99 // pred_fallthru
          _
      $region100: #{_lambda_.3} parent=5 // pred_fallthru
        _
      %p2314 = scmp.le.s32.totalorder 2, %s41
      // Predicated region
      $region169: #{_lambda_.3} parent=5 // pred_check
        %p2315 = pneg %p2314
      $region170: #{_lambda_.3} parent=5 // pred_check_branch
        %2317 = sbr.rel (%p2315) target = $region172
      $region171: #{_lambda_.3} parent=5 // pred_region
        %s2318 = ssub.s32 %s41, 2
        // Predicated region
        $region173: #{_lambda_.3} parent=171 // pred_check
          %p2319 = pneg %p530
        $region174: #{_lambda_.3} parent=171 // pred_check_branch
          %2321 = sbr.rel (%p2319) target = $region176
        $region175: #{_lambda_.3} parent=171 // pred_region
          %p2322 = scmp.lt.s32.totalorder %s47, 1
          %s2323 = scalar_select %p2322, %s47, 1
          %s2324 = smul.addr %s2323, 4
          %s2325 = smul.addr %s2324, 8
          %s2326 = scalar_lea.vmem %s20, %s2325
        $region176: #{_lambda_.3} parent=171 // pred_fallthru
          _
        // Predicated region
        $region177: #{_lambda_.3} parent=171 // pred_check
          %p2327 = pneg %p556
        $region178: #{_lambda_.3} parent=171 // pred_check_branch
          %2329 = sbr.rel (%p2327) target = $region180
        $region179: #{_lambda_.3} parent=171 // pred_region
          %p2330 = scmp.lt.s32.totalorder %s47, 1
          %s2331 = scalar_select %p2330, %s47, 1
          %s2332 = smul.addr %s2331, 4
          %s2333 = smul.addr %s2332, 8
          %s2334 = scalar_lea.vmem %s21, %s2333
        $region180: #{_lambda_.3} parent=171 // pred_fallthru
          _
        // Predicated region
        $region181: #{_lambda_.3} parent=171 // pred_check
          %p2335 = pneg %p582
        $region182: #{_lambda_.3} parent=171 // pred_check_branch
          %2337 = sbr.rel (%p2335) target = $region184
        $region183: #{_lambda_.3} parent=171 // pred_region
          %p2338 = scmp.lt.s32.totalorder %s47, 1
          %s2339 = scalar_select %p2338, %s47, 1
          %s2340 = smul.addr %s2339, 2
          %s2341 = smul.addr %s2340, 8
          %s2342 = scalar_lea.vmem %s22, %s2341
        $region184: #{_lambda_.3} parent=171 // pred_fallthru
          _
      $region172: #{_lambda_.3} parent=5 // pred_fallthru
        _
    $region6: #{_lambda_.3} parent=1 // loop_footer
      %s45 = sadd.s32 1, %s41
    $region7: #{_lambda_.3} parent=1 // loop_footer_branch
      %40 = sbr.rel target = $region3
    $region8: #{_lambda_.3} parent=1 // loop_exit
      _
    %2343 = vsyncpa [#allocation3], 1
    %s2344 = scalar_lea.sflag [#allocation3], 1
    %2345 = vsyncpa %s2344, 1
    %2346 = vsyncpa [#allocation5], 1
    %s2347 = scalar_lea.sflag [#allocation5], 1
    %2348 = vsyncpa %s2347, 1
    %2349 = vsyncpa [#allocation8], 1
    %2350 = vsyncpa [#allocation11], 1
    %2351 = vsyncpa [#allocation14], 1
    %2352 = vsyncpa [#allocation17], 1
    %2353 = vsyncpa [#allocation20], 1
    %2354 = vsyncpa [#allocation23], 1

// kernel: _lambda_.4
$region0: #{_lambda_.4}
  #allocation0 [shape = 'u32[]', space=smem, size = 0x4, offset = 0x4, fixed_abs, tag = 'smem constant byte address 0x4 - core index']
  #allocation1 [shape = 'u32[144,128]{1,0:T(1,128)}', space=vmem, size = 0x12000, scoped, tag = 'internal scratch']
  %s0 = inlined_call_operand.vmem [shape: f32[2,16,256], index: 0, kind: input, shape index: {}]
  %s1 = inlined_call_operand.vmem [shape: f32[2,16,256], index: 1, kind: input, shape index: {}]
  %s2 = inlined_call_operand.vmem [shape: f32[2,1,16], index: 2, kind: input, shape index: {}]
  %s3 = inlined_call_operand.vmem [shape: f32[2,16,1], index: 3, kind: input, shape index: {}]
  %s4 = inlined_call_operand.hbm [shape: bf16[2,256,1536], index: 4, kind: input, shape index: {}]
  %s5 = inlined_call_operand.hbm [shape: f32[2,1,1536], index: 5, kind: input, shape index: {}]
  %s6 = inlined_call_operand.hbm [shape: bf16[2,256,768], index: 6, kind: input, shape index: {}]
  %s7 = inlined_call_operand.hbm [shape: f32[2,1,768], index: 7, kind: input, shape index: {}]
  %s8 = inlined_call_operand.hbm [shape: bf16[2,256,256], index: 8, kind: input, shape index: {}]
  %s9 = inlined_call_operand.hbm [shape: f32[2,1,256], index: 9, kind: input, shape index: {}]
  %s10 = inlined_call_operand.hbm [shape: bf16[2,256,1024], index: 10, kind: input, shape index: {}]
  %s11 = inlined_call_operand.hbm [shape: f32[2,1,1024], index: 11, kind: input, shape index: {}]
  %s12 = inlined_call_operand.hbm [shape: bf16[2,1024,256], index: 12, kind: input, shape index: {}]
  %s13 = inlined_call_operand.hbm [shape: f32[2,1,256], index: 13, kind: input, shape index: {}]
  %s14 = inlined_call_operand.vmem [shape: f32[2,16,256], index: 14, kind: output, shape index: {}]
  %s15 = sld [smem:[#allocation0]]
  $region133: #{_lambda_.4} parent=0
    _
  %s17 = ssub.s32 1, %s15
  %s18 = scalar_select 0, %s17, %s15
  $region1: #{_lambda_.4} parent=0
    #allocation2 [shape = 'u8[1572864]{0}', space=vmem, size = 0x180000, scoped, tag = 'input window, operand 4']
    #allocation3 [shape = 's32[2]{0}', space=sflag, size = 0x8, scoped, tag = 'scoped memory for _lambda_.4']
    #allocation4 [shape = 'u8[12288]{0}', space=vmem, size = 0x3000, scoped, tag = 'input window, operand 5']
    #allocation5 [shape = 's32[2]{0}', space=sflag, size = 0x8, scoped, tag = 'scoped memory for _lambda_.4']
    #allocation6 [shape = 'u8[786432]{0}', space=vmem, size = 0xc0000, scoped, tag = 'input window, operand 6']
    #allocation7 [shape = 'u8[6144]{0}', space=vmem, size = 0x1800, scoped, tag = 'input window, operand 7']
    #allocation8 [shape = 's32[2]{0}', space=sflag, size = 0x8, scoped, tag = 'scoped memory for _lambda_.4']
    #allocation9 [shape = 'u8[262144]{0}', space=vmem, size = 0x40000, scoped, tag = 'input window, operand 8']
    #allocation10 [shape = 'u8[2048]{0}', space=vmem, size = 0x800, scoped, tag = 'input window, operand 9']
    #allocation11 [shape = 's32[2]{0}', space=sflag, size = 0x8, scoped, tag = 'scoped memory for _lambda_.4']
    #allocation12 [shape = 'u8[1048576]{0}', space=vmem, size = 0x100000, scoped, tag = 'input window, operand 10']
    #allocation13 [shape = 'u8[8192]{0}', space=vmem, size = 0x2000, scoped, tag = 'input window, operand 11']
    #allocation14 [shape = 's32[2]{0}', space=sflag, size = 0x8, scoped, tag = 'scoped memory for _lambda_.4']
    #allocation15 [shape = 'u8[1048576]{0}', space=vmem, size = 0x100000, scoped, tag = 'input window, operand 12']
    #allocation16 [shape = 'u8[2048]{0}', space=vmem, size = 0x800, scoped, tag = 'input window, operand 13']
    #allocation17 [shape = 's32[2]{0}', space=sflag, size = 0x8, scoped, tag = 'scoped memory for _lambda_.4']
    %19 = vsyncpa [#allocation3], 0
    %s20 = scalar_lea.sflag [#allocation3], 1
    %21 = vsyncpa %s20, 0
    %22 = vsyncpa [#allocation5], 0
    %s23 = scalar_lea.sflag [#allocation5], 1
    %24 = vsyncpa %s23, 0
    %25 = vsyncpa [#allocation8], 0
    %s26 = scalar_lea.sflag [#allocation8], 1
    %27 = vsyncpa %s26, 0
    %28 = vsyncpa [#allocation11], 0
    %s29 = scalar_lea.sflag [#allocation11], 1
    %30 = vsyncpa %s29, 0
    %31 = vsyncpa [#allocation14], 0
    %s32 = scalar_lea.sflag [#allocation14], 1
    %33 = vsyncpa %s32, 0
    %34 = vsyncpa [#allocation17], 0
    %s35 = scalar_lea.sflag [#allocation17], 1
    %36 = vsyncpa %s35, 0
    loop: start=0, step=1, limit=6
    $region2: #{_lambda_.4} parent=1 // loop_pre_header
      _
    $region3: #{_lambda_.4} parent=1 // loop_header
      %s38 = sphi 0, %s42
      %p39 = scmp.ge.s32.totalorder %s38, 6
      %s45 = sphi 0, %s57
      %s46 = sphi 0, %s53
      %s47 = sphi 0, %s45
      %s48 = sphi 0, %s46
      %s49 = sphi 0, %s47
      %s50 = sphi 0, %s48
      %s60 = sphi 0, %s62
      %s63 = sphi 0, %s60
      %s64 = sphi 0, %s63
      %s80 = sphi 0, %s64
      %s86 = sphi 0, %s88
      %s89 = sphi 0, %s86
      %s90 = sphi 0, %s89
      %s106 = sphi 0, %s90
      %s112 = sphi 0, %s114
      %s115 = sphi 0, %s112
      %s116 = sphi 0, %s115
      %s132 = sphi 0, %s116
      %s138 = sphi 0, %s140
      %s141 = sphi 0, %s138
      %s142 = sphi 0, %s141
      %s158 = sphi 0, %s142
      %s164 = sphi 0, %s166
      %s167 = sphi 0, %s164
      %s168 = sphi 0, %s167
      %s184 = sphi 0, %s168
      %s190 = sphi 0, %s192
      %s193 = sphi 0, %s190
      %s194 = sphi 0, %s193
      %s210 = sphi 0, %s194
      %s216 = sphi 0, %s218
      %s219 = sphi 0, %s216
      %s220 = sphi 0, %s219
      %s236 = sphi 0, %s220
      %s242 = sphi 0, %s244
      %s245 = sphi 0, %s242
      %s246 = sphi 0, %s245
      %s262 = sphi 0, %s246
      %s268 = sphi 0, %s270
      %s271 = sphi 0, %s268
      %s272 = sphi 0, %s271
      %s288 = sphi 0, %s272
      %s294 = sphi 0, %s296
      %s297 = sphi 0, %s294
      %s298 = sphi 0, %s297
      %s314 = sphi 0, %s298
      %s320 = sphi 0, %s322
      %s323 = sphi 0, %s320
      %s324 = sphi 0, %s323
      %s340 = sphi 0, %s324
      %s346 = sphi 0, %s348
      %s349 = sphi 0, %s346
      %s350 = sphi 0, %s349
      %s366 = sphi 0, %s350
      %s372 = sphi 0, %s374
      %s375 = sphi 0, %s372
      %s376 = sphi 0, %s375
      %s392 = sphi 0, %s376
      %s398 = sphi 0, %s400
      %s401 = sphi 0, %s398
      %s402 = sphi 0, %s401
      %s418 = sphi 0, %s402
      %s424 = sphi 0, %s426
      %s427 = sphi 0, %s424
      %s428 = sphi 0, %s427
      %s444 = sphi 0, %s428
    $region4: #{_lambda_.4} parent=1 // loop_header_branch
      %41 = sbr.rel (%p39) target = $region8
    $region5: #{_lambda_.4} parent=1 // loop_body
      %s43 = ssub.s32 %s38, 1
      %s44 = ssub.s32 %s38, 2
      %s51 = sadd.s32 1, %s46
      %p52 = scmp.ge.s32.totalorder %s51, 2
      %s53 = scalar_select %p52, 0, %s51
      %s54 = sadd.s32 1, %s45
      %s55 = scalar_select %p52, %s54, %s45
      %p56 = scmp.ge.s32.totalorder %s55, 2
      %s57 = scalar_select %p56, 0, %s55
      %s58 = ssub.s32 %s45, %s57
      %p59 = scmp.eq.s32.totalorder %s58, 0
      %s61 = sadd.s32 %s60, 1
      %s62 = scalar_select %p59, %s60, %s61
      %p65 = pneg %p59
      %p66 = scmp.eq.s32.totalorder %s38, 3
      %p67 = por %p65, %p66
      %p68 = scmp.ne.s32.totalorder %s60, %s63
      %p69 = scmp.eq.s32.totalorder %s38, 0
      %p70 = por %p68, %p69
      %p71 = scmp.ne.s32.totalorder %s60, %s63
      %p72 = scmp.eq.s32.totalorder %s43, 3
      %p73 = por %p71, %p72
      %p74 = scmp.ne.s32.totalorder %s63, %s64
      %p75 = scmp.eq.s32.totalorder %s43, 0
      %p76 = por %p74, %p75
      %p77 = scmp.ne.s32.totalorder %s63, %s64
      %p78 = scmp.eq.s32.totalorder %s44, 3
      %p79 = por %p77, %p78
      %p81 = scmp.ne.s32.totalorder %s64, %s80
      %p82 = scmp.eq.s32.totalorder %s44, 0
      %p83 = por %p81, %p82
      %s84 = ssub.s32 %s45, %s57
      %p85 = scmp.eq.s32.totalorder %s84, 0
      %s87 = sadd.s32 %s86, 1
      %s88 = scalar_select %p85, %s86, %s87
      %p91 = pneg %p85
      %p92 = scmp.eq.s32.totalorder %s38, 3
      %p93 = por %p91, %p92
      %p94 = scmp.ne.s32.totalorder %s86, %s89
      %p95 = scmp.eq.s32.totalorder %s38, 0
      %p96 = por %p94, %p95
      %p97 = scmp.ne.s32.totalorder %s86, %s89
      %p98 = scmp.eq.s32.totalorder %s43, 3
      %p99 = por %p97, %p98
      %p100 = scmp.ne.s32.totalorder %s89, %s90
      %p101 = scmp.eq.s32.totalorder %s43, 0
      %p102 = por %p100, %p101
      %p103 = scmp.ne.s32.totalorder %s89, %s90
      %p104 = scmp.eq.s32.totalorder %s44, 3
      %p105 = por %p103, %p104
      %p107 = scmp.ne.s32.totalorder %s90, %s106
      %p108 = scmp.eq.s32.totalorder %s44, 0
      %p109 = por %p107, %p108
      %s110 = ssub.s32 %s45, %s57
      %p111 = scmp.eq.s32.totalorder %s110, 0
      %s113 = sadd.s32 %s112, 1
      %s114 = scalar_select %p111, %s112, %s113
      %p117 = pneg %p111
      %p118 = scmp.eq.s32.totalorder %s38, 3
      %p119 = por %p117, %p118
      %p120 = scmp.ne.s32.totalorder %s112, %s115
      %p121 = scmp.eq.s32.totalorder %s38, 0
      %p122 = por %p120, %p121
      %p123 = scmp.ne.s32.totalorder %s112, %s115
      %p124 = scmp.eq.s32.totalorder %s43, 3
      %p125 = por %p123, %p124
      %p126 = scmp.ne.s32.totalorder %s115, %s116
      %p127 = scmp.eq.s32.totalorder %s43, 0
      %p128 = por %p126, %p127
      %p129 = scmp.ne.s32.totalorder %s115, %s116
      %p130 = scmp.eq.s32.totalorder %s44, 3
      %p131 = por %p129, %p130
      %p133 = scmp.ne.s32.totalorder %s116, %s132
      %p134 = scmp.eq.s32.totalorder %s44, 0
      %p135 = por %p133, %p134
      %s136 = ssub.s32 %s45, %s57
      %p137 = scmp.eq.s32.totalorder %s136, 0
      %s139 = sadd.s32 %s138, 1
      %s140 = scalar_select %p137, %s138, %s139
      %p143 = pneg %p137
      %p144 = scmp.eq.s32.totalorder %s38, 3
      %p145 = por %p143, %p144
      %p146 = scmp.ne.s32.totalorder %s138, %s141
      %p147 = scmp.eq.s32.totalorder %s38, 0
      %p148 = por %p146, %p147
      %p149 = scmp.ne.s32.totalorder %s138, %s141
      %p150 = scmp.eq.s32.totalorder %s43, 3
      %p151 = por %p149, %p150
      %p152 = scmp.ne.s32.totalorder %s141, %s142
      %p153 = scmp.eq.s32.totalorder %s43, 0
      %p154 = por %p152, %p153
      %p155 = scmp.ne.s32.totalorder %s141, %s142
      %p156 = scmp.eq.s32.totalorder %s44, 3
      %p157 = por %p155, %p156
      %p159 = scmp.ne.s32.totalorder %s142, %s158
      %p160 = scmp.eq.s32.totalorder %s44, 0
      %p161 = por %p159, %p160
      %s162 = ssub.s32 %s46, %s53
      %p163 = scmp.eq.s32.totalorder %s162, 0
      %s165 = sadd.s32 %s164, 1
      %s166 = scalar_select %p163, %s164, %s165
      %p169 = pneg %p163
      %p170 = scmp.eq.s32.totalorder %s38, 3
      %p171 = por %p169, %p170
      %p172 = scmp.ne.s32.totalorder %s164, %s167
      %p173 = scmp.eq.s32.totalorder %s38, 0
      %p174 = por %p172, %p173
      %p175 = scmp.ne.s32.totalorder %s164, %s167
      %p176 = scmp.eq.s32.totalorder %s43, 3
      %p177 = por %p175, %p176
      %p178 = scmp.ne.s32.totalorder %s167, %s168
      %p179 = scmp.eq.s32.totalorder %s43, 0
      %p180 = por %p178, %p179
      %p181 = scmp.ne.s32.totalorder %s167, %s168
      %p182 = scmp.eq.s32.totalorder %s44, 3
      %p183 = por %p181, %p182
      %p185 = scmp.ne.s32.totalorder %s168, %s184
      %p186 = scmp.eq.s32.totalorder %s44, 0
      %p187 = por %p185, %p186
      %s188 = ssub.s32 %s46, %s53
      %p189 = scmp.eq.s32.totalorder %s188, 0
      %s191 = sadd.s32 %s190, 1
      %s192 = scalar_select %p189, %s190, %s191
      %p195 = pneg %p189
      %p196 = scmp.eq.s32.totalorder %s38, 3
      %p197 = por %p195, %p196
      %p198 = scmp.ne.s32.totalorder %s190, %s193
      %p199 = scmp.eq.s32.totalorder %s38, 0
      %p200 = por %p198, %p199
      %p201 = scmp.ne.s32.totalorder %s190, %s193
      %p202 = scmp.eq.s32.totalorder %s43, 3
      %p203 = por %p201, %p202
      %p204 = scmp.ne.s32.totalorder %s193, %s194
      %p205 = scmp.eq.s32.totalorder %s43, 0
      %p206 = por %p204, %p205
      %p207 = scmp.ne.s32.totalorder %s193, %s194
      %p208 = scmp.eq.s32.totalorder %s44, 3
      %p209 = por %p207, %p208
      %p211 = scmp.ne.s32.totalorder %s194, %s210
      %p212 = scmp.eq.s32.totalorder %s44, 0
      %p213 = por %p211, %p212
      %s214 = ssub.s32 %s46, %s53
      %p215 = scmp.eq.s32.totalorder %s214, 0
      %s217 = sadd.s32 %s216, 1
      %s218 = scalar_select %p215, %s216, %s217
      %p221 = pneg %p215
      %p222 = scmp.eq.s32.totalorder %s38, 3
      %p223 = por %p221, %p222
      %p224 = scmp.ne.s32.totalorder %s216, %s219
      %p225 = scmp.eq.s32.totalorder %s38, 0
      %p226 = por %p224, %p225
      %p227 = scmp.ne.s32.totalorder %s216, %s219
      %p228 = scmp.eq.s32.totalorder %s43, 3
      %p229 = por %p227, %p228
      %p230 = scmp.ne.s32.totalorder %s219, %s220
      %p231 = scmp.eq.s32.totalorder %s43, 0
      %p232 = por %p230, %p231
      %p233 = scmp.ne.s32.totalorder %s219, %s220
      %p234 = scmp.eq.s32.totalorder %s44, 3
      %p235 = por %p233, %p234
      %p237 = scmp.ne.s32.totalorder %s220, %s236
      %p238 = scmp.eq.s32.totalorder %s44, 0
      %p239 = por %p237, %p238
      %s240 = ssub.s32 %s46, %s53
      %p241 = scmp.eq.s32.totalorder %s240, 0
      %s243 = sadd.s32 %s242, 1
      %s244 = scalar_select %p241, %s242, %s243
      %p247 = pneg %p241
      %p248 = scmp.eq.s32.totalorder %s38, 3
      %p249 = por %p247, %p248
      %p250 = scmp.ne.s32.totalorder %s242, %s245
      %p251 = scmp.eq.s32.totalorder %s38, 0
      %p252 = por %p250, %p251
      %p253 = scmp.ne.s32.totalorder %s242, %s245
      %p254 = scmp.eq.s32.totalorder %s43, 3
      %p255 = por %p253, %p254
      %p256 = scmp.ne.s32.totalorder %s245, %s246
      %p257 = scmp.eq.s32.totalorder %s43, 0
      %p258 = por %p256, %p257
      %p259 = scmp.ne.s32.totalorder %s245, %s246
      %p260 = scmp.eq.s32.totalorder %s44, 3
      %p261 = por %p259, %p260
      %p263 = scmp.ne.s32.totalorder %s246, %s262
      %p264 = scmp.eq.s32.totalorder %s44, 0
      %p265 = por %p263, %p264
      %s266 = ssub.s32 %s46, %s53
      %p267 = scmp.eq.s32.totalorder %s266, 0
      %s269 = sadd.s32 %s268, 1
      %s270 = scalar_select %p267, %s268, %s269
      %p273 = pneg %p267
      %p274 = scmp.eq.s32.totalorder %s38, 3
      %p275 = por %p273, %p274
      %p276 = scmp.ne.s32.totalorder %s268, %s271
      %p277 = scmp.eq.s32.totalorder %s38, 0
      %p278 = por %p276, %p277
      %p279 = scmp.ne.s32.totalorder %s268, %s271
      %p280 = scmp.eq.s32.totalorder %s43, 3
      %p281 = por %p279, %p280
      %p282 = scmp.ne.s32.totalorder %s271, %s272
      %p283 = scmp.eq.s32.totalorder %s43, 0
      %p284 = por %p282, %p283
      %p285 = scmp.ne.s32.totalorder %s271, %s272
      %p286 = scmp.eq.s32.totalorder %s44, 3
      %p287 = por %p285, %p286
      %p289 = scmp.ne.s32.totalorder %s272, %s288
      %p290 = scmp.eq.s32.totalorder %s44, 0
      %p291 = por %p289, %p290
      %s292 = ssub.s32 %s46, %s53
      %p293 = scmp.eq.s32.totalorder %s292, 0
      %s295 = sadd.s32 %s294, 1
      %s296 = scalar_select %p293, %s294, %s295
      %p299 = pneg %p293
      %p300 = scmp.eq.s32.totalorder %s38, 3
      %p301 = por %p299, %p300
      %p302 = scmp.ne.s32.totalorder %s294, %s297
      %p303 = scmp.eq.s32.totalorder %s38, 0
      %p304 = por %p302, %p303
      %p305 = scmp.ne.s32.totalorder %s294, %s297
      %p306 = scmp.eq.s32.totalorder %s43, 3
      %p307 = por %p305, %p306
      %p308 = scmp.ne.s32.totalorder %s297, %s298
      %p309 = scmp.eq.s32.totalorder %s43, 0
      %p310 = por %p308, %p309
      %p311 = scmp.ne.s32.totalorder %s297, %s298
      %p312 = scmp.eq.s32.totalorder %s44, 3
      %p313 = por %p311, %p312
      %p315 = scmp.ne.s32.totalorder %s298, %s314
      %p316 = scmp.eq.s32.totalorder %s44, 0
      %p317 = por %p315, %p316
      %s318 = ssub.s32 %s46, %s53
      %p319 = scmp.eq.s32.totalorder %s318, 0
      %s321 = sadd.s32 %s320, 1
      %s322 = scalar_select %p319, %s320, %s321
      %p325 = pneg %p319
      %p326 = scmp.eq.s32.totalorder %s38, 3
      %p327 = por %p325, %p326
      %p328 = scmp.ne.s32.totalorder %s320, %s323
      %p329 = scmp.eq.s32.totalorder %s38, 0
      %p330 = por %p328, %p329
      %p331 = scmp.ne.s32.totalorder %s320, %s323
      %p332 = scmp.eq.s32.totalorder %s43, 3
      %p333 = por %p331, %p332
      %p334 = scmp.ne.s32.totalorder %s323, %s324
      %p335 = scmp.eq.s32.totalorder %s43, 0
      %p336 = por %p334, %p335
      %p337 = scmp.ne.s32.totalorder %s323, %s324
      %p338 = scmp.eq.s32.totalorder %s44, 3
      %p339 = por %p337, %p338
      %p341 = scmp.ne.s32.totalorder %s324, %s340
      %p342 = scmp.eq.s32.totalorder %s44, 0
      %p343 = por %p341, %p342
      %s344 = ssub.s32 %s46, %s53
      %p345 = scmp.eq.s32.totalorder %s344, 0
      %s347 = sadd.s32 %s346, 1
      %s348 = scalar_select %p345, %s346, %s347
      %p351 = pneg %p345
      %p352 = scmp.eq.s32.totalorder %s38, 3
      %p353 = por %p351, %p352
      %p354 = scmp.ne.s32.totalorder %s346, %s349
      %p355 = scmp.eq.s32.totalorder %s38, 0
      %p356 = por %p354, %p355
      %p357 = scmp.ne.s32.totalorder %s346, %s349
      %p358 = scmp.eq.s32.totalorder %s43, 3
      %p359 = por %p357, %p358
      %p360 = scmp.ne.s32.totalorder %s349, %s350
      %p361 = scmp.eq.s32.totalorder %s43, 0
      %p362 = por %p360, %p361
      %p363 = scmp.ne.s32.totalorder %s349, %s350
      %p364 = scmp.eq.s32.totalorder %s44, 3
      %p365 = por %p363, %p364
      %p367 = scmp.ne.s32.totalorder %s350, %s366
      %p368 = scmp.eq.s32.totalorder %s44, 0
      %p369 = por %p367, %p368
      %s370 = ssub.s32 %s46, %s53
      %p371 = scmp.eq.s32.totalorder %s370, 0
      %s373 = sadd.s32 %s372, 1
      %s374 = scalar_select %p371, %s372, %s373
      %p377 = pneg %p371
      %p378 = scmp.eq.s32.totalorder %s38, 3
      %p379 = por %p377, %p378
      %p380 = scmp.ne.s32.totalorder %s372, %s375
      %p381 = scmp.eq.s32.totalorder %s38, 0
      %p382 = por %p380, %p381
      %p383 = scmp.ne.s32.totalorder %s372, %s375
      %p384 = scmp.eq.s32.totalorder %s43, 3
      %p385 = por %p383, %p384
      %p386 = scmp.ne.s32.totalorder %s375, %s376
      %p387 = scmp.eq.s32.totalorder %s43, 0
      %p388 = por %p386, %p387
      %p389 = scmp.ne.s32.totalorder %s375, %s376
      %p390 = scmp.eq.s32.totalorder %s44, 3
      %p391 = por %p389, %p390
      %p393 = scmp.ne.s32.totalorder %s376, %s392
      %p394 = scmp.eq.s32.totalorder %s44, 0
      %p395 = por %p393, %p394
      %s396 = ssub.s32 %s46, %s53
      %p397 = scmp.eq.s32.totalorder %s396, 0
      %s399 = sadd.s32 %s398, 1
      %s400 = scalar_select %p397, %s398, %s399
      %p403 = pneg %p397
      %p404 = scmp.eq.s32.totalorder %s38, 3
      %p405 = por %p403, %p404
      %p406 = scmp.ne.s32.totalorder %s398, %s401
      %p407 = scmp.eq.s32.totalorder %s38, 0
      %p408 = por %p406, %p407
      %p409 = scmp.ne.s32.totalorder %s398, %s401
      %p410 = scmp.eq.s32.totalorder %s43, 3
      %p411 = por %p409, %p410
      %p412 = scmp.ne.s32.totalorder %s401, %s402
      %p413 = scmp.eq.s32.totalorder %s43, 0
      %p414 = por %p412, %p413
      %p415 = scmp.ne.s32.totalorder %s401, %s402
      %p416 = scmp.eq.s32.totalorder %s44, 3
      %p417 = por %p415, %p416
      %p419 = scmp.ne.s32.totalorder %s402, %s418
      %p420 = scmp.eq.s32.totalorder %s44, 0
      %p421 = por %p419, %p420
      %s422 = ssub.s32 %s45, %s57
      %p423 = scmp.eq.s32.totalorder %s422, 0
      %s425 = sadd.s32 %s424, 1
      %s426 = scalar_select %p423, %s424, %s425
      %p429 = pneg %p423
      %p430 = scmp.eq.s32.totalorder %s38, 3
      %p431 = por %p429, %p430
      %p432 = scmp.ne.s32.totalorder %s424, %s427
      %p433 = scmp.eq.s32.totalorder %s38, 0
      %p434 = por %p432, %p433
      %p435 = scmp.ne.s32.totalorder %s424, %s427
      %p436 = scmp.eq.s32.totalorder %s43, 3
      %p437 = por %p435, %p436
      %p438 = scmp.ne.s32.totalorder %s427, %s428
      %p439 = scmp.eq.s32.totalorder %s43, 0
      %p440 = por %p438, %p439
      %p441 = scmp.ne.s32.totalorder %s427, %s428
      %p442 = scmp.eq.s32.totalorder %s44, 3
      %p443 = por %p441, %p442
      %p445 = scmp.ne.s32.totalorder %s428, %s444
      %p446 = scmp.eq.s32.totalorder %s44, 0
      %p447 = por %p445, %p446
      %p448 = scmp.le.s32.totalorder 1, %s38
      %p449 = scmp.lt.s32.totalorder %s38, 5
      %p450 = pnand %p448, %p449
      %p451 = pneg %p450
      // Predicated region
      $region9: #{_lambda_.4} parent=5 // pred_check
        _
      $region10: #{_lambda_.4} parent=5 // pred_check_branch
        %453 = sbr.rel (%p450) target = $region12
      $region11: #{_lambda_.4} parent=5 // pred_region
        %s454 = ssub.s32 %s38, 1
      $region12: #{_lambda_.4} parent=5 // pred_fallthru
        _
      %p455 = scmp.lt.s32.totalorder %s38, 4
      // Predicated region
      $region13: #{_lambda_.4} parent=5 // pred_check
        %p456 = pneg %p455
      $region14: #{_lambda_.4} parent=5 // pred_check_branch
        %458 = sbr.rel (%p456) target = $region16
      $region15: #{_lambda_.4} parent=5 // pred_region
        // Predicated region
        $region17: #{_lambda_.4} parent=15 // pred_check
          %p459 = pneg %p70
        $region18: #{_lambda_.4} parent=15 // pred_check_branch
          %461 = sbr.rel (%p459) target = $region20
        $region19: #{_lambda_.4} parent=15 // pred_region
          %p462 = scmp.lt.s32.totalorder %s45, 1
          %s463 = scalar_select %p462, %s45, 1
          %s464 = smul.addr %s463, 4
          %s465 = smul.addr %s464, 8
          %s466 = scalar_lea.vmem %s0, %s465
        $region20: #{_lambda_.4} parent=15 // pred_fallthru
          _
        // Predicated region
        $region21: #{_lambda_.4} parent=15 // pred_check
          %p467 = pneg %p96
        $region22: #{_lambda_.4} parent=15 // pred_check_branch
          %469 = sbr.rel (%p467) target = $region24
        $region23: #{_lambda_.4} parent=15 // pred_region
          %p470 = scmp.lt.s32.totalorder %s45, 1
          %s471 = scalar_select %p470, %s45, 1
          %s472 = smul.addr %s471, 4
          %s473 = smul.addr %s472, 8
          %s474 = scalar_lea.vmem %s1, %s473
        $region24: #{_lambda_.4} parent=15 // pred_fallthru
          _
        // Predicated region
        $region25: #{_lambda_.4} parent=15 // pred_check
          %p475 = pneg %p122
        $region26: #{_lambda_.4} parent=15 // pred_check_branch
          %477 = sbr.rel (%p475) target = $region28
        $region27: #{_lambda_.4} parent=15 // pred_region
          %p478 = scmp.lt.s32.totalorder %s45, 1
          %s479 = scalar_select %p478, %s45, 1
          %s480 = scalar_lea.vmem %s2, %s479
        $region28: #{_lambda_.4} parent=15 // pred_fallthru
          _
        // Predicated region
        $region29: #{_lambda_.4} parent=15 // pred_check
          %p481 = pneg %p148
        $region30: #{_lambda_.4} parent=15 // pred_check_branch
          %483 = sbr.rel (%p481) target = $region32
        $region31: #{_lambda_.4} parent=15 // pred_region
          %p484 = scmp.lt.s32.totalorder %s45, 1
          %s485 = scalar_select %p484, %s45, 1
          %s486 = smul.addr %s485, 2
          %s487 = smul.addr %s486, 8
          %s488 = scalar_lea.vmem %s3, %s487
        $region32: #{_lambda_.4} parent=15 // pred_fallthru
          _
        // Predicated region
        $region33: #{_lambda_.4} parent=15 // pred_check
          %p489 = pneg %p174
        $region34: #{_lambda_.4} parent=15 // pred_check_branch
          %491 = sbr.rel (%p489) target = $region36
        $region35: #{_lambda_.4} parent=15 // pred_region
          %s492 = sand.u32 %s164, 1
          %s493 = scalar_lea.sflag [#allocation3], %s492
          %s494 = sand.u32 %s164, 1
          %s495 = smul.addr %s494, 1536
          %s496 = scalar_lea.vmem [#allocation2], %s495
          %s498 = ssub.s32 24576, 24576
          %499 = vsyncadd %s493, %s498
          %s500 = smul.addr %s46, 384
          %s501 = smul.addr %s500, 64
          %s502 = scalar_lea.hbm %s4, %s501
          %s503 = sshll.u32 %s496, 4
          %s504 = int_to_ptr.vmem [resolvable:$true] %s503
          %509 = dma.hbm_to_vmem [thread:$0]  %s502, 24576, %s504, %s493, 768, 768, 48
        $region36: #{_lambda_.4} parent=15 // pred_fallthru
          _
        // Predicated region
        $region37: #{_lambda_.4} parent=15 // pred_check
          %p510 = pneg %p200
        $region38: #{_lambda_.4} parent=15 // pred_check_branch
          %512 = sbr.rel (%p510) target = $region40
        $region39: #{_lambda_.4} parent=15 // pred_region
          %s513 = sand.u32 %s38, 1
          %s514 = scalar_lea.sflag [#allocation5], %s513
          %s515 = sand.u32 %s190, 1
          %s516 = smul.addr %s515, 12
          %s517 = scalar_lea.vmem [#allocation4], %s516
          %s519 = ssub.s32 192, 192
          %520 = vsyncadd %s514, %s519
          %s521 = smul.addr %s46, 12
          %s522 = smul.addr %s521, 16
          %s523 = scalar_lea.hbm %s5, %s522
          %s525 = sshll.u32 %s517, 4
          %s526 = int_to_ptr.vmem [resolvable:$true] %s525
          %528 = dma.hbm_to_vmem [thread:$0]  %s523, 192, %s526, %s514
        $region40: #{_lambda_.4} parent=15 // pred_fallthru
          _
        // Predicated region
        $region41: #{_lambda_.4} parent=15 // pred_check
          %p529 = pneg %p226
        $region42: #{_lambda_.4} parent=15 // pred_check_branch
          %531 = sbr.rel (%p529) target = $region44
        $region43: #{_lambda_.4} parent=15 // pred_region
          %s532 = sand.u32 %s38, 1
          %s533 = scalar_lea.sflag [#allocation5], %s532
          %s534 = sand.u32 %s216, 1
          %s535 = smul.addr %s534, 768
          %s536 = scalar_lea.vmem [#allocation6], %s535
          %s538 = ssub.s32 12288, 12288
          %539 = vsyncadd %s533, %s538
          %s540 = smul.addr %s46, 192
          %s541 = smul.addr %s540, 64
          %s542 = scalar_lea.hbm %s6, %s541
          %s543 = sshll.u32 %s536, 4
          %s544 = int_to_ptr.vmem [resolvable:$true] %s543
          %549 = dma.hbm_to_vmem [thread:$0]  %s542, 12288, %s544, %s533, 384, 384, 24
        $region44: #{_lambda_.4} parent=15 // pred_fallthru
          _
        // Predicated region
        $region45: #{_lambda_.4} parent=15 // pred_check
          %p550 = pneg %p252
        $region46: #{_lambda_.4} parent=15 // pred_check_branch
          %552 = sbr.rel (%p550) target = $region48
        $region47: #{_lambda_.4} parent=15 // pred_region
          %s553 = sand.u32 %s38, 1
          %s554 = scalar_lea.sflag [#allocation8], %s553
          %s555 = sand.u32 %s242, 1
          %s556 = smul.addr %s555, 6
          %s557 = scalar_lea.vmem [#allocation7], %s556
          %s559 = ssub.s32 96, 96
          %560 = vsyncadd %s554, %s559
          %s561 = smul.addr %s46, 6
          %s562 = smul.addr %s561, 16
          %s563 = scalar_lea.hbm %s7, %s562
          %s565 = sshll.u32 %s557, 4
          %s566 = int_to_ptr.vmem [resolvable:$true] %s565
          %568 = dma.hbm_to_vmem [thread:$0]  %s563, 96, %s566, %s554
        $region48: #{_lambda_.4} parent=15 // pred_fallthru
          _
        // Predicated region
        $region49: #{_lambda_.4} parent=15 // pred_check
          %p569 = pneg %p278
        $region50: #{_lambda_.4} parent=15 // pred_check_branch
          %571 = sbr.rel (%p569) target = $region52
        $region51: #{_lambda_.4} parent=15 // pred_region
          %s572 = sand.u32 %s38, 1
          %s573 = scalar_lea.sflag [#allocation8], %s572
          %s574 = sand.u32 %s268, 1
          %s575 = smul.addr %s574, 256
          %s576 = scalar_lea.vmem [#allocation9], %s575
          %s578 = ssub.s32 4096, 4096
          %579 = vsyncadd %s573, %s578
          %s580 = smul.addr %s46, 64
          %s581 = smul.addr %s580, 64
          %s582 = scalar_lea.hbm %s8, %s581
          %s583 = sshll.u32 %s576, 4
          %s584 = int_to_ptr.vmem [resolvable:$true] %s583
          %589 = dma.hbm_to_vmem [thread:$0]  %s582, 4096, %s584, %s573, 128, 128, 8
        $region52: #{_lambda_.4} parent=15 // pred_fallthru
          _
        // Predicated region
        $region53: #{_lambda_.4} parent=15 // pred_check
          %p590 = pneg %p304
        $region54: #{_lambda_.4} parent=15 // pred_check_branch
          %592 = sbr.rel (%p590) target = $region56
        $region55: #{_lambda_.4} parent=15 // pred_region
          %s593 = sand.u32 %s38, 1
          %s594 = scalar_lea.sflag [#allocation11], %s593
          %s595 = sand.u32 %s294, 1
          %s596 = smul.addr %s595, 2
          %s597 = scalar_lea.vmem [#allocation10], %s596
          %s599 = ssub.s32 32, 32
          %600 = vsyncadd %s594, %s599
          %s601 = smul.addr %s46, 2
          %s602 = smul.addr %s601, 16
          %s603 = scalar_lea.hbm %s9, %s602
          %s605 = sshll.u32 %s597, 4
          %s606 = int_to_ptr.vmem [resolvable:$true] %s605
          %608 = dma.hbm_to_vmem [thread:$0]  %s603, 32, %s606, %s594
        $region56: #{_lambda_.4} parent=15 // pred_fallthru
          _
        // Predicated region
        $region57: #{_lambda_.4} parent=15 // pred_check
          %p609 = pneg %p330
        $region58: #{_lambda_.4} parent=15 // pred_check_branch
          %611 = sbr.rel (%p609) target = $region60
        $region59: #{_lambda_.4} parent=15 // pred_region
          %s612 = sand.u32 %s38, 1
          %s613 = scalar_lea.sflag [#allocation11], %s612
          %s614 = sand.u32 %s320, 1
          %s615 = smul.addr %s614, 1024
          %s616 = scalar_lea.vmem [#allocation12], %s615
          %s618 = ssub.s32 16384, 16384
          %619 = vsyncadd %s613, %s618
          %s620 = smul.addr %s46, 256
          %s621 = smul.addr %s620, 64
          %s622 = scalar_lea.hbm %s10, %s621
          %s623 = sshll.u32 %s616, 4
          %s624 = int_to_ptr.vmem [resolvable:$true] %s623
          %629 = dma.hbm_to_vmem [thread:$0]  %s622, 16384, %s624, %s613, 512, 512, 32
        $region60: #{_lambda_.4} parent=15 // pred_fallthru
          _
        // Predicated region
        $region61: #{_lambda_.4} parent=15 // pred_check
          %p630 = pneg %p356
        $region62: #{_lambda_.4} parent=15 // pred_check_branch
          %632 = sbr.rel (%p630) target = $region64
        $region63: #{_lambda_.4} parent=15 // pred_region
          %s633 = sand.u32 %s38, 1
          %s634 = scalar_lea.sflag [#allocation14], %s633
          %s635 = sand.u32 %s346, 1
          %s636 = smul.addr %s635, 8
          %s637 = scalar_lea.vmem [#allocation13], %s636
          %s639 = ssub.s32 128, 128
          %640 = vsyncadd %s634, %s639
          %s641 = smul.addr %s46, 8
          %s642 = smul.addr %s641, 16
          %s643 = scalar_lea.hbm %s11, %s642
          %s645 = sshll.u32 %s637, 4
          %s646 = int_to_ptr.vmem [resolvable:$true] %s645
          %648 = dma.hbm_to_vmem [thread:$0]  %s643, 128, %s646, %s634
        $region64: #{_lambda_.4} parent=15 // pred_fallthru
          _
        // Predicated region
        $region65: #{_lambda_.4} parent=15 // pred_check
          %p649 = pneg %p382
        $region66: #{_lambda_.4} parent=15 // pred_check_branch
          %651 = sbr.rel (%p649) target = $region68
        $region67: #{_lambda_.4} parent=15 // pred_region
          %s652 = sand.u32 %s38, 1
          %s653 = scalar_lea.sflag [#allocation14], %s652
          %s654 = sand.u32 %s372, 1
          %s655 = smul.addr %s654, 1024
          %s656 = scalar_lea.vmem [#allocation15], %s655
          %s658 = ssub.s32 16384, 16384
          %659 = vsyncadd %s653, %s658
          %s660 = smul.addr %s46, 256
          %s661 = smul.addr %s660, 64
          %s662 = scalar_lea.hbm %s12, %s661
          %s663 = sshll.u32 %s656, 4
          %s664 = int_to_ptr.vmem [resolvable:$true] %s663
          %669 = dma.hbm_to_vmem [thread:$0]  %s662, 16384, %s664, %s653, 128, 128, 8
        $region68: #{_lambda_.4} parent=15 // pred_fallthru
          _
        // Predicated region
        $region69: #{_lambda_.4} parent=15 // pred_check
          %p670 = pneg %p408
        $region70: #{_lambda_.4} parent=15 // pred_check_branch
          %672 = sbr.rel (%p670) target = $region72
        $region71: #{_lambda_.4} parent=15 // pred_region
          %s673 = sand.u32 %s398, 1
          %s674 = scalar_lea.sflag [#allocation17], %s673
          %s675 = sand.u32 %s398, 1
          %s676 = smul.addr %s675, 2
          %s677 = scalar_lea.vmem [#allocation16], %s676
          %s679 = ssub.s32 32, 32
          %680 = vsyncadd %s674, %s679
          %s681 = smul.addr %s46, 2
          %s682 = smul.addr %s681, 16
          %s683 = scalar_lea.hbm %s13, %s682
          %s685 = sshll.u32 %s677, 4
          %s686 = int_to_ptr.vmem [resolvable:$true] %s685
          %688 = dma.hbm_to_vmem [thread:$0]  %s683, 32, %s686, %s674
        $region72: #{_lambda_.4} parent=15 // pred_fallthru
          _
      $region16: #{_lambda_.4} parent=5 // pred_fallthru
        _
      %p689 = scmp.le.s32.totalorder 1, %s38
      %p690 = scmp.lt.s32.totalorder %s38, 5
      %p691 = pnand %p689, %p690
      %p692 = pneg %p691
      // Predicated region
      $region73: #{_lambda_.4} parent=5 // pred_check
        _
      $region74: #{_lambda_.4} parent=5 // pred_check_branch
        %694 = sbr.rel (%p691) target = $region76
      $region75: #{_lambda_.4} parent=5 // pred_region
        %s695 = ssub.s32 %s38, 1
        %s696 = sand.u32 %s167, 1
        %s697 = scalar_lea.sflag [#allocation3], %s696
        %s698 = sand.u32 %s167, 1
        %s699 = smul.addr %s698, 1536
        %s700 = scalar_lea.vmem [#allocation2], %s699
        // Predicated region
        $region77: #{_lambda_.4} parent=75 // pred_check
          %p701 = pneg %p180
        $region78: #{_lambda_.4} parent=75 // pred_check_branch
          %703 = sbr.rel (%p701) target = $region80
        $region79: #{_lambda_.4} parent=75 // pred_region
          %704 = dma.done %s697, 24576
        $region80: #{_lambda_.4} parent=75 // pred_fallthru
          _
        %s705 = sand.u32 %s43, 1
        %s706 = scalar_lea.sflag [#allocation5], %s705
        %s707 = sand.u32 %s193, 1
        %s708 = smul.addr %s707, 12
        %s709 = scalar_lea.vmem [#allocation4], %s708
        // Predicated region
        $region81: #{_lambda_.4} parent=75 // pred_check
          %p710 = pneg %p206
        $region82: #{_lambda_.4} parent=75 // pred_check_branch
          %712 = sbr.rel (%p710) target = $region84
        $region83: #{_lambda_.4} parent=75 // pred_region
          %713 = dma.done %s706, 192
        $region84: #{_lambda_.4} parent=75 // pred_fallthru
          _
        %s714 = sand.u32 %s43, 1
        %s715 = scalar_lea.sflag [#allocation5], %s714
        %s716 = sand.u32 %s219, 1
        %s717 = smul.addr %s716, 768
        %s718 = scalar_lea.vmem [#allocation6], %s717
        // Predicated region
        $region85: #{_lambda_.4} parent=75 // pred_check
          %p719 = pneg %p232
        $region86: #{_lambda_.4} parent=75 // pred_check_branch
          %721 = sbr.rel (%p719) target = $region88
        $region87: #{_lambda_.4} parent=75 // pred_region
          %722 = dma.done %s715, 12288
        $region88: #{_lambda_.4} parent=75 // pred_fallthru
          _
        %s723 = sand.u32 %s43, 1
        %s724 = scalar_lea.sflag [#allocation8], %s723
        %s725 = sand.u32 %s245, 1
        %s726 = smul.addr %s725, 6
        %s727 = scalar_lea.vmem [#allocation7], %s726
        // Predicated region
        $region89: #{_lambda_.4} parent=75 // pred_check
          %p728 = pneg %p258
        $region90: #{_lambda_.4} parent=75 // pred_check_branch
          %730 = sbr.rel (%p728) target = $region92
        $region91: #{_lambda_.4} parent=75 // pred_region
          %731 = dma.done %s724, 96
        $region92: #{_lambda_.4} parent=75 // pred_fallthru
          _
        %s732 = sand.u32 %s43, 1
        %s733 = scalar_lea.sflag [#allocation8], %s732
        %s734 = sand.u32 %s271, 1
        %s735 = smul.addr %s734, 256
        %s736 = scalar_lea.vmem [#allocation9], %s735
        // Predicated region
        $region93: #{_lambda_.4} parent=75 // pred_check
          %p737 = pneg %p284
        $region94: #{_lambda_.4} parent=75 // pred_check_branch
          %739 = sbr.rel (%p737) target = $region96
        $region95: #{_lambda_.4} parent=75 // pred_region
          %740 = dma.done %s733, 4096
        $region96: #{_lambda_.4} parent=75 // pred_fallthru
          _
        %s741 = sand.u32 %s43, 1
        %s742 = scalar_lea.sflag [#allocation11], %s741
        %s743 = sand.u32 %s297, 1
        %s744 = smul.addr %s743, 2
        %s745 = scalar_lea.vmem [#allocation10], %s744
        // Predicated region
        $region97: #{_lambda_.4} parent=75 // pred_check
          %p746 = pneg %p310
        $region98: #{_lambda_.4} parent=75 // pred_check_branch
          %748 = sbr.rel (%p746) target = $region100
        $region99: #{_lambda_.4} parent=75 // pred_region
          %749 = dma.done %s742, 32
        $region100: #{_lambda_.4} parent=75 // pred_fallthru
          _
        %s750 = sand.u32 %s43, 1
        %s751 = scalar_lea.sflag [#allocation11], %s750
        %s752 = sand.u32 %s323, 1
        %s753 = smul.addr %s752, 1024
        %s754 = scalar_lea.vmem [#allocation12], %s753
        // Predicated region
        $region101: #{_lambda_.4} parent=75 // pred_check
          %p755 = pneg %p336
        $region102: #{_lambda_.4} parent=75 // pred_check_branch
          %757 = sbr.rel (%p755) target = $region104
        $region103: #{_lambda_.4} parent=75 // pred_region
          %758 = dma.done %s751, 16384
        $region104: #{_lambda_.4} parent=75 // pred_fallthru
          _
        %s759 = sand.u32 %s43, 1
        %s760 = scalar_lea.sflag [#allocation14], %s759
        %s761 = sand.u32 %s349, 1
        %s762 = smul.addr %s761, 8
        %s763 = scalar_lea.vmem [#allocation13], %s762
        // Predicated region
        $region105: #{_lambda_.4} parent=75 // pred_check
          %p764 = pneg %p362
        $region106: #{_lambda_.4} parent=75 // pred_check_branch
          %766 = sbr.rel (%p764) target = $region108
        $region107: #{_lambda_.4} parent=75 // pred_region
          %767 = dma.done %s760, 128
        $region108: #{_lambda_.4} parent=75 // pred_fallthru
          _
        %s768 = sand.u32 %s43, 1
        %s769 = scalar_lea.sflag [#allocation14], %s768
        %s770 = sand.u32 %s375, 1
        %s771 = smul.addr %s770, 1024
        %s772 = scalar_lea.vmem [#allocation15], %s771
        // Predicated region
        $region109: #{_lambda_.4} parent=75 // pred_check
          %p773 = pneg %p388
        $region110: #{_lambda_.4} parent=75 // pred_check_branch
          %775 = sbr.rel (%p773) target = $region112
        $region111: #{_lambda_.4} parent=75 // pred_region
          %776 = dma.done %s769, 16384
        $region112: #{_lambda_.4} parent=75 // pred_fallthru
          _
        %s777 = sand.u32 %s401, 1
        %s778 = scalar_lea.sflag [#allocation17], %s777
        %s779 = sand.u32 %s401, 1
        %s780 = smul.addr %s779, 2
        %s781 = scalar_lea.vmem [#allocation16], %s780
        // Predicated region
        $region113: #{_lambda_.4} parent=75 // pred_check
          %p782 = pneg %p414
        $region114: #{_lambda_.4} parent=75 // pred_check_branch
          %784 = sbr.rel (%p782) target = $region116
        $region115: #{_lambda_.4} parent=75 // pred_region
          %785 = dma.done %s778, 32
        $region116: #{_lambda_.4} parent=75 // pred_fallthru
          _
        %p786 = scmp.lt.s32.totalorder %s47, 1
        %s787 = scalar_select %p786, %s47, 1
        %s788 = smul.addr %s787, 4
        %s789 = smul.addr %s788, 8
        %s790 = scalar_lea.vmem %s0, %s789
        %p791 = pneg %p76
        %p792 = pneg %p73
        %p793 = scmp.lt.s32.totalorder %s47, 1
        %s794 = scalar_select %p793, %s47, 1
        %s795 = smul.addr %s794, 4
        %s796 = smul.addr %s795, 8
        %s797 = scalar_lea.vmem %s1, %s796
        %p798 = pneg %p102
        %p799 = pneg %p99
        %p800 = scmp.lt.s32.totalorder %s47, 1
        %s801 = scalar_select %p800, %s47, 1
        %s802 = scalar_lea.vmem %s2, %s801
        %p803 = pneg %p128
        %p804 = pneg %p125
        %p805 = scmp.lt.s32.totalorder %s47, 1
        %s806 = scalar_select %p805, %s47, 1
        %s807 = smul.addr %s806, 2
        %s808 = smul.addr %s807, 8
        %s809 = scalar_lea.vmem %s3, %s808
        %p810 = pneg %p154
        %p811 = pneg %p151
        %s812 = sand.u32 %s167, 1
        %s813 = scalar_lea.sflag [#allocation3], %s812
        %s814 = sand.u32 %s167, 1
        %s815 = smul.addr %s814, 1536
        %s816 = scalar_lea.vmem [#allocation2], %s815
        %p817 = pneg %p180
        %p818 = pneg %p177
        %s819 = sand.u32 %s43, 1
        %s820 = scalar_lea.sflag [#allocation5], %s819
        %s821 = sand.u32 %s193, 1
        %s822 = smul.addr %s821, 12
        %s823 = scalar_lea.vmem [#allocation4], %s822
        %p824 = pneg %p206
        %p825 = pneg %p203
        %s826 = sand.u32 %s43, 1
        %s827 = scalar_lea.sflag [#allocation5], %s826
        %s828 = sand.u32 %s219, 1
        %s829 = smul.addr %s828, 768
        %s830 = scalar_lea.vmem [#allocation6], %s829
        %p831 = pneg %p232
        %p832 = pneg %p229
        %s833 = sand.u32 %s43, 1
        %s834 = scalar_lea.sflag [#allocation8], %s833
        %s835 = sand.u32 %s245, 1
        %s836 = smul.addr %s835, 6
        %s837 = scalar_lea.vmem [#allocation7], %s836
        %p838 = pneg %p258
        %p839 = pneg %p255
        %s840 = sand.u32 %s43, 1
        %s841 = scalar_lea.sflag [#allocation8], %s840
        %s842 = sand.u32 %s271, 1
        %s843 = smul.addr %s842, 256
        %s844 = scalar_lea.vmem [#allocation9], %s843
        %p845 = pneg %p284
        %p846 = pneg %p281
        %s847 = sand.u32 %s43, 1
        %s848 = scalar_lea.sflag [#allocation11], %s847
        %s849 = sand.u32 %s297, 1
        %s850 = smul.addr %s849, 2
        %s851 = scalar_lea.vmem [#allocation10], %s850
        %p852 = pneg %p310
        %p853 = pneg %p307
        %s854 = sand.u32 %s43, 1
        %s855 = scalar_lea.sflag [#allocation11], %s854
        %s856 = sand.u32 %s323, 1
        %s857 = smul.addr %s856, 1024
        %s858 = scalar_lea.vmem [#allocation12], %s857
        %p859 = pneg %p336
        %p860 = pneg %p333
        %s861 = sand.u32 %s43, 1
        %s862 = scalar_lea.sflag [#allocation14], %s861
        %s863 = sand.u32 %s349, 1
        %s864 = smul.addr %s863, 8
        %s865 = scalar_lea.vmem [#allocation13], %s864
        %p866 = pneg %p362
        %p867 = pneg %p359
        %s868 = sand.u32 %s43, 1
        %s869 = scalar_lea.sflag [#allocation14], %s868
        %s870 = sand.u32 %s375, 1
        %s871 = smul.addr %s870, 1024
        %s872 = scalar_lea.vmem [#allocation15], %s871
        %p873 = pneg %p388
        %p874 = pneg %p385
        %s875 = sand.u32 %s401, 1
        %s876 = scalar_lea.sflag [#allocation17], %s875
        %s877 = sand.u32 %s401, 1
        %s878 = smul.addr %s877, 2
        %s879 = scalar_lea.vmem [#allocation16], %s878
        %p880 = pneg %p414
        %p881 = pneg %p411
        %p882 = pneg %p440
        %p883 = pneg %p437
        %p884 = scmp.lt.s32.totalorder %s47, 1
        %s885 = scalar_select %p884, %s47, 1
        %s886 = smul.addr %s885, 4
        %s887 = smul.addr %s886, 8
        %s888 = scalar_lea.vmem %s14, %s887
        %p889 = scmp.lt.s32.totalorder %s47, 1
        %s890 = scalar_select %p889, %s47, 1
        %s891 = smul.addr %s890, 4
        %s892 = smul.addr %s891, 8
        %s893 = scalar_lea.vmem %s0, %s892
        %p894 = scmp.lt.s32.totalorder %s47, 1
        %s895 = scalar_select %p894, %s47, 1
        %s896 = smul.addr %s895, 4
        %s897 = smul.addr %s896, 8
        %s898 = scalar_lea.vmem %s1, %s897
        %p899 = scmp.lt.s32.totalorder %s47, 1
        %s900 = scalar_select %p899, %s47, 1
        %s901 = scalar_lea.vmem %s2, %s900
        %p902 = scmp.lt.s32.totalorder %s47, 1
        %s903 = scalar_select %p902, %s47, 1
        %s904 = smul.addr %s903, 2
        %s905 = smul.addr %s904, 8
        %s906 = scalar_lea.vmem %s3, %s905
        %p907 = scmp.lt.s32.totalorder %s47, 1
        %s908 = scalar_select %p907, %s47, 1
        %s909 = smul.addr %s908, 4
        %s910 = smul.addr %s909, 8
        %s911 = scalar_lea.vmem %s14, %s910
        %p913 = scmp.eq.s32.totalorder %s48, 0
        // Predicated region
        $region117: #{_lambda_.4} parent=75 // pred_check
          %p914 = pneg %p913
        $region118: #{_lambda_.4} parent=75 // pred_check_branch
          %916 = sbr.rel (%p914) target = $region120
        $region119: #{_lambda_.4} parent=75 // pred_region
          %v917 = vld [vmem:[%s893] sm:$0xff]
          %v918 = vld [vmem:[%s893 + $0x8] sm:$0xff]
          %v919 = vld [vmem:[%s893 + $0x10] sm:$0xff]
          %v920 = vld [vmem:[%s893 + $0x18] sm:$0xff]
          %921 = vst [vmem:[%s911] sm:$0xff] %v917
          %922 = vst [vmem:[%s911 + $0x8] sm:$0xff] %v918
          %923 = vst [vmem:[%s911 + $0x10] sm:$0xff] %v919
          %924 = vst [vmem:[%s911 + $0x18] sm:$0xff] %v920
        $region120: #{_lambda_.4} parent=75 // pred_fallthru
          _
        %v925 = vld [vmem:[%s911] sm:$0xff]
        %v926 = vld [vmem:[%s911 + $0x8] sm:$0xff]
        %v927 = vld [vmem:[%s911 + $0x10] sm:$0xff]
        %v928 = vld [vmem:[%s911 + $0x18] sm:$0xff]
        %v929 = vld [vmem:[%s898] sm:$0xff]
        %v930 = vld [vmem:[%s898 + $0x8] sm:$0xff]
        %v931 = vld [vmem:[%s898 + $0x10] sm:$0xff]
        %v932 = vld [vmem:[%s898 + $0x18] sm:$0xff]
        %v933 = vld [vmem:[%s901] sm:$0x1]
        %v934 = vld [vmem:[%s906] sm:$0xff]
        %v935 = vld [vmem:[%s906 + $0x8] sm:$0xff]
        %v936 = vld [vmem:[%s700] sm:$0xff]
        %v937 = vld [vmem:[%s700 + $0x8] sm:$0xff]
        %v938 = vld [vmem:[%s700 + $0x10] sm:$0xff]
        %v939 = vld [vmem:[%s700 + $0x18] sm:$0xff]
        %v940 = vld [vmem:[%s700 + $0x20] sm:$0xff]
        %v941 = vld [vmem:[%s700 + $0x28] sm:$0xff]
        %v942 = vld [vmem:[%s700 + $0x30] sm:$0xff]
        %v943 = vld [vmem:[%s700 + $0x38] sm:$0xff]
        %v944 = vld [vmem:[%s700 + $0x40] sm:$0xff]
        %v945 = vld [vmem:[%s700 + $0x48] sm:$0xff]
        %v946 = vld [vmem:[%s700 + $0x50] sm:$0xff]
        %v947 = vld [vmem:[%s700 + $0x58] sm:$0xff]
        %v948 = vld [vmem:[%s700 + $0x60] sm:$0xff]
        %v949 = vld [vmem:[%s700 + $0x68] sm:$0xff]
        %v950 = vld [vmem:[%s700 + $0x70] sm:$0xff]
        %v951 = vld [vmem:[%s700 + $0x78] sm:$0xff]
        %v952 = vld [vmem:[%s700 + $0x80] sm:$0xff]
        %v953 = vld [vmem:[%s700 + $0x88] sm:$0xff]
        %v954 = vld [vmem:[%s700 + $0x90] sm:$0xff]
        %v955 = vld [vmem:[%s700 + $0x98] sm:$0xff]
        %v956 = vld [vmem:[%s700 + $0xa0] sm:$0xff]
        %v957 = vld [vmem:[%s700 + $0xa8] sm:$0xff]
        %v958 = vld [vmem:[%s700 + $0xb0] sm:$0xff]
        %v959 = vld [vmem:[%s700 + $0xb8] sm:$0xff]
        %v960 = vld [vmem:[%s700 + $0xc0] sm:$0xff]
        %v961 = vld [vmem:[%s700 + $0xc8] sm:$0xff]
        %v962 = vld [vmem:[%s700 + $0xd0] sm:$0xff]
        %v963 = vld [vmem:[%s700 + $0xd8] sm:$0xff]
        %v964 = vld [vmem:[%s700 + $0xe0] sm:$0xff]
        %v965 = vld [vmem:[%s700 + $0xe8] sm:$0xff]
        %v966 = vld [vmem:[%s700 + $0xf0] sm:$0xff]
        %v967 = vld [vmem:[%s700 + $0xf8] sm:$0xff]
        %v968 = vld [vmem:[%s700 + $0x100] sm:$0xff]
        %v969 = vld [vmem:[%s700 + $0x108] sm:$0xff]
        %v970 = vld [vmem:[%s700 + $0x110] sm:$0xff]
        %v971 = vld [vmem:[%s700 + $0x118] sm:$0xff]
        %v972 = vld [vmem:[%s700 + $0x120] sm:$0xff]
        %v973 = vld [vmem:[%s700 + $0x128] sm:$0xff]
        %v974 = vld [vmem:[%s700 + $0x130] sm:$0xff]
        %v975 = vld [vmem:[%s700 + $0x138] sm:$0xff]
        %v976 = vld [vmem:[%s700 + $0x140] sm:$0xff]
        %v977 = vld [vmem:[%s700 + $0x148] sm:$0xff]
        %v978 = vld [vmem:[%s700 + $0x150] sm:$0xff]
        %v979 = vld [vmem:[%s700 + $0x158] sm:$0xff]
        %v980 = vld [vmem:[%s700 + $0x160] sm:$0xff]
        %v981 = vld [vmem:[%s700 + $0x168] sm:$0xff]
        %v982 = vld [vmem:[%s700 + $0x170] sm:$0xff]
        %v983 = vld [vmem:[%s700 + $0x178] sm:$0xff]
        %v984 = vld [vmem:[%s700 + $0x180] sm:$0xff]
        %v985 = vld [vmem:[%s700 + $0x188] sm:$0xff]
        %v986 = vld [vmem:[%s700 + $0x190] sm:$0xff]
        %v987 = vld [vmem:[%s700 + $0x198] sm:$0xff]
        %v988 = vld [vmem:[%s700 + $0x1a0] sm:$0xff]
        %v989 = vld [vmem:[%s700 + $0x1a8] sm:$0xff]
        %v990 = vld [vmem:[%s700 + $0x1b0] sm:$0xff]
        %v991 = vld [vmem:[%s700 + $0x1b8] sm:$0xff]
        %v992 = vld [vmem:[%s700 + $0x1c0] sm:$0xff]
        %v993 = vld [vmem:[%s700 + $0x1c8] sm:$0xff]
        %v994 = vld [vmem:[%s700 + $0x1d0] sm:$0xff]
        %v995 = vld [vmem:[%s700 + $0x1d8] sm:$0xff]
        %v996 = vld [vmem:[%s700 + $0x1e0] sm:$0xff]
        %v997 = vld [vmem:[%s700 + $0x1e8] sm:$0xff]
        %v998 = vld [vmem:[%s700 + $0x1f0] sm:$0xff]
        %v999 = vld [vmem:[%s700 + $0x1f8] sm:$0xff]
        %v1000 = vld [vmem:[%s700 + $0x200] sm:$0xff]
        %v1001 = vld [vmem:[%s700 + $0x208] sm:$0xff]
        %v1002 = vld [vmem:[%s700 + $0x210] sm:$0xff]
        %v1003 = vld [vmem:[%s700 + $0x218] sm:$0xff]
        %v1004 = vld [vmem:[%s700 + $0x220] sm:$0xff]
        %v1005 = vld [vmem:[%s700 + $0x228] sm:$0xff]
        %v1006 = vld [vmem:[%s700 + $0x230] sm:$0xff]
        %v1007 = vld [vmem:[%s700 + $0x238] sm:$0xff]
        %v1008 = vld [vmem:[%s700 + $0x240] sm:$0xff]
        %v1009 = vld [vmem:[%s700 + $0x248] sm:$0xff]
        %v1010 = vld [vmem:[%s700 + $0x250] sm:$0xff]
        %v1011 = vld [vmem:[%s700 + $0x258] sm:$0xff]
        %v1012 = vld [vmem:[%s700 + $0x260] sm:$0xff]
        %v1013 = vld [vmem:[%s700 + $0x268] sm:$0xff]
        %v1014 = vld [vmem:[%s700 + $0x270] sm:$0xff]
        %v1015 = vld [vmem:[%s700 + $0x278] sm:$0xff]
        %v1016 = vld [vmem:[%s700 + $0x280] sm:$0xff]
        %v1017 = vld [vmem:[%s700 + $0x288] sm:$0xff]
        %v1018 = vld [vmem:[%s700 + $0x290] sm:$0xff]
        %v1019 = vld [vmem:[%s700 + $0x298] sm:$0xff]
        %v1020 = vld [vmem:[%s700 + $0x2a0] sm:$0xff]
        %v1021 = vld [vmem:[%s700 + $0x2a8] sm:$0xff]
        %v1022 = vld [vmem:[%s700 + $0x2b0] sm:$0xff]
        %v1023 = vld [vmem:[%s700 + $0x2b8] sm:$0xff]
        %v1024 = vld [vmem:[%s700 + $0x2c0] sm:$0xff]
        %v1025 = vld [vmem:[%s700 + $0x2c8] sm:$0xff]
        %v1026 = vld [vmem:[%s700 + $0x2d0] sm:$0xff]
        %v1027 = vld [vmem:[%s700 + $0x2d8] sm:$0xff]
        %v1028 = vld [vmem:[%s700 + $0x2e0] sm:$0xff]
        %v1029 = vld [vmem:[%s700 + $0x2e8] sm:$0xff]
        %v1030 = vld [vmem:[%s700 + $0x2f0] sm:$0xff]
        %v1031 = vld [vmem:[%s700 + $0x2f8] sm:$0xff]
        %v1032 = vld [vmem:[%s700 + $0x300] sm:$0xff]
        %v1033 = vld [vmem:[%s700 + $0x308] sm:$0xff]
        %v1034 = vld [vmem:[%s700 + $0x310] sm:$0xff]
        %v1035 = vld [vmem:[%s700 + $0x318] sm:$0xff]
        %v1036 = vld [vmem:[%s700 + $0x320] sm:$0xff]
        %v1037 = vld [vmem:[%s700 + $0x328] sm:$0xff]
        %v1038 = vld [vmem:[%s700 + $0x330] sm:$0xff]
        %v1039 = vld [vmem:[%s700 + $0x338] sm:$0xff]
        %v1040 = vld [vmem:[%s700 + $0x340] sm:$0xff]
        %v1041 = vld [vmem:[%s700 + $0x348] sm:$0xff]
        %v1042 = vld [vmem:[%s700 + $0x350] sm:$0xff]
        %v1043 = vld [vmem:[%s700 + $0x358] sm:$0xff]
        %v1044 = vld [vmem:[%s700 + $0x360] sm:$0xff]
        %v1045 = vld [vmem:[%s700 + $0x368] sm:$0xff]
        %v1046 = vld [vmem:[%s700 + $0x370] sm:$0xff]
        %v1047 = vld [vmem:[%s700 + $0x378] sm:$0xff]
        %v1048 = vld [vmem:[%s700 + $0x380] sm:$0xff]
        %v1049 = vld [vmem:[%s700 + $0x388] sm:$0xff]
        %v1050 = vld [vmem:[%s700 + $0x390] sm:$0xff]
        %v1051 = vld [vmem:[%s700 + $0x398] sm:$0xff]
        %v1052 = vld [vmem:[%s700 + $0x3a0] sm:$0xff]
        %v1053 = vld [vmem:[%s700 + $0x3a8] sm:$0xff]
        %v1054 = vld [vmem:[%s700 + $0x3b0] sm:$0xff]
        %v1055 = vld [vmem:[%s700 + $0x3b8] sm:$0xff]
        %v1056 = vld [vmem:[%s700 + $0x3c0] sm:$0xff]
        %v1057 = vld [vmem:[%s700 + $0x3c8] sm:$0xff]
        %v1058 = vld [vmem:[%s700 + $0x3d0] sm:$0xff]
        %v1059 = vld [vmem:[%s700 + $0x3d8] sm:$0xff]
        %v1060 = vld [vmem:[%s700 + $0x3e0] sm:$0xff]
        %v1061 = vld [vmem:[%s700 + $0x3e8] sm:$0xff]
        %v1062 = vld [vmem:[%s700 + $0x3f0] sm:$0xff]
        %v1063 = vld [vmem:[%s700 + $0x3f8] sm:$0xff]
        %v1064 = vld [vmem:[%s700 + $0x400] sm:$0xff]
        %v1065 = vld [vmem:[%s700 + $0x408] sm:$0xff]
        %v1066 = vld [vmem:[%s700 + $0x410] sm:$0xff]
        %v1067 = vld [vmem:[%s700 + $0x418] sm:$0xff]
        %v1068 = vld [vmem:[%s700 + $0x420] sm:$0xff]
        %v1069 = vld [vmem:[%s700 + $0x428] sm:$0xff]
        %v1070 = vld [vmem:[%s700 + $0x430] sm:$0xff]
        %v1071 = vld [vmem:[%s700 + $0x438] sm:$0xff]
        %v1072 = vld [vmem:[%s700 + $0x440] sm:$0xff]
        %v1073 = vld [vmem:[%s700 + $0x448] sm:$0xff]
        %v1074 = vld [vmem:[%s700 + $0x450] sm:$0xff]
        %v1075 = vld [vmem:[%s700 + $0x458] sm:$0xff]
        %v1076 = vld [vmem:[%s700 + $0x460] sm:$0xff]
        %v1077 = vld [vmem:[%s700 + $0x468] sm:$0xff]
        %v1078 = vld [vmem:[%s700 + $0x470] sm:$0xff]
        %v1079 = vld [vmem:[%s700 + $0x478] sm:$0xff]
        %v1080 = vld [vmem:[%s700 + $0x480] sm:$0xff]
        %v1081 = vld [vmem:[%s700 + $0x488] sm:$0xff]
        %v1082 = vld [vmem:[%s700 + $0x490] sm:$0xff]
        %v1083 = vld [vmem:[%s700 + $0x498] sm:$0xff]
        %v1084 = vld [vmem:[%s700 + $0x4a0] sm:$0xff]
        %v1085 = vld [vmem:[%s700 + $0x4a8] sm:$0xff]
        %v1086 = vld [vmem:[%s700 + $0x4b0] sm:$0xff]
        %v1087 = vld [vmem:[%s700 + $0x4b8] sm:$0xff]
        %v1088 = vld [vmem:[%s700 + $0x4c0] sm:$0xff]
        %v1089 = vld [vmem:[%s700 + $0x4c8] sm:$0xff]
        %v1090 = vld [vmem:[%s700 + $0x4d0] sm:$0xff]
        %v1091 = vld [vmem:[%s700 + $0x4d8] sm:$0xff]
        %v1092 = vld [vmem:[%s700 + $0x4e0] sm:$0xff]
        %v1093 = vld [vmem:[%s700 + $0x4e8] sm:$0xff]
        %v1094 = vld [vmem:[%s700 + $0x4f0] sm:$0xff]
        %v1095 = vld [vmem:[%s700 + $0x4f8] sm:$0xff]
        %v1096 = vld [vmem:[%s700 + $0x500] sm:$0xff]
        %v1097 = vld [vmem:[%s700 + $0x508] sm:$0xff]
        %v1098 = vld [vmem:[%s700 + $0x510] sm:$0xff]
        %v1099 = vld [vmem:[%s700 + $0x518] sm:$0xff]
        %v1100 = vld [vmem:[%s700 + $0x520] sm:$0xff]
        %v1101 = vld [vmem:[%s700 + $0x528] sm:$0xff]
        %v1102 = vld [vmem:[%s700 + $0x530] sm:$0xff]
        %v1103 = vld [vmem:[%s700 + $0x538] sm:$0xff]
        %v1104 = vld [vmem:[%s700 + $0x540] sm:$0xff]
        %v1105 = vld [vmem:[%s700 + $0x548] sm:$0xff]
        %v1106 = vld [vmem:[%s700 + $0x550] sm:$0xff]
        %v1107 = vld [vmem:[%s700 + $0x558] sm:$0xff]
        %v1108 = vld [vmem:[%s700 + $0x560] sm:$0xff]
        %v1109 = vld [vmem:[%s700 + $0x568] sm:$0xff]
        %v1110 = vld [vmem:[%s700 + $0x570] sm:$0xff]
        %v1111 = vld [vmem:[%s700 + $0x578] sm:$0xff]
        %v1112 = vld [vmem:[%s700 + $0x580] sm:$0xff]
        %v1113 = vld [vmem:[%s700 + $0x588] sm:$0xff]
        %v1114 = vld [vmem:[%s700 + $0x590] sm:$0xff]
        %v1115 = vld [vmem:[%s700 + $0x598] sm:$0xff]
        %v1116 = vld [vmem:[%s700 + $0x5a0] sm:$0xff]
        %v1117 = vld [vmem:[%s700 + $0x5a8] sm:$0xff]
        %v1118 = vld [vmem:[%s700 + $0x5b0] sm:$0xff]
        %v1119 = vld [vmem:[%s700 + $0x5b8] sm:$0xff]
        %v1120 = vld [vmem:[%s700 + $0x5c0] sm:$0xff]
        %v1121 = vld [vmem:[%s700 + $0x5c8] sm:$0xff]
        %v1122 = vld [vmem:[%s700 + $0x5d0] sm:$0xff]
        %v1123 = vld [vmem:[%s700 + $0x5d8] sm:$0xff]
        %v1124 = vld [vmem:[%s700 + $0x5e0] sm:$0xff]
        %v1125 = vld [vmem:[%s700 + $0x5e8] sm:$0xff]
        %v1126 = vld [vmem:[%s700 + $0x5f0] sm:$0xff]
        %v1127 = vld [vmem:[%s700 + $0x5f8] sm:$0xff]
        %v1128 = vpack.c.bf16 %v931, %v929
        %v1129 = vpack.c.bf16 %v932, %v930
        %v1130 = vld [vmem:[%s709] sm:$0xff]
        %v1131 = vld [vmem:[%s709 + $0x8] sm:$0xf]
        %v1134 = vlaneseq
        %v1135 = vshrl.u32 %v1134, 7
        %v1136 = vsub.s32 0, %v1135
        %v1137 = vrot.slane %v1130, %v1136
        %v1138 = vlaneseq
        %v1139 = vshrl.u32 %v1138, 7
        %v1140 = vsub.s32 1, %v1139
        %v1141 = vrot.slane %v1130, %v1140
        %v1142 = vlaneseq
        %v1143 = vshrl.u32 %v1142, 7
        %v1144 = vsub.s32 2, %v1143
        %v1145 = vrot.slane %v1130, %v1144
        %v1146 = vlaneseq
        %v1147 = vshrl.u32 %v1146, 7
        %v1148 = vsub.s32 3, %v1147
        %v1149 = vrot.slane %v1130, %v1148
        %v1150 = vlaneseq
        %v1151 = vshrl.u32 %v1150, 7
        %v1152 = vsub.s32 4, %v1151
        %v1153 = vrot.slane %v1130, %v1152
        %v1154 = vlaneseq
        %v1155 = vshrl.u32 %v1154, 7
        %v1156 = vsub.s32 5, %v1155
        %v1157 = vrot.slane %v1130, %v1156
        %v1158 = vlaneseq
        %v1159 = vshrl.u32 %v1158, 7
        %v1160 = vsub.s32 6, %v1159
        %v1161 = vrot.slane %v1130, %v1160
        %v1162 = vlaneseq
        %v1163 = vshrl.u32 %v1162, 7
        %v1164 = vsub.s32 7, %v1163
        %v1165 = vrot.slane %v1130, %v1164
        %v1166 = vlaneseq
        %v1167 = vshrl.u32 %v1166, 7
        %v1168 = vsub.s32 0, %v1167
        %v1169 = vrot.slane %v1131, %v1168
        %v1170 = vlaneseq
        %v1171 = vshrl.u32 %v1170, 7
        %v1172 = vsub.s32 1, %v1171
        %v1173 = vrot.slane %v1131, %v1172
        %v1174 = vlaneseq
        %v1175 = vshrl.u32 %v1174, 7
        %v1176 = vsub.s32 2, %v1175
        %v1177 = vrot.slane %v1131, %v1176
        %v1178 = vlaneseq
        %v1179 = vshrl.u32 %v1178, 7
        %v1180 = vsub.s32 3, %v1179
        %v1181 = vrot.slane %v1131, %v1180
        %v1386 = vunpack.c.l.b16 %v936
        %v1387 = vunpack.c.h.b16 %v936
        %v1388 = vunpack.c.l.b16 %v937
        %v1389 = vunpack.c.h.b16 %v937
        %v1390 = vunpack.c.l.b16 %v938
        %v1391 = vunpack.c.h.b16 %v938
        %v1392 = vunpack.c.l.b16 %v939
        %v1393 = vunpack.c.h.b16 %v939
        %v1394 = vunpack.c.l.b16 %v940
        %v1395 = vunpack.c.h.b16 %v940
        %v1396 = vunpack.c.l.b16 %v941
        %v1397 = vunpack.c.h.b16 %v941
        %v1398 = vunpack.c.l.b16 %v942
        %v1399 = vunpack.c.h.b16 %v942
        %v1400 = vunpack.c.l.b16 %v943
        %v1401 = vunpack.c.h.b16 %v943
        %v1402 = vunpack.c.l.b16 %v944
        %v1403 = vunpack.c.h.b16 %v944
        %v1404 = vunpack.c.l.b16 %v945
        %v1405 = vunpack.c.h.b16 %v945
        %v1406 = vunpack.c.l.b16 %v946
        %v1407 = vunpack.c.h.b16 %v946
        %v1408 = vunpack.c.l.b16 %v947
        %v1409 = vunpack.c.h.b16 %v947
        %v1410 = vunpack.c.l.b16 %v948
        %v1411 = vunpack.c.h.b16 %v948
        %v1412 = vunpack.c.l.b16 %v949
        %v1413 = vunpack.c.h.b16 %v949
        %v1414 = vunpack.c.l.b16 %v950
        %v1415 = vunpack.c.h.b16 %v950
        %v1416 = vunpack.c.l.b16 %v951
        %v1417 = vunpack.c.h.b16 %v951
        %v1418 = vunpack.c.l.b16 %v952
        %v1419 = vunpack.c.h.b16 %v952
        %v1420 = vunpack.c.l.b16 %v953
        %v1421 = vunpack.c.h.b16 %v953
        %v1422 = vunpack.c.l.b16 %v954
        %v1423 = vunpack.c.h.b16 %v954
        %v1424 = vunpack.c.l.b16 %v955
        %v1425 = vunpack.c.h.b16 %v955
        %v1426 = vunpack.c.l.b16 %v956
        %v1427 = vunpack.c.h.b16 %v956
        %v1428 = vunpack.c.l.b16 %v957
        %v1429 = vunpack.c.h.b16 %v957
        %v1430 = vunpack.c.l.b16 %v958
        %v1431 = vunpack.c.h.b16 %v958
        %v1432 = vunpack.c.l.b16 %v959
        %v1433 = vunpack.c.h.b16 %v959
        %v1434 = vunpack.c.l.b16 %v960
        %v1435 = vunpack.c.h.b16 %v960
        %v1436 = vunpack.c.l.b16 %v961
        %v1437 = vunpack.c.h.b16 %v961
        %v1438 = vunpack.c.l.b16 %v962
        %v1439 = vunpack.c.h.b16 %v962
        %v1440 = vunpack.c.l.b16 %v963
        %v1441 = vunpack.c.h.b16 %v963
        %v1442 = vunpack.c.l.b16 %v964
        %v1443 = vunpack.c.h.b16 %v964
        %v1444 = vunpack.c.l.b16 %v965
        %v1445 = vunpack.c.h.b16 %v965
        %v1446 = vunpack.c.l.b16 %v966
        %v1447 = vunpack.c.h.b16 %v966
        %v1448 = vunpack.c.l.b16 %v967
        %v1449 = vunpack.c.h.b16 %v967
        %v1450 = vunpack.c.l.b16 %v968
        %v1451 = vunpack.c.h.b16 %v968
        %v1452 = vunpack.c.l.b16 %v969
        %v1453 = vunpack.c.h.b16 %v969
        %v1454 = vunpack.c.l.b16 %v970
        %v1455 = vunpack.c.h.b16 %v970
        %v1456 = vunpack.c.l.b16 %v971
        %v1457 = vunpack.c.h.b16 %v971
        %v1458 = vunpack.c.l.b16 %v972
        %v1459 = vunpack.c.h.b16 %v972
        %v1460 = vunpack.c.l.b16 %v973
        %v1461 = vunpack.c.h.b16 %v973
        %v1462 = vunpack.c.l.b16 %v974
        %v1463 = vunpack.c.h.b16 %v974
        %v1464 = vunpack.c.l.b16 %v975
        %v1465 = vunpack.c.h.b16 %v975
        %v1466 = vunpack.c.l.b16 %v976
        %v1467 = vunpack.c.h.b16 %v976
        %v1468 = vunpack.c.l.b16 %v977
        %v1469 = vunpack.c.h.b16 %v977
        %v1470 = vunpack.c.l.b16 %v978
        %v1471 = vunpack.c.h.b16 %v978
        %v1472 = vunpack.c.l.b16 %v979
        %v1473 = vunpack.c.h.b16 %v979
        %v1474 = vunpack.c.l.b16 %v980
        %v1475 = vunpack.c.h.b16 %v980
        %v1476 = vunpack.c.l.b16 %v981
        %v1477 = vunpack.c.h.b16 %v981
        %v1478 = vunpack.c.l.b16 %v982
        %v1479 = vunpack.c.h.b16 %v982
        %v1480 = vunpack.c.l.b16 %v983
        %v1481 = vunpack.c.h.b16 %v983
        %v1482 = vunpack.c.l.b16 %v984
        %v1483 = vunpack.c.h.b16 %v984
        %v1484 = vunpack.c.l.b16 %v985
        %v1485 = vunpack.c.h.b16 %v985
        %v1486 = vunpack.c.l.b16 %v986
        %v1487 = vunpack.c.h.b16 %v986
        %v1488 = vunpack.c.l.b16 %v987
        %v1489 = vunpack.c.h.b16 %v987
        %v1490 = vunpack.c.l.b16 %v988
        %v1491 = vunpack.c.h.b16 %v988
        %v1492 = vunpack.c.l.b16 %v989
        %v1493 = vunpack.c.h.b16 %v989
        %v1494 = vunpack.c.l.b16 %v990
        %v1495 = vunpack.c.h.b16 %v990
        %v1496 = vunpack.c.l.b16 %v991
        %v1497 = vunpack.c.h.b16 %v991
        %v1498 = vunpack.c.l.b16 %v992
        %v1499 = vunpack.c.h.b16 %v992
        %v1500 = vunpack.c.l.b16 %v993
        %v1501 = vunpack.c.h.b16 %v993
        %v1502 = vunpack.c.l.b16 %v994
        %v1503 = vunpack.c.h.b16 %v994
        %v1504 = vunpack.c.l.b16 %v995
        %v1505 = vunpack.c.h.b16 %v995
        %v1506 = vunpack.c.l.b16 %v996
        %v1507 = vunpack.c.h.b16 %v996
        %v1508 = vunpack.c.l.b16 %v997
        %v1509 = vunpack.c.h.b16 %v997
        %v1510 = vunpack.c.l.b16 %v998
        %v1511 = vunpack.c.h.b16 %v998
        %v1512 = vunpack.c.l.b16 %v999
        %v1513 = vunpack.c.h.b16 %v999
        %v1514 = vunpack.c.l.b16 %v1000
        %v1515 = vunpack.c.h.b16 %v1000
        %v1516 = vunpack.c.l.b16 %v1001
        %v1517 = vunpack.c.h.b16 %v1001
        %v1518 = vunpack.c.l.b16 %v1002
        %v1519 = vunpack.c.h.b16 %v1002
        %v1520 = vunpack.c.l.b16 %v1003
        %v1521 = vunpack.c.h.b16 %v1003
        %v1522 = vunpack.c.l.b16 %v1004
        %v1523 = vunpack.c.h.b16 %v1004
        %v1524 = vunpack.c.l.b16 %v1005
        %v1525 = vunpack.c.h.b16 %v1005
        %v1526 = vunpack.c.l.b16 %v1006
        %v1527 = vunpack.c.h.b16 %v1006
        %v1528 = vunpack.c.l.b16 %v1007
        %v1529 = vunpack.c.h.b16 %v1007
        %v1530 = vunpack.c.l.b16 %v1008
        %v1531 = vunpack.c.h.b16 %v1008
        %v1532 = vunpack.c.l.b16 %v1009
        %v1533 = vunpack.c.h.b16 %v1009
        %v1534 = vunpack.c.l.b16 %v1010
        %v1535 = vunpack.c.h.b16 %v1010
        %v1536 = vunpack.c.l.b16 %v1011
        %v1537 = vunpack.c.h.b16 %v1011
        %v1538 = vunpack.c.l.b16 %v1012
        %v1539 = vunpack.c.h.b16 %v1012
        %v1540 = vunpack.c.l.b16 %v1013
        %v1541 = vunpack.c.h.b16 %v1013
        %v1542 = vunpack.c.l.b16 %v1014
        %v1543 = vunpack.c.h.b16 %v1014
        %v1544 = vunpack.c.l.b16 %v1015
        %v1545 = vunpack.c.h.b16 %v1015
        %v1546 = vunpack.c.l.b16 %v1016
        %v1547 = vunpack.c.h.b16 %v1016
        %v1548 = vunpack.c.l.b16 %v1017
        %v1549 = vunpack.c.h.b16 %v1017
        %v1550 = vunpack.c.l.b16 %v1018
        %v1551 = vunpack.c.h.b16 %v1018
        %v1552 = vunpack.c.l.b16 %v1019
        %v1553 = vunpack.c.h.b16 %v1019
        %v1554 = vunpack.c.l.b16 %v1020
        %v1555 = vunpack.c.h.b16 %v1020
        %v1556 = vunpack.c.l.b16 %v1021
        %v1557 = vunpack.c.h.b16 %v1021
        %v1558 = vunpack.c.l.b16 %v1022
        %v1559 = vunpack.c.h.b16 %v1022
        %v1560 = vunpack.c.l.b16 %v1023
        %v1561 = vunpack.c.h.b16 %v1023
        %v1562 = vunpack.c.l.b16 %v1024
        %v1563 = vunpack.c.h.b16 %v1024
        %v1564 = vunpack.c.l.b16 %v1025
        %v1565 = vunpack.c.h.b16 %v1025
        %v1566 = vunpack.c.l.b16 %v1026
        %v1567 = vunpack.c.h.b16 %v1026
        %v1568 = vunpack.c.l.b16 %v1027
        %v1569 = vunpack.c.h.b16 %v1027
        %v1570 = vunpack.c.l.b16 %v1028
        %v1571 = vunpack.c.h.b16 %v1028
        %v1572 = vunpack.c.l.b16 %v1029
        %v1573 = vunpack.c.h.b16 %v1029
        %v1574 = vunpack.c.l.b16 %v1030
        %v1575 = vunpack.c.h.b16 %v1030
        %v1576 = vunpack.c.l.b16 %v1031
        %v1577 = vunpack.c.h.b16 %v1031
        %v1578 = vunpack.c.l.b16 %v1032
        %v1579 = vunpack.c.h.b16 %v1032
        %v1580 = vunpack.c.l.b16 %v1033
        %v1581 = vunpack.c.h.b16 %v1033
        %v1582 = vunpack.c.l.b16 %v1034
        %v1583 = vunpack.c.h.b16 %v1034
        %v1584 = vunpack.c.l.b16 %v1035
        %v1585 = vunpack.c.h.b16 %v1035
        %v1586 = vunpack.c.l.b16 %v1036
        %v1587 = vunpack.c.h.b16 %v1036
        %v1588 = vunpack.c.l.b16 %v1037
        %v1589 = vunpack.c.h.b16 %v1037
        %v1590 = vunpack.c.l.b16 %v1038
        %v1591 = vunpack.c.h.b16 %v1038
        %v1592 = vunpack.c.l.b16 %v1039
        %v1593 = vunpack.c.h.b16 %v1039
        %v1594 = vunpack.c.l.b16 %v1040
        %v1595 = vunpack.c.h.b16 %v1040
        %v1596 = vunpack.c.l.b16 %v1041
        %v1597 = vunpack.c.h.b16 %v1041
        %v1598 = vunpack.c.l.b16 %v1042
        %v1599 = vunpack.c.h.b16 %v1042
        %v1600 = vunpack.c.l.b16 %v1043
        %v1601 = vunpack.c.h.b16 %v1043
        %v1602 = vunpack.c.l.b16 %v1044
        %v1603 = vunpack.c.h.b16 %v1044
        %v1604 = vunpack.c.l.b16 %v1045
        %v1605 = vunpack.c.h.b16 %v1045
        %v1606 = vunpack.c.l.b16 %v1046
        %v1607 = vunpack.c.h.b16 %v1046
        %v1608 = vunpack.c.l.b16 %v1047
        %v1609 = vunpack.c.h.b16 %v1047
        %v1610 = vunpack.c.l.b16 %v1048
        %v1611 = vunpack.c.h.b16 %v1048
        %v1612 = vunpack.c.l.b16 %v1049
        %v1613 = vunpack.c.h.b16 %v1049
        %v1614 = vunpack.c.l.b16 %v1050
        %v1615 = vunpack.c.h.b16 %v1050
        %v1616 = vunpack.c.l.b16 %v1051
        %v1617 = vunpack.c.h.b16 %v1051
        %v1618 = vunpack.c.l.b16 %v1052
        %v1619 = vunpack.c.h.b16 %v1052
        %v1620 = vunpack.c.l.b16 %v1053
        %v1621 = vunpack.c.h.b16 %v1053
        %v1622 = vunpack.c.l.b16 %v1054
        %v1623 = vunpack.c.h.b16 %v1054
        %v1624 = vunpack.c.l.b16 %v1055
        %v1625 = vunpack.c.h.b16 %v1055
        %v1626 = vunpack.c.l.b16 %v1056
        %v1627 = vunpack.c.h.b16 %v1056
        %v1628 = vunpack.c.l.b16 %v1057
        %v1629 = vunpack.c.h.b16 %v1057
        %v1630 = vunpack.c.l.b16 %v1058
        %v1631 = vunpack.c.h.b16 %v1058
        %v1632 = vunpack.c.l.b16 %v1059
        %v1633 = vunpack.c.h.b16 %v1059
        %v1634 = vunpack.c.l.b16 %v1060
        %v1635 = vunpack.c.h.b16 %v1060
        %v1636 = vunpack.c.l.b16 %v1061
        %v1637 = vunpack.c.h.b16 %v1061
        %v1638 = vunpack.c.l.b16 %v1062
        %v1639 = vunpack.c.h.b16 %v1062
        %v1640 = vunpack.c.l.b16 %v1063
        %v1641 = vunpack.c.h.b16 %v1063
        %v1642 = vunpack.c.l.b16 %v1064
        %v1643 = vunpack.c.h.b16 %v1064
        %v1644 = vunpack.c.l.b16 %v1065
        %v1645 = vunpack.c.h.b16 %v1065
        %v1646 = vunpack.c.l.b16 %v1066
        %v1647 = vunpack.c.h.b16 %v1066
        %v1648 = vunpack.c.l.b16 %v1067
        %v1649 = vunpack.c.h.b16 %v1067
        %v1650 = vunpack.c.l.b16 %v1068
        %v1651 = vunpack.c.h.b16 %v1068
        %v1652 = vunpack.c.l.b16 %v1069
        %v1653 = vunpack.c.h.b16 %v1069
        %v1654 = vunpack.c.l.b16 %v1070
        %v1655 = vunpack.c.h.b16 %v1070
        %v1656 = vunpack.c.l.b16 %v1071
        %v1657 = vunpack.c.h.b16 %v1071
        %v1658 = vunpack.c.l.b16 %v1072
        %v1659 = vunpack.c.h.b16 %v1072
        %v1660 = vunpack.c.l.b16 %v1073
        %v1661 = vunpack.c.h.b16 %v1073
        %v1662 = vunpack.c.l.b16 %v1074
        %v1663 = vunpack.c.h.b16 %v1074
        %v1664 = vunpack.c.l.b16 %v1075
        %v1665 = vunpack.c.h.b16 %v1075
        %v1666 = vunpack.c.l.b16 %v1076
        %v1667 = vunpack.c.h.b16 %v1076
        %v1668 = vunpack.c.l.b16 %v1077
        %v1669 = vunpack.c.h.b16 %v1077
        %v1670 = vunpack.c.l.b16 %v1078
        %v1671 = vunpack.c.h.b16 %v1078
        %v1672 = vunpack.c.l.b16 %v1079
        %v1673 = vunpack.c.h.b16 %v1079
        %v1674 = vunpack.c.l.b16 %v1080
        %v1675 = vunpack.c.h.b16 %v1080
        %v1676 = vunpack.c.l.b16 %v1081
        %v1677 = vunpack.c.h.b16 %v1081
        %v1678 = vunpack.c.l.b16 %v1082
        %v1679 = vunpack.c.h.b16 %v1082
        %v1680 = vunpack.c.l.b16 %v1083
        %v1681 = vunpack.c.h.b16 %v1083
        %v1682 = vunpack.c.l.b16 %v1084
        %v1683 = vunpack.c.h.b16 %v1084
        %v1684 = vunpack.c.l.b16 %v1085
        %v1685 = vunpack.c.h.b16 %v1085
        %v1686 = vunpack.c.l.b16 %v1086
        %v1687 = vunpack.c.h.b16 %v1086
        %v1688 = vunpack.c.l.b16 %v1087
        %v1689 = vunpack.c.h.b16 %v1087
        %v1690 = vunpack.c.l.b16 %v1088
        %v1691 = vunpack.c.h.b16 %v1088
        %v1692 = vunpack.c.l.b16 %v1089
        %v1693 = vunpack.c.h.b16 %v1089
        %v1694 = vunpack.c.l.b16 %v1090
        %v1695 = vunpack.c.h.b16 %v1090
        %v1696 = vunpack.c.l.b16 %v1091
        %v1697 = vunpack.c.h.b16 %v1091
        %v1698 = vunpack.c.l.b16 %v1092
        %v1699 = vunpack.c.h.b16 %v1092
        %v1700 = vunpack.c.l.b16 %v1093
        %v1701 = vunpack.c.h.b16 %v1093
        %v1702 = vunpack.c.l.b16 %v1094
        %v1703 = vunpack.c.h.b16 %v1094
        %v1704 = vunpack.c.l.b16 %v1095
        %v1705 = vunpack.c.h.b16 %v1095
        %v1706 = vunpack.c.l.b16 %v1096
        %v1707 = vunpack.c.h.b16 %v1096
        %v1708 = vunpack.c.l.b16 %v1097
        %v1709 = vunpack.c.h.b16 %v1097
        %v1710 = vunpack.c.l.b16 %v1098
        %v1711 = vunpack.c.h.b16 %v1098
        %v1712 = vunpack.c.l.b16 %v1099
        %v1713 = vunpack.c.h.b16 %v1099
        %v1714 = vunpack.c.l.b16 %v1100
        %v1715 = vunpack.c.h.b16 %v1100
        %v1716 = vunpack.c.l.b16 %v1101
        %v1717 = vunpack.c.h.b16 %v1101
        %v1718 = vunpack.c.l.b16 %v1102
        %v1719 = vunpack.c.h.b16 %v1102
        %v1720 = vunpack.c.l.b16 %v1103
        %v1721 = vunpack.c.h.b16 %v1103
        %v1722 = vunpack.c.l.b16 %v1104
        %v1723 = vunpack.c.h.b16 %v1104
        %v1724 = vunpack.c.l.b16 %v1105
        %v1725 = vunpack.c.h.b16 %v1105
        %v1726 = vunpack.c.l.b16 %v1106
        %v1727 = vunpack.c.h.b16 %v1106
        %v1728 = vunpack.c.l.b16 %v1107
        %v1729 = vunpack.c.h.b16 %v1107
        %v1730 = vunpack.c.l.b16 %v1108
        %v1731 = vunpack.c.h.b16 %v1108
        %v1732 = vunpack.c.l.b16 %v1109
        %v1733 = vunpack.c.h.b16 %v1109
        %v1734 = vunpack.c.l.b16 %v1110
        %v1735 = vunpack.c.h.b16 %v1110
        %v1736 = vunpack.c.l.b16 %v1111
        %v1737 = vunpack.c.h.b16 %v1111
        %v1738 = vunpack.c.l.b16 %v1112
        %v1739 = vunpack.c.h.b16 %v1112
        %v1740 = vunpack.c.l.b16 %v1113
        %v1741 = vunpack.c.h.b16 %v1113
        %v1742 = vunpack.c.l.b16 %v1114
        %v1743 = vunpack.c.h.b16 %v1114
        %v1744 = vunpack.c.l.b16 %v1115
        %v1745 = vunpack.c.h.b16 %v1115
        %v1746 = vunpack.c.l.b16 %v1116
        %v1747 = vunpack.c.h.b16 %v1116
        %v1748 = vunpack.c.l.b16 %v1117
        %v1749 = vunpack.c.h.b16 %v1117
        %v1750 = vunpack.c.l.b16 %v1118
        %v1751 = vunpack.c.h.b16 %v1118
        %v1752 = vunpack.c.l.b16 %v1119
        %v1753 = vunpack.c.h.b16 %v1119
        %v1754 = vunpack.c.l.b16 %v1120
        %v1755 = vunpack.c.h.b16 %v1120
        %v1756 = vunpack.c.l.b16 %v1121
        %v1757 = vunpack.c.h.b16 %v1121
        %v1758 = vunpack.c.l.b16 %v1122
        %v1759 = vunpack.c.h.b16 %v1122
        %v1760 = vunpack.c.l.b16 %v1123
        %v1761 = vunpack.c.h.b16 %v1123
        %v1762 = vunpack.c.l.b16 %v1124
        %v1763 = vunpack.c.h.b16 %v1124
        %v1764 = vunpack.c.l.b16 %v1125
        %v1765 = vunpack.c.h.b16 %v1125
        %v1766 = vunpack.c.l.b16 %v1126
        %v1767 = vunpack.c.h.b16 %v1126
        %v1768 = vunpack.c.l.b16 %v1127
        %v1769 = vunpack.c.h.b16 %v1127
        %v1770 = vpack.c.b16 %v1398, %v1386
        %v1771 = vpack.c.b16 %v1399, %v1387
        %v1772 = vpack.c.b16 %v1400, %v1388
        %v1773 = vpack.c.b16 %v1401, %v1389
        %v1774 = vpack.c.b16 %v1402, %v1390
        %v1775 = vpack.c.b16 %v1403, %v1391
        %v1776 = vpack.c.b16 %v1404, %v1392
        %v1777 = vpack.c.b16 %v1405, %v1393
        %v1778 = vpack.c.b16 %v1406, %v1394
        %v1779 = vpack.c.b16 %v1407, %v1395
        %v1780 = vpack.c.b16 %v1408, %v1396
        %v1781 = vpack.c.b16 %v1409, %v1397
        %v1782 = vpack.c.b16 %v1422, %v1410
        %v1783 = vpack.c.b16 %v1423, %v1411
        %v1784 = vpack.c.b16 %v1424, %v1412
        %v1785 = vpack.c.b16 %v1425, %v1413
        %v1786 = vpack.c.b16 %v1426, %v1414
        %v1787 = vpack.c.b16 %v1427, %v1415
        %v1788 = vpack.c.b16 %v1428, %v1416
        %v1789 = vpack.c.b16 %v1429, %v1417
        %v1790 = vpack.c.b16 %v1430, %v1418
        %v1791 = vpack.c.b16 %v1431, %v1419
        %v1792 = vpack.c.b16 %v1432, %v1420
        %v1793 = vpack.c.b16 %v1433, %v1421
        %v1794 = vpack.c.b16 %v1446, %v1434
        %v1795 = vpack.c.b16 %v1447, %v1435
        %v1796 = vpack.c.b16 %v1448, %v1436
        %v1797 = vpack.c.b16 %v1449, %v1437
        %v1798 = vpack.c.b16 %v1450, %v1438
        %v1799 = vpack.c.b16 %v1451, %v1439
        %v1800 = vpack.c.b16 %v1452, %v1440
        %v1801 = vpack.c.b16 %v1453, %v1441
        %v1802 = vpack.c.b16 %v1454, %v1442
        %v1803 = vpack.c.b16 %v1455, %v1443
        %v1804 = vpack.c.b16 %v1456, %v1444
        %v1805 = vpack.c.b16 %v1457, %v1445
        %v1806 = vpack.c.b16 %v1470, %v1458
        %v1807 = vpack.c.b16 %v1471, %v1459
        %v1808 = vpack.c.b16 %v1472, %v1460
        %v1809 = vpack.c.b16 %v1473, %v1461
        %v1810 = vpack.c.b16 %v1474, %v1462
        %v1811 = vpack.c.b16 %v1475, %v1463
        %v1812 = vpack.c.b16 %v1476, %v1464
        %v1813 = vpack.c.b16 %v1477, %v1465
        %v1814 = vpack.c.b16 %v1478, %v1466
        %v1815 = vpack.c.b16 %v1479, %v1467
        %v1816 = vpack.c.b16 %v1480, %v1468
        %v1817 = vpack.c.b16 %v1481, %v1469
        %v1818 = vpack.c.b16 %v1494, %v1482
        %v1819 = vpack.c.b16 %v1495, %v1483
        %v1820 = vpack.c.b16 %v1496, %v1484
        %v1821 = vpack.c.b16 %v1497, %v1485
        %v1822 = vpack.c.b16 %v1498, %v1486
        %v1823 = vpack.c.b16 %v1499, %v1487
        %v1824 = vpack.c.b16 %v1500, %v1488
        %v1825 = vpack.c.b16 %v1501, %v1489
        %v1826 = vpack.c.b16 %v1502, %v1490
        %v1827 = vpack.c.b16 %v1503, %v1491
        %v1828 = vpack.c.b16 %v1504, %v1492
        %v1829 = vpack.c.b16 %v1505, %v1493
        %v1830 = vpack.c.b16 %v1518, %v1506
        %v1831 = vpack.c.b16 %v1519, %v1507
        %v1832 = vpack.c.b16 %v1520, %v1508
        %v1833 = vpack.c.b16 %v1521, %v1509
        %v1834 = vpack.c.b16 %v1522, %v1510
        %v1835 = vpack.c.b16 %v1523, %v1511
        %v1836 = vpack.c.b16 %v1524, %v1512
        %v1837 = vpack.c.b16 %v1525, %v1513
        %v1838 = vpack.c.b16 %v1526, %v1514
        %v1839 = vpack.c.b16 %v1527, %v1515
        %v1840 = vpack.c.b16 %v1528, %v1516
        %v1841 = vpack.c.b16 %v1529, %v1517
        %v1842 = vpack.c.b16 %v1542, %v1530
        %v1843 = vpack.c.b16 %v1543, %v1531
        %v1844 = vpack.c.b16 %v1544, %v1532
        %v1845 = vpack.c.b16 %v1545, %v1533
        %v1846 = vpack.c.b16 %v1546, %v1534
        %v1847 = vpack.c.b16 %v1547, %v1535
        %v1848 = vpack.c.b16 %v1548, %v1536
        %v1849 = vpack.c.b16 %v1549, %v1537
        %v1850 = vpack.c.b16 %v1550, %v1538
        %v1851 = vpack.c.b16 %v1551, %v1539
        %v1852 = vpack.c.b16 %v1552, %v1540
        %v1853 = vpack.c.b16 %v1553, %v1541
        %v1854 = vpack.c.b16 %v1566, %v1554
        %v1855 = vpack.c.b16 %v1567, %v1555
        %v1856 = vpack.c.b16 %v1568, %v1556
        %v1857 = vpack.c.b16 %v1569, %v1557
        %v1858 = vpack.c.b16 %v1570, %v1558
        %v1859 = vpack.c.b16 %v1571, %v1559
        %v1860 = vpack.c.b16 %v1572, %v1560
        %v1861 = vpack.c.b16 %v1573, %v1561
        %v1862 = vpack.c.b16 %v1574, %v1562
        %v1863 = vpack.c.b16 %v1575, %v1563
        %v1864 = vpack.c.b16 %v1576, %v1564
        %v1865 = vpack.c.b16 %v1577, %v1565
        %v1866 = vpack.c.b16 %v1590, %v1578
        %v1867 = vpack.c.b16 %v1591, %v1579
        %v1868 = vpack.c.b16 %v1592, %v1580
        %v1869 = vpack.c.b16 %v1593, %v1581
        %v1870 = vpack.c.b16 %v1594, %v1582
        %v1871 = vpack.c.b16 %v1595, %v1583
        %v1872 = vpack.c.b16 %v1596, %v1584
        %v1873 = vpack.c.b16 %v1597, %v1585
        %v1874 = vpack.c.b16 %v1598, %v1586
        %v1875 = vpack.c.b16 %v1599, %v1587
        %v1876 = vpack.c.b16 %v1600, %v1588
        %v1877 = vpack.c.b16 %v1601, %v1589
        %v1878 = vpack.c.b16 %v1614, %v1602
        %v1879 = vpack.c.b16 %v1615, %v1603
        %v1880 = vpack.c.b16 %v1616, %v1604
        %v1881 = vpack.c.b16 %v1617, %v1605
        %v1882 = vpack.c.b16 %v1618, %v1606
        %v1883 = vpack.c.b16 %v1619, %v1607
        %v1884 = vpack.c.b16 %v1620, %v1608
        %v1885 = vpack.c.b16 %v1621, %v1609
        %v1886 = vpack.c.b16 %v1622, %v1610
        %v1887 = vpack.c.b16 %v1623, %v1611
        %v1888 = vpack.c.b16 %v1624, %v1612
        %v1889 = vpack.c.b16 %v1625, %v1613
        %v1890 = vpack.c.b16 %v1638, %v1626
        %v1891 = vpack.c.b16 %v1639, %v1627
        %v1892 = vpack.c.b16 %v1640, %v1628
        %v1893 = vpack.c.b16 %v1641, %v1629
        %v1894 = vpack.c.b16 %v1642, %v1630
        %v1895 = vpack.c.b16 %v1643, %v1631
        %v1896 = vpack.c.b16 %v1644, %v1632
        %v1897 = vpack.c.b16 %v1645, %v1633
        %v1898 = vpack.c.b16 %v1646, %v1634
        %v1899 = vpack.c.b16 %v1647, %v1635
        %v1900 = vpack.c.b16 %v1648, %v1636
        %v1901 = vpack.c.b16 %v1649, %v1637
        %v1902 = vpack.c.b16 %v1662, %v1650
        %v1903 = vpack.c.b16 %v1663, %v1651
        %v1904 = vpack.c.b16 %v1664, %v1652
        %v1905 = vpack.c.b16 %v1665, %v1653
        %v1906 = vpack.c.b16 %v1666, %v1654
        %v1907 = vpack.c.b16 %v1667, %v1655
        %v1908 = vpack.c.b16 %v1668, %v1656
        %v1909 = vpack.c.b16 %v1669, %v1657
        %v1910 = vpack.c.b16 %v1670, %v1658
        %v1911 = vpack.c.b16 %v1671, %v1659
        %v1912 = vpack.c.b16 %v1672, %v1660
        %v1913 = vpack.c.b16 %v1673, %v1661
        %v1914 = vpack.c.b16 %v1686, %v1674
        %v1915 = vpack.c.b16 %v1687, %v1675
        %v1916 = vpack.c.b16 %v1688, %v1676
        %v1917 = vpack.c.b16 %v1689, %v1677
        %v1918 = vpack.c.b16 %v1690, %v1678
        %v1919 = vpack.c.b16 %v1691, %v1679
        %v1920 = vpack.c.b16 %v1692, %v1680
        %v1921 = vpack.c.b16 %v1693, %v1681
        %v1922 = vpack.c.b16 %v1694, %v1682
        %v1923 = vpack.c.b16 %v1695, %v1683
        %v1924 = vpack.c.b16 %v1696, %v1684
        %v1925 = vpack.c.b16 %v1697, %v1685
        %v1926 = vpack.c.b16 %v1710, %v1698
        %v1927 = vpack.c.b16 %v1711, %v1699
        %v1928 = vpack.c.b16 %v1712, %v1700
        %v1929 = vpack.c.b16 %v1713, %v1701
        %v1930 = vpack.c.b16 %v1714, %v1702
        %v1931 = vpack.c.b16 %v1715, %v1703
        %v1932 = vpack.c.b16 %v1716, %v1704
        %v1933 = vpack.c.b16 %v1717, %v1705
        %v1934 = vpack.c.b16 %v1718, %v1706
        %v1935 = vpack.c.b16 %v1719, %v1707
        %v1936 = vpack.c.b16 %v1720, %v1708
        %v1937 = vpack.c.b16 %v1721, %v1709
        %v1938 = vpack.c.b16 %v1734, %v1722
        %v1939 = vpack.c.b16 %v1735, %v1723
        %v1940 = vpack.c.b16 %v1736, %v1724
        %v1941 = vpack.c.b16 %v1737, %v1725
        %v1942 = vpack.c.b16 %v1738, %v1726
        %v1943 = vpack.c.b16 %v1739, %v1727
        %v1944 = vpack.c.b16 %v1740, %v1728
        %v1945 = vpack.c.b16 %v1741, %v1729
        %v1946 = vpack.c.b16 %v1742, %v1730
        %v1947 = vpack.c.b16 %v1743, %v1731
        %v1948 = vpack.c.b16 %v1744, %v1732
        %v1949 = vpack.c.b16 %v1745, %v1733
        %v1950 = vpack.c.b16 %v1758, %v1746
        %v1951 = vpack.c.b16 %v1759, %v1747
        %v1952 = vpack.c.b16 %v1760, %v1748
        %v1953 = vpack.c.b16 %v1761, %v1749
        %v1954 = vpack.c.b16 %v1762, %v1750
        %v1955 = vpack.c.b16 %v1763, %v1751
        %v1956 = vpack.c.b16 %v1764, %v1752
        %v1957 = vpack.c.b16 %v1765, %v1753
        %v1958 = vpack.c.b16 %v1766, %v1754
        %v1959 = vpack.c.b16 %v1767, %v1755
        %v1960 = vpack.c.b16 %v1768, %v1756
        %v1961 = vpack.c.b16 %v1769, %v1757
        %2154 = vmatprep.subr.bf16.mxu0 %v1855
        %2155 = vmatpush1.bf16.msra.mxu0 %v1854
        %2156 = vmatprep.subr.bf16.mxu0 %v1843
        %2157 = vmatpush1.bf16.msra.mxu0 %v1842
        %2158 = vmatprep.subr.bf16.mxu0 %v1831
        %2159 = vmatpush1.bf16.msra.mxu0 %v1830
        %2160 = vmatprep.subr.bf16.mxu0 %v1819
        %2161 = vmatpush1.bf16.msra.mxu0 %v1818
        %2162 = vmatprep.subr.bf16.mxu0 %v1807
        %2163 = vmatpush1.bf16.msra.mxu0 %v1806
        %2164 = vmatprep.subr.bf16.mxu0 %v1795
        %2165 = vmatpush1.bf16.msra.mxu0 %v1794
        %2166 = vmatprep.subr.bf16.mxu0 %v1783
        %2167 = vmatpush1.bf16.msra.mxu0 %v1782
        %2168 = vmatprep.subr.bf16.mxu0 %v1771
        %2169 = vmatpush1.bf16.msra.mxu0 %v1770
        %2170 = vmatprep.subr.bf16.mxu0 %v1951
        %2171 = vmatpush2.bf16.msra.mxu0 %v1950
        %2172 = vmatprep.subr.bf16.mxu0 %v1939
        %2173 = vmatpush2.bf16.msra.mxu0 %v1938
        %2174 = vmatprep.subr.bf16.mxu0 %v1927
        %2175 = vmatpush2.bf16.msra.mxu0 %v1926
        %2176 = vmatprep.subr.bf16.mxu0 %v1915
        %2177 = vmatpush2.bf16.msra.mxu0 %v1914
        %2178 = vmatprep.subr.bf16.mxu0 %v1903
        %2179 = vmatpush2.bf16.msra.mxu0 %v1902
        %2180 = vmatprep.subr.bf16.mxu0 %v1891
        %2181 = vmatpush2.bf16.msra.mxu0 %v1890
        %2182 = vmatprep.subr.bf16.mxu0 %v1879
        %2183 = vmatpush2.bf16.msra.mxu0 %v1878
        %2184 = vmatprep.subr.bf16.mxu0 %v1867
        %2185 = vmatpush2.bf16.msra.mxu0 %v1866
        %2186 = vmatprep.mubr.bf16.mxu0 %v1129
        %2187 = vmatmul.mubr.bf16.gmra.mxu0 %v1128
        %v2188 = vpop.f32.mrf.mxu0
        %v2189 = vadd.f32 %v1137, %v2188
        %v2190 = vpop.f32.mrf.mxu0
        %v2191 = vadd.f32 %v1141, %v2190
        %v2192 = vpop.f32.mrf.mxu0
        %v2193 = vadd.f32 %v1137, %v2192
        %v2194 = vpop.f32.mrf.mxu0
        %v2195 = vadd.f32 %v1141, %v2194
        %2196 = vdwg.mxu0
        %2197 = vmatprep.subr.bf16.mxu0 %v1857
        %2198 = vmatpush1.bf16.msra.mxu0 %v1856
        %2199 = vmatprep.subr.bf16.mxu0 %v1845
        %2200 = vmatpush1.bf16.msra.mxu0 %v1844
        %2201 = vmatprep.subr.bf16.mxu0 %v1833
        %2202 = vmatpush1.bf16.msra.mxu0 %v1832
        %2203 = vmatprep.subr.bf16.mxu0 %v1821
        %2204 = vmatpush1.bf16.msra.mxu0 %v1820
        %2205 = vmatprep.subr.bf16.mxu0 %v1809
        %2206 = vmatpush1.bf16.msra.mxu0 %v1808
        %2207 = vmatprep.subr.bf16.mxu0 %v1797
        %2208 = vmatpush1.bf16.msra.mxu0 %v1796
        %2209 = vmatprep.subr.bf16.mxu0 %v1785
        %2210 = vmatpush1.bf16.msra.mxu0 %v1784
        %2211 = vmatprep.subr.bf16.mxu0 %v1773
        %2212 = vmatpush1.bf16.msra.mxu0 %v1772
        %2213 = vmatprep.subr.bf16.mxu0 %v1953
        %2214 = vmatpush2.bf16.msra.mxu0 %v1952
        %2215 = vmatprep.subr.bf16.mxu0 %v1941
        %2216 = vmatpush2.bf16.msra.mxu0 %v1940
        %2217 = vmatprep.subr.bf16.mxu0 %v1929
        %2218 = vmatpush2.bf16.msra.mxu0 %v1928
        %2219 = vmatprep.subr.bf16.mxu0 %v1917
        %2220 = vmatpush2.bf16.msra.mxu0 %v1916
        %2221 = vmatprep.subr.bf16.mxu0 %v1905
        %2222 = vmatpush2.bf16.msra.mxu0 %v1904
        %2223 = vmatprep.subr.bf16.mxu0 %v1893
        %2224 = vmatpush2.bf16.msra.mxu0 %v1892
        %2225 = vmatprep.subr.bf16.mxu0 %v1881
        %2226 = vmatpush2.bf16.msra.mxu0 %v1880
        %2227 = vmatprep.subr.bf16.mxu0 %v1869
        %2228 = vmatpush2.bf16.msra.mxu0 %v1868
        %2229 = vmatprep.mubr.bf16.mxu0 %v1129
        %2230 = vmatmul.mubr.bf16.gmra.mxu0 %v1128
        %v2231 = vpop.f32.mrf.mxu0
        %v2232 = vadd.f32 %v1145, %v2231
        %v2233 = vpop.f32.mrf.mxu0
        %v2234 = vadd.f32 %v1149, %v2233
        %v2235 = vpop.f32.mrf.mxu0
        %v2236 = vadd.f32 %v1145, %v2235
        %v2237 = vpop.f32.mrf.mxu0
        %v2238 = vadd.f32 %v1149, %v2237
        %2239 = vdwg.mxu0
        %2240 = vmatprep.subr.bf16.mxu0 %v1859
        %2241 = vmatpush1.bf16.msra.mxu0 %v1858
        %2242 = vmatprep.subr.bf16.mxu0 %v1847
        %2243 = vmatpush1.bf16.msra.mxu0 %v1846
        %2244 = vmatprep.subr.bf16.mxu0 %v1835
        %2245 = vmatpush1.bf16.msra.mxu0 %v1834
        %2246 = vmatprep.subr.bf16.mxu0 %v1823
        %2247 = vmatpush1.bf16.msra.mxu0 %v1822
        %2248 = vmatprep.subr.bf16.mxu0 %v1811
        %2249 = vmatpush1.bf16.msra.mxu0 %v1810
        %2250 = vmatprep.subr.bf16.mxu0 %v1799
        %2251 = vmatpush1.bf16.msra.mxu0 %v1798
        %2252 = vmatprep.subr.bf16.mxu0 %v1787
        %2253 = vmatpush1.bf16.msra.mxu0 %v1786
        %2254 = vmatprep.subr.bf16.mxu0 %v1775
        %2255 = vmatpush1.bf16.msra.mxu0 %v1774
        %2256 = vmatprep.subr.bf16.mxu0 %v1955
        %2257 = vmatpush2.bf16.msra.mxu0 %v1954
        %2258 = vmatprep.subr.bf16.mxu0 %v1943
        %2259 = vmatpush2.bf16.msra.mxu0 %v1942
        %2260 = vmatprep.subr.bf16.mxu0 %v1931
        %2261 = vmatpush2.bf16.msra.mxu0 %v1930
        %2262 = vmatprep.subr.bf16.mxu0 %v1919
        %2263 = vmatpush2.bf16.msra.mxu0 %v1918
        %2264 = vmatprep.subr.bf16.mxu0 %v1907
        %2265 = vmatpush2.bf16.msra.mxu0 %v1906
        %2266 = vmatprep.subr.bf16.mxu0 %v1895
        %2267 = vmatpush2.bf16.msra.mxu0 %v1894
        %2268 = vmatprep.subr.bf16.mxu0 %v1883
        %2269 = vmatpush2.bf16.msra.mxu0 %v1882
        %2270 = vmatprep.subr.bf16.mxu0 %v1871
        %2271 = vmatpush2.bf16.msra.mxu0 %v1870
        %2272 = vmatprep.mubr.bf16.mxu0 %v1129
        %2273 = vmatmul.mubr.bf16.gmra.mxu0 %v1128
        %v2274 = vpop.f32.mrf.mxu0
        %v2275 = vadd.f32 %v1153, %v2274
        %v2276 = vpop.f32.mrf.mxu0
        %v2277 = vadd.f32 %v1157, %v2276
        %v2278 = vpop.f32.mrf.mxu0
        %v2279 = vadd.f32 %v1153, %v2278
        %v2280 = vpop.f32.mrf.mxu0
        %v2281 = vadd.f32 %v1157, %v2280
        %2282 = vdwg.mxu0
        %2283 = vmatprep.subr.bf16.mxu0 %v1861
        %2284 = vmatpush1.bf16.msra.mxu0 %v1860
        %2285 = vmatprep.subr.bf16.mxu0 %v1849
        %2286 = vmatpush1.bf16.msra.mxu0 %v1848
        %2287 = vmatprep.subr.bf16.mxu0 %v1837
        %2288 = vmatpush1.bf16.msra.mxu0 %v1836
        %2289 = vmatprep.subr.bf16.mxu0 %v1825
        %2290 = vmatpush1.bf16.msra.mxu0 %v1824
        %2291 = vmatprep.subr.bf16.mxu0 %v1813
        %2292 = vmatpush1.bf16.msra.mxu0 %v1812
        %2293 = vmatprep.subr.bf16.mxu0 %v1801
        %2294 = vmatpush1.bf16.msra.mxu0 %v1800
        %2295 = vmatprep.subr.bf16.mxu0 %v1789
        %2296 = vmatpush1.bf16.msra.mxu0 %v1788
        %2297 = vmatprep.subr.bf16.mxu0 %v1777
        %2298 = vmatpush1.bf16.msra.mxu0 %v1776
        %2299 = vmatprep.subr.bf16.mxu0 %v1957
        %2300 = vmatpush2.bf16.msra.mxu0 %v1956
        %2301 = vmatprep.subr.bf16.mxu0 %v1945
        %2302 = vmatpush2.bf16.msra.mxu0 %v1944
        %2303 = vmatprep.subr.bf16.mxu0 %v1933
        %2304 = vmatpush2.bf16.msra.mxu0 %v1932
        %2305 = vmatprep.subr.bf16.mxu0 %v1921
        %2306 = vmatpush2.bf16.msra.mxu0 %v1920
        %2307 = vmatprep.subr.bf16.mxu0 %v1909
        %2308 = vmatpush2.bf16.msra.mxu0 %v1908
        %2309 = vmatprep.subr.bf16.mxu0 %v1897
        %2310 = vmatpush2.bf16.msra.mxu0 %v1896
        %2311 = vmatprep.subr.bf16.mxu0 %v1885
        %2312 = vmatpush2.bf16.msra.mxu0 %v1884
        %2313 = vmatprep.subr.bf16.mxu0 %v1873
        %2314 = vmatpush2.bf16.msra.mxu0 %v1872
        %2315 = vmatprep.mubr.bf16.mxu0 %v1129
        %2316 = vmatmul.mubr.bf16.gmra.mxu0 %v1128
        %v2317 = vpop.f32.mrf.mxu0
        %v2318 = vadd.f32 %v1161, %v2317
        %v2319 = vpop.f32.mrf.mxu0
        %v2320 = vadd.f32 %v1165, %v2319
        %v2321 = vpop.f32.mrf.mxu0
        %v2322 = vadd.f32 %v1161, %v2321
        %v2323 = vpop.f32.mrf.mxu0
        %v2324 = vadd.f32 %v1165, %v2323
        %2325 = vdwg.mxu0
        %2326 = vmatprep.subr.bf16.mxu0 %v1863
        %2327 = vmatpush1.bf16.msra.mxu0 %v1862
        %2328 = vmatprep.subr.bf16.mxu0 %v1851
        %2329 = vmatpush1.bf16.msra.mxu0 %v1850
        %2330 = vmatprep.subr.bf16.mxu0 %v1839
        %2331 = vmatpush1.bf16.msra.mxu0 %v1838
        %2332 = vmatprep.subr.bf16.mxu0 %v1827
        %2333 = vmatpush1.bf16.msra.mxu0 %v1826
        %2334 = vmatprep.subr.bf16.mxu0 %v1815
        %2335 = vmatpush1.bf16.msra.mxu0 %v1814
        %2336 = vmatprep.subr.bf16.mxu0 %v1803
        %2337 = vmatpush1.bf16.msra.mxu0 %v1802
        %2338 = vmatprep.subr.bf16.mxu0 %v1791
        %2339 = vmatpush1.bf16.msra.mxu0 %v1790
        %2340 = vmatprep.subr.bf16.mxu0 %v1779
        %2341 = vmatpush1.bf16.msra.mxu0 %v1778
        %2342 = vmatprep.subr.bf16.mxu0 %v1959
        %2343 = vmatpush2.bf16.msra.mxu0 %v1958
        %2344 = vmatprep.subr.bf16.mxu0 %v1947
        %2345 = vmatpush2.bf16.msra.mxu0 %v1946
        %2346 = vmatprep.subr.bf16.mxu0 %v1935
        %2347 = vmatpush2.bf16.msra.mxu0 %v1934
        %2348 = vmatprep.subr.bf16.mxu0 %v1923
        %2349 = vmatpush2.bf16.msra.mxu0 %v1922
        %2350 = vmatprep.subr.bf16.mxu0 %v1911
        %2351 = vmatpush2.bf16.msra.mxu0 %v1910
        %2352 = vmatprep.subr.bf16.mxu0 %v1899
        %2353 = vmatpush2.bf16.msra.mxu0 %v1898
        %2354 = vmatprep.subr.bf16.mxu0 %v1887
        %2355 = vmatpush2.bf16.msra.mxu0 %v1886
        %2356 = vmatprep.subr.bf16.mxu0 %v1875
        %2357 = vmatpush2.bf16.msra.mxu0 %v1874
        %2358 = vmatprep.mubr.bf16.mxu0 %v1129
        %2359 = vmatmul.mubr.bf16.gmra.mxu0 %v1128
        %v2360 = vpop.f32.mrf.mxu0
        %v2361 = vadd.f32 %v1169, %v2360
        %v2362 = vpop.f32.mrf.mxu0
        %v2363 = vadd.f32 %v1173, %v2362
        %v2364 = vpop.f32.mrf.mxu0
        %v2365 = vadd.f32 %v1169, %v2364
        %v2366 = vpop.f32.mrf.mxu0
        %v2367 = vadd.f32 %v1173, %v2366
        %2368 = vdwg.mxu0
        %2369 = vmatprep.subr.bf16.mxu0 %v1865
        %2370 = vmatpush1.bf16.msra.mxu0 %v1864
        %2371 = vmatprep.subr.bf16.mxu0 %v1853
        %2372 = vmatpush1.bf16.msra.mxu0 %v1852
        %2373 = vmatprep.subr.bf16.mxu0 %v1841
        %2374 = vmatpush1.bf16.msra.mxu0 %v1840
        %2375 = vmatprep.subr.bf16.mxu0 %v1829
        %2376 = vmatpush1.bf16.msra.mxu0 %v1828
        %2377 = vmatprep.subr.bf16.mxu0 %v1817
        %2378 = vmatpush1.bf16.msra.mxu0 %v1816
        %2379 = vmatprep.subr.bf16.mxu0 %v1805
        %2380 = vmatpush1.bf16.msra.mxu0 %v1804
        %2381 = vmatprep.subr.bf16.mxu0 %v1793
        %2382 = vmatpush1.bf16.msra.mxu0 %v1792
        %2383 = vmatprep.subr.bf16.mxu0 %v1781
        %2384 = vmatpush1.bf16.msra.mxu0 %v1780
        %2385 = vmatprep.subr.bf16.mxu0 %v1961
        %2386 = vmatpush2.bf16.msra.mxu0 %v1960
        %2387 = vmatprep.subr.bf16.mxu0 %v1949
        %2388 = vmatpush2.bf16.msra.mxu0 %v1948
        %2389 = vmatprep.subr.bf16.mxu0 %v1937
        %2390 = vmatpush2.bf16.msra.mxu0 %v1936
        %2391 = vmatprep.subr.bf16.mxu0 %v1925
        %2392 = vmatpush2.bf16.msra.mxu0 %v1924
        %2393 = vmatprep.subr.bf16.mxu0 %v1913
        %2394 = vmatpush2.bf16.msra.mxu0 %v1912
        %2395 = vmatprep.subr.bf16.mxu0 %v1901
        %2396 = vmatpush2.bf16.msra.mxu0 %v1900
        %2397 = vmatprep.subr.bf16.mxu0 %v1889
        %2398 = vmatpush2.bf16.msra.mxu0 %v1888
        %2399 = vmatprep.subr.bf16.mxu0 %v1877
        %2400 = vmatpush2.bf16.msra.mxu0 %v1876
        %2401 = vmatprep.mubr.bf16.mxu0 %v1129
        %2402 = vmatmul.mubr.bf16.gmra.mxu0 %v1128
        %v2403 = vpop.f32.mrf.mxu0
        %v2404 = vadd.f32 %v1177, %v2403
        %v2405 = vpop.f32.mrf.mxu0
        %v2406 = vadd.f32 %v1181, %v2405
        %v2407 = vpop.f32.mrf.mxu0
        %v2408 = vadd.f32 %v1177, %v2407
        %v2409 = vpop.f32.mrf.mxu0
        %v2410 = vadd.f32 %v1181, %v2409
        %2411 = vdwg.mxu0
        %v2412 = vadd.f32 %v925, %v926
        %2413 = vadd.xlane.f32.xlu0 %v2412
        %v2414 = vpop.xlane.xlu0 %2413
        %v2415 = vadd.f32 %v927, %v928
        %2416 = vadd.xlane.f32.xlu0 %v2415
        %v2417 = vpop.xlane.xlu0 %2416
        %v2418 = vrcp.pop 256.0
        %v2419 = vmul.f32 %v2414, %v2418
        %v2420 = vmul.f32 %v2417, %v2418
        %v2421 = vsub.f32 %v925, %v2419
        %v2422 = vsub.f32 %v926, %v2419
        %v2423 = vsub.f32 %v927, %v2420
        %v2424 = vsub.f32 %v928, %v2420
        %v2425 = vmul.f32 %v2421, %v2421
        %v2426 = vmul.f32 %v2422, %v2422
        %v2427 = vmul.f32 %v2423, %v2423
        %v2428 = vmul.f32 %v2424, %v2424
        %v2429 = vadd.f32 %v2425, %v2426
        %2430 = vadd.xlane.f32.xlu0 %v2429
        %v2431 = vpop.xlane.xlu0 %2430
        %v2432 = vadd.f32 %v2427, %v2428
        %2433 = vadd.xlane.f32.xlu0 %v2432
        %v2434 = vpop.xlane.xlu0 %2433
        %v2435 = vmul.f32 %v2431, %v2418
        %v2436 = vmul.f32 %v2434, %v2418
        %v2437 = vadd.f32 %v2435, 1e-06
        %v2438 = vadd.f32 %v2436, 1e-06
        %v2439 = vrsqrt.pop %v2437
        %v2440 = vrsqrt.pop %v2438
        %v2441 = vmul.f32 %v2421, %v2439
        %v2442 = vmul.f32 %v2422, %v2439
        %v2443 = vmul.f32 %v2423, %v2440
        %v2444 = vmul.f32 %v2424, %v2440
        %v2445 = vadd.f32 %v2232, 1.0
        %v2446 = vadd.f32 %v2234, 1.0
        %v2447 = vadd.f32 %v2236, 1.0
        %v2448 = vadd.f32 %v2238, 1.0
        %v2449 = vmul.f32 %v2441, %v2445
        %v2450 = vmul.f32 %v2442, %v2446
        %v2451 = vmul.f32 %v2443, %v2447
        %v2452 = vmul.f32 %v2444, %v2448
        %v2453 = vadd.f32 %v2449, %v2189
        %v2454 = vadd.f32 %v2450, %v2191
        %v2455 = vadd.f32 %v2451, %v2193
        %v2456 = vadd.f32 %v2452, %v2195
        %v2457 = vld [vmem:[%s718] sm:$0xff]
        %v2458 = vld [vmem:[%s718 + $0x8] sm:$0xff]
        %v2459 = vld [vmem:[%s718 + $0x10] sm:$0xff]
        %v2460 = vld [vmem:[%s718 + $0x18] sm:$0xff]
        %v2461 = vld [vmem:[%s718 + $0x20] sm:$0xff]
        %v2462 = vld [vmem:[%s718 + $0x28] sm:$0xff]
        %v2463 = vld [vmem:[%s718 + $0x30] sm:$0xff]
        %v2464 = vld [vmem:[%s718 + $0x38] sm:$0xff]
        %v2465 = vld [vmem:[%s718 + $0x40] sm:$0xff]
        %v2466 = vld [vmem:[%s718 + $0x48] sm:$0xff]
        %v2467 = vld [vmem:[%s718 + $0x50] sm:$0xff]
        %v2468 = vld [vmem:[%s718 + $0x58] sm:$0xff]
        %v2469 = vld [vmem:[%s718 + $0x60] sm:$0xff]
        %v2470 = vld [vmem:[%s718 + $0x68] sm:$0xff]
        %v2471 = vld [vmem:[%s718 + $0x70] sm:$0xff]
        %v2472 = vld [vmem:[%s718 + $0x78] sm:$0xff]
        %v2473 = vld [vmem:[%s718 + $0x80] sm:$0xff]
        %v2474 = vld [vmem:[%s718 + $0x88] sm:$0xff]
        %v2475 = vld [vmem:[%s718 + $0x90] sm:$0xff]
        %v2476 = vld [vmem:[%s718 + $0x98] sm:$0xff]
        %v2477 = vld [vmem:[%s718 + $0xa0] sm:$0xff]
        %v2478 = vld [vmem:[%s718 + $0xa8] sm:$0xff]
        %v2479 = vld [vmem:[%s718 + $0xb0] sm:$0xff]
        %v2480 = vld [vmem:[%s718 + $0xb8] sm:$0xff]
        %v2481 = vld [vmem:[%s718 + $0xc0] sm:$0xff]
        %v2482 = vld [vmem:[%s718 + $0xc8] sm:$0xff]
        %v2483 = vld [vmem:[%s718 + $0xd0] sm:$0xff]
        %v2484 = vld [vmem:[%s718 + $0xd8] sm:$0xff]
        %v2485 = vld [vmem:[%s718 + $0xe0] sm:$0xff]
        %v2486 = vld [vmem:[%s718 + $0xe8] sm:$0xff]
        %v2487 = vld [vmem:[%s718 + $0xf0] sm:$0xff]
        %v2488 = vld [vmem:[%s718 + $0xf8] sm:$0xff]
        %v2489 = vld [vmem:[%s718 + $0x100] sm:$0xff]
        %v2490 = vld [vmem:[%s718 + $0x108] sm:$0xff]
        %v2491 = vld [vmem:[%s718 + $0x110] sm:$0xff]
        %v2492 = vld [vmem:[%s718 + $0x118] sm:$0xff]
        %v2493 = vld [vmem:[%s718 + $0x120] sm:$0xff]
        %v2494 = vld [vmem:[%s718 + $0x128] sm:$0xff]
        %v2495 = vld [vmem:[%s718 + $0x130] sm:$0xff]
        %v2496 = vld [vmem:[%s718 + $0x138] sm:$0xff]
        %v2497 = vld [vmem:[%s718 + $0x140] sm:$0xff]
        %v2498 = vld [vmem:[%s718 + $0x148] sm:$0xff]
        %v2499 = vld [vmem:[%s718 + $0x150] sm:$0xff]
        %v2500 = vld [vmem:[%s718 + $0x158] sm:$0xff]
        %v2501 = vld [vmem:[%s718 + $0x160] sm:$0xff]
        %v2502 = vld [vmem:[%s718 + $0x168] sm:$0xff]
        %v2503 = vld [vmem:[%s718 + $0x170] sm:$0xff]
        %v2504 = vld [vmem:[%s718 + $0x178] sm:$0xff]
        %v2505 = vld [vmem:[%s718 + $0x180] sm:$0xff]
        %v2506 = vld [vmem:[%s718 + $0x188] sm:$0xff]
        %v2507 = vld [vmem:[%s718 + $0x190] sm:$0xff]
        %v2508 = vld [vmem:[%s718 + $0x198] sm:$0xff]
        %v2509 = vld [vmem:[%s718 + $0x1a0] sm:$0xff]
        %v2510 = vld [vmem:[%s718 + $0x1a8] sm:$0xff]
        %v2511 = vld [vmem:[%s718 + $0x1b0] sm:$0xff]
        %v2512 = vld [vmem:[%s718 + $0x1b8] sm:$0xff]
        %v2513 = vld [vmem:[%s718 + $0x1c0] sm:$0xff]
        %v2514 = vld [vmem:[%s718 + $0x1c8] sm:$0xff]
        %v2515 = vld [vmem:[%s718 + $0x1d0] sm:$0xff]
        %v2516 = vld [vmem:[%s718 + $0x1d8] sm:$0xff]
        %v2517 = vld [vmem:[%s718 + $0x1e0] sm:$0xff]
        %v2518 = vld [vmem:[%s718 + $0x1e8] sm:$0xff]
        %v2519 = vld [vmem:[%s718 + $0x1f0] sm:$0xff]
        %v2520 = vld [vmem:[%s718 + $0x1f8] sm:$0xff]
        %v2521 = vld [vmem:[%s718 + $0x200] sm:$0xff]
        %v2522 = vld [vmem:[%s718 + $0x208] sm:$0xff]
        %v2523 = vld [vmem:[%s718 + $0x210] sm:$0xff]
        %v2524 = vld [vmem:[%s718 + $0x218] sm:$0xff]
        %v2525 = vld [vmem:[%s718 + $0x220] sm:$0xff]
        %v2526 = vld [vmem:[%s718 + $0x228] sm:$0xff]
        %v2527 = vld [vmem:[%s718 + $0x230] sm:$0xff]
        %v2528 = vld [vmem:[%s718 + $0x238] sm:$0xff]
        %v2529 = vld [vmem:[%s718 + $0x240] sm:$0xff]
        %v2530 = vld [vmem:[%s718 + $0x248] sm:$0xff]
        %v2531 = vld [vmem:[%s718 + $0x250] sm:$0xff]
        %v2532 = vld [vmem:[%s718 + $0x258] sm:$0xff]
        %v2533 = vld [vmem:[%s718 + $0x260] sm:$0xff]
        %v2534 = vld [vmem:[%s718 + $0x268] sm:$0xff]
        %v2535 = vld [vmem:[%s718 + $0x270] sm:$0xff]
        %v2536 = vld [vmem:[%s718 + $0x278] sm:$0xff]
        %v2537 = vld [vmem:[%s718 + $0x280] sm:$0xff]
        %v2538 = vld [vmem:[%s718 + $0x288] sm:$0xff]
        %v2539 = vld [vmem:[%s718 + $0x290] sm:$0xff]
        %v2540 = vld [vmem:[%s718 + $0x298] sm:$0xff]
        %v2541 = vld [vmem:[%s718 + $0x2a0] sm:$0xff]
        %v2542 = vld [vmem:[%s718 + $0x2a8] sm:$0xff]
        %v2543 = vld [vmem:[%s718 + $0x2b0] sm:$0xff]
        %v2544 = vld [vmem:[%s718 + $0x2b8] sm:$0xff]
        %v2545 = vld [vmem:[%s718 + $0x2c0] sm:$0xff]
        %v2546 = vld [vmem:[%s718 + $0x2c8] sm:$0xff]
        %v2547 = vld [vmem:[%s718 + $0x2d0] sm:$0xff]
        %v2548 = vld [vmem:[%s718 + $0x2d8] sm:$0xff]
        %v2549 = vld [vmem:[%s718 + $0x2e0] sm:$0xff]
        %v2550 = vld [vmem:[%s718 + $0x2e8] sm:$0xff]
        %v2551 = vld [vmem:[%s718 + $0x2f0] sm:$0xff]
        %v2552 = vld [vmem:[%s718 + $0x2f8] sm:$0xff]
        %v2553 = vpack.c.bf16 %v2455, %v2453
        %v2554 = vpack.c.bf16 %v2456, %v2454
        %v2555 = vld [vmem:[%s727] sm:$0x3f]
        %v2557 = vlaneseq
        %v2558 = vshrl.u32 %v2557, 7
        %v2559 = vsub.s32 0, %v2558
        %v2560 = vrot.slane %v2555, %v2559
        %v2561 = vlaneseq
        %v2562 = vshrl.u32 %v2561, 7
        %v2563 = vsub.s32 1, %v2562
        %v2564 = vrot.slane %v2555, %v2563
        %v2565 = vlaneseq
        %v2566 = vshrl.u32 %v2565, 7
        %v2567 = vsub.s32 2, %v2566
        %v2568 = vrot.slane %v2555, %v2567
        %v2569 = vlaneseq
        %v2570 = vshrl.u32 %v2569, 7
        %v2571 = vsub.s32 3, %v2570
        %v2572 = vrot.slane %v2555, %v2571
        %v2573 = vlaneseq
        %v2574 = vshrl.u32 %v2573, 7
        %v2575 = vsub.s32 4, %v2574
        %v2576 = vrot.slane %v2555, %v2575
        %v2577 = vlaneseq
        %v2578 = vshrl.u32 %v2577, 7
        %v2579 = vsub.s32 5, %v2578
        %v2580 = vrot.slane %v2555, %v2579
        %v2683 = vunpack.c.l.b16 %v2457
        %v2684 = vunpack.c.h.b16 %v2457
        %v2685 = vunpack.c.l.b16 %v2458
        %v2686 = vunpack.c.h.b16 %v2458
        %v2687 = vunpack.c.l.b16 %v2459
        %v2688 = vunpack.c.h.b16 %v2459
        %v2689 = vunpack.c.l.b16 %v2460
        %v2690 = vunpack.c.h.b16 %v2460
        %v2691 = vunpack.c.l.b16 %v2461
        %v2692 = vunpack.c.h.b16 %v2461
        %v2693 = vunpack.c.l.b16 %v2462
        %v2694 = vunpack.c.h.b16 %v2462
        %v2695 = vunpack.c.l.b16 %v2463
        %v2696 = vunpack.c.h.b16 %v2463
        %v2697 = vunpack.c.l.b16 %v2464
        %v2698 = vunpack.c.h.b16 %v2464
        %v2699 = vunpack.c.l.b16 %v2465
        %v2700 = vunpack.c.h.b16 %v2465
        %v2701 = vunpack.c.l.b16 %v2466
        %v2702 = vunpack.c.h.b16 %v2466
        %v2703 = vunpack.c.l.b16 %v2467
        %v2704 = vunpack.c.h.b16 %v2467
        %v2705 = vunpack.c.l.b16 %v2468
        %v2706 = vunpack.c.h.b16 %v2468
        %v2707 = vunpack.c.l.b16 %v2469
        %v2708 = vunpack.c.h.b16 %v2469
        %v2709 = vunpack.c.l.b16 %v2470
        %v2710 = vunpack.c.h.b16 %v2470
        %v2711 = vunpack.c.l.b16 %v2471
        %v2712 = vunpack.c.h.b16 %v2471
        %v2713 = vunpack.c.l.b16 %v2472
        %v2714 = vunpack.c.h.b16 %v2472
        %v2715 = vunpack.c.l.b16 %v2473
        %v2716 = vunpack.c.h.b16 %v2473
        %v2717 = vunpack.c.l.b16 %v2474
        %v2718 = vunpack.c.h.b16 %v2474
        %v2719 = vunpack.c.l.b16 %v2475
        %v2720 = vunpack.c.h.b16 %v2475
        %v2721 = vunpack.c.l.b16 %v2476
        %v2722 = vunpack.c.h.b16 %v2476
        %v2723 = vunpack.c.l.b16 %v2477
        %v2724 = vunpack.c.h.b16 %v2477
        %v2725 = vunpack.c.l.b16 %v2478
        %v2726 = vunpack.c.h.b16 %v2478
        %v2727 = vunpack.c.l.b16 %v2479
        %v2728 = vunpack.c.h.b16 %v2479
        %v2729 = vunpack.c.l.b16 %v2480
        %v2730 = vunpack.c.h.b16 %v2480
        %v2731 = vunpack.c.l.b16 %v2481
        %v2732 = vunpack.c.h.b16 %v2481
        %v2733 = vunpack.c.l.b16 %v2482
        %v2734 = vunpack.c.h.b16 %v2482
        %v2735 = vunpack.c.l.b16 %v2483
        %v2736 = vunpack.c.h.b16 %v2483
        %v2737 = vunpack.c.l.b16 %v2484
        %v2738 = vunpack.c.h.b16 %v2484
        %v2739 = vunpack.c.l.b16 %v2485
        %v2740 = vunpack.c.h.b16 %v2485
        %v2741 = vunpack.c.l.b16 %v2486
        %v2742 = vunpack.c.h.b16 %v2486
        %v2743 = vunpack.c.l.b16 %v2487
        %v2744 = vunpack.c.h.b16 %v2487
        %v2745 = vunpack.c.l.b16 %v2488
        %v2746 = vunpack.c.h.b16 %v2488
        %v2747 = vunpack.c.l.b16 %v2489
        %v2748 = vunpack.c.h.b16 %v2489
        %v2749 = vunpack.c.l.b16 %v2490
        %v2750 = vunpack.c.h.b16 %v2490
        %v2751 = vunpack.c.l.b16 %v2491
        %v2752 = vunpack.c.h.b16 %v2491
        %v2753 = vunpack.c.l.b16 %v2492
        %v2754 = vunpack.c.h.b16 %v2492
        %v2755 = vunpack.c.l.b16 %v2493
        %v2756 = vunpack.c.h.b16 %v2493
        %v2757 = vunpack.c.l.b16 %v2494
        %v2758 = vunpack.c.h.b16 %v2494
        %v2759 = vunpack.c.l.b16 %v2495
        %v2760 = vunpack.c.h.b16 %v2495
        %v2761 = vunpack.c.l.b16 %v2496
        %v2762 = vunpack.c.h.b16 %v2496
        %v2763 = vunpack.c.l.b16 %v2497
        %v2764 = vunpack.c.h.b16 %v2497
        %v2765 = vunpack.c.l.b16 %v2498
        %v2766 = vunpack.c.h.b16 %v2498
        %v2767 = vunpack.c.l.b16 %v2499
        %v2768 = vunpack.c.h.b16 %v2499
        %v2769 = vunpack.c.l.b16 %v2500
        %v2770 = vunpack.c.h.b16 %v2500
        %v2771 = vunpack.c.l.b16 %v2501
        %v2772 = vunpack.c.h.b16 %v2501
        %v2773 = vunpack.c.l.b16 %v2502
        %v2774 = vunpack.c.h.b16 %v2502
        %v2775 = vunpack.c.l.b16 %v2503
        %v2776 = vunpack.c.h.b16 %v2503
        %v2777 = vunpack.c.l.b16 %v2504
        %v2778 = vunpack.c.h.b16 %v2504
        %v2779 = vunpack.c.l.b16 %v2505
        %v2780 = vunpack.c.h.b16 %v2505
        %v2781 = vunpack.c.l.b16 %v2506
        %v2782 = vunpack.c.h.b16 %v2506
        %v2783 = vunpack.c.l.b16 %v2507
        %v2784 = vunpack.c.h.b16 %v2507
        %v2785 = vunpack.c.l.b16 %v2508
        %v2786 = vunpack.c.h.b16 %v2508
        %v2787 = vunpack.c.l.b16 %v2509
        %v2788 = vunpack.c.h.b16 %v2509
        %v2789 = vunpack.c.l.b16 %v2510
        %v2790 = vunpack.c.h.b16 %v2510
        %v2791 = vunpack.c.l.b16 %v2511
        %v2792 = vunpack.c.h.b16 %v2511
        %v2793 = vunpack.c.l.b16 %v2512
        %v2794 = vunpack.c.h.b16 %v2512
        %v2795 = vunpack.c.l.b16 %v2513
        %v2796 = vunpack.c.h.b16 %v2513
        %v2797 = vunpack.c.l.b16 %v2514
        %v2798 = vunpack.c.h.b16 %v2514
        %v2799 = vunpack.c.l.b16 %v2515
        %v2800 = vunpack.c.h.b16 %v2515
        %v2801 = vunpack.c.l.b16 %v2516
        %v2802 = vunpack.c.h.b16 %v2516
        %v2803 = vunpack.c.l.b16 %v2517
        %v2804 = vunpack.c.h.b16 %v2517
        %v2805 = vunpack.c.l.b16 %v2518
        %v2806 = vunpack.c.h.b16 %v2518
        %v2807 = vunpack.c.l.b16 %v2519
        %v2808 = vunpack.c.h.b16 %v2519
        %v2809 = vunpack.c.l.b16 %v2520
        %v2810 = vunpack.c.h.b16 %v2520
        %v2811 = vunpack.c.l.b16 %v2521
        %v2812 = vunpack.c.h.b16 %v2521
        %v2813 = vunpack.c.l.b16 %v2522
        %v2814 = vunpack.c.h.b16 %v2522
        %v2815 = vunpack.c.l.b16 %v2523
        %v2816 = vunpack.c.h.b16 %v2523
        %v2817 = vunpack.c.l.b16 %v2524
        %v2818 = vunpack.c.h.b16 %v2524
        %v2819 = vunpack.c.l.b16 %v2525
        %v2820 = vunpack.c.h.b16 %v2525
        %v2821 = vunpack.c.l.b16 %v2526
        %v2822 = vunpack.c.h.b16 %v2526
        %v2823 = vunpack.c.l.b16 %v2527
        %v2824 = vunpack.c.h.b16 %v2527
        %v2825 = vunpack.c.l.b16 %v2528
        %v2826 = vunpack.c.h.b16 %v2528
        %v2827 = vunpack.c.l.b16 %v2529
        %v2828 = vunpack.c.h.b16 %v2529
        %v2829 = vunpack.c.l.b16 %v2530
        %v2830 = vunpack.c.h.b16 %v2530
        %v2831 = vunpack.c.l.b16 %v2531
        %v2832 = vunpack.c.h.b16 %v2531
        %v2833 = vunpack.c.l.b16 %v2532
        %v2834 = vunpack.c.h.b16 %v2532
        %v2835 = vunpack.c.l.b16 %v2533
        %v2836 = vunpack.c.h.b16 %v2533
        %v2837 = vunpack.c.l.b16 %v2534
        %v2838 = vunpack.c.h.b16 %v2534
        %v2839 = vunpack.c.l.b16 %v2535
        %v2840 = vunpack.c.h.b16 %v2535
        %v2841 = vunpack.c.l.b16 %v2536
        %v2842 = vunpack.c.h.b16 %v2536
        %v2843 = vunpack.c.l.b16 %v2537
        %v2844 = vunpack.c.h.b16 %v2537
        %v2845 = vunpack.c.l.b16 %v2538
        %v2846 = vunpack.c.h.b16 %v2538
        %v2847 = vunpack.c.l.b16 %v2539
        %v2848 = vunpack.c.h.b16 %v2539
        %v2849 = vunpack.c.l.b16 %v2540
        %v2850 = vunpack.c.h.b16 %v2540
        %v2851 = vunpack.c.l.b16 %v2541
        %v2852 = vunpack.c.h.b16 %v2541
        %v2853 = vunpack.c.l.b16 %v2542
        %v2854 = vunpack.c.h.b16 %v2542
        %v2855 = vunpack.c.l.b16 %v2543
        %v2856 = vunpack.c.h.b16 %v2543
        %v2857 = vunpack.c.l.b16 %v2544
        %v2858 = vunpack.c.h.b16 %v2544
        %v2859 = vunpack.c.l.b16 %v2545
        %v2860 = vunpack.c.h.b16 %v2545
        %v2861 = vunpack.c.l.b16 %v2546
        %v2862 = vunpack.c.h.b16 %v2546
        %v2863 = vunpack.c.l.b16 %v2547
        %v2864 = vunpack.c.h.b16 %v2547
        %v2865 = vunpack.c.l.b16 %v2548
        %v2866 = vunpack.c.h.b16 %v2548
        %v2867 = vunpack.c.l.b16 %v2549
        %v2868 = vunpack.c.h.b16 %v2549
        %v2869 = vunpack.c.l.b16 %v2550
        %v2870 = vunpack.c.h.b16 %v2550
        %v2871 = vunpack.c.l.b16 %v2551
        %v2872 = vunpack.c.h.b16 %v2551
        %v2873 = vunpack.c.l.b16 %v2552
        %v2874 = vunpack.c.h.b16 %v2552
        %v2875 = vpack.c.b16 %v2689, %v2683
        %v2876 = vpack.c.b16 %v2690, %v2684
        %v2877 = vpack.c.b16 %v2691, %v2685
        %v2878 = vpack.c.b16 %v2692, %v2686
        %v2879 = vpack.c.b16 %v2693, %v2687
        %v2880 = vpack.c.b16 %v2694, %v2688
        %v2881 = vpack.c.b16 %v2701, %v2695
        %v2882 = vpack.c.b16 %v2702, %v2696
        %v2883 = vpack.c.b16 %v2703, %v2697
        %v2884 = vpack.c.b16 %v2704, %v2698
        %v2885 = vpack.c.b16 %v2705, %v2699
        %v2886 = vpack.c.b16 %v2706, %v2700
        %v2887 = vpack.c.b16 %v2713, %v2707
        %v2888 = vpack.c.b16 %v2714, %v2708
        %v2889 = vpack.c.b16 %v2715, %v2709
        %v2890 = vpack.c.b16 %v2716, %v2710
        %v2891 = vpack.c.b16 %v2717, %v2711
        %v2892 = vpack.c.b16 %v2718, %v2712
        %v2893 = vpack.c.b16 %v2725, %v2719
        %v2894 = vpack.c.b16 %v2726, %v2720
        %v2895 = vpack.c.b16 %v2727, %v2721
        %v2896 = vpack.c.b16 %v2728, %v2722
        %v2897 = vpack.c.b16 %v2729, %v2723
        %v2898 = vpack.c.b16 %v2730, %v2724
        %v2899 = vpack.c.b16 %v2737, %v2731
        %v2900 = vpack.c.b16 %v2738, %v2732
        %v2901 = vpack.c.b16 %v2739, %v2733
        %v2902 = vpack.c.b16 %v2740, %v2734
        %v2903 = vpack.c.b16 %v2741, %v2735
        %v2904 = vpack.c.b16 %v2742, %v2736
        %v2905 = vpack.c.b16 %v2749, %v2743
        %v2906 = vpack.c.b16 %v2750, %v2744
        %v2907 = vpack.c.b16 %v2751, %v2745
        %v2908 = vpack.c.b16 %v2752, %v2746
        %v2909 = vpack.c.b16 %v2753, %v2747
        %v2910 = vpack.c.b16 %v2754, %v2748
        %v2911 = vpack.c.b16 %v2761, %v2755
        %v2912 = vpack.c.b16 %v2762, %v2756
        %v2913 = vpack.c.b16 %v2763, %v2757
        %v2914 = vpack.c.b16 %v2764, %v2758
        %v2915 = vpack.c.b16 %v2765, %v2759
        %v2916 = vpack.c.b16 %v2766, %v2760
        %v2917 = vpack.c.b16 %v2773, %v2767
        %v2918 = vpack.c.b16 %v2774, %v2768
        %v2919 = vpack.c.b16 %v2775, %v2769
        %v2920 = vpack.c.b16 %v2776, %v2770
        %v2921 = vpack.c.b16 %v2777, %v2771
        %v2922 = vpack.c.b16 %v2778, %v2772
        %v2923 = vpack.c.b16 %v2785, %v2779
        %v2924 = vpack.c.b16 %v2786, %v2780
        %v2925 = vpack.c.b16 %v2787, %v2781
        %v2926 = vpack.c.b16 %v2788, %v2782
        %v2927 = vpack.c.b16 %v2789, %v2783
        %v2928 = vpack.c.b16 %v2790, %v2784
        %v2929 = vpack.c.b16 %v2797, %v2791
        %v2930 = vpack.c.b16 %v2798, %v2792
        %v2931 = vpack.c.b16 %v2799, %v2793
        %v2932 = vpack.c.b16 %v2800, %v2794
        %v2933 = vpack.c.b16 %v2801, %v2795
        %v2934 = vpack.c.b16 %v2802, %v2796
        %v2935 = vpack.c.b16 %v2809, %v2803
        %v2936 = vpack.c.b16 %v2810, %v2804
        %v2937 = vpack.c.b16 %v2811, %v2805
        %v2938 = vpack.c.b16 %v2812, %v2806
        %v2939 = vpack.c.b16 %v2813, %v2807
        %v2940 = vpack.c.b16 %v2814, %v2808
        %v2941 = vpack.c.b16 %v2821, %v2815
        %v2942 = vpack.c.b16 %v2822, %v2816
        %v2943 = vpack.c.b16 %v2823, %v2817
        %v2944 = vpack.c.b16 %v2824, %v2818
        %v2945 = vpack.c.b16 %v2825, %v2819
        %v2946 = vpack.c.b16 %v2826, %v2820
        %v2947 = vpack.c.b16 %v2833, %v2827
        %v2948 = vpack.c.b16 %v2834, %v2828
        %v2949 = vpack.c.b16 %v2835, %v2829
        %v2950 = vpack.c.b16 %v2836, %v2830
        %v2951 = vpack.c.b16 %v2837, %v2831
        %v2952 = vpack.c.b16 %v2838, %v2832
        %v2953 = vpack.c.b16 %v2845, %v2839
        %v2954 = vpack.c.b16 %v2846, %v2840
        %v2955 = vpack.c.b16 %v2847, %v2841
        %v2956 = vpack.c.b16 %v2848, %v2842
        %v2957 = vpack.c.b16 %v2849, %v2843
        %v2958 = vpack.c.b16 %v2850, %v2844
        %v2959 = vpack.c.b16 %v2857, %v2851
        %v2960 = vpack.c.b16 %v2858, %v2852
        %v2961 = vpack.c.b16 %v2859, %v2853
        %v2962 = vpack.c.b16 %v2860, %v2854
        %v2963 = vpack.c.b16 %v2861, %v2855
        %v2964 = vpack.c.b16 %v2862, %v2856
        %v2965 = vpack.c.b16 %v2869, %v2863
        %v2966 = vpack.c.b16 %v2870, %v2864
        %v2967 = vpack.c.b16 %v2871, %v2865
        %v2968 = vpack.c.b16 %v2872, %v2866
        %v2969 = vpack.c.b16 %v2873, %v2867
        %v2970 = vpack.c.b16 %v2874, %v2868
        %3067 = vmatprep.subr.bf16.mxu0 %v2918
        %3068 = vmatpush1.bf16.msra.mxu0 %v2917
        %3069 = vmatprep.subr.bf16.mxu0 %v2912
        %3070 = vmatpush1.bf16.msra.mxu0 %v2911
        %3071 = vmatprep.subr.bf16.mxu0 %v2906
        %3072 = vmatpush1.bf16.msra.mxu0 %v2905
        %3073 = vmatprep.subr.bf16.mxu0 %v2900
        %3074 = vmatpush1.bf16.msra.mxu0 %v2899
        %3075 = vmatprep.subr.bf16.mxu0 %v2894
        %3076 = vmatpush1.bf16.msra.mxu0 %v2893
        %3077 = vmatprep.subr.bf16.mxu0 %v2888
        %3078 = vmatpush1.bf16.msra.mxu0 %v2887
        %3079 = vmatprep.subr.bf16.mxu0 %v2882
        %3080 = vmatpush1.bf16.msra.mxu0 %v2881
        %3081 = vmatprep.subr.bf16.mxu0 %v2876
        %3082 = vmatpush1.bf16.msra.mxu0 %v2875
        %3083 = vmatprep.subr.bf16.mxu0 %v2966
        %3084 = vmatpush2.bf16.msra.mxu0 %v2965
        %3085 = vmatprep.subr.bf16.mxu0 %v2960
        %3086 = vmatpush2.bf16.msra.mxu0 %v2959
        %3087 = vmatprep.subr.bf16.mxu0 %v2954
        %3088 = vmatpush2.bf16.msra.mxu0 %v2953
        %3089 = vmatprep.subr.bf16.mxu0 %v2948
        %3090 = vmatpush2.bf16.msra.mxu0 %v2947
        %3091 = vmatprep.subr.bf16.mxu0 %v2942
        %3092 = vmatpush2.bf16.msra.mxu0 %v2941
        %3093 = vmatprep.subr.bf16.mxu0 %v2936
        %3094 = vmatpush2.bf16.msra.mxu0 %v2935
        %3095 = vmatprep.subr.bf16.mxu0 %v2930
        %3096 = vmatpush2.bf16.msra.mxu0 %v2929
        %3097 = vmatprep.subr.bf16.mxu0 %v2924
        %3098 = vmatpush2.bf16.msra.mxu0 %v2923
        %3099 = vmatprep.mubr.bf16.mxu0 %v2554
        %3100 = vmatmul.mubr.bf16.gmra.mxu0 %v2553
        %v3101 = vpop.f32.mrf.mxu0
        %v3102 = vadd.f32 %v2560, %v3101
        %v3103 = vpop.f32.mrf.mxu0
        %v3104 = vadd.f32 %v2564, %v3103
        %v3105 = vpop.f32.mrf.mxu0
        %v3106 = vadd.f32 %v2560, %v3105
        %v3107 = vpop.f32.mrf.mxu0
        %v3108 = vadd.f32 %v2564, %v3107
        %3109 = vdwg.mxu0
        %3110 = vmatprep.subr.bf16.mxu0 %v2920
        %3111 = vmatpush1.bf16.msra.mxu0 %v2919
        %3112 = vmatprep.subr.bf16.mxu0 %v2914
        %3113 = vmatpush1.bf16.msra.mxu0 %v2913
        %3114 = vmatprep.subr.bf16.mxu0 %v2908
        %3115 = vmatpush1.bf16.msra.mxu0 %v2907
        %3116 = vmatprep.subr.bf16.mxu0 %v2902
        %3117 = vmatpush1.bf16.msra.mxu0 %v2901
        %3118 = vmatprep.subr.bf16.mxu0 %v2896
        %3119 = vmatpush1.bf16.msra.mxu0 %v2895
        %3120 = vmatprep.subr.bf16.mxu0 %v2890
        %3121 = vmatpush1.bf16.msra.mxu0 %v2889
        %3122 = vmatprep.subr.bf16.mxu0 %v2884
        %3123 = vmatpush1.bf16.msra.mxu0 %v2883
        %3124 = vmatprep.subr.bf16.mxu0 %v2878
        %3125 = vmatpush1.bf16.msra.mxu0 %v2877
        %3126 = vmatprep.subr.bf16.mxu0 %v2968
        %3127 = vmatpush2.bf16.msra.mxu0 %v2967
        %3128 = vmatprep.subr.bf16.mxu0 %v2962
        %3129 = vmatpush2.bf16.msra.mxu0 %v2961
        %3130 = vmatprep.subr.bf16.mxu0 %v2956
        %3131 = vmatpush2.bf16.msra.mxu0 %v2955
        %3132 = vmatprep.subr.bf16.mxu0 %v2950
        %3133 = vmatpush2.bf16.msra.mxu0 %v2949
        %3134 = vmatprep.subr.bf16.mxu0 %v2944
        %3135 = vmatpush2.bf16.msra.mxu0 %v2943
        %3136 = vmatprep.subr.bf16.mxu0 %v2938
        %3137 = vmatpush2.bf16.msra.mxu0 %v2937
        %3138 = vmatprep.subr.bf16.mxu0 %v2932
        %3139 = vmatpush2.bf16.msra.mxu0 %v2931
        %3140 = vmatprep.subr.bf16.mxu0 %v2926
        %3141 = vmatpush2.bf16.msra.mxu0 %v2925
        %3142 = vmatprep.mubr.bf16.mxu0 %v2554
        %3143 = vmatmul.mubr.bf16.gmra.mxu0 %v2553
        %v3144 = vpop.f32.mrf.mxu0
        %v3145 = vadd.f32 %v2568, %v3144
        %v3146 = vpop.f32.mrf.mxu0
        %v3147 = vadd.f32 %v2572, %v3146
        %v3148 = vpop.f32.mrf.mxu0
        %v3149 = vadd.f32 %v2568, %v3148
        %v3150 = vpop.f32.mrf.mxu0
        %v3151 = vadd.f32 %v2572, %v3150
        %3152 = vdwg.mxu0
        %3153 = vmatprep.subr.bf16.mxu0 %v2922
        %3154 = vmatpush1.bf16.msra.mxu0 %v2921
        %3155 = vmatprep.subr.bf16.mxu0 %v2916
        %3156 = vmatpush1.bf16.msra.mxu0 %v2915
        %3157 = vmatprep.subr.bf16.mxu0 %v2910
        %3158 = vmatpush1.bf16.msra.mxu0 %v2909
        %3159 = vmatprep.subr.bf16.mxu0 %v2904
        %3160 = vmatpush1.bf16.msra.mxu0 %v2903
        %3161 = vmatprep.subr.bf16.mxu0 %v2898
        %3162 = vmatpush1.bf16.msra.mxu0 %v2897
        %3163 = vmatprep.subr.bf16.mxu0 %v2892
        %3164 = vmatpush1.bf16.msra.mxu0 %v2891
        %3165 = vmatprep.subr.bf16.mxu0 %v2886
        %3166 = vmatpush1.bf16.msra.mxu0 %v2885
        %3167 = vmatprep.subr.bf16.mxu0 %v2880
        %3168 = vmatpush1.bf16.msra.mxu0 %v2879
        %3169 = vmatprep.subr.bf16.mxu0 %v2970
        %3170 = vmatpush2.bf16.msra.mxu0 %v2969
        %3171 = vmatprep.subr.bf16.mxu0 %v2964
        %3172 = vmatpush2.bf16.msra.mxu0 %v2963
        %3173 = vmatprep.subr.bf16.mxu0 %v2958
        %3174 = vmatpush2.bf16.msra.mxu0 %v2957
        %3175 = vmatprep.subr.bf16.mxu0 %v2952
        %3176 = vmatpush2.bf16.msra.mxu0 %v2951
        %3177 = vmatprep.subr.bf16.mxu0 %v2946
        %3178 = vmatpush2.bf16.msra.mxu0 %v2945
        %3179 = vmatprep.subr.bf16.mxu0 %v2940
        %3180 = vmatpush2.bf16.msra.mxu0 %v2939
        %3181 = vmatprep.subr.bf16.mxu0 %v2934
        %3182 = vmatpush2.bf16.msra.mxu0 %v2933
        %3183 = vmatprep.subr.bf16.mxu0 %v2928
        %3184 = vmatpush2.bf16.msra.mxu0 %v2927
        %3185 = vmatprep.mubr.bf16.mxu0 %v2554
        %3186 = vmatmul.mubr.bf16.gmra.mxu0 %v2553
        %v3187 = vpop.f32.mrf.mxu0
        %v3188 = vadd.f32 %v2576, %v3187
        %v3189 = vpop.f32.mrf.mxu0
        %v3190 = vadd.f32 %v2580, %v3189
        %v3191 = vpop.f32.mrf.mxu0
        %v3192 = vadd.f32 %v2576, %v3191
        %v3193 = vpop.f32.mrf.mxu0
        %v3194 = vadd.f32 %v2580, %v3193
        %3195 = vdwg.mxu0
        %v3196 = vsub.f32 1.0, %v933
        %v3197 = vmul.f32 %v3196, -1e+09
        %v3198 = vpack.c.bf16 %v3106, %v3102
        %v3199 = vpack.c.bf16 %v3149, %v3145
        %3200 = vmatprep.subr.bf16.mxu0 0
        %3201 = vmatpush1.bf16.xpose.msra.mxu0 0
        %3202 = vmatprep.subr.bf16.mxu0 0
        %3203 = vmatpush1.bf16.xpose.msra.mxu0 0
        %3204 = vmatprep.subr.bf16.mxu0 0
        %3205 = vmatpush1.bf16.xpose.msra.mxu0 0
        %3206 = vmatprep.subr.bf16.mxu0 0
        %3207 = vmatpush1.bf16.xpose.msra.mxu0 0
        %3208 = vmatprep.subr.bf16.mxu0 0
        %3209 = vmatpush1.bf16.xpose.msra.mxu0 0
        %3210 = vmatprep.subr.bf16.mxu0 0
        %3211 = vmatpush1.bf16.xpose.msra.mxu0 0
        %3212 = vmatprep.subr.bf16.mxu0 0
        %3213 = vmatpush1.bf16.xpose.msra.mxu0 0
        %3214 = vmatprep.subr.bf16.mxu0 0
        %3215 = vmatpush1.bf16.xpose.msra.mxu0 %v3199
        %3216 = vmatprep.subr.bf16.mxu0 0
        %3217 = vmatpush2.bf16.xpose.msra.mxu0 0
        %3218 = vmatprep.subr.bf16.mxu0 0
        %3219 = vmatpush2.bf16.xpose.msra.mxu0 0
        %3220 = vmatprep.subr.bf16.mxu0 0
        %3221 = vmatpush2.bf16.xpose.msra.mxu0 0
        %3222 = vmatprep.subr.bf16.mxu0 0
        %3223 = vmatpush2.bf16.xpose.msra.mxu0 0
        %3224 = vmatprep.subr.bf16.mxu0 0
        %3225 = vmatpush2.bf16.xpose.msra.mxu0 0
        %3226 = vmatprep.subr.bf16.mxu0 0
        %3227 = vmatpush2.bf16.xpose.msra.mxu0 0
        %3228 = vmatprep.subr.bf16.mxu0 0
        %3229 = vmatpush2.bf16.xpose.msra.mxu0 0
        %3230 = vmatprep.subr.bf16.mxu0 0
        %3231 = vmatpush2.bf16.xpose.msra.mxu0 0
        %3232 = vmatprep.mubr.bf16.mxu0 0
        %3233 = vmatmul.mubr.bf16.gmra.mxu0 %v3198
        %v3234 = vpop.f32.mrf.mxu0
        %v3235 = vadd.f32 0.0, %v3234
        %v3236 = vpop.f32.mrf.mxu0
        %v3237 = vpop.f32.mrf.mxu0
        %v3238 = vadd.f32 0.0, %v3237
        %v3239 = vpop.f32.mrf.mxu0
        %3240 = vdwg.mxu0
        %v3241 = vmul.f32 %v3235, 0.088388346
        %v3242 = vmul.f32 %v3238, 0.088388346
        %v3244 = vlaneseq
        %v3245 = vshrl.u32 %v3244, 7
        %v3246 = vsub.s32 0, %v3245
        %v3247 = vrot.slane %v3197, %v3246
        %v3249 = vadd.f32 %v3241, %v3247
        %v3250 = vadd.f32 %v3242, %v3247
        %vm3251 = vcmask 130048
        %v3252 = vsel %vm3251, %v3249, -inf
        %3253 = vmax.xlane.f32.xlu0 %v3252
        %v3254 = vpop.xlane.xlu0 %3253
        %v3255 = vsel %vm3251, %v3250, -inf
        %3256 = vmax.xlane.f32.xlu0 %v3255
        %v3257 = vpop.xlane.xlu0 %3256
        %v3258 = vsub.f32 %v3249, %v3254
        %v3259 = vsub.f32 %v3250, %v3257
        %v3260 = vmul.f32 %v3258, 1.442695
        %v3261 = vpow.pop %v3260
        %v3262 = vmul.f32 %v3259, 1.442695
        %v3263 = vpow.pop %v3262
        %v3264 = vsel %vm3251, %v3261, 0.0
        %3265 = vadd.xlane.f32.xlu0 %v3264
        %v3266 = vpop.xlane.xlu0 %3265
        %v3267 = vsel %vm3251, %v3263, 0.0
        %3268 = vadd.xlane.f32.xlu0 %v3267
        %v3269 = vpop.xlane.xlu0 %3268
        %v3270 = vrcp.pop %v3266
        %v3271 = vrcp.pop %v3269
        %v3272 = vmul.f32 %v3261, %v3270
        %v3273 = vmul.f32 %v3263, %v3271
        %v3274 = vpack.c.bf16 %v3273, %v3272
        %v3275 = vpack.c.bf16 %v3192, %v3188
        %v3277 = vsel %vm3251, %v3274, 0
        %3279 = vmatprep.subr.bf16.mxu0 0
        %3280 = vmatpush1.bf16.msra.mxu0 0
        %3281 = vmatprep.subr.bf16.mxu0 0
        %3282 = vmatpush1.bf16.msra.mxu0 0
        %3283 = vmatprep.subr.bf16.mxu0 0
        %3284 = vmatpush1.bf16.msra.mxu0 0
        %3285 = vmatprep.subr.bf16.mxu0 0
        %3286 = vmatpush1.bf16.msra.mxu0 0
        %3287 = vmatprep.subr.bf16.mxu0 0
        %3288 = vmatpush1.bf16.msra.mxu0 0
        %3289 = vmatprep.subr.bf16.mxu0 0
        %3290 = vmatpush1.bf16.msra.mxu0 0
        %3291 = vmatprep.subr.bf16.mxu0 0
        %3292 = vmatpush1.bf16.msra.mxu0 0
        %3293 = vmatprep.subr.bf16.mxu0 0
        %3294 = vmatpush1.bf16.msra.mxu0 %v3275
        %3295 = vmatprep.subr.bf16.mxu0 0
        %3296 = vmatpush2.bf16.msra.mxu0 0
        %3297 = vmatprep.subr.bf16.mxu0 0
        %3298 = vmatpush2.bf16.msra.mxu0 0
        %3299 = vmatprep.subr.bf16.mxu0 0
        %3300 = vmatpush2.bf16.msra.mxu0 0
        %3301 = vmatprep.subr.bf16.mxu0 0
        %3302 = vmatpush2.bf16.msra.mxu0 0
        %3303 = vmatprep.subr.bf16.mxu0 0
        %3304 = vmatpush2.bf16.msra.mxu0 0
        %3305 = vmatprep.subr.bf16.mxu0 0
        %3306 = vmatpush2.bf16.msra.mxu0 0
        %3307 = vmatprep.subr.bf16.mxu0 0
        %3308 = vmatpush2.bf16.msra.mxu0 0
        %3309 = vmatprep.subr.bf16.mxu0 0
        %3310 = vmatpush2.bf16.msra.mxu0 0
        %3311 = vmatprep.mubr.bf16.mxu0 0
        %3312 = vmatmul.mubr.bf16.gmra.mxu0 %v3277
        %v3313 = vpop.f32.mrf.mxu0
        %v3314 = vadd.f32 0.0, %v3313
        %v3315 = vpop.f32.mrf.mxu0
        %v3316 = vpop.f32.mrf.mxu0
        %v3317 = vadd.f32 0.0, %v3316
        %v3318 = vpop.f32.mrf.mxu0
        %3319 = vdwg.mxu0
        %v3320 = vpack.c.bf16 %v3108, %v3104
        %v3321 = vpack.c.bf16 %v3151, %v3147
        %3322 = vmatprep.subr.bf16.mxu0 0
        %3323 = vmatpush1.bf16.xpose.msra.mxu0 0
        %3324 = vmatprep.subr.bf16.mxu0 0
        %3325 = vmatpush1.bf16.xpose.msra.mxu0 0
        %3326 = vmatprep.subr.bf16.mxu0 0
        %3327 = vmatpush1.bf16.xpose.msra.mxu0 0
        %3328 = vmatprep.subr.bf16.mxu0 0
        %3329 = vmatpush1.bf16.xpose.msra.mxu0 0
        %3330 = vmatprep.subr.bf16.mxu0 0
        %3331 = vmatpush1.bf16.xpose.msra.mxu0 0
        %3332 = vmatprep.subr.bf16.mxu0 0
        %3333 = vmatpush1.bf16.xpose.msra.mxu0 0
        %3334 = vmatprep.subr.bf16.mxu0 0
        %3335 = vmatpush1.bf16.xpose.msra.mxu0 0
        %3336 = vmatprep.subr.bf16.mxu0 0
        %3337 = vmatpush1.bf16.xpose.msra.mxu0 %v3321
        %3338 = vmatprep.subr.bf16.mxu0 0
        %3339 = vmatpush2.bf16.xpose.msra.mxu0 0
        %3340 = vmatprep.subr.bf16.mxu0 0
        %3341 = vmatpush2.bf16.xpose.msra.mxu0 0
        %3342 = vmatprep.subr.bf16.mxu0 0
        %3343 = vmatpush2.bf16.xpose.msra.mxu0 0
        %3344 = vmatprep.subr.bf16.mxu0 0
        %3345 = vmatpush2.bf16.xpose.msra.mxu0 0
        %3346 = vmatprep.subr.bf16.mxu0 0
        %3347 = vmatpush2.bf16.xpose.msra.mxu0 0
        %3348 = vmatprep.subr.bf16.mxu0 0
        %3349 = vmatpush2.bf16.xpose.msra.mxu0 0
        %3350 = vmatprep.subr.bf16.mxu0 0
        %3351 = vmatpush2.bf16.xpose.msra.mxu0 0
        %3352 = vmatprep.subr.bf16.mxu0 0
        %3353 = vmatpush2.bf16.xpose.msra.mxu0 0
        %3354 = vmatprep.mubr.bf16.mxu0 0
        %3355 = vmatmul.mubr.bf16.gmra.mxu0 %v3320
        %v3356 = vpop.f32.mrf.mxu0
        %v3357 = vadd.f32 0.0, %v3356
        %v3358 = vpop.f32.mrf.mxu0
        %v3359 = vpop.f32.mrf.mxu0
        %v3360 = vadd.f32 0.0, %v3359
        %v3361 = vpop.f32.mrf.mxu0
        %3362 = vdwg.mxu0
        %v3363 = vmul.f32 %v3357, 0.088388346
        %v3364 = vmul.f32 %v3360, 0.088388346
        %v3365 = vadd.f32 %v3363, %v3247
        %v3366 = vadd.f32 %v3364, %v3247
        %v3367 = vsel %vm3251, %v3365, -inf
        %3368 = vmax.xlane.f32.xlu0 %v3367
        %v3369 = vpop.xlane.xlu0 %3368
        %v3370 = vsel %vm3251, %v3366, -inf
        %3371 = vmax.xlane.f32.xlu0 %v3370
        %v3372 = vpop.xlane.xlu0 %3371
        %v3373 = vsub.f32 %v3365, %v3369
        %v3374 = vsub.f32 %v3366, %v3372
        %v3375 = vmul.f32 %v3373, 1.442695
        %v3376 = vpow.pop %v3375
        %v3377 = vmul.f32 %v3374, 1.442695
        %v3378 = vpow.pop %v3377
        %v3379 = vsel %vm3251, %v3376, 0.0
        %3380 = vadd.xlane.f32.xlu0 %v3379
        %v3381 = vpop.xlane.xlu0 %3380
        %v3382 = vsel %vm3251, %v3378, 0.0
        %3383 = vadd.xlane.f32.xlu0 %v3382
        %v3384 = vpop.xlane.xlu0 %3383
        %v3385 = vrcp.pop %v3381
        %v3386 = vrcp.pop %v3384
        %v3387 = vmul.f32 %v3376, %v3385
        %v3388 = vmul.f32 %v3378, %v3386
        %v3389 = vpack.c.bf16 %v3388, %v3387
        %v3390 = vpack.c.bf16 %v3194, %v3190
        %v3392 = vsel %vm3251, %v3389, 0
        %3394 = vmatprep.subr.bf16.mxu0 0
        %3395 = vmatpush1.bf16.msra.mxu0 0
        %3396 = vmatprep.subr.bf16.mxu0 0
        %3397 = vmatpush1.bf16.msra.mxu0 0
        %3398 = vmatprep.subr.bf16.mxu0 0
        %3399 = vmatpush1.bf16.msra.mxu0 0
        %3400 = vmatprep.subr.bf16.mxu0 0
        %3401 = vmatpush1.bf16.msra.mxu0 0
        %3402 = vmatprep.subr.bf16.mxu0 0
        %3403 = vmatpush1.bf16.msra.mxu0 0
        %3404 = vmatprep.subr.bf16.mxu0 0
        %3405 = vmatpush1.bf16.msra.mxu0 0
        %3406 = vmatprep.subr.bf16.mxu0 0
        %3407 = vmatpush1.bf16.msra.mxu0 0
        %3408 = vmatprep.subr.bf16.mxu0 0
        %3409 = vmatpush1.bf16.msra.mxu0 %v3390
        %3410 = vmatprep.subr.bf16.mxu0 0
        %3411 = vmatpush2.bf16.msra.mxu0 0
        %3412 = vmatprep.subr.bf16.mxu0 0
        %3413 = vmatpush2.bf16.msra.mxu0 0
        %3414 = vmatprep.subr.bf16.mxu0 0
        %3415 = vmatpush2.bf16.msra.mxu0 0
        %3416 = vmatprep.subr.bf16.mxu0 0
        %3417 = vmatpush2.bf16.msra.mxu0 0
        %3418 = vmatprep.subr.bf16.mxu0 0
        %3419 = vmatpush2.bf16.msra.mxu0 0
        %3420 = vmatprep.subr.bf16.mxu0 0
        %3421 = vmatpush2.bf16.msra.mxu0 0
        %3422 = vmatprep.subr.bf16.mxu0 0
        %3423 = vmatpush2.bf16.msra.mxu0 0
        %3424 = vmatprep.subr.bf16.mxu0 0
        %3425 = vmatpush2.bf16.msra.mxu0 0
        %3426 = vmatprep.mubr.bf16.mxu0 0
        %3427 = vmatmul.mubr.bf16.gmra.mxu0 %v3392
        %v3428 = vpop.f32.mrf.mxu0
        %v3429 = vadd.f32 0.0, %v3428
        %v3430 = vpop.f32.mrf.mxu0
        %v3431 = vpop.f32.mrf.mxu0
        %v3432 = vadd.f32 0.0, %v3431
        %v3433 = vpop.f32.mrf.mxu0
        %3434 = vdwg.mxu0
        %v3435 = vld [vmem:[%s736] sm:$0xff]
        %v3436 = vld [vmem:[%s736 + $0x8] sm:$0xff]
        %v3437 = vld [vmem:[%s736 + $0x10] sm:$0xff]
        %v3438 = vld [vmem:[%s736 + $0x18] sm:$0xff]
        %v3439 = vld [vmem:[%s736 + $0x20] sm:$0xff]
        %v3440 = vld [vmem:[%s736 + $0x28] sm:$0xff]
        %v3441 = vld [vmem:[%s736 + $0x30] sm:$0xff]
        %v3442 = vld [vmem:[%s736 + $0x38] sm:$0xff]
        %v3443 = vld [vmem:[%s736 + $0x40] sm:$0xff]
        %v3444 = vld [vmem:[%s736 + $0x48] sm:$0xff]
        %v3445 = vld [vmem:[%s736 + $0x50] sm:$0xff]
        %v3446 = vld [vmem:[%s736 + $0x58] sm:$0xff]
        %v3447 = vld [vmem:[%s736 + $0x60] sm:$0xff]
        %v3448 = vld [vmem:[%s736 + $0x68] sm:$0xff]
        %v3449 = vld [vmem:[%s736 + $0x70] sm:$0xff]
        %v3450 = vld [vmem:[%s736 + $0x78] sm:$0xff]
        %v3451 = vld [vmem:[%s736 + $0x80] sm:$0xff]
        %v3452 = vld [vmem:[%s736 + $0x88] sm:$0xff]
        %v3453 = vld [vmem:[%s736 + $0x90] sm:$0xff]
        %v3454 = vld [vmem:[%s736 + $0x98] sm:$0xff]
        %v3455 = vld [vmem:[%s736 + $0xa0] sm:$0xff]
        %v3456 = vld [vmem:[%s736 + $0xa8] sm:$0xff]
        %v3457 = vld [vmem:[%s736 + $0xb0] sm:$0xff]
        %v3458 = vld [vmem:[%s736 + $0xb8] sm:$0xff]
        %v3459 = vld [vmem:[%s736 + $0xc0] sm:$0xff]
        %v3460 = vld [vmem:[%s736 + $0xc8] sm:$0xff]
        %v3461 = vld [vmem:[%s736 + $0xd0] sm:$0xff]
        %v3462 = vld [vmem:[%s736 + $0xd8] sm:$0xff]
        %v3463 = vld [vmem:[%s736 + $0xe0] sm:$0xff]
        %v3464 = vld [vmem:[%s736 + $0xe8] sm:$0xff]
        %v3465 = vld [vmem:[%s736 + $0xf0] sm:$0xff]
        %v3466 = vld [vmem:[%s736 + $0xf8] sm:$0xff]
        %v3467 = vpack.c.bf16 %v3317, %v3314
        %v3468 = vpack.c.bf16 %v3432, %v3429
        %v3469 = vld [vmem:[%s745] sm:$0x3]
        %v3471 = vlaneseq
        %v3472 = vshrl.u32 %v3471, 7
        %v3473 = vsub.s32 0, %v3472
        %v3474 = vrot.slane %v3469, %v3473
        %v3475 = vlaneseq
        %v3476 = vshrl.u32 %v3475, 7
        %v3477 = vsub.s32 1, %v3476
        %v3478 = vrot.slane %v3469, %v3477
        %v3513 = vunpack.c.l.b16 %v3435
        %v3514 = vunpack.c.h.b16 %v3435
        %v3515 = vunpack.c.l.b16 %v3436
        %v3516 = vunpack.c.h.b16 %v3436
        %v3517 = vunpack.c.l.b16 %v3437
        %v3518 = vunpack.c.h.b16 %v3437
        %v3519 = vunpack.c.l.b16 %v3438
        %v3520 = vunpack.c.h.b16 %v3438
        %v3521 = vunpack.c.l.b16 %v3439
        %v3522 = vunpack.c.h.b16 %v3439
        %v3523 = vunpack.c.l.b16 %v3440
        %v3524 = vunpack.c.h.b16 %v3440
        %v3525 = vunpack.c.l.b16 %v3441
        %v3526 = vunpack.c.h.b16 %v3441
        %v3527 = vunpack.c.l.b16 %v3442
        %v3528 = vunpack.c.h.b16 %v3442
        %v3529 = vunpack.c.l.b16 %v3443
        %v3530 = vunpack.c.h.b16 %v3443
        %v3531 = vunpack.c.l.b16 %v3444
        %v3532 = vunpack.c.h.b16 %v3444
        %v3533 = vunpack.c.l.b16 %v3445
        %v3534 = vunpack.c.h.b16 %v3445
        %v3535 = vunpack.c.l.b16 %v3446
        %v3536 = vunpack.c.h.b16 %v3446
        %v3537 = vunpack.c.l.b16 %v3447
        %v3538 = vunpack.c.h.b16 %v3447
        %v3539 = vunpack.c.l.b16 %v3448
        %v3540 = vunpack.c.h.b16 %v3448
        %v3541 = vunpack.c.l.b16 %v3449
        %v3542 = vunpack.c.h.b16 %v3449
        %v3543 = vunpack.c.l.b16 %v3450
        %v3544 = vunpack.c.h.b16 %v3450
        %v3545 = vunpack.c.l.b16 %v3451
        %v3546 = vunpack.c.h.b16 %v3451
        %v3547 = vunpack.c.l.b16 %v3452
        %v3548 = vunpack.c.h.b16 %v3452
        %v3549 = vunpack.c.l.b16 %v3453
        %v3550 = vunpack.c.h.b16 %v3453
        %v3551 = vunpack.c.l.b16 %v3454
        %v3552 = vunpack.c.h.b16 %v3454
        %v3553 = vunpack.c.l.b16 %v3455
        %v3554 = vunpack.c.h.b16 %v3455
        %v3555 = vunpack.c.l.b16 %v3456
        %v3556 = vunpack.c.h.b16 %v3456
        %v3557 = vunpack.c.l.b16 %v3457
        %v3558 = vunpack.c.h.b16 %v3457
        %v3559 = vunpack.c.l.b16 %v3458
        %v3560 = vunpack.c.h.b16 %v3458
        %v3561 = vunpack.c.l.b16 %v3459
        %v3562 = vunpack.c.h.b16 %v3459
        %v3563 = vunpack.c.l.b16 %v3460
        %v3564 = vunpack.c.h.b16 %v3460
        %v3565 = vunpack.c.l.b16 %v3461
        %v3566 = vunpack.c.h.b16 %v3461
        %v3567 = vunpack.c.l.b16 %v3462
        %v3568 = vunpack.c.h.b16 %v3462
        %v3569 = vunpack.c.l.b16 %v3463
        %v3570 = vunpack.c.h.b16 %v3463
        %v3571 = vunpack.c.l.b16 %v3464
        %v3572 = vunpack.c.h.b16 %v3464
        %v3573 = vunpack.c.l.b16 %v3465
        %v3574 = vunpack.c.h.b16 %v3465
        %v3575 = vunpack.c.l.b16 %v3466
        %v3576 = vunpack.c.h.b16 %v3466
        %v3577 = vpack.c.b16 %v3515, %v3513
        %v3578 = vpack.c.b16 %v3516, %v3514
        %v3579 = vpack.c.b16 %v3519, %v3517
        %v3580 = vpack.c.b16 %v3520, %v3518
        %v3581 = vpack.c.b16 %v3523, %v3521
        %v3582 = vpack.c.b16 %v3524, %v3522
        %v3583 = vpack.c.b16 %v3527, %v3525
        %v3584 = vpack.c.b16 %v3528, %v3526
        %v3585 = vpack.c.b16 %v3531, %v3529
        %v3586 = vpack.c.b16 %v3532, %v3530
        %v3587 = vpack.c.b16 %v3535, %v3533
        %v3588 = vpack.c.b16 %v3536, %v3534
        %v3589 = vpack.c.b16 %v3539, %v3537
        %v3590 = vpack.c.b16 %v3540, %v3538
        %v3591 = vpack.c.b16 %v3543, %v3541
        %v3592 = vpack.c.b16 %v3544, %v3542
        %v3593 = vpack.c.b16 %v3547, %v3545
        %v3594 = vpack.c.b16 %v3548, %v3546
        %v3595 = vpack.c.b16 %v3551, %v3549
        %v3596 = vpack.c.b16 %v3552, %v3550
        %v3597 = vpack.c.b16 %v3555, %v3553
        %v3598 = vpack.c.b16 %v3556, %v3554
        %v3599 = vpack.c.b16 %v3559, %v3557
        %v3600 = vpack.c.b16 %v3560, %v3558
        %v3601 = vpack.c.b16 %v3563, %v3561
        %v3602 = vpack.c.b16 %v3564, %v3562
        %v3603 = vpack.c.b16 %v3567, %v3565
        %v3604 = vpack.c.b16 %v3568, %v3566
        %v3605 = vpack.c.b16 %v3571, %v3569
        %v3606 = vpack.c.b16 %v3572, %v3570
        %v3607 = vpack.c.b16 %v3575, %v3573
        %v3608 = vpack.c.b16 %v3576, %v3574
        %3641 = vmatprep.subr.bf16.mxu0 %v3592
        %3642 = vmatpush1.bf16.msra.mxu0 %v3591
        %3643 = vmatprep.subr.bf16.mxu0 %v3590
        %3644 = vmatpush1.bf16.msra.mxu0 %v3589
        %3645 = vmatprep.subr.bf16.mxu0 %v3588
        %3646 = vmatpush1.bf16.msra.mxu0 %v3587
        %3647 = vmatprep.subr.bf16.mxu0 %v3586
        %3648 = vmatpush1.bf16.msra.mxu0 %v3585
        %3649 = vmatprep.subr.bf16.mxu0 %v3584
        %3650 = vmatpush1.bf16.msra.mxu0 %v3583
        %3651 = vmatprep.subr.bf16.mxu0 %v3582
        %3652 = vmatpush1.bf16.msra.mxu0 %v3581
        %3653 = vmatprep.subr.bf16.mxu0 %v3580
        %3654 = vmatpush1.bf16.msra.mxu0 %v3579
        %3655 = vmatprep.subr.bf16.mxu0 %v3578
        %3656 = vmatpush1.bf16.msra.mxu0 %v3577
        %3657 = vmatprep.subr.bf16.mxu0 %v3608
        %3658 = vmatpush2.bf16.msra.mxu0 %v3607
        %3659 = vmatprep.subr.bf16.mxu0 %v3606
        %3660 = vmatpush2.bf16.msra.mxu0 %v3605
        %3661 = vmatprep.subr.bf16.mxu0 %v3604
        %3662 = vmatpush2.bf16.msra.mxu0 %v3603
        %3663 = vmatprep.subr.bf16.mxu0 %v3602
        %3664 = vmatpush2.bf16.msra.mxu0 %v3601
        %3665 = vmatprep.subr.bf16.mxu0 %v3600
        %3666 = vmatpush2.bf16.msra.mxu0 %v3599
        %3667 = vmatprep.subr.bf16.mxu0 %v3598
        %3668 = vmatpush2.bf16.msra.mxu0 %v3597
        %3669 = vmatprep.subr.bf16.mxu0 %v3596
        %3670 = vmatpush2.bf16.msra.mxu0 %v3595
        %3671 = vmatprep.subr.bf16.mxu0 %v3594
        %3672 = vmatpush2.bf16.msra.mxu0 %v3593
        %3673 = vmatprep.mubr.bf16.mxu0 %v3468
        %3674 = vmatmul.mubr.bf16.gmra.mxu0 %v3467
        %v3675 = vpop.f32.mrf.mxu0
        %v3676 = vadd.f32 %v3474, %v3675
        %v3677 = vpop.f32.mrf.mxu0
        %v3678 = vadd.f32 %v3478, %v3677
        %v3679 = vpop.f32.mrf.mxu0
        %v3680 = vadd.f32 %v3474, %v3679
        %v3681 = vpop.f32.mrf.mxu0
        %v3682 = vadd.f32 %v3478, %v3681
        %3683 = vdwg.mxu0
        %v3684 = vmul.f32 %v2275, %v3676
        %v3685 = vmul.f32 %v2277, %v3678
        %v3686 = vmul.f32 %v2279, %v3680
        %v3687 = vmul.f32 %v2281, %v3682
        %v3688 = vadd.f32 %v925, %v3684
        %v3689 = vadd.f32 %v926, %v3685
        %v3690 = vadd.f32 %v927, %v3686
        %v3691 = vadd.f32 %v928, %v3687
        %v3692 = vadd.f32 %v3688, %v3689
        %3693 = vadd.xlane.f32.xlu0 %v3692
        %v3694 = vpop.xlane.xlu0 %3693
        %v3695 = vadd.f32 %v3690, %v3691
        %3696 = vadd.xlane.f32.xlu0 %v3695
        %v3697 = vpop.xlane.xlu0 %3696
        %v3698 = vmul.f32 %v3694, %v2418
        %v3699 = vmul.f32 %v3697, %v2418
        %v3700 = vsub.f32 %v3688, %v3698
        %v3701 = vsub.f32 %v3689, %v3698
        %v3702 = vsub.f32 %v3690, %v3699
        %v3703 = vsub.f32 %v3691, %v3699
        %v3704 = vmul.f32 %v3700, %v3700
        %v3705 = vmul.f32 %v3701, %v3701
        %v3706 = vmul.f32 %v3702, %v3702
        %v3707 = vmul.f32 %v3703, %v3703
        %v3708 = vadd.f32 %v3704, %v3705
        %3709 = vadd.xlane.f32.xlu0 %v3708
        %v3710 = vpop.xlane.xlu0 %3709
        %v3711 = vadd.f32 %v3706, %v3707
        %3712 = vadd.xlane.f32.xlu0 %v3711
        %v3713 = vpop.xlane.xlu0 %3712
        %v3714 = vmul.f32 %v3710, %v2418
        %v3715 = vmul.f32 %v3713, %v2418
        %v3716 = vadd.f32 %v3714, 1e-06
        %v3717 = vadd.f32 %v3715, 1e-06
        %v3718 = vrsqrt.pop %v3716
        %v3719 = vrsqrt.pop %v3717
        %v3720 = vmul.f32 %v3700, %v3718
        %v3721 = vmul.f32 %v3701, %v3718
        %v3722 = vmul.f32 %v3702, %v3719
        %v3723 = vmul.f32 %v3703, %v3719
        %v3724 = vadd.f32 %v2361, 1.0
        %v3725 = vadd.f32 %v2363, 1.0
        %v3726 = vadd.f32 %v2365, 1.0
        %v3727 = vadd.f32 %v2367, 1.0
        %v3728 = vmul.f32 %v3720, %v3724
        %v3729 = vmul.f32 %v3721, %v3725
        %v3730 = vmul.f32 %v3722, %v3726
        %v3731 = vmul.f32 %v3723, %v3727
        %v3732 = vadd.f32 %v3728, %v2318
        %v3733 = vadd.f32 %v3729, %v2320
        %v3734 = vadd.f32 %v3730, %v2322
        %v3735 = vadd.f32 %v3731, %v2324
        %v3736 = vld [vmem:[%s754] sm:$0xff]
        %v3737 = vld [vmem:[%s754 + $0x8] sm:$0xff]
        %v3738 = vld [vmem:[%s754 + $0x10] sm:$0xff]
        %v3739 = vld [vmem:[%s754 + $0x18] sm:$0xff]
        %v3740 = vld [vmem:[%s754 + $0x20] sm:$0xff]
        %v3741 = vld [vmem:[%s754 + $0x28] sm:$0xff]
        %v3742 = vld [vmem:[%s754 + $0x30] sm:$0xff]
        %v3743 = vld [vmem:[%s754 + $0x38] sm:$0xff]
        %v3744 = vld [vmem:[%s754 + $0x40] sm:$0xff]
        %v3745 = vld [vmem:[%s754 + $0x48] sm:$0xff]
        %v3746 = vld [vmem:[%s754 + $0x50] sm:$0xff]
        %v3747 = vld [vmem:[%s754 + $0x58] sm:$0xff]
        %v3748 = vld [vmem:[%s754 + $0x60] sm:$0xff]
        %v3749 = vld [vmem:[%s754 + $0x68] sm:$0xff]
        %v3750 = vld [vmem:[%s754 + $0x70] sm:$0xff]
        %v3751 = vld [vmem:[%s754 + $0x78] sm:$0xff]
        %v3752 = vld [vmem:[%s754 + $0x80] sm:$0xff]
        %v3753 = vld [vmem:[%s754 + $0x88] sm:$0xff]
        %v3754 = vld [vmem:[%s754 + $0x90] sm:$0xff]
        %v3755 = vld [vmem:[%s754 + $0x98] sm:$0xff]
        %v3756 = vld [vmem:[%s754 + $0xa0] sm:$0xff]
        %v3757 = vld [vmem:[%s754 + $0xa8] sm:$0xff]
        %v3758 = vld [vmem:[%s754 + $0xb0] sm:$0xff]
        %v3759 = vld [vmem:[%s754 + $0xb8] sm:$0xff]
        %v3760 = vld [vmem:[%s754 + $0xc0] sm:$0xff]
        %v3761 = vld [vmem:[%s754 + $0xc8] sm:$0xff]
        %v3762 = vld [vmem:[%s754 + $0xd0] sm:$0xff]
        %v3763 = vld [vmem:[%s754 + $0xd8] sm:$0xff]
        %v3764 = vld [vmem:[%s754 + $0xe0] sm:$0xff]
        %v3765 = vld [vmem:[%s754 + $0xe8] sm:$0xff]
        %v3766 = vld [vmem:[%s754 + $0xf0] sm:$0xff]
        %v3767 = vld [vmem:[%s754 + $0xf8] sm:$0xff]
        %v3768 = vld [vmem:[%s754 + $0x100] sm:$0xff]
        %v3769 = vld [vmem:[%s754 + $0x108] sm:$0xff]
        %v3770 = vld [vmem:[%s754 + $0x110] sm:$0xff]
        %v3771 = vld [vmem:[%s754 + $0x118] sm:$0xff]
        %v3772 = vld [vmem:[%s754 + $0x120] sm:$0xff]
        %v3773 = vld [vmem:[%s754 + $0x128] sm:$0xff]
        %v3774 = vld [vmem:[%s754 + $0x130] sm:$0xff]
        %v3775 = vld [vmem:[%s754 + $0x138] sm:$0xff]
        %v3776 = vld [vmem:[%s754 + $0x140] sm:$0xff]
        %v3777 = vld [vmem:[%s754 + $0x148] sm:$0xff]
        %v3778 = vld [vmem:[%s754 + $0x150] sm:$0xff]
        %v3779 = vld [vmem:[%s754 + $0x158] sm:$0xff]
        %v3780 = vld [vmem:[%s754 + $0x160] sm:$0xff]
        %v3781 = vld [vmem:[%s754 + $0x168] sm:$0xff]
        %v3782 = vld [vmem:[%s754 + $0x170] sm:$0xff]
        %v3783 = vld [vmem:[%s754 + $0x178] sm:$0xff]
        %v3784 = vld [vmem:[%s754 + $0x180] sm:$0xff]
        %v3785 = vld [vmem:[%s754 + $0x188] sm:$0xff]
        %v3786 = vld [vmem:[%s754 + $0x190] sm:$0xff]
        %v3787 = vld [vmem:[%s754 + $0x198] sm:$0xff]
        %v3788 = vld [vmem:[%s754 + $0x1a0] sm:$0xff]
        %v3789 = vld [vmem:[%s754 + $0x1a8] sm:$0xff]
        %v3790 = vld [vmem:[%s754 + $0x1b0] sm:$0xff]
        %v3791 = vld [vmem:[%s754 + $0x1b8] sm:$0xff]
        %v3792 = vld [vmem:[%s754 + $0x1c0] sm:$0xff]
        %v3793 = vld [vmem:[%s754 + $0x1c8] sm:$0xff]
        %v3794 = vld [vmem:[%s754 + $0x1d0] sm:$0xff]
        %v3795 = vld [vmem:[%s754 + $0x1d8] sm:$0xff]
        %v3796 = vld [vmem:[%s754 + $0x1e0] sm:$0xff]
        %v3797 = vld [vmem:[%s754 + $0x1e8] sm:$0xff]
        %v3798 = vld [vmem:[%s754 + $0x1f0] sm:$0xff]
        %v3799 = vld [vmem:[%s754 + $0x1f8] sm:$0xff]
        %v3800 = vld [vmem:[%s754 + $0x200] sm:$0xff]
        %v3801 = vld [vmem:[%s754 + $0x208] sm:$0xff]
        %v3802 = vld [vmem:[%s754 + $0x210] sm:$0xff]
        %v3803 = vld [vmem:[%s754 + $0x218] sm:$0xff]
        %v3804 = vld [vmem:[%s754 + $0x220] sm:$0xff]
        %v3805 = vld [vmem:[%s754 + $0x228] sm:$0xff]
        %v3806 = vld [vmem:[%s754 + $0x230] sm:$0xff]
        %v3807 = vld [vmem:[%s754 + $0x238] sm:$0xff]
        %v3808 = vld [vmem:[%s754 + $0x240] sm:$0xff]
        %v3809 = vld [vmem:[%s754 + $0x248] sm:$0xff]
        %v3810 = vld [vmem:[%s754 + $0x250] sm:$0xff]
        %v3811 = vld [vmem:[%s754 + $0x258] sm:$0xff]
        %v3812 = vld [vmem:[%s754 + $0x260] sm:$0xff]
        %v3813 = vld [vmem:[%s754 + $0x268] sm:$0xff]
        %v3814 = vld [vmem:[%s754 + $0x270] sm:$0xff]
        %v3815 = vld [vmem:[%s754 + $0x278] sm:$0xff]
        %v3816 = vld [vmem:[%s754 + $0x280] sm:$0xff]
        %v3817 = vld [vmem:[%s754 + $0x288] sm:$0xff]
        %v3818 = vld [vmem:[%s754 + $0x290] sm:$0xff]
        %v3819 = vld [vmem:[%s754 + $0x298] sm:$0xff]
        %v3820 = vld [vmem:[%s754 + $0x2a0] sm:$0xff]
        %v3821 = vld [vmem:[%s754 + $0x2a8] sm:$0xff]
        %v3822 = vld [vmem:[%s754 + $0x2b0] sm:$0xff]
        %v3823 = vld [vmem:[%s754 + $0x2b8] sm:$0xff]
        %v3824 = vld [vmem:[%s754 + $0x2c0] sm:$0xff]
        %v3825 = vld [vmem:[%s754 + $0x2c8] sm:$0xff]
        %v3826 = vld [vmem:[%s754 + $0x2d0] sm:$0xff]
        %v3827 = vld [vmem:[%s754 + $0x2d8] sm:$0xff]
        %v3828 = vld [vmem:[%s754 + $0x2e0] sm:$0xff]
        %v3829 = vld [vmem:[%s754 + $0x2e8] sm:$0xff]
        %v3830 = vld [vmem:[%s754 + $0x2f0] sm:$0xff]
        %v3831 = vld [vmem:[%s754 + $0x2f8] sm:$0xff]
        %v3832 = vld [vmem:[%s754 + $0x300] sm:$0xff]
        %v3833 = vld [vmem:[%s754 + $0x308] sm:$0xff]
        %v3834 = vld [vmem:[%s754 + $0x310] sm:$0xff]
        %v3835 = vld [vmem:[%s754 + $0x318] sm:$0xff]
        %v3836 = vld [vmem:[%s754 + $0x320] sm:$0xff]
        %v3837 = vld [vmem:[%s754 + $0x328] sm:$0xff]
        %v3838 = vld [vmem:[%s754 + $0x330] sm:$0xff]
        %v3839 = vld [vmem:[%s754 + $0x338] sm:$0xff]
        %v3840 = vld [vmem:[%s754 + $0x340] sm:$0xff]
        %v3841 = vld [vmem:[%s754 + $0x348] sm:$0xff]
        %v3842 = vld [vmem:[%s754 + $0x350] sm:$0xff]
        %v3843 = vld [vmem:[%s754 + $0x358] sm:$0xff]
        %v3844 = vld [vmem:[%s754 + $0x360] sm:$0xff]
        %v3845 = vld [vmem:[%s754 + $0x368] sm:$0xff]
        %v3846 = vld [vmem:[%s754 + $0x370] sm:$0xff]
        %v3847 = vld [vmem:[%s754 + $0x378] sm:$0xff]
        %v3848 = vld [vmem:[%s754 + $0x380] sm:$0xff]
        %v3849 = vld [vmem:[%s754 + $0x388] sm:$0xff]
        %v3850 = vld [vmem:[%s754 + $0x390] sm:$0xff]
        %v3851 = vld [vmem:[%s754 + $0x398] sm:$0xff]
        %v3852 = vld [vmem:[%s754 + $0x3a0] sm:$0xff]
        %v3853 = vld [vmem:[%s754 + $0x3a8] sm:$0xff]
        %v3854 = vld [vmem:[%s754 + $0x3b0] sm:$0xff]
        %v3855 = vld [vmem:[%s754 + $0x3b8] sm:$0xff]
        %v3856 = vld [vmem:[%s754 + $0x3c0] sm:$0xff]
        %v3857 = vld [vmem:[%s754 + $0x3c8] sm:$0xff]
        %v3858 = vld [vmem:[%s754 + $0x3d0] sm:$0xff]
        %v3859 = vld [vmem:[%s754 + $0x3d8] sm:$0xff]
        %v3860 = vld [vmem:[%s754 + $0x3e0] sm:$0xff]
        %v3861 = vld [vmem:[%s754 + $0x3e8] sm:$0xff]
        %v3862 = vld [vmem:[%s754 + $0x3f0] sm:$0xff]
        %v3863 = vld [vmem:[%s754 + $0x3f8] sm:$0xff]
        %v3864 = vpack.c.bf16 %v3734, %v3732
        %v3865 = vpack.c.bf16 %v3735, %v3733
        %v3866 = vld [vmem:[%s763] sm:$0xff]
        %v3868 = vlaneseq
        %v3869 = vshrl.u32 %v3868, 7
        %v3870 = vsub.s32 0, %v3869
        %v3871 = vrot.slane %v3866, %v3870
        %v3872 = vlaneseq
        %v3873 = vshrl.u32 %v3872, 7
        %v3874 = vsub.s32 1, %v3873
        %v3875 = vrot.slane %v3866, %v3874
        %v3876 = vlaneseq
        %v3877 = vshrl.u32 %v3876, 7
        %v3878 = vsub.s32 2, %v3877
        %v3879 = vrot.slane %v3866, %v3878
        %v3880 = vlaneseq
        %v3881 = vshrl.u32 %v3880, 7
        %v3882 = vsub.s32 3, %v3881
        %v3883 = vrot.slane %v3866, %v3882
        %v3884 = vlaneseq
        %v3885 = vshrl.u32 %v3884, 7
        %v3886 = vsub.s32 4, %v3885
        %v3887 = vrot.slane %v3866, %v3886
        %v3888 = vlaneseq
        %v3889 = vshrl.u32 %v3888, 7
        %v3890 = vsub.s32 5, %v3889
        %v3891 = vrot.slane %v3866, %v3890
        %v3892 = vlaneseq
        %v3893 = vshrl.u32 %v3892, 7
        %v3894 = vsub.s32 6, %v3893
        %v3895 = vrot.slane %v3866, %v3894
        %v3896 = vlaneseq
        %v3897 = vshrl.u32 %v3896, 7
        %v3898 = vsub.s32 7, %v3897
        %v3899 = vrot.slane %v3866, %v3898
        %v4036 = vunpack.c.l.b16 %v3736
        %v4037 = vunpack.c.h.b16 %v3736
        %v4038 = vunpack.c.l.b16 %v3737
        %v4039 = vunpack.c.h.b16 %v3737
        %v4040 = vunpack.c.l.b16 %v3738
        %v4041 = vunpack.c.h.b16 %v3738
        %v4042 = vunpack.c.l.b16 %v3739
        %v4043 = vunpack.c.h.b16 %v3739
        %v4044 = vunpack.c.l.b16 %v3740
        %v4045 = vunpack.c.h.b16 %v3740
        %v4046 = vunpack.c.l.b16 %v3741
        %v4047 = vunpack.c.h.b16 %v3741
        %v4048 = vunpack.c.l.b16 %v3742
        %v4049 = vunpack.c.h.b16 %v3742
        %v4050 = vunpack.c.l.b16 %v3743
        %v4051 = vunpack.c.h.b16 %v3743
        %v4052 = vunpack.c.l.b16 %v3744
        %v4053 = vunpack.c.h.b16 %v3744
        %v4054 = vunpack.c.l.b16 %v3745
        %v4055 = vunpack.c.h.b16 %v3745
        %v4056 = vunpack.c.l.b16 %v3746
        %v4057 = vunpack.c.h.b16 %v3746
        %v4058 = vunpack.c.l.b16 %v3747
        %v4059 = vunpack.c.h.b16 %v3747
        %v4060 = vunpack.c.l.b16 %v3748
        %v4061 = vunpack.c.h.b16 %v3748
        %v4062 = vunpack.c.l.b16 %v3749
        %v4063 = vunpack.c.h.b16 %v3749
        %v4064 = vunpack.c.l.b16 %v3750
        %v4065 = vunpack.c.h.b16 %v3750
        %v4066 = vunpack.c.l.b16 %v3751
        %v4067 = vunpack.c.h.b16 %v3751
        %v4068 = vunpack.c.l.b16 %v3752
        %v4069 = vunpack.c.h.b16 %v3752
        %v4070 = vunpack.c.l.b16 %v3753
        %v4071 = vunpack.c.h.b16 %v3753
        %v4072 = vunpack.c.l.b16 %v3754
        %v4073 = vunpack.c.h.b16 %v3754
        %v4074 = vunpack.c.l.b16 %v3755
        %v4075 = vunpack.c.h.b16 %v3755
        %v4076 = vunpack.c.l.b16 %v3756
        %v4077 = vunpack.c.h.b16 %v3756
        %v4078 = vunpack.c.l.b16 %v3757
        %v4079 = vunpack.c.h.b16 %v3757
        %v4080 = vunpack.c.l.b16 %v3758
        %v4081 = vunpack.c.h.b16 %v3758
        %v4082 = vunpack.c.l.b16 %v3759
        %v4083 = vunpack.c.h.b16 %v3759
        %v4084 = vunpack.c.l.b16 %v3760
        %v4085 = vunpack.c.h.b16 %v3760
        %v4086 = vunpack.c.l.b16 %v3761
        %v4087 = vunpack.c.h.b16 %v3761
        %v4088 = vunpack.c.l.b16 %v3762
        %v4089 = vunpack.c.h.b16 %v3762
        %v4090 = vunpack.c.l.b16 %v3763
        %v4091 = vunpack.c.h.b16 %v3763
        %v4092 = vunpack.c.l.b16 %v3764
        %v4093 = vunpack.c.h.b16 %v3764
        %v4094 = vunpack.c.l.b16 %v3765
        %v4095 = vunpack.c.h.b16 %v3765
        %v4096 = vunpack.c.l.b16 %v3766
        %v4097 = vunpack.c.h.b16 %v3766
        %v4098 = vunpack.c.l.b16 %v3767
        %v4099 = vunpack.c.h.b16 %v3767
        %v4100 = vunpack.c.l.b16 %v3768
        %v4101 = vunpack.c.h.b16 %v3768
        %v4102 = vunpack.c.l.b16 %v3769
        %v4103 = vunpack.c.h.b16 %v3769
        %v4104 = vunpack.c.l.b16 %v3770
        %v4105 = vunpack.c.h.b16 %v3770
        %v4106 = vunpack.c.l.b16 %v3771
        %v4107 = vunpack.c.h.b16 %v3771
        %v4108 = vunpack.c.l.b16 %v3772
        %v4109 = vunpack.c.h.b16 %v3772
        %v4110 = vunpack.c.l.b16 %v3773
        %v4111 = vunpack.c.h.b16 %v3773
        %v4112 = vunpack.c.l.b16 %v3774
        %v4113 = vunpack.c.h.b16 %v3774
        %v4114 = vunpack.c.l.b16 %v3775
        %v4115 = vunpack.c.h.b16 %v3775
        %v4116 = vunpack.c.l.b16 %v3776
        %v4117 = vunpack.c.h.b16 %v3776
        %v4118 = vunpack.c.l.b16 %v3777
        %v4119 = vunpack.c.h.b16 %v3777
        %v4120 = vunpack.c.l.b16 %v3778
        %v4121 = vunpack.c.h.b16 %v3778
        %v4122 = vunpack.c.l.b16 %v3779
        %v4123 = vunpack.c.h.b16 %v3779
        %v4124 = vunpack.c.l.b16 %v3780
        %v4125 = vunpack.c.h.b16 %v3780
        %v4126 = vunpack.c.l.b16 %v3781
        %v4127 = vunpack.c.h.b16 %v3781
        %v4128 = vunpack.c.l.b16 %v3782
        %v4129 = vunpack.c.h.b16 %v3782
        %v4130 = vunpack.c.l.b16 %v3783
        %v4131 = vunpack.c.h.b16 %v3783
        %v4132 = vunpack.c.l.b16 %v3784
        %v4133 = vunpack.c.h.b16 %v3784
        %v4134 = vunpack.c.l.b16 %v3785
        %v4135 = vunpack.c.h.b16 %v3785
        %v4136 = vunpack.c.l.b16 %v3786
        %v4137 = vunpack.c.h.b16 %v3786
        %v4138 = vunpack.c.l.b16 %v3787
        %v4139 = vunpack.c.h.b16 %v3787
        %v4140 = vunpack.c.l.b16 %v3788
        %v4141 = vunpack.c.h.b16 %v3788
        %v4142 = vunpack.c.l.b16 %v3789
        %v4143 = vunpack.c.h.b16 %v3789
        %v4144 = vunpack.c.l.b16 %v3790
        %v4145 = vunpack.c.h.b16 %v3790
        %v4146 = vunpack.c.l.b16 %v3791
        %v4147 = vunpack.c.h.b16 %v3791
        %v4148 = vunpack.c.l.b16 %v3792
        %v4149 = vunpack.c.h.b16 %v3792
        %v4150 = vunpack.c.l.b16 %v3793
        %v4151 = vunpack.c.h.b16 %v3793
        %v4152 = vunpack.c.l.b16 %v3794
        %v4153 = vunpack.c.h.b16 %v3794
        %v4154 = vunpack.c.l.b16 %v3795
        %v4155 = vunpack.c.h.b16 %v3795
        %v4156 = vunpack.c.l.b16 %v3796
        %v4157 = vunpack.c.h.b16 %v3796
        %v4158 = vunpack.c.l.b16 %v3797
        %v4159 = vunpack.c.h.b16 %v3797
        %v4160 = vunpack.c.l.b16 %v3798
        %v4161 = vunpack.c.h.b16 %v3798
        %v4162 = vunpack.c.l.b16 %v3799
        %v4163 = vunpack.c.h.b16 %v3799
        %v4164 = vunpack.c.l.b16 %v3800
        %v4165 = vunpack.c.h.b16 %v3800
        %v4166 = vunpack.c.l.b16 %v3801
        %v4167 = vunpack.c.h.b16 %v3801
        %v4168 = vunpack.c.l.b16 %v3802
        %v4169 = vunpack.c.h.b16 %v3802
        %v4170 = vunpack.c.l.b16 %v3803
        %v4171 = vunpack.c.h.b16 %v3803
        %v4172 = vunpack.c.l.b16 %v3804
        %v4173 = vunpack.c.h.b16 %v3804
        %v4174 = vunpack.c.l.b16 %v3805
        %v4175 = vunpack.c.h.b16 %v3805
        %v4176 = vunpack.c.l.b16 %v3806
        %v4177 = vunpack.c.h.b16 %v3806
        %v4178 = vunpack.c.l.b16 %v3807
        %v4179 = vunpack.c.h.b16 %v3807
        %v4180 = vunpack.c.l.b16 %v3808
        %v4181 = vunpack.c.h.b16 %v3808
        %v4182 = vunpack.c.l.b16 %v3809
        %v4183 = vunpack.c.h.b16 %v3809
        %v4184 = vunpack.c.l.b16 %v3810
        %v4185 = vunpack.c.h.b16 %v3810
        %v4186 = vunpack.c.l.b16 %v3811
        %v4187 = vunpack.c.h.b16 %v3811
        %v4188 = vunpack.c.l.b16 %v3812
        %v4189 = vunpack.c.h.b16 %v3812
        %v4190 = vunpack.c.l.b16 %v3813
        %v4191 = vunpack.c.h.b16 %v3813
        %v4192 = vunpack.c.l.b16 %v3814
        %v4193 = vunpack.c.h.b16 %v3814
        %v4194 = vunpack.c.l.b16 %v3815
        %v4195 = vunpack.c.h.b16 %v3815
        %v4196 = vunpack.c.l.b16 %v3816
        %v4197 = vunpack.c.h.b16 %v3816
        %v4198 = vunpack.c.l.b16 %v3817
        %v4199 = vunpack.c.h.b16 %v3817
        %v4200 = vunpack.c.l.b16 %v3818
        %v4201 = vunpack.c.h.b16 %v3818
        %v4202 = vunpack.c.l.b16 %v3819
        %v4203 = vunpack.c.h.b16 %v3819
        %v4204 = vunpack.c.l.b16 %v3820
        %v4205 = vunpack.c.h.b16 %v3820
        %v4206 = vunpack.c.l.b16 %v3821
        %v4207 = vunpack.c.h.b16 %v3821
        %v4208 = vunpack.c.l.b16 %v3822
        %v4209 = vunpack.c.h.b16 %v3822
        %v4210 = vunpack.c.l.b16 %v3823
        %v4211 = vunpack.c.h.b16 %v3823
        %v4212 = vunpack.c.l.b16 %v3824
        %v4213 = vunpack.c.h.b16 %v3824
        %v4214 = vunpack.c.l.b16 %v3825
        %v4215 = vunpack.c.h.b16 %v3825
        %v4216 = vunpack.c.l.b16 %v3826
        %v4217 = vunpack.c.h.b16 %v3826
        %v4218 = vunpack.c.l.b16 %v3827
        %v4219 = vunpack.c.h.b16 %v3827
        %v4220 = vunpack.c.l.b16 %v3828
        %v4221 = vunpack.c.h.b16 %v3828
        %v4222 = vunpack.c.l.b16 %v3829
        %v4223 = vunpack.c.h.b16 %v3829
        %v4224 = vunpack.c.l.b16 %v3830
        %v4225 = vunpack.c.h.b16 %v3830
        %v4226 = vunpack.c.l.b16 %v3831
        %v4227 = vunpack.c.h.b16 %v3831
        %v4228 = vunpack.c.l.b16 %v3832
        %v4229 = vunpack.c.h.b16 %v3832
        %v4230 = vunpack.c.l.b16 %v3833
        %v4231 = vunpack.c.h.b16 %v3833
        %v4232 = vunpack.c.l.b16 %v3834
        %v4233 = vunpack.c.h.b16 %v3834
        %v4234 = vunpack.c.l.b16 %v3835
        %v4235 = vunpack.c.h.b16 %v3835
        %v4236 = vunpack.c.l.b16 %v3836
        %v4237 = vunpack.c.h.b16 %v3836
        %v4238 = vunpack.c.l.b16 %v3837
        %v4239 = vunpack.c.h.b16 %v3837
        %v4240 = vunpack.c.l.b16 %v3838
        %v4241 = vunpack.c.h.b16 %v3838
        %v4242 = vunpack.c.l.b16 %v3839
        %v4243 = vunpack.c.h.b16 %v3839
        %v4244 = vunpack.c.l.b16 %v3840
        %v4245 = vunpack.c.h.b16 %v3840
        %v4246 = vunpack.c.l.b16 %v3841
        %v4247 = vunpack.c.h.b16 %v3841
        %v4248 = vunpack.c.l.b16 %v3842
        %v4249 = vunpack.c.h.b16 %v3842
        %v4250 = vunpack.c.l.b16 %v3843
        %v4251 = vunpack.c.h.b16 %v3843
        %v4252 = vunpack.c.l.b16 %v3844
        %v4253 = vunpack.c.h.b16 %v3844
        %v4254 = vunpack.c.l.b16 %v3845
        %v4255 = vunpack.c.h.b16 %v3845
        %v4256 = vunpack.c.l.b16 %v3846
        %v4257 = vunpack.c.h.b16 %v3846
        %v4258 = vunpack.c.l.b16 %v3847
        %v4259 = vunpack.c.h.b16 %v3847
        %v4260 = vunpack.c.l.b16 %v3848
        %v4261 = vunpack.c.h.b16 %v3848
        %v4262 = vunpack.c.l.b16 %v3849
        %v4263 = vunpack.c.h.b16 %v3849
        %v4264 = vunpack.c.l.b16 %v3850
        %v4265 = vunpack.c.h.b16 %v3850
        %v4266 = vunpack.c.l.b16 %v3851
        %v4267 = vunpack.c.h.b16 %v3851
        %v4268 = vunpack.c.l.b16 %v3852
        %v4269 = vunpack.c.h.b16 %v3852
        %v4270 = vunpack.c.l.b16 %v3853
        %v4271 = vunpack.c.h.b16 %v3853
        %v4272 = vunpack.c.l.b16 %v3854
        %v4273 = vunpack.c.h.b16 %v3854
        %v4274 = vunpack.c.l.b16 %v3855
        %v4275 = vunpack.c.h.b16 %v3855
        %v4276 = vunpack.c.l.b16 %v3856
        %v4277 = vunpack.c.h.b16 %v3856
        %v4278 = vunpack.c.l.b16 %v3857
        %v4279 = vunpack.c.h.b16 %v3857
        %v4280 = vunpack.c.l.b16 %v3858
        %v4281 = vunpack.c.h.b16 %v3858
        %v4282 = vunpack.c.l.b16 %v3859
        %v4283 = vunpack.c.h.b16 %v3859
        %v4284 = vunpack.c.l.b16 %v3860
        %v4285 = vunpack.c.h.b16 %v3860
        %v4286 = vunpack.c.l.b16 %v3861
        %v4287 = vunpack.c.h.b16 %v3861
        %v4288 = vunpack.c.l.b16 %v3862
        %v4289 = vunpack.c.h.b16 %v3862
        %v4290 = vunpack.c.l.b16 %v3863
        %v4291 = vunpack.c.h.b16 %v3863
        %v4292 = vpack.c.b16 %v4044, %v4036
        %v4293 = vpack.c.b16 %v4045, %v4037
        %v4294 = vpack.c.b16 %v4046, %v4038
        %v4295 = vpack.c.b16 %v4047, %v4039
        %v4296 = vpack.c.b16 %v4048, %v4040
        %v4297 = vpack.c.b16 %v4049, %v4041
        %v4298 = vpack.c.b16 %v4050, %v4042
        %v4299 = vpack.c.b16 %v4051, %v4043
        %v4300 = vpack.c.b16 %v4060, %v4052
        %v4301 = vpack.c.b16 %v4061, %v4053
        %v4302 = vpack.c.b16 %v4062, %v4054
        %v4303 = vpack.c.b16 %v4063, %v4055
        %v4304 = vpack.c.b16 %v4064, %v4056
        %v4305 = vpack.c.b16 %v4065, %v4057
        %v4306 = vpack.c.b16 %v4066, %v4058
        %v4307 = vpack.c.b16 %v4067, %v4059
        %v4308 = vpack.c.b16 %v4076, %v4068
        %v4309 = vpack.c.b16 %v4077, %v4069
        %v4310 = vpack.c.b16 %v4078, %v4070
        %v4311 = vpack.c.b16 %v4079, %v4071
        %v4312 = vpack.c.b16 %v4080, %v4072
        %v4313 = vpack.c.b16 %v4081, %v4073
        %v4314 = vpack.c.b16 %v4082, %v4074
        %v4315 = vpack.c.b16 %v4083, %v4075
        %v4316 = vpack.c.b16 %v4092, %v4084
        %v4317 = vpack.c.b16 %v4093, %v4085
        %v4318 = vpack.c.b16 %v4094, %v4086
        %v4319 = vpack.c.b16 %v4095, %v4087
        %v4320 = vpack.c.b16 %v4096, %v4088
        %v4321 = vpack.c.b16 %v4097, %v4089
        %v4322 = vpack.c.b16 %v4098, %v4090
        %v4323 = vpack.c.b16 %v4099, %v4091
        %v4324 = vpack.c.b16 %v4108, %v4100
        %v4325 = vpack.c.b16 %v4109, %v4101
        %v4326 = vpack.c.b16 %v4110, %v4102
        %v4327 = vpack.c.b16 %v4111, %v4103
        %v4328 = vpack.c.b16 %v4112, %v4104
        %v4329 = vpack.c.b16 %v4113, %v4105
        %v4330 = vpack.c.b16 %v4114, %v4106
        %v4331 = vpack.c.b16 %v4115, %v4107
        %v4332 = vpack.c.b16 %v4124, %v4116
        %v4333 = vpack.c.b16 %v4125, %v4117
        %v4334 = vpack.c.b16 %v4126, %v4118
        %v4335 = vpack.c.b16 %v4127, %v4119
        %v4336 = vpack.c.b16 %v4128, %v4120
        %v4337 = vpack.c.b16 %v4129, %v4121
        %v4338 = vpack.c.b16 %v4130, %v4122
        %v4339 = vpack.c.b16 %v4131, %v4123
        %v4340 = vpack.c.b16 %v4140, %v4132
        %v4341 = vpack.c.b16 %v4141, %v4133
        %v4342 = vpack.c.b16 %v4142, %v4134
        %v4343 = vpack.c.b16 %v4143, %v4135
        %v4344 = vpack.c.b16 %v4144, %v4136
        %v4345 = vpack.c.b16 %v4145, %v4137
        %v4346 = vpack.c.b16 %v4146, %v4138
        %v4347 = vpack.c.b16 %v4147, %v4139
        %v4348 = vpack.c.b16 %v4156, %v4148
        %v4349 = vpack.c.b16 %v4157, %v4149
        %v4350 = vpack.c.b16 %v4158, %v4150
        %v4351 = vpack.c.b16 %v4159, %v4151
        %v4352 = vpack.c.b16 %v4160, %v4152
        %v4353 = vpack.c.b16 %v4161, %v4153
        %v4354 = vpack.c.b16 %v4162, %v4154
        %v4355 = vpack.c.b16 %v4163, %v4155
        %v4356 = vpack.c.b16 %v4172, %v4164
        %v4357 = vpack.c.b16 %v4173, %v4165
        %v4358 = vpack.c.b16 %v4174, %v4166
        %v4359 = vpack.c.b16 %v4175, %v4167
        %v4360 = vpack.c.b16 %v4176, %v4168
        %v4361 = vpack.c.b16 %v4177, %v4169
        %v4362 = vpack.c.b16 %v4178, %v4170
        %v4363 = vpack.c.b16 %v4179, %v4171
        %v4364 = vpack.c.b16 %v4188, %v4180
        %v4365 = vpack.c.b16 %v4189, %v4181
        %v4366 = vpack.c.b16 %v4190, %v4182
        %v4367 = vpack.c.b16 %v4191, %v4183
        %v4368 = vpack.c.b16 %v4192, %v4184
        %v4369 = vpack.c.b16 %v4193, %v4185
        %v4370 = vpack.c.b16 %v4194, %v4186
        %v4371 = vpack.c.b16 %v4195, %v4187
        %v4372 = vpack.c.b16 %v4204, %v4196
        %v4373 = vpack.c.b16 %v4205, %v4197
        %v4374 = vpack.c.b16 %v4206, %v4198
        %v4375 = vpack.c.b16 %v4207, %v4199
        %v4376 = vpack.c.b16 %v4208, %v4200
        %v4377 = vpack.c.b16 %v4209, %v4201
        %v4378 = vpack.c.b16 %v4210, %v4202
        %v4379 = vpack.c.b16 %v4211, %v4203
        %v4380 = vpack.c.b16 %v4220, %v4212
        %v4381 = vpack.c.b16 %v4221, %v4213
        %v4382 = vpack.c.b16 %v4222, %v4214
        %v4383 = vpack.c.b16 %v4223, %v4215
        %v4384 = vpack.c.b16 %v4224, %v4216
        %v4385 = vpack.c.b16 %v4225, %v4217
        %v4386 = vpack.c.b16 %v4226, %v4218
        %v4387 = vpack.c.b16 %v4227, %v4219
        %v4388 = vpack.c.b16 %v4236, %v4228
        %v4389 = vpack.c.b16 %v4237, %v4229
        %v4390 = vpack.c.b16 %v4238, %v4230
        %v4391 = vpack.c.b16 %v4239, %v4231
        %v4392 = vpack.c.b16 %v4240, %v4232
        %v4393 = vpack.c.b16 %v4241, %v4233
        %v4394 = vpack.c.b16 %v4242, %v4234
        %v4395 = vpack.c.b16 %v4243, %v4235
        %v4396 = vpack.c.b16 %v4252, %v4244
        %v4397 = vpack.c.b16 %v4253, %v4245
        %v4398 = vpack.c.b16 %v4254, %v4246
        %v4399 = vpack.c.b16 %v4255, %v4247
        %v4400 = vpack.c.b16 %v4256, %v4248
        %v4401 = vpack.c.b16 %v4257, %v4249
        %v4402 = vpack.c.b16 %v4258, %v4250
        %v4403 = vpack.c.b16 %v4259, %v4251
        %v4404 = vpack.c.b16 %v4268, %v4260
        %v4405 = vpack.c.b16 %v4269, %v4261
        %v4406 = vpack.c.b16 %v4270, %v4262
        %v4407 = vpack.c.b16 %v4271, %v4263
        %v4408 = vpack.c.b16 %v4272, %v4264
        %v4409 = vpack.c.b16 %v4273, %v4265
        %v4410 = vpack.c.b16 %v4274, %v4266
        %v4411 = vpack.c.b16 %v4275, %v4267
        %v4412 = vpack.c.b16 %v4284, %v4276
        %v4413 = vpack.c.b16 %v4285, %v4277
        %v4414 = vpack.c.b16 %v4286, %v4278
        %v4415 = vpack.c.b16 %v4287, %v4279
        %v4416 = vpack.c.b16 %v4288, %v4280
        %v4417 = vpack.c.b16 %v4289, %v4281
        %v4418 = vpack.c.b16 %v4290, %v4282
        %v4419 = vpack.c.b16 %v4291, %v4283
        %4548 = vmatprep.subr.bf16.mxu0 %v4349
        %4549 = vmatpush1.bf16.msra.mxu0 %v4348
        %4550 = vmatprep.subr.bf16.mxu0 %v4341
        %4551 = vmatpush1.bf16.msra.mxu0 %v4340
        %4552 = vmatprep.subr.bf16.mxu0 %v4333
        %4553 = vmatpush1.bf16.msra.mxu0 %v4332
        %4554 = vmatprep.subr.bf16.mxu0 %v4325
        %4555 = vmatpush1.bf16.msra.mxu0 %v4324
        %4556 = vmatprep.subr.bf16.mxu0 %v4317
        %4557 = vmatpush1.bf16.msra.mxu0 %v4316
        %4558 = vmatprep.subr.bf16.mxu0 %v4309
        %4559 = vmatpush1.bf16.msra.mxu0 %v4308
        %4560 = vmatprep.subr.bf16.mxu0 %v4301
        %4561 = vmatpush1.bf16.msra.mxu0 %v4300
        %4562 = vmatprep.subr.bf16.mxu0 %v4293
        %4563 = vmatpush1.bf16.msra.mxu0 %v4292
        %4564 = vmatprep.subr.bf16.mxu0 %v4413
        %4565 = vmatpush2.bf16.msra.mxu0 %v4412
        %4566 = vmatprep.subr.bf16.mxu0 %v4405
        %4567 = vmatpush2.bf16.msra.mxu0 %v4404
        %4568 = vmatprep.subr.bf16.mxu0 %v4397
        %4569 = vmatpush2.bf16.msra.mxu0 %v4396
        %4570 = vmatprep.subr.bf16.mxu0 %v4389
        %4571 = vmatpush2.bf16.msra.mxu0 %v4388
        %4572 = vmatprep.subr.bf16.mxu0 %v4381
        %4573 = vmatpush2.bf16.msra.mxu0 %v4380
        %4574 = vmatprep.subr.bf16.mxu0 %v4373
        %4575 = vmatpush2.bf16.msra.mxu0 %v4372
        %4576 = vmatprep.subr.bf16.mxu0 %v4365
        %4577 = vmatpush2.bf16.msra.mxu0 %v4364
        %4578 = vmatprep.subr.bf16.mxu0 %v4357
        %4579 = vmatpush2.bf16.msra.mxu0 %v4356
        %4580 = vmatprep.mubr.bf16.mxu0 %v3865
        %4581 = vmatmul.mubr.bf16.gmra.mxu0 %v3864
        %v4582 = vpop.f32.mrf.mxu0
        %v4583 = vadd.f32 %v3871, %v4582
        %v4584 = vpop.f32.mrf.mxu0
        %v4585 = vadd.f32 %v3875, %v4584
        %v4586 = vpop.f32.mrf.mxu0
        %v4587 = vadd.f32 %v3871, %v4586
        %v4588 = vpop.f32.mrf.mxu0
        %v4589 = vadd.f32 %v3875, %v4588
        %4590 = vdwg.mxu0
        %4591 = vmatprep.subr.bf16.mxu0 %v4351
        %4592 = vmatpush1.bf16.msra.mxu0 %v4350
        %4593 = vmatprep.subr.bf16.mxu0 %v4343
        %4594 = vmatpush1.bf16.msra.mxu0 %v4342
        %4595 = vmatprep.subr.bf16.mxu0 %v4335
        %4596 = vmatpush1.bf16.msra.mxu0 %v4334
        %4597 = vmatprep.subr.bf16.mxu0 %v4327
        %4598 = vmatpush1.bf16.msra.mxu0 %v4326
        %4599 = vmatprep.subr.bf16.mxu0 %v4319
        %4600 = vmatpush1.bf16.msra.mxu0 %v4318
        %4601 = vmatprep.subr.bf16.mxu0 %v4311
        %4602 = vmatpush1.bf16.msra.mxu0 %v4310
        %4603 = vmatprep.subr.bf16.mxu0 %v4303
        %4604 = vmatpush1.bf16.msra.mxu0 %v4302
        %4605 = vmatprep.subr.bf16.mxu0 %v4295
        %4606 = vmatpush1.bf16.msra.mxu0 %v4294
        %4607 = vmatprep.subr.bf16.mxu0 %v4415
        %4608 = vmatpush2.bf16.msra.mxu0 %v4414
        %4609 = vmatprep.subr.bf16.mxu0 %v4407
        %4610 = vmatpush2.bf16.msra.mxu0 %v4406
        %4611 = vmatprep.subr.bf16.mxu0 %v4399
        %4612 = vmatpush2.bf16.msra.mxu0 %v4398
        %4613 = vmatprep.subr.bf16.mxu0 %v4391
        %4614 = vmatpush2.bf16.msra.mxu0 %v4390
        %4615 = vmatprep.subr.bf16.mxu0 %v4383
        %4616 = vmatpush2.bf16.msra.mxu0 %v4382
        %4617 = vmatprep.subr.bf16.mxu0 %v4375
        %4618 = vmatpush2.bf16.msra.mxu0 %v4374
        %4619 = vmatprep.subr.bf16.mxu0 %v4367
        %4620 = vmatpush2.bf16.msra.mxu0 %v4366
        %4621 = vmatprep.subr.bf16.mxu0 %v4359
        %4622 = vmatpush2.bf16.msra.mxu0 %v4358
        %4623 = vmatprep.mubr.bf16.mxu0 %v3865
        %4624 = vmatmul.mubr.bf16.gmra.mxu0 %v3864
        %v4625 = vpop.f32.mrf.mxu0
        %v4626 = vadd.f32 %v3879, %v4625
        %v4627 = vpop.f32.mrf.mxu0
        %v4628 = vadd.f32 %v3883, %v4627
        %v4629 = vpop.f32.mrf.mxu0
        %v4630 = vadd.f32 %v3879, %v4629
        %v4631 = vpop.f32.mrf.mxu0
        %v4632 = vadd.f32 %v3883, %v4631
        %4633 = vdwg.mxu0
        %4634 = vmatprep.subr.bf16.mxu0 %v4353
        %4635 = vmatpush1.bf16.msra.mxu0 %v4352
        %4636 = vmatprep.subr.bf16.mxu0 %v4345
        %4637 = vmatpush1.bf16.msra.mxu0 %v4344
        %4638 = vmatprep.subr.bf16.mxu0 %v4337
        %4639 = vmatpush1.bf16.msra.mxu0 %v4336
        %4640 = vmatprep.subr.bf16.mxu0 %v4329
        %4641 = vmatpush1.bf16.msra.mxu0 %v4328
        %4642 = vmatprep.subr.bf16.mxu0 %v4321
        %4643 = vmatpush1.bf16.msra.mxu0 %v4320
        %4644 = vmatprep.subr.bf16.mxu0 %v4313
        %4645 = vmatpush1.bf16.msra.mxu0 %v4312
        %4646 = vmatprep.subr.bf16.mxu0 %v4305
        %4647 = vmatpush1.bf16.msra.mxu0 %v4304
        %4648 = vmatprep.subr.bf16.mxu0 %v4297
        %4649 = vmatpush1.bf16.msra.mxu0 %v4296
        %4650 = vmatprep.subr.bf16.mxu0 %v4417
        %4651 = vmatpush2.bf16.msra.mxu0 %v4416
        %4652 = vmatprep.subr.bf16.mxu0 %v4409
        %4653 = vmatpush2.bf16.msra.mxu0 %v4408
        %4654 = vmatprep.subr.bf16.mxu0 %v4401
        %4655 = vmatpush2.bf16.msra.mxu0 %v4400
        %4656 = vmatprep.subr.bf16.mxu0 %v4393
        %4657 = vmatpush2.bf16.msra.mxu0 %v4392
        %4658 = vmatprep.subr.bf16.mxu0 %v4385
        %4659 = vmatpush2.bf16.msra.mxu0 %v4384
        %4660 = vmatprep.subr.bf16.mxu0 %v4377
        %4661 = vmatpush2.bf16.msra.mxu0 %v4376
        %4662 = vmatprep.subr.bf16.mxu0 %v4369
        %4663 = vmatpush2.bf16.msra.mxu0 %v4368
        %4664 = vmatprep.subr.bf16.mxu0 %v4361
        %4665 = vmatpush2.bf16.msra.mxu0 %v4360
        %4666 = vmatprep.mubr.bf16.mxu0 %v3865
        %4667 = vmatmul.mubr.bf16.gmra.mxu0 %v3864
        %v4668 = vpop.f32.mrf.mxu0
        %v4669 = vadd.f32 %v3887, %v4668
        %v4670 = vpop.f32.mrf.mxu0
        %v4671 = vadd.f32 %v3891, %v4670
        %v4672 = vpop.f32.mrf.mxu0
        %v4673 = vadd.f32 %v3887, %v4672
        %v4674 = vpop.f32.mrf.mxu0
        %v4675 = vadd.f32 %v3891, %v4674
        %4676 = vdwg.mxu0
        %4677 = vmatprep.subr.bf16.mxu0 %v4355
        %4678 = vmatpush1.bf16.msra.mxu0 %v4354
        %4679 = vmatprep.subr.bf16.mxu0 %v4347
        %4680 = vmatpush1.bf16.msra.mxu0 %v4346
        %4681 = vmatprep.subr.bf16.mxu0 %v4339
        %4682 = vmatpush1.bf16.msra.mxu0 %v4338
        %4683 = vmatprep.subr.bf16.mxu0 %v4331
        %4684 = vmatpush1.bf16.msra.mxu0 %v4330
        %4685 = vmatprep.subr.bf16.mxu0 %v4323
        %4686 = vmatpush1.bf16.msra.mxu0 %v4322
        %4687 = vmatprep.subr.bf16.mxu0 %v4315
        %4688 = vmatpush1.bf16.msra.mxu0 %v4314
        %4689 = vmatprep.subr.bf16.mxu0 %v4307
        %4690 = vmatpush1.bf16.msra.mxu0 %v4306
        %4691 = vmatprep.subr.bf16.mxu0 %v4299
        %4692 = vmatpush1.bf16.msra.mxu0 %v4298
        %4693 = vmatprep.subr.bf16.mxu0 %v4419
        %4694 = vmatpush2.bf16.msra.mxu0 %v4418
        %4695 = vmatprep.subr.bf16.mxu0 %v4411
        %4696 = vmatpush2.bf16.msra.mxu0 %v4410
        %4697 = vmatprep.subr.bf16.mxu0 %v4403
        %4698 = vmatpush2.bf16.msra.mxu0 %v4402
        %4699 = vmatprep.subr.bf16.mxu0 %v4395
        %4700 = vmatpush2.bf16.msra.mxu0 %v4394
        %4701 = vmatprep.subr.bf16.mxu0 %v4387
        %4702 = vmatpush2.bf16.msra.mxu0 %v4386
        %4703 = vmatprep.subr.bf16.mxu0 %v4379
        %4704 = vmatpush2.bf16.msra.mxu0 %v4378
        %4705 = vmatprep.subr.bf16.mxu0 %v4371
        %4706 = vmatpush2.bf16.msra.mxu0 %v4370
        %4707 = vmatprep.subr.bf16.mxu0 %v4363
        %4708 = vmatpush2.bf16.msra.mxu0 %v4362
        %4709 = vmatprep.mubr.bf16.mxu0 %v3865
        %4710 = vmatmul.mubr.bf16.gmra.mxu0 %v3864
        %v4711 = vpop.f32.mrf.mxu0
        %v4712 = vadd.f32 %v3895, %v4711
        %v4713 = vpop.f32.mrf.mxu0
        %v4714 = vadd.f32 %v3899, %v4713
        %v4715 = vpop.f32.mrf.mxu0
        %v4716 = vadd.f32 %v3895, %v4715
        %v4717 = vpop.f32.mrf.mxu0
        %v4718 = vadd.f32 %v3899, %v4717
        %4719 = vdwg.mxu0
        %v4720 = vmul.f32 %v4583, %v4583
        %v4721 = vmul.f32 %v4585, %v4585
        %v4722 = vmul.f32 %v4626, %v4626
        %v4723 = vmul.f32 %v4628, %v4628
        %v4724 = vmul.f32 %v4669, %v4669
        %v4725 = vmul.f32 %v4671, %v4671
        %v4726 = vmul.f32 %v4712, %v4712
        %v4727 = vmul.f32 %v4714, %v4714
        %v4728 = vmul.f32 %v4587, %v4587
        %v4729 = vmul.f32 %v4589, %v4589
        %v4730 = vmul.f32 %v4630, %v4630
        %v4731 = vmul.f32 %v4632, %v4632
        %v4732 = vmul.f32 %v4673, %v4673
        %v4733 = vmul.f32 %v4675, %v4675
        %v4734 = vmul.f32 %v4716, %v4716
        %v4735 = vmul.f32 %v4718, %v4718
        %v4736 = vmul.f32 %v4583, %v4720
        %v4737 = vmul.f32 %v4585, %v4721
        %v4738 = vmul.f32 %v4626, %v4722
        %v4739 = vmul.f32 %v4628, %v4723
        %v4740 = vmul.f32 %v4669, %v4724
        %v4741 = vmul.f32 %v4671, %v4725
        %v4742 = vmul.f32 %v4712, %v4726
        %v4743 = vmul.f32 %v4714, %v4727
        %v4744 = vmul.f32 %v4587, %v4728
        %v4745 = vmul.f32 %v4589, %v4729
        %v4746 = vmul.f32 %v4630, %v4730
        %v4747 = vmul.f32 %v4632, %v4731
        %v4748 = vmul.f32 %v4673, %v4732
        %v4749 = vmul.f32 %v4675, %v4733
        %v4750 = vmul.f32 %v4716, %v4734
        %v4751 = vmul.f32 %v4718, %v4735
        %v4752 = vmul.f32 %v4736, 0.044715
        %v4753 = vmul.f32 %v4737, 0.044715
        %v4754 = vmul.f32 %v4738, 0.044715
        %v4755 = vmul.f32 %v4739, 0.044715
        %v4756 = vmul.f32 %v4740, 0.044715
        %v4757 = vmul.f32 %v4741, 0.044715
        %v4758 = vmul.f32 %v4742, 0.044715
        %v4759 = vmul.f32 %v4743, 0.044715
        %v4760 = vmul.f32 %v4744, 0.044715
        %v4761 = vmul.f32 %v4745, 0.044715
        %v4762 = vmul.f32 %v4746, 0.044715
        %v4763 = vmul.f32 %v4747, 0.044715
        %v4764 = vmul.f32 %v4748, 0.044715
        %v4765 = vmul.f32 %v4749, 0.044715
        %v4766 = vmul.f32 %v4750, 0.044715
        %v4767 = vmul.f32 %v4751, 0.044715
        %v4768 = vadd.f32 %v4583, %v4752
        %v4769 = vadd.f32 %v4585, %v4753
        %v4770 = vadd.f32 %v4626, %v4754
        %v4771 = vadd.f32 %v4628, %v4755
        %v4772 = vadd.f32 %v4669, %v4756
        %v4773 = vadd.f32 %v4671, %v4757
        %v4774 = vadd.f32 %v4712, %v4758
        %v4775 = vadd.f32 %v4714, %v4759
        %v4776 = vadd.f32 %v4587, %v4760
        %v4777 = vadd.f32 %v4589, %v4761
        %v4778 = vadd.f32 %v4630, %v4762
        %v4779 = vadd.f32 %v4632, %v4763
        %v4780 = vadd.f32 %v4673, %v4764
        %v4781 = vadd.f32 %v4675, %v4765
        %v4782 = vadd.f32 %v4716, %v4766
        %v4783 = vadd.f32 %v4718, %v4767
        %v4784 = vmul.f32 %v4768, 0.7978846
        %v4785 = vmul.f32 %v4769, 0.7978846
        %v4786 = vmul.f32 %v4770, 0.7978846
        %v4787 = vmul.f32 %v4771, 0.7978846
        %v4788 = vmul.f32 %v4772, 0.7978846
        %v4789 = vmul.f32 %v4773, 0.7978846
        %v4790 = vmul.f32 %v4774, 0.7978846
        %v4791 = vmul.f32 %v4775, 0.7978846
        %v4792 = vmul.f32 %v4776, 0.7978846
        %v4793 = vmul.f32 %v4777, 0.7978846
        %v4794 = vmul.f32 %v4778, 0.7978846
        %v4795 = vmul.f32 %v4779, 0.7978846
        %v4796 = vmul.f32 %v4780, 0.7978846
        %v4797 = vmul.f32 %v4781, 0.7978846
        %v4798 = vmul.f32 %v4782, 0.7978846
        %v4799 = vmul.f32 %v4783, 0.7978846
        %v4800 = vtanh.pop %v4784
        %v4801 = vtanh.pop %v4785
        %v4802 = vtanh.pop %v4786
        %v4803 = vtanh.pop %v4787
        %v4804 = vtanh.pop %v4788
        %v4805 = vtanh.pop %v4789
        %v4806 = vtanh.pop %v4790
        %v4807 = vtanh.pop %v4791
        %v4808 = vtanh.pop %v4792
        %v4809 = vtanh.pop %v4793
        %v4810 = vtanh.pop %v4794
        %v4811 = vtanh.pop %v4795
        %v4812 = vtanh.pop %v4796
        %v4813 = vtanh.pop %v4797
        %v4814 = vtanh.pop %v4798
        %v4815 = vtanh.pop %v4799
        %v4816 = vadd.f32 %v4800, 1.0
        %v4817 = vadd.f32 %v4801, 1.0
        %v4818 = vadd.f32 %v4802, 1.0
        %v4819 = vadd.f32 %v4803, 1.0
        %v4820 = vadd.f32 %v4804, 1.0
        %v4821 = vadd.f32 %v4805, 1.0
        %v4822 = vadd.f32 %v4806, 1.0
        %v4823 = vadd.f32 %v4807, 1.0
        %v4824 = vadd.f32 %v4808, 1.0
        %v4825 = vadd.f32 %v4809, 1.0
        %v4826 = vadd.f32 %v4810, 1.0
        %v4827 = vadd.f32 %v4811, 1.0
        %v4828 = vadd.f32 %v4812, 1.0
        %v4829 = vadd.f32 %v4813, 1.0
        %v4830 = vadd.f32 %v4814, 1.0
        %v4831 = vadd.f32 %v4815, 1.0
        %v4832 = vmul.f32 %v4816, 0.5
        %v4833 = vmul.f32 %v4817, 0.5
        %v4834 = vmul.f32 %v4818, 0.5
        %v4835 = vmul.f32 %v4819, 0.5
        %v4836 = vmul.f32 %v4820, 0.5
        %v4837 = vmul.f32 %v4821, 0.5
        %v4838 = vmul.f32 %v4822, 0.5
        %v4839 = vmul.f32 %v4823, 0.5
        %v4840 = vmul.f32 %v4824, 0.5
        %v4841 = vmul.f32 %v4825, 0.5
        %v4842 = vmul.f32 %v4826, 0.5
        %v4843 = vmul.f32 %v4827, 0.5
        %v4844 = vmul.f32 %v4828, 0.5
        %v4845 = vmul.f32 %v4829, 0.5
        %v4846 = vmul.f32 %v4830, 0.5
        %v4847 = vmul.f32 %v4831, 0.5
        %v4848 = vmul.f32 %v4583, %v4832
        %v4849 = vmul.f32 %v4585, %v4833
        %v4850 = vmul.f32 %v4626, %v4834
        %v4851 = vmul.f32 %v4628, %v4835
        %v4852 = vmul.f32 %v4669, %v4836
        %v4853 = vmul.f32 %v4671, %v4837
        %v4854 = vmul.f32 %v4712, %v4838
        %v4855 = vmul.f32 %v4714, %v4839
        %v4856 = vmul.f32 %v4587, %v4840
        %v4857 = vmul.f32 %v4589, %v4841
        %v4858 = vmul.f32 %v4630, %v4842
        %v4859 = vmul.f32 %v4632, %v4843
        %v4860 = vmul.f32 %v4673, %v4844
        %v4861 = vmul.f32 %v4675, %v4845
        %v4862 = vmul.f32 %v4716, %v4846
        %v4863 = vmul.f32 %v4718, %v4847
        %v4864 = vld [vmem:[%s772] sm:$0xff]
        %v4865 = vld [vmem:[%s772 + $0x8] sm:$0xff]
        %v4866 = vld [vmem:[%s772 + $0x10] sm:$0xff]
        %v4867 = vld [vmem:[%s772 + $0x18] sm:$0xff]
        %v4868 = vld [vmem:[%s772 + $0x20] sm:$0xff]
        %v4869 = vld [vmem:[%s772 + $0x28] sm:$0xff]
        %v4870 = vld [vmem:[%s772 + $0x30] sm:$0xff]
        %v4871 = vld [vmem:[%s772 + $0x38] sm:$0xff]
        %v4872 = vld [vmem:[%s772 + $0x40] sm:$0xff]
        %v4873 = vld [vmem:[%s772 + $0x48] sm:$0xff]
        %v4874 = vld [vmem:[%s772 + $0x50] sm:$0xff]
        %v4875 = vld [vmem:[%s772 + $0x58] sm:$0xff]
        %v4876 = vld [vmem:[%s772 + $0x60] sm:$0xff]
        %v4877 = vld [vmem:[%s772 + $0x68] sm:$0xff]
        %v4878 = vld [vmem:[%s772 + $0x70] sm:$0xff]
        %v4879 = vld [vmem:[%s772 + $0x78] sm:$0xff]
        %v4880 = vld [vmem:[%s772 + $0x80] sm:$0xff]
        %v4881 = vld [vmem:[%s772 + $0x88] sm:$0xff]
        %v4882 = vld [vmem:[%s772 + $0x90] sm:$0xff]
        %v4883 = vld [vmem:[%s772 + $0x98] sm:$0xff]
        %v4884 = vld [vmem:[%s772 + $0xa0] sm:$0xff]
        %v4885 = vld [vmem:[%s772 + $0xa8] sm:$0xff]
        %v4886 = vld [vmem:[%s772 + $0xb0] sm:$0xff]
        %v4887 = vld [vmem:[%s772 + $0xb8] sm:$0xff]
        %v4888 = vld [vmem:[%s772 + $0xc0] sm:$0xff]
        %v4889 = vld [vmem:[%s772 + $0xc8] sm:$0xff]
        %v4890 = vld [vmem:[%s772 + $0xd0] sm:$0xff]
        %v4891 = vld [vmem:[%s772 + $0xd8] sm:$0xff]
        %v4892 = vld [vmem:[%s772 + $0xe0] sm:$0xff]
        %v4893 = vld [vmem:[%s772 + $0xe8] sm:$0xff]
        %v4894 = vld [vmem:[%s772 + $0xf0] sm:$0xff]
        %v4895 = vld [vmem:[%s772 + $0xf8] sm:$0xff]
        %v4896 = vld [vmem:[%s772 + $0x100] sm:$0xff]
        %v4897 = vld [vmem:[%s772 + $0x108] sm:$0xff]
        %v4898 = vld [vmem:[%s772 + $0x110] sm:$0xff]
        %v4899 = vld [vmem:[%s772 + $0x118] sm:$0xff]
        %v4900 = vld [vmem:[%s772 + $0x120] sm:$0xff]
        %v4901 = vld [vmem:[%s772 + $0x128] sm:$0xff]
        %v4902 = vld [vmem:[%s772 + $0x130] sm:$0xff]
        %v4903 = vld [vmem:[%s772 + $0x138] sm:$0xff]
        %v4904 = vld [vmem:[%s772 + $0x140] sm:$0xff]
        %v4905 = vld [vmem:[%s772 + $0x148] sm:$0xff]
        %v4906 = vld [vmem:[%s772 + $0x150] sm:$0xff]
        %v4907 = vld [vmem:[%s772 + $0x158] sm:$0xff]
        %v4908 = vld [vmem:[%s772 + $0x160] sm:$0xff]
        %v4909 = vld [vmem:[%s772 + $0x168] sm:$0xff]
        %v4910 = vld [vmem:[%s772 + $0x170] sm:$0xff]
        %v4911 = vld [vmem:[%s772 + $0x178] sm:$0xff]
        %v4912 = vld [vmem:[%s772 + $0x180] sm:$0xff]
        %v4913 = vld [vmem:[%s772 + $0x188] sm:$0xff]
        %v4914 = vld [vmem:[%s772 + $0x190] sm:$0xff]
        %v4915 = vld [vmem:[%s772 + $0x198] sm:$0xff]
        %v4916 = vld [vmem:[%s772 + $0x1a0] sm:$0xff]
        %v4917 = vld [vmem:[%s772 + $0x1a8] sm:$0xff]
        %v4918 = vld [vmem:[%s772 + $0x1b0] sm:$0xff]
        %v4919 = vld [vmem:[%s772 + $0x1b8] sm:$0xff]
        %v4920 = vld [vmem:[%s772 + $0x1c0] sm:$0xff]
        %v4921 = vld [vmem:[%s772 + $0x1c8] sm:$0xff]
        %v4922 = vld [vmem:[%s772 + $0x1d0] sm:$0xff]
        %v4923 = vld [vmem:[%s772 + $0x1d8] sm:$0xff]
        %v4924 = vld [vmem:[%s772 + $0x1e0] sm:$0xff]
        %v4925 = vld [vmem:[%s772 + $0x1e8] sm:$0xff]
        %v4926 = vld [vmem:[%s772 + $0x1f0] sm:$0xff]
        %v4927 = vld [vmem:[%s772 + $0x1f8] sm:$0xff]
        %v4928 = vld [vmem:[%s772 + $0x200] sm:$0xff]
        %v4929 = vld [vmem:[%s772 + $0x208] sm:$0xff]
        %v4930 = vld [vmem:[%s772 + $0x210] sm:$0xff]
        %v4931 = vld [vmem:[%s772 + $0x218] sm:$0xff]
        %v4932 = vld [vmem:[%s772 + $0x220] sm:$0xff]
        %v4933 = vld [vmem:[%s772 + $0x228] sm:$0xff]
        %v4934 = vld [vmem:[%s772 + $0x230] sm:$0xff]
        %v4935 = vld [vmem:[%s772 + $0x238] sm:$0xff]
        %v4936 = vld [vmem:[%s772 + $0x240] sm:$0xff]
        %v4937 = vld [vmem:[%s772 + $0x248] sm:$0xff]
        %v4938 = vld [vmem:[%s772 + $0x250] sm:$0xff]
        %v4939 = vld [vmem:[%s772 + $0x258] sm:$0xff]
        %v4940 = vld [vmem:[%s772 + $0x260] sm:$0xff]
        %v4941 = vld [vmem:[%s772 + $0x268] sm:$0xff]
        %v4942 = vld [vmem:[%s772 + $0x270] sm:$0xff]
        %v4943 = vld [vmem:[%s772 + $0x278] sm:$0xff]
        %v4944 = vld [vmem:[%s772 + $0x280] sm:$0xff]
        %v4945 = vld [vmem:[%s772 + $0x288] sm:$0xff]
        %v4946 = vld [vmem:[%s772 + $0x290] sm:$0xff]
        %v4947 = vld [vmem:[%s772 + $0x298] sm:$0xff]
        %v4948 = vld [vmem:[%s772 + $0x2a0] sm:$0xff]
        %v4949 = vld [vmem:[%s772 + $0x2a8] sm:$0xff]
        %v4950 = vld [vmem:[%s772 + $0x2b0] sm:$0xff]
        %v4951 = vld [vmem:[%s772 + $0x2b8] sm:$0xff]
        %v4952 = vld [vmem:[%s772 + $0x2c0] sm:$0xff]
        %v4953 = vld [vmem:[%s772 + $0x2c8] sm:$0xff]
        %v4954 = vld [vmem:[%s772 + $0x2d0] sm:$0xff]
        %v4955 = vld [vmem:[%s772 + $0x2d8] sm:$0xff]
        %v4956 = vld [vmem:[%s772 + $0x2e0] sm:$0xff]
        %v4957 = vld [vmem:[%s772 + $0x2e8] sm:$0xff]
        %v4958 = vld [vmem:[%s772 + $0x2f0] sm:$0xff]
        %v4959 = vld [vmem:[%s772 + $0x2f8] sm:$0xff]
        %v4960 = vld [vmem:[%s772 + $0x300] sm:$0xff]
        %v4961 = vld [vmem:[%s772 + $0x308] sm:$0xff]
        %v4962 = vld [vmem:[%s772 + $0x310] sm:$0xff]
        %v4963 = vld [vmem:[%s772 + $0x318] sm:$0xff]
        %v4964 = vld [vmem:[%s772 + $0x320] sm:$0xff]
        %v4965 = vld [vmem:[%s772 + $0x328] sm:$0xff]
        %v4966 = vld [vmem:[%s772 + $0x330] sm:$0xff]
        %v4967 = vld [vmem:[%s772 + $0x338] sm:$0xff]
        %v4968 = vld [vmem:[%s772 + $0x340] sm:$0xff]
        %v4969 = vld [vmem:[%s772 + $0x348] sm:$0xff]
        %v4970 = vld [vmem:[%s772 + $0x350] sm:$0xff]
        %v4971 = vld [vmem:[%s772 + $0x358] sm:$0xff]
        %v4972 = vld [vmem:[%s772 + $0x360] sm:$0xff]
        %v4973 = vld [vmem:[%s772 + $0x368] sm:$0xff]
        %v4974 = vld [vmem:[%s772 + $0x370] sm:$0xff]
        %v4975 = vld [vmem:[%s772 + $0x378] sm:$0xff]
        %v4976 = vld [vmem:[%s772 + $0x380] sm:$0xff]
        %v4977 = vld [vmem:[%s772 + $0x388] sm:$0xff]
        %v4978 = vld [vmem:[%s772 + $0x390] sm:$0xff]
        %v4979 = vld [vmem:[%s772 + $0x398] sm:$0xff]
        %v4980 = vld [vmem:[%s772 + $0x3a0] sm:$0xff]
        %v4981 = vld [vmem:[%s772 + $0x3a8] sm:$0xff]
        %v4982 = vld [vmem:[%s772 + $0x3b0] sm:$0xff]
        %v4983 = vld [vmem:[%s772 + $0x3b8] sm:$0xff]
        %v4984 = vld [vmem:[%s772 + $0x3c0] sm:$0xff]
        %v4985 = vld [vmem:[%s772 + $0x3c8] sm:$0xff]
        %v4986 = vld [vmem:[%s772 + $0x3d0] sm:$0xff]
        %v4987 = vld [vmem:[%s772 + $0x3d8] sm:$0xff]
        %v4988 = vld [vmem:[%s772 + $0x3e0] sm:$0xff]
        %v4989 = vld [vmem:[%s772 + $0x3e8] sm:$0xff]
        %v4990 = vld [vmem:[%s772 + $0x3f0] sm:$0xff]
        %v4991 = vld [vmem:[%s772 + $0x3f8] sm:$0xff]
        %v4992 = vpack.c.bf16 %v4856, %v4848
        %v4993 = vpack.c.bf16 %v4857, %v4849
        %v4994 = vpack.c.bf16 %v4858, %v4850
        %v4995 = vpack.c.bf16 %v4859, %v4851
        %v4996 = vpack.c.bf16 %v4860, %v4852
        %v4997 = vpack.c.bf16 %v4861, %v4853
        %v4998 = vpack.c.bf16 %v4862, %v4854
        %v4999 = vpack.c.bf16 %v4863, %v4855
        %v5000 = vld [vmem:[%s781] sm:$0x3]
        %v5002 = vlaneseq
        %v5003 = vshrl.u32 %v5002, 7
        %v5004 = vsub.s32 0, %v5003
        %v5005 = vrot.slane %v5000, %v5004
        %v5006 = vlaneseq
        %v5007 = vshrl.u32 %v5006, 7
        %v5008 = vsub.s32 1, %v5007
        %v5009 = vrot.slane %v5000, %v5008
        %v5140 = vunpack.c.l.b16 %v4864
        %v5141 = vunpack.c.h.b16 %v4864
        %v5142 = vunpack.c.l.b16 %v4865
        %v5143 = vunpack.c.h.b16 %v4865
        %v5144 = vunpack.c.l.b16 %v4866
        %v5145 = vunpack.c.h.b16 %v4866
        %v5146 = vunpack.c.l.b16 %v4867
        %v5147 = vunpack.c.h.b16 %v4867
        %v5148 = vunpack.c.l.b16 %v4868
        %v5149 = vunpack.c.h.b16 %v4868
        %v5150 = vunpack.c.l.b16 %v4869
        %v5151 = vunpack.c.h.b16 %v4869
        %v5152 = vunpack.c.l.b16 %v4870
        %v5153 = vunpack.c.h.b16 %v4870
        %v5154 = vunpack.c.l.b16 %v4871
        %v5155 = vunpack.c.h.b16 %v4871
        %v5156 = vunpack.c.l.b16 %v4872
        %v5157 = vunpack.c.h.b16 %v4872
        %v5158 = vunpack.c.l.b16 %v4873
        %v5159 = vunpack.c.h.b16 %v4873
        %v5160 = vunpack.c.l.b16 %v4874
        %v5161 = vunpack.c.h.b16 %v4874
        %v5162 = vunpack.c.l.b16 %v4875
        %v5163 = vunpack.c.h.b16 %v4875
        %v5164 = vunpack.c.l.b16 %v4876
        %v5165 = vunpack.c.h.b16 %v4876
        %v5166 = vunpack.c.l.b16 %v4877
        %v5167 = vunpack.c.h.b16 %v4877
        %v5168 = vunpack.c.l.b16 %v4878
        %v5169 = vunpack.c.h.b16 %v4878
        %v5170 = vunpack.c.l.b16 %v4879
        %v5171 = vunpack.c.h.b16 %v4879
        %v5172 = vunpack.c.l.b16 %v4880
        %v5173 = vunpack.c.h.b16 %v4880
        %v5174 = vunpack.c.l.b16 %v4881
        %v5175 = vunpack.c.h.b16 %v4881
        %v5176 = vunpack.c.l.b16 %v4882
        %v5177 = vunpack.c.h.b16 %v4882
        %v5178 = vunpack.c.l.b16 %v4883
        %v5179 = vunpack.c.h.b16 %v4883
        %v5180 = vunpack.c.l.b16 %v4884
        %v5181 = vunpack.c.h.b16 %v4884
        %v5182 = vunpack.c.l.b16 %v4885
        %v5183 = vunpack.c.h.b16 %v4885
        %v5184 = vunpack.c.l.b16 %v4886
        %v5185 = vunpack.c.h.b16 %v4886
        %v5186 = vunpack.c.l.b16 %v4887
        %v5187 = vunpack.c.h.b16 %v4887
        %v5188 = vunpack.c.l.b16 %v4888
        %v5189 = vunpack.c.h.b16 %v4888
        %v5190 = vunpack.c.l.b16 %v4889
        %v5191 = vunpack.c.h.b16 %v4889
        %v5192 = vunpack.c.l.b16 %v4890
        %v5193 = vunpack.c.h.b16 %v4890
        %v5194 = vunpack.c.l.b16 %v4891
        %v5195 = vunpack.c.h.b16 %v4891
        %v5196 = vunpack.c.l.b16 %v4892
        %v5197 = vunpack.c.h.b16 %v4892
        %v5198 = vunpack.c.l.b16 %v4893
        %v5199 = vunpack.c.h.b16 %v4893
        %v5200 = vunpack.c.l.b16 %v4894
        %v5201 = vunpack.c.h.b16 %v4894
        %v5202 = vunpack.c.l.b16 %v4895
        %v5203 = vunpack.c.h.b16 %v4895
        %v5204 = vunpack.c.l.b16 %v4896
        %v5205 = vunpack.c.h.b16 %v4896
        %v5206 = vunpack.c.l.b16 %v4897
        %v5207 = vunpack.c.h.b16 %v4897
        %v5208 = vunpack.c.l.b16 %v4898
        %v5209 = vunpack.c.h.b16 %v4898
        %v5210 = vunpack.c.l.b16 %v4899
        %v5211 = vunpack.c.h.b16 %v4899
        %v5212 = vunpack.c.l.b16 %v4900
        %v5213 = vunpack.c.h.b16 %v4900
        %v5214 = vunpack.c.l.b16 %v4901
        %v5215 = vunpack.c.h.b16 %v4901
        %v5216 = vunpack.c.l.b16 %v4902
        %v5217 = vunpack.c.h.b16 %v4902
        %v5218 = vunpack.c.l.b16 %v4903
        %v5219 = vunpack.c.h.b16 %v4903
        %v5220 = vunpack.c.l.b16 %v4904
        %v5221 = vunpack.c.h.b16 %v4904
        %v5222 = vunpack.c.l.b16 %v4905
        %v5223 = vunpack.c.h.b16 %v4905
        %v5224 = vunpack.c.l.b16 %v4906
        %v5225 = vunpack.c.h.b16 %v4906
        %v5226 = vunpack.c.l.b16 %v4907
        %v5227 = vunpack.c.h.b16 %v4907
        %v5228 = vunpack.c.l.b16 %v4908
        %v5229 = vunpack.c.h.b16 %v4908
        %v5230 = vunpack.c.l.b16 %v4909
        %v5231 = vunpack.c.h.b16 %v4909
        %v5232 = vunpack.c.l.b16 %v4910
        %v5233 = vunpack.c.h.b16 %v4910
        %v5234 = vunpack.c.l.b16 %v4911
        %v5235 = vunpack.c.h.b16 %v4911
        %v5236 = vunpack.c.l.b16 %v4912
        %v5237 = vunpack.c.h.b16 %v4912
        %v5238 = vunpack.c.l.b16 %v4913
        %v5239 = vunpack.c.h.b16 %v4913
        %v5240 = vunpack.c.l.b16 %v4914
        %v5241 = vunpack.c.h.b16 %v4914
        %v5242 = vunpack.c.l.b16 %v4915
        %v5243 = vunpack.c.h.b16 %v4915
        %v5244 = vunpack.c.l.b16 %v4916
        %v5245 = vunpack.c.h.b16 %v4916
        %v5246 = vunpack.c.l.b16 %v4917
        %v5247 = vunpack.c.h.b16 %v4917
        %v5248 = vunpack.c.l.b16 %v4918
        %v5249 = vunpack.c.h.b16 %v4918
        %v5250 = vunpack.c.l.b16 %v4919
        %v5251 = vunpack.c.h.b16 %v4919
        %v5252 = vunpack.c.l.b16 %v4920
        %v5253 = vunpack.c.h.b16 %v4920
        %v5254 = vunpack.c.l.b16 %v4921
        %v5255 = vunpack.c.h.b16 %v4921
        %v5256 = vunpack.c.l.b16 %v4922
        %v5257 = vunpack.c.h.b16 %v4922
        %v5258 = vunpack.c.l.b16 %v4923
        %v5259 = vunpack.c.h.b16 %v4923
        %v5260 = vunpack.c.l.b16 %v4924
        %v5261 = vunpack.c.h.b16 %v4924
        %v5262 = vunpack.c.l.b16 %v4925
        %v5263 = vunpack.c.h.b16 %v4925
        %v5264 = vunpack.c.l.b16 %v4926
        %v5265 = vunpack.c.h.b16 %v4926
        %v5266 = vunpack.c.l.b16 %v4927
        %v5267 = vunpack.c.h.b16 %v4927
        %v5268 = vunpack.c.l.b16 %v4928
        %v5269 = vunpack.c.h.b16 %v4928
        %v5270 = vunpack.c.l.b16 %v4929
        %v5271 = vunpack.c.h.b16 %v4929
        %v5272 = vunpack.c.l.b16 %v4930
        %v5273 = vunpack.c.h.b16 %v4930
        %v5274 = vunpack.c.l.b16 %v4931
        %v5275 = vunpack.c.h.b16 %v4931
        %v5276 = vunpack.c.l.b16 %v4932
        %v5277 = vunpack.c.h.b16 %v4932
        %v5278 = vunpack.c.l.b16 %v4933
        %v5279 = vunpack.c.h.b16 %v4933
        %v5280 = vunpack.c.l.b16 %v4934
        %v5281 = vunpack.c.h.b16 %v4934
        %v5282 = vunpack.c.l.b16 %v4935
        %v5283 = vunpack.c.h.b16 %v4935
        %v5284 = vunpack.c.l.b16 %v4936
        %v5285 = vunpack.c.h.b16 %v4936
        %v5286 = vunpack.c.l.b16 %v4937
        %v5287 = vunpack.c.h.b16 %v4937
        %v5288 = vunpack.c.l.b16 %v4938
        %v5289 = vunpack.c.h.b16 %v4938
        %v5290 = vunpack.c.l.b16 %v4939
        %v5291 = vunpack.c.h.b16 %v4939
        %v5292 = vunpack.c.l.b16 %v4940
        %v5293 = vunpack.c.h.b16 %v4940
        %v5294 = vunpack.c.l.b16 %v4941
        %v5295 = vunpack.c.h.b16 %v4941
        %v5296 = vunpack.c.l.b16 %v4942
        %v5297 = vunpack.c.h.b16 %v4942
        %v5298 = vunpack.c.l.b16 %v4943
        %v5299 = vunpack.c.h.b16 %v4943
        %v5300 = vunpack.c.l.b16 %v4944
        %v5301 = vunpack.c.h.b16 %v4944
        %v5302 = vunpack.c.l.b16 %v4945
        %v5303 = vunpack.c.h.b16 %v4945
        %v5304 = vunpack.c.l.b16 %v4946
        %v5305 = vunpack.c.h.b16 %v4946
        %v5306 = vunpack.c.l.b16 %v4947
        %v5307 = vunpack.c.h.b16 %v4947
        %v5308 = vunpack.c.l.b16 %v4948
        %v5309 = vunpack.c.h.b16 %v4948
        %v5310 = vunpack.c.l.b16 %v4949
        %v5311 = vunpack.c.h.b16 %v4949
        %v5312 = vunpack.c.l.b16 %v4950
        %v5313 = vunpack.c.h.b16 %v4950
        %v5314 = vunpack.c.l.b16 %v4951
        %v5315 = vunpack.c.h.b16 %v4951
        %v5316 = vunpack.c.l.b16 %v4952
        %v5317 = vunpack.c.h.b16 %v4952
        %v5318 = vunpack.c.l.b16 %v4953
        %v5319 = vunpack.c.h.b16 %v4953
        %v5320 = vunpack.c.l.b16 %v4954
        %v5321 = vunpack.c.h.b16 %v4954
        %v5322 = vunpack.c.l.b16 %v4955
        %v5323 = vunpack.c.h.b16 %v4955
        %v5324 = vunpack.c.l.b16 %v4956
        %v5325 = vunpack.c.h.b16 %v4956
        %v5326 = vunpack.c.l.b16 %v4957
        %v5327 = vunpack.c.h.b16 %v4957
        %v5328 = vunpack.c.l.b16 %v4958
        %v5329 = vunpack.c.h.b16 %v4958
        %v5330 = vunpack.c.l.b16 %v4959
        %v5331 = vunpack.c.h.b16 %v4959
        %v5332 = vunpack.c.l.b16 %v4960
        %v5333 = vunpack.c.h.b16 %v4960
        %v5334 = vunpack.c.l.b16 %v4961
        %v5335 = vunpack.c.h.b16 %v4961
        %v5336 = vunpack.c.l.b16 %v4962
        %v5337 = vunpack.c.h.b16 %v4962
        %v5338 = vunpack.c.l.b16 %v4963
        %v5339 = vunpack.c.h.b16 %v4963
        %v5340 = vunpack.c.l.b16 %v4964
        %v5341 = vunpack.c.h.b16 %v4964
        %v5342 = vunpack.c.l.b16 %v4965
        %v5343 = vunpack.c.h.b16 %v4965
        %v5344 = vunpack.c.l.b16 %v4966
        %v5345 = vunpack.c.h.b16 %v4966
        %v5346 = vunpack.c.l.b16 %v4967
        %v5347 = vunpack.c.h.b16 %v4967
        %v5348 = vunpack.c.l.b16 %v4968
        %v5349 = vunpack.c.h.b16 %v4968
        %v5350 = vunpack.c.l.b16 %v4969
        %v5351 = vunpack.c.h.b16 %v4969
        %v5352 = vunpack.c.l.b16 %v4970
        %v5353 = vunpack.c.h.b16 %v4970
        %v5354 = vunpack.c.l.b16 %v4971
        %v5355 = vunpack.c.h.b16 %v4971
        %v5356 = vunpack.c.l.b16 %v4972
        %v5357 = vunpack.c.h.b16 %v4972
        %v5358 = vunpack.c.l.b16 %v4973
        %v5359 = vunpack.c.h.b16 %v4973
        %v5360 = vunpack.c.l.b16 %v4974
        %v5361 = vunpack.c.h.b16 %v4974
        %v5362 = vunpack.c.l.b16 %v4975
        %v5363 = vunpack.c.h.b16 %v4975
        %v5364 = vunpack.c.l.b16 %v4976
        %v5365 = vunpack.c.h.b16 %v4976
        %v5366 = vunpack.c.l.b16 %v4977
        %v5367 = vunpack.c.h.b16 %v4977
        %v5368 = vunpack.c.l.b16 %v4978
        %v5369 = vunpack.c.h.b16 %v4978
        %v5370 = vunpack.c.l.b16 %v4979
        %v5371 = vunpack.c.h.b16 %v4979
        %v5372 = vunpack.c.l.b16 %v4980
        %v5373 = vunpack.c.h.b16 %v4980
        %v5374 = vunpack.c.l.b16 %v4981
        %v5375 = vunpack.c.h.b16 %v4981
        %v5376 = vunpack.c.l.b16 %v4982
        %v5377 = vunpack.c.h.b16 %v4982
        %v5378 = vunpack.c.l.b16 %v4983
        %v5379 = vunpack.c.h.b16 %v4983
        %v5380 = vunpack.c.l.b16 %v4984
        %v5381 = vunpack.c.h.b16 %v4984
        %v5382 = vunpack.c.l.b16 %v4985
        %v5383 = vunpack.c.h.b16 %v4985
        %v5384 = vunpack.c.l.b16 %v4986
        %v5385 = vunpack.c.h.b16 %v4986
        %v5386 = vunpack.c.l.b16 %v4987
        %v5387 = vunpack.c.h.b16 %v4987
        %v5388 = vunpack.c.l.b16 %v4988
        %v5389 = vunpack.c.h.b16 %v4988
        %v5390 = vunpack.c.l.b16 %v4989
        %v5391 = vunpack.c.h.b16 %v4989
        %v5392 = vunpack.c.l.b16 %v4990
        %v5393 = vunpack.c.h.b16 %v4990
        %v5394 = vunpack.c.l.b16 %v4991
        %v5395 = vunpack.c.h.b16 %v4991
        %v5396 = vpack.c.b16 %v5142, %v5140
        %v5397 = vpack.c.b16 %v5143, %v5141
        %v5398 = vpack.c.b16 %v5146, %v5144
        %v5399 = vpack.c.b16 %v5147, %v5145
        %v5400 = vpack.c.b16 %v5150, %v5148
        %v5401 = vpack.c.b16 %v5151, %v5149
        %v5402 = vpack.c.b16 %v5154, %v5152
        %v5403 = vpack.c.b16 %v5155, %v5153
        %v5404 = vpack.c.b16 %v5158, %v5156
        %v5405 = vpack.c.b16 %v5159, %v5157
        %v5406 = vpack.c.b16 %v5162, %v5160
        %v5407 = vpack.c.b16 %v5163, %v5161
        %v5408 = vpack.c.b16 %v5166, %v5164
        %v5409 = vpack.c.b16 %v5167, %v5165
        %v5410 = vpack.c.b16 %v5170, %v5168
        %v5411 = vpack.c.b16 %v5171, %v5169
        %v5412 = vpack.c.b16 %v5174, %v5172
        %v5413 = vpack.c.b16 %v5175, %v5173
        %v5414 = vpack.c.b16 %v5178, %v5176
        %v5415 = vpack.c.b16 %v5179, %v5177
        %v5416 = vpack.c.b16 %v5182, %v5180
        %v5417 = vpack.c.b16 %v5183, %v5181
        %v5418 = vpack.c.b16 %v5186, %v5184
        %v5419 = vpack.c.b16 %v5187, %v5185
        %v5420 = vpack.c.b16 %v5190, %v5188
        %v5421 = vpack.c.b16 %v5191, %v5189
        %v5422 = vpack.c.b16 %v5194, %v5192
        %v5423 = vpack.c.b16 %v5195, %v5193
        %v5424 = vpack.c.b16 %v5198, %v5196
        %v5425 = vpack.c.b16 %v5199, %v5197
        %v5426 = vpack.c.b16 %v5202, %v5200
        %v5427 = vpack.c.b16 %v5203, %v5201
        %v5428 = vpack.c.b16 %v5206, %v5204
        %v5429 = vpack.c.b16 %v5207, %v5205
        %v5430 = vpack.c.b16 %v5210, %v5208
        %v5431 = vpack.c.b16 %v5211, %v5209
        %v5432 = vpack.c.b16 %v5214, %v5212
        %v5433 = vpack.c.b16 %v5215, %v5213
        %v5434 = vpack.c.b16 %v5218, %v5216
        %v5435 = vpack.c.b16 %v5219, %v5217
        %v5436 = vpack.c.b16 %v5222, %v5220
        %v5437 = vpack.c.b16 %v5223, %v5221
        %v5438 = vpack.c.b16 %v5226, %v5224
        %v5439 = vpack.c.b16 %v5227, %v5225
        %v5440 = vpack.c.b16 %v5230, %v5228
        %v5441 = vpack.c.b16 %v5231, %v5229
        %v5442 = vpack.c.b16 %v5234, %v5232
        %v5443 = vpack.c.b16 %v5235, %v5233
        %v5444 = vpack.c.b16 %v5238, %v5236
        %v5445 = vpack.c.b16 %v5239, %v5237
        %v5446 = vpack.c.b16 %v5242, %v5240
        %v5447 = vpack.c.b16 %v5243, %v5241
        %v5448 = vpack.c.b16 %v5246, %v5244
        %v5449 = vpack.c.b16 %v5247, %v5245
        %v5450 = vpack.c.b16 %v5250, %v5248
        %v5451 = vpack.c.b16 %v5251, %v5249
        %v5452 = vpack.c.b16 %v5254, %v5252
        %v5453 = vpack.c.b16 %v5255, %v5253
        %v5454 = vpack.c.b16 %v5258, %v5256
        %v5455 = vpack.c.b16 %v5259, %v5257
        %v5456 = vpack.c.b16 %v5262, %v5260
        %v5457 = vpack.c.b16 %v5263, %v5261
        %v5458 = vpack.c.b16 %v5266, %v5264
        %v5459 = vpack.c.b16 %v5267, %v5265
        %v5460 = vpack.c.b16 %v5270, %v5268
        %v5461 = vpack.c.b16 %v5271, %v5269
        %v5462 = vpack.c.b16 %v5274, %v5272
        %v5463 = vpack.c.b16 %v5275, %v5273
        %v5464 = vpack.c.b16 %v5278, %v5276
        %v5465 = vpack.c.b16 %v5279, %v5277
        %v5466 = vpack.c.b16 %v5282, %v5280
        %v5467 = vpack.c.b16 %v5283, %v5281
        %v5468 = vpack.c.b16 %v5286, %v5284
        %v5469 = vpack.c.b16 %v5287, %v5285
        %v5470 = vpack.c.b16 %v5290, %v5288
        %v5471 = vpack.c.b16 %v5291, %v5289
        %v5472 = vpack.c.b16 %v5294, %v5292
        %v5473 = vpack.c.b16 %v5295, %v5293
        %v5474 = vpack.c.b16 %v5298, %v5296
        %v5475 = vpack.c.b16 %v5299, %v5297
        %v5476 = vpack.c.b16 %v5302, %v5300
        %v5477 = vpack.c.b16 %v5303, %v5301
        %v5478 = vpack.c.b16 %v5306, %v5304
        %v5479 = vpack.c.b16 %v5307, %v5305
        %v5480 = vpack.c.b16 %v5310, %v5308
        %v5481 = vpack.c.b16 %v5311, %v5309
        %v5482 = vpack.c.b16 %v5314, %v5312
        %v5483 = vpack.c.b16 %v5315, %v5313
        %v5484 = vpack.c.b16 %v5318, %v5316
        %v5485 = vpack.c.b16 %v5319, %v5317
        %v5486 = vpack.c.b16 %v5322, %v5320
        %v5487 = vpack.c.b16 %v5323, %v5321
        %v5488 = vpack.c.b16 %v5326, %v5324
        %v5489 = vpack.c.b16 %v5327, %v5325
        %v5490 = vpack.c.b16 %v5330, %v5328
        %v5491 = vpack.c.b16 %v5331, %v5329
        %v5492 = vpack.c.b16 %v5334, %v5332
        %v5493 = vpack.c.b16 %v5335, %v5333
        %v5494 = vpack.c.b16 %v5338, %v5336
        %v5495 = vpack.c.b16 %v5339, %v5337
        %v5496 = vpack.c.b16 %v5342, %v5340
        %v5497 = vpack.c.b16 %v5343, %v5341
        %v5498 = vpack.c.b16 %v5346, %v5344
        %v5499 = vpack.c.b16 %v5347, %v5345
        %v5500 = vpack.c.b16 %v5350, %v5348
        %v5501 = vpack.c.b16 %v5351, %v5349
        %v5502 = vpack.c.b16 %v5354, %v5352
        %v5503 = vpack.c.b16 %v5355, %v5353
        %v5504 = vpack.c.b16 %v5358, %v5356
        %v5505 = vpack.c.b16 %v5359, %v5357
        %v5506 = vpack.c.b16 %v5362, %v5360
        %v5507 = vpack.c.b16 %v5363, %v5361
        %v5508 = vpack.c.b16 %v5366, %v5364
        %v5509 = vpack.c.b16 %v5367, %v5365
        %v5510 = vpack.c.b16 %v5370, %v5368
        %v5511 = vpack.c.b16 %v5371, %v5369
        %v5512 = vpack.c.b16 %v5374, %v5372
        %v5513 = vpack.c.b16 %v5375, %v5373
        %v5514 = vpack.c.b16 %v5378, %v5376
        %v5515 = vpack.c.b16 %v5379, %v5377
        %v5516 = vpack.c.b16 %v5382, %v5380
        %v5517 = vpack.c.b16 %v5383, %v5381
        %v5518 = vpack.c.b16 %v5386, %v5384
        %v5519 = vpack.c.b16 %v5387, %v5385
        %v5520 = vpack.c.b16 %v5390, %v5388
        %v5521 = vpack.c.b16 %v5391, %v5389
        %v5522 = vpack.c.b16 %v5394, %v5392
        %v5523 = vpack.c.b16 %v5395, %v5393
        %5652 = vmatprep.subr.bf16.mxu0 %v5411
        %5653 = vmatpush1.bf16.msra.mxu0 %v5410
        %5654 = vmatprep.subr.bf16.mxu0 %v5409
        %5655 = vmatpush1.bf16.msra.mxu0 %v5408
        %5656 = vmatprep.subr.bf16.mxu0 %v5407
        %5657 = vmatpush1.bf16.msra.mxu0 %v5406
        %5658 = vmatprep.subr.bf16.mxu0 %v5405
        %5659 = vmatpush1.bf16.msra.mxu0 %v5404
        %5660 = vmatprep.subr.bf16.mxu0 %v5403
        %5661 = vmatpush1.bf16.msra.mxu0 %v5402
        %5662 = vmatprep.subr.bf16.mxu0 %v5401
        %5663 = vmatpush1.bf16.msra.mxu0 %v5400
        %5664 = vmatprep.subr.bf16.mxu0 %v5399
        %5665 = vmatpush1.bf16.msra.mxu0 %v5398
        %5666 = vmatprep.subr.bf16.mxu0 %v5397
        %5667 = vmatpush1.bf16.msra.mxu0 %v5396
        %5668 = vmatprep.subr.bf16.mxu0 %v5427
        %5669 = vmatpush2.bf16.msra.mxu0 %v5426
        %5670 = vmatprep.subr.bf16.mxu0 %v5425
        %5671 = vmatpush2.bf16.msra.mxu0 %v5424
        %5672 = vmatprep.subr.bf16.mxu0 %v5423
        %5673 = vmatpush2.bf16.msra.mxu0 %v5422
        %5674 = vmatprep.subr.bf16.mxu0 %v5421
        %5675 = vmatpush2.bf16.msra.mxu0 %v5420
        %5676 = vmatprep.subr.bf16.mxu0 %v5419
        %5677 = vmatpush2.bf16.msra.mxu0 %v5418
        %5678 = vmatprep.subr.bf16.mxu0 %v5417
        %5679 = vmatpush2.bf16.msra.mxu0 %v5416
        %5680 = vmatprep.subr.bf16.mxu0 %v5415
        %5681 = vmatpush2.bf16.msra.mxu0 %v5414
        %5682 = vmatprep.subr.bf16.mxu0 %v5413
        %5683 = vmatpush2.bf16.msra.mxu0 %v5412
        %5684 = vmatprep.mubr.bf16.mxu0 %v4993
        %5685 = vmatmul.mubr.bf16.gmra.mxu0 %v4992
        %v5686 = vpop.f32.mrf.mxu0
        %v5687 = vadd.f32 %v5005, %v5686
        %v5688 = vpop.f32.mrf.mxu0
        %v5689 = vadd.f32 %v5009, %v5688
        %v5690 = vpop.f32.mrf.mxu0
        %v5691 = vadd.f32 %v5005, %v5690
        %v5692 = vpop.f32.mrf.mxu0
        %v5693 = vadd.f32 %v5009, %v5692
        %5694 = vdwg.mxu0
        %5695 = vmatprep.subr.bf16.mxu0 %v5443
        %5696 = vmatpush1.bf16.msra.mxu0 %v5442
        %5697 = vmatprep.subr.bf16.mxu0 %v5441
        %5698 = vmatpush1.bf16.msra.mxu0 %v5440
        %5699 = vmatprep.subr.bf16.mxu0 %v5439
        %5700 = vmatpush1.bf16.msra.mxu0 %v5438
        %5701 = vmatprep.subr.bf16.mxu0 %v5437
        %5702 = vmatpush1.bf16.msra.mxu0 %v5436
        %5703 = vmatprep.subr.bf16.mxu0 %v5435
        %5704 = vmatpush1.bf16.msra.mxu0 %v5434
        %5705 = vmatprep.subr.bf16.mxu0 %v5433
        %5706 = vmatpush1.bf16.msra.mxu0 %v5432
        %5707 = vmatprep.subr.bf16.mxu0 %v5431
        %5708 = vmatpush1.bf16.msra.mxu0 %v5430
        %5709 = vmatprep.subr.bf16.mxu0 %v5429
        %5710 = vmatpush1.bf16.msra.mxu0 %v5428
        %5711 = vmatprep.subr.bf16.mxu0 %v5459
        %5712 = vmatpush2.bf16.msra.mxu0 %v5458
        %5713 = vmatprep.subr.bf16.mxu0 %v5457
        %5714 = vmatpush2.bf16.msra.mxu0 %v5456
        %5715 = vmatprep.subr.bf16.mxu0 %v5455
        %5716 = vmatpush2.bf16.msra.mxu0 %v5454
        %5717 = vmatprep.subr.bf16.mxu0 %v5453
        %5718 = vmatpush2.bf16.msra.mxu0 %v5452
        %5719 = vmatprep.subr.bf16.mxu0 %v5451
        %5720 = vmatpush2.bf16.msra.mxu0 %v5450
        %5721 = vmatprep.subr.bf16.mxu0 %v5449
        %5722 = vmatpush2.bf16.msra.mxu0 %v5448
        %5723 = vmatprep.subr.bf16.mxu0 %v5447
        %5724 = vmatpush2.bf16.msra.mxu0 %v5446
        %5725 = vmatprep.subr.bf16.mxu0 %v5445
        %5726 = vmatpush2.bf16.msra.mxu0 %v5444
        %5727 = vmatprep.mubr.bf16.mxu0 %v4995
        %5728 = vmatmul.mubr.bf16.gmra.mxu0 %v4994
        %v5729 = vpop.f32.mrf.mxu0
        %v5730 = vadd.f32 %v5687, %v5729
        %v5731 = vpop.f32.mrf.mxu0
        %v5732 = vadd.f32 %v5689, %v5731
        %v5733 = vpop.f32.mrf.mxu0
        %v5734 = vadd.f32 %v5691, %v5733
        %v5735 = vpop.f32.mrf.mxu0
        %v5736 = vadd.f32 %v5693, %v5735
        %5737 = vdwg.mxu0
        %5738 = vmatprep.subr.bf16.mxu0 %v5475
        %5739 = vmatpush1.bf16.msra.mxu0 %v5474
        %5740 = vmatprep.subr.bf16.mxu0 %v5473
        %5741 = vmatpush1.bf16.msra.mxu0 %v5472
        %5742 = vmatprep.subr.bf16.mxu0 %v5471
        %5743 = vmatpush1.bf16.msra.mxu0 %v5470
        %5744 = vmatprep.subr.bf16.mxu0 %v5469
        %5745 = vmatpush1.bf16.msra.mxu0 %v5468
        %5746 = vmatprep.subr.bf16.mxu0 %v5467
        %5747 = vmatpush1.bf16.msra.mxu0 %v5466
        %5748 = vmatprep.subr.bf16.mxu0 %v5465
        %5749 = vmatpush1.bf16.msra.mxu0 %v5464
        %5750 = vmatprep.subr.bf16.mxu0 %v5463
        %5751 = vmatpush1.bf16.msra.mxu0 %v5462
        %5752 = vmatprep.subr.bf16.mxu0 %v5461
        %5753 = vmatpush1.bf16.msra.mxu0 %v5460
        %5754 = vmatprep.subr.bf16.mxu0 %v5491
        %5755 = vmatpush2.bf16.msra.mxu0 %v5490
        %5756 = vmatprep.subr.bf16.mxu0 %v5489
        %5757 = vmatpush2.bf16.msra.mxu0 %v5488
        %5758 = vmatprep.subr.bf16.mxu0 %v5487
        %5759 = vmatpush2.bf16.msra.mxu0 %v5486
        %5760 = vmatprep.subr.bf16.mxu0 %v5485
        %5761 = vmatpush2.bf16.msra.mxu0 %v5484
        %5762 = vmatprep.subr.bf16.mxu0 %v5483
        %5763 = vmatpush2.bf16.msra.mxu0 %v5482
        %5764 = vmatprep.subr.bf16.mxu0 %v5481
        %5765 = vmatpush2.bf16.msra.mxu0 %v5480
        %5766 = vmatprep.subr.bf16.mxu0 %v5479
        %5767 = vmatpush2.bf16.msra.mxu0 %v5478
        %5768 = vmatprep.subr.bf16.mxu0 %v5477
        %5769 = vmatpush2.bf16.msra.mxu0 %v5476
        %5770 = vmatprep.mubr.bf16.mxu0 %v4997
        %5771 = vmatmul.mubr.bf16.gmra.mxu0 %v4996
        %v5772 = vpop.f32.mrf.mxu0
        %v5773 = vadd.f32 %v5730, %v5772
        %v5774 = vpop.f32.mrf.mxu0
        %v5775 = vadd.f32 %v5732, %v5774
        %v5776 = vpop.f32.mrf.mxu0
        %v5777 = vadd.f32 %v5734, %v5776
        %v5778 = vpop.f32.mrf.mxu0
        %v5779 = vadd.f32 %v5736, %v5778
        %5780 = vdwg.mxu0
        %5781 = vmatprep.subr.bf16.mxu0 %v5507
        %5782 = vmatpush1.bf16.msra.mxu0 %v5506
        %5783 = vmatprep.subr.bf16.mxu0 %v5505
        %5784 = vmatpush1.bf16.msra.mxu0 %v5504
        %5785 = vmatprep.subr.bf16.mxu0 %v5503
        %5786 = vmatpush1.bf16.msra.mxu0 %v5502
        %5787 = vmatprep.subr.bf16.mxu0 %v5501
        %5788 = vmatpush1.bf16.msra.mxu0 %v5500
        %5789 = vmatprep.subr.bf16.mxu0 %v5499
        %5790 = vmatpush1.bf16.msra.mxu0 %v5498
        %5791 = vmatprep.subr.bf16.mxu0 %v5497
        %5792 = vmatpush1.bf16.msra.mxu0 %v5496
        %5793 = vmatprep.subr.bf16.mxu0 %v5495
        %5794 = vmatpush1.bf16.msra.mxu0 %v5494
        %5795 = vmatprep.subr.bf16.mxu0 %v5493
        %5796 = vmatpush1.bf16.msra.mxu0 %v5492
        %5797 = vmatprep.subr.bf16.mxu0 %v5523
        %5798 = vmatpush2.bf16.msra.mxu0 %v5522
        %5799 = vmatprep.subr.bf16.mxu0 %v5521
        %5800 = vmatpush2.bf16.msra.mxu0 %v5520
        %5801 = vmatprep.subr.bf16.mxu0 %v5519
        %5802 = vmatpush2.bf16.msra.mxu0 %v5518
        %5803 = vmatprep.subr.bf16.mxu0 %v5517
        %5804 = vmatpush2.bf16.msra.mxu0 %v5516
        %5805 = vmatprep.subr.bf16.mxu0 %v5515
        %5806 = vmatpush2.bf16.msra.mxu0 %v5514
        %5807 = vmatprep.subr.bf16.mxu0 %v5513
        %5808 = vmatpush2.bf16.msra.mxu0 %v5512
        %5809 = vmatprep.subr.bf16.mxu0 %v5511
        %5810 = vmatpush2.bf16.msra.mxu0 %v5510
        %5811 = vmatprep.subr.bf16.mxu0 %v5509
        %5812 = vmatpush2.bf16.msra.mxu0 %v5508
        %5813 = vmatprep.mubr.bf16.mxu0 %v4999
        %5814 = vmatmul.mubr.bf16.gmra.mxu0 %v4998
        %v5815 = vpop.f32.mrf.mxu0
        %v5816 = vadd.f32 %v5773, %v5815
        %v5817 = vpop.f32.mrf.mxu0
        %v5818 = vadd.f32 %v5775, %v5817
        %v5819 = vpop.f32.mrf.mxu0
        %v5820 = vadd.f32 %v5777, %v5819
        %v5821 = vpop.f32.mrf.mxu0
        %v5822 = vadd.f32 %v5779, %v5821
        %5823 = vdwg.mxu0
        %v5824 = vmul.f32 %v2404, %v5816
        %v5825 = vmul.f32 %v2406, %v5818
        %v5826 = vmul.f32 %v2408, %v5820
        %v5827 = vmul.f32 %v2410, %v5822
        %v5828 = vadd.f32 %v3688, %v5824
        %v5829 = vadd.f32 %v3689, %v5825
        %v5830 = vadd.f32 %v3690, %v5826
        %v5831 = vadd.f32 %v3691, %v5827
        %5833 = vset.pattern.permute.xlu0 0
        %5834 = vperm.xlu0 %5833, %v934
        %v5835 = vpop.permute.xlu0 %5834
        %5838 = vset.pattern.permute.xlu0 0
        %5839 = vperm.xlu0 %5838, %v935
        %v5840 = vpop.permute.xlu0 %5839
        %v5842 = vmul.f32 %v5828, %v5835
        %v5843 = vmul.f32 %v5829, %v5835
        %v5844 = vmul.f32 %v5830, %v5840
        %v5845 = vmul.f32 %v5831, %v5840
        %5846 = vst [vmem:[%s911] sm:$0xff] %v5842
        %5847 = vst [vmem:[%s911 + $0x8] sm:$0xff] %v5843
        %5848 = vst [vmem:[%s911 + $0x10] sm:$0xff] %v5844
        %5849 = vst [vmem:[%s911 + $0x18] sm:$0xff] %v5845
        %p5850 = scmp.lt.s32.totalorder %s47, 1
        %s5851 = scalar_select %p5850, %s47, 1
        %s5852 = smul.addr %s5851, 4
        %s5853 = smul.addr %s5852, 8
        %s5854 = scalar_lea.vmem %s14, %s5853
        // Predicated region
        $region121: #{_lambda_.4} parent=75 // pred_check
          %p5855 = pneg %p437
        $region122: #{_lambda_.4} parent=75 // pred_check_branch
          %5857 = sbr.rel (%p5855) target = $region124
        $region123: #{_lambda_.4} parent=75 // pred_region
          _
        $region124: #{_lambda_.4} parent=75 // pred_fallthru
          _
      $region76: #{_lambda_.4} parent=5 // pred_fallthru
        _
      %p5858 = scmp.le.s32.totalorder 2, %s38
      // Predicated region
      $region125: #{_lambda_.4} parent=5 // pred_check
        %p5859 = pneg %p5858
      $region126: #{_lambda_.4} parent=5 // pred_check_branch
        %5861 = sbr.rel (%p5859) target = $region128
      $region127: #{_lambda_.4} parent=5 // pred_region
        %s5862 = ssub.s32 %s38, 2
        // Predicated region
        $region129: #{_lambda_.4} parent=127 // pred_check
          %p5863 = pneg %p443
        $region130: #{_lambda_.4} parent=127 // pred_check_branch
          %5865 = sbr.rel (%p5863) target = $region132
        $region131: #{_lambda_.4} parent=127 // pred_region
          %p5866 = scmp.lt.s32.totalorder %s49, 1
          %s5867 = scalar_select %p5866, %s49, 1
          %s5868 = smul.addr %s5867, 4
          %s5869 = smul.addr %s5868, 8
          %s5870 = scalar_lea.vmem %s14, %s5869
        $region132: #{_lambda_.4} parent=127 // pred_fallthru
          _
      $region128: #{_lambda_.4} parent=5 // pred_fallthru
        _
    $region6: #{_lambda_.4} parent=1 // loop_footer
      %s42 = sadd.s32 1, %s38
    $region7: #{_lambda_.4} parent=1 // loop_footer_branch
      %37 = sbr.rel target = $region3
    $region8: #{_lambda_.4} parent=1 // loop_exit
      _
    %5871 = vsyncpa [#allocation3], 1
    %s5872 = scalar_lea.sflag [#allocation3], 1
    %5873 = vsyncpa %s5872, 1
    %5874 = vsyncpa [#allocation5], 1
    %s5875 = scalar_lea.sflag [#allocation5], 1
    %5876 = vsyncpa %s5875, 1
    %5877 = vsyncpa [#allocation8], 1
    %s5878 = scalar_lea.sflag [#allocation8], 1
    %5879 = vsyncpa %s5878, 1
    %5880 = vsyncpa [#allocation11], 1
    %s5881 = scalar_lea.sflag [#allocation11], 1
    %5882 = vsyncpa %s5881, 1
    %5883 = vsyncpa [#allocation14], 1
    %s5884 = scalar_lea.sflag [#allocation14], 1
    %5885 = vsyncpa %s5884, 1
    %5886 = vsyncpa [#allocation17], 1
    %s5887 = scalar_lea.sflag [#allocation17], 1
    %5888 = vsyncpa %s5887, 1

</llo_original>
